<compile_context>
chip_gen: v6e
topology: v6e:2x2x1
jax: 0.10.0
libtpu: 0.0.40
codegen_flags: <defaults>
</compile_context>

<pallas_src>
import functools
import math

import jax
import jax.numpy as jnp
import numpy as np
from jax.experimental import pallas as pl
from jax.experimental.pallas import tpu as pltpu


def _fast_sigmoid(x):
    # sigmoid(x) == 0.5 * (tanh(0.5 * x) + 1): a single EUP transcendental.
    return 0.5 * jnp.tanh(0.5 * x) + 0.5


def _lstm_recurrent_kernel(x_ref, u_ref, w_ref, b_ref, h0_ref, c0_ref,
                           seq_ref, h_out_ref, c_out_ref,
                           h_sc, c_sc, stage_sc,
                           *, unroll_threshold, inner_block):
    """One grid step = one (batch_block, time_chunk) tile of the recurrence.

    x_ref  : (Bb, T, I)      matmul dtype (bf16)   input tile (batch-major)
    u_ref  : (I, 4H)         matmul dtype          packed input weights  [i,f,o,c]
    w_ref  : (H, 4H)         matmul dtype          packed recurrent weights
    b_ref  : (1, 4H)         f32                   packed bias
    h0/c0  : (Bb, H)         f32                   initial state
    seq_ref: (Bb, T, H)      f32                   hidden_seq tile
    h_out/c_out: (Bb, H)     f32                   final state (last chunk only)
    h_sc/c_sc  : (Bb, H)     f32  VMEM carry across time chunks
    stage_sc   : (Bb, inner_block, H) f32  staging buffer for aligned seq stores
    """
    t = pl.program_id(1)

    @pl.when(t == 0)
    def _():
        h_sc[...] = h0_ref[...]
        c_sc[...] = c0_ref[...]

    bb, t_chunk, idim = x_ref.shape
    hdim = w_ref.shape[0]
    gdim = w_ref.shape[1]
    b = b_ref[...].astype(jnp.float32)                      # (1, 4H), tiny

    sublane = {2: 16, 1: 32}.get(x_ref.dtype.itemsize, 8)
    fuse_chunk = (t_chunk % sublane == 0)

    if fuse_chunk:
        # Whole-chunk input projection: one big (Bb*T, I) @ (I, 4H) MXU matmul
        # (reshape is a no-op relayout because t_chunk is sublane-aligned).
        x_flat = x_ref[...].astype(u_ref.dtype).reshape(bb * t_chunk, idim)
        xu = jnp.dot(x_flat, u_ref[...], preferred_element_type=jnp.float32)
        xu = xu.reshape(bb, t_chunk, gdim) + b

    def step(xu_t, h, c):
        gates = xu_t + jnp.dot(h.astype(w_ref.dtype), w_ref[...],
                               preferred_element_type=jnp.float32)
        i_t = _fast_sigmoid(gates[:, 0 * hdim:1 * hdim])
        f_t = _fast_sigmoid(gates[:, 1 * hdim:2 * hdim])
        o_t = _fast_sigmoid(gates[:, 2 * hdim:3 * hdim])
        c_tilde = jnp.tanh(gates[:, 3 * hdim:4 * hdim])
        c = f_t * c + i_t * c_tilde
        h = o_t * jnp.tanh(c)
        return h, c

    h = h_sc[...]
    c = c_sc[...]

    if t_chunk <= unroll_threshold:
        # Fully (statically) unrolled inner time loop; all slices are static views.
        for j in range(t_chunk):
            if fuse_chunk:
                xu_t = xu[:, j, :]
            else:
                xu_t = jnp.dot(x_ref[:, j, :].astype(u_ref.dtype), u_ref[...],
                               preferred_element_type=jnp.float32) + b
            h, c = step(xu_t, h, c)
            seq_ref[:, j, :] = h.astype(seq_ref.dtype)
    else:
        # Longer chunks: fori_loop over sublane-aligned blocks of `inner_block`
        # timesteps, statically unrolled inside (bounds code size / live ranges,
        # keeps the hidden_seq stores sublane- and lane-aligned).
        assert fuse_chunk and t_chunk % inner_block == 0

        def body(blk, carry):
            h, c = carry
            base = pl.multiple_of(blk * inner_block, inner_block)
            xu_blk = jax.lax.dynamic_slice_in_dim(xu, base, inner_block, axis=1)
            for jj in range(inner_block):
                h, c = step(xu_blk[:, jj, :], h, c)
                stage_sc[:, jj, :] = h
            seq_ref[:, pl.ds(base, inner_block), :] = (
                stage_sc[...].astype(seq_ref.dtype))
            return h, c

        h, c = jax.lax.fori_loop(0, t_chunk // inner_block, body, (h, c))

    h_sc[...] = h
    c_sc[...] = c

    # Final-state outputs have a t-invariant block index (VMEM-resident across
    # the time axis): only write them on the last chunk.
    @pl.when(t == pl.num_programs(1) - 1)
    def _():
        h_out_ref[...] = h.astype(h_out_ref.dtype)
        c_out_ref[...] = c.astype(c_out_ref.dtype)


# ----------------------------------------------------------------------------
# Wrapper-side helpers: padding, tiling, VMEM budgeting.
# ----------------------------------------------------------------------------

def _round_up(n, m):
    return ((n + m - 1) // m) * m


def _pad_packed_gates(arr, h, h_pad, row_pad=0):
    """Pad a gate-packed [..., 4h] array to [..., 4*h_pad] with zeros, keeping the
    [i, f, o, c] gate boundaries lane-aligned; optionally zero-pad leading rows."""
    if h_pad != h:
        parts = []
        for g in range(4):
            p = arr[..., g * h:(g + 1) * h]
            pad_width = [(0, 0)] * (arr.ndim - 1) + [(0, h_pad - h)]
            parts.append(jnp.pad(p, pad_width))
        arr = jnp.concatenate(parts, axis=-1)
    if row_pad:
        pad_width = [(0, row_pad)] + [(0, 0)] * (arr.ndim - 1)
        arr = jnp.pad(arr, pad_width)
    return arr


def _tile_vmem_bytes(bb, tc, input_size, h_pad, in_itemsize, inner_block=8):
    """Conservative per-grid-step VMEM estimate (double-buffered streams + temps)."""
    g = 4 * h_pad
    x_tile = bb * tc * input_size * in_itemsize
    seq_tile = bb * tc * h_pad * 4
    weights = (h_pad * g + input_size * g) * in_itemsize + g * 4
    states = 4 * bb * h_pad * 4                       # h0, c0, h_out, c_out
    xu_tmp = bb * tc * g * 4                          # in-kernel projection value
    scratch = (2 * bb * h_pad + bb * inner_block * h_pad) * 4
    return 2 * (x_tile + seq_tile + weights + states) + xu_tmp + scratch


def _pick_time_chunk(seq_len, batch_block, input_size, h_pad, in_itemsize,
                     budget_bytes, sublane, unroll_threshold, inner_block,
                     max_chunk=256):
    """Largest legal time chunk whose VMEM estimate fits the budget."""
    def legal(cand):
        if seq_len % cand:
            return False
        if cand % sublane != 0 and cand != seq_len:
            return False
        if cand > unroll_threshold and (cand % sublane or cand % inner_block):
            return False
        return True

    best = None
    for cand in range(1, min(seq_len, max_chunk) + 1):
        if legal(cand) and _tile_vmem_bytes(batch_block, cand, input_size, h_pad,
                                            in_itemsize, inner_block) <= budget_bytes:
            best = cand
    if best is None:
        for cand in range(1, seq_len + 1):
            if legal(cand):
                best = cand
                break
    return best if best is not None else seq_len


# ----------------------------------------------------------------------------
# Public forward.
# ----------------------------------------------------------------------------

def peephole_lstm_forward(x, params, init_states=None, *,
                          time_chunk=None, batch_block=None,
                          matmul_dtype=jnp.bfloat16,
                          vmem_budget_bytes=40 * 1024 * 1024,
                          unroll_threshold=16, inner_block=8,
                          out_dtype=jnp.float32):
    """x: (batch, seq, input_size) f32. Returns (hidden_seq, (h_t, c_t))."""
    B, S, I = x.shape
    W_all, U_all, b_all = params["W_all"], params["U_all"], params["b_all"]
    H = W_all.shape[0]
    assert W_all.shape == (H, 4 * H)
    assert U_all.shape == (I, 4 * H)
    assert b_all.shape == (1, 4 * H)

    # --- hardware-tile-aligned padded shapes (lane-dense gates & hidden writes) --
    H_pad = _round_up(H, 128)        # lane alignment for gate slices / seq stores
    B_pad = _round_up(B, 8)          # sublane alignment for the batch axis

    W_p = _pad_packed_gates(W_all, H, H_pad, row_pad=H_pad - H).astype(matmul_dtype)
    U_p = _pad_packed_gates(U_all, H, H_pad).astype(matmul_dtype)
    b_p = _pad_packed_gates(b_all, H, H_pad).astype(jnp.float32)

    x_p = x.astype(matmul_dtype)
    if B_pad != B:
        x_p = jnp.pad(x_p, ((0, B_pad - B), (0, 0), (0, 0)))

    if init_states is None:
        h0 = jnp.zeros((B_pad, H_pad), jnp.float32)
        c0 = jnp.zeros((B_pad, H_pad), jnp.float32)
    else:
        h0, c0 = init_states
        h0 = jnp.pad(h0.astype(jnp.float32), ((0, B_pad - B), (0, H_pad - H)))
        c0 = jnp.pad(c0.astype(jnp.float32), ((0, B_pad - B), (0, H_pad - H)))

    # --- tiling ------------------------------------------------------------------
    if batch_block is None:
        # >=2 batch blocks when batch is big enough so the leading "parallel" grid
        # axis can shard across both v7x TensorCores; single block otherwise.
        if B_pad >= 16:
            batch_block = max(8, (B_pad // 2) // 8 * 8)
            while B_pad % batch_block:
                batch_block -= 8
        else:
            batch_block = B_pad
    assert B_pad % batch_block == 0 and batch_block % 8 == 0

    itemsize = jnp.dtype(matmul_dtype).itemsize
    sub_x = {2: 16, 1: 32}.get(itemsize, 8)       # sublane packing of the x tile

    if time_chunk is None:
        time_chunk = _pick_time_chunk(S, batch_block, I, H_pad, itemsize,
                                      vmem_budget_bytes, sub_x,
                                      unroll_threshold, inner_block)
    assert S % time_chunk == 0, "time_chunk must divide seq_len"
    assert time_chunk % sub_x == 0 or time_chunk == S, (
        "time_chunk must be sublane-aligned for the x tile (or equal seq_len)")
    if time_chunk > unroll_threshold:
        assert (inner_block % 8 == 0 and time_chunk % inner_block == 0
                and time_chunk % sub_x == 0), (
            "fori-loop path needs a sublane-aligned time_chunk divisible by "
            "inner_block (or raise unroll_threshold)")

    nb = B_pad // batch_block
    nt = S // time_chunk

    est = _tile_vmem_bytes(batch_block, time_chunk, I, H_pad, itemsize, inner_block)
    vmem_limit = int(min(64 * 1024 * 1024, max(32 * 1024 * 1024, 2 * est)))

    kernel = functools.partial(_lstm_recurrent_kernel,
                               unroll_threshold=unroll_threshold,
                               inner_block=inner_block)

    grid_spec = pltpu.PrefetchScalarGridSpec(
        num_scalar_prefetch=0,
        grid=(nb, nt),
        in_specs=[
            # x tile, strided along the (batch-major) time axis.
            pl.BlockSpec((batch_block, time_chunk, I), lambda b, t: (b, t, 0)),
            # Grid-invariant packed weights / bias.
            pl.BlockSpec((I, 4 * H_pad), lambda b, t: (0, 0)),
            pl.BlockSpec((H_pad, 4 * H_pad), lambda b, t: (0, 0)),
            pl.BlockSpec((1, 4 * H_pad), lambda b, t: (0, 0)),
            # Initial state (t-invariant, VMEM-resident per batch block).
            pl.BlockSpec((batch_block, H_pad), lambda b, t: (b, 0)),
            pl.BlockSpec((batch_block, H_pad), lambda b, t: (b, 0)),
        ],
        out_specs=[
            pl.BlockSpec((batch_block, time_chunk, H_pad), lambda b, t: (b, t, 0)),
            pl.BlockSpec((batch_block, H_pad), lambda b, t: (b, 0)),
            pl.BlockSpec((batch_block, H_pad), lambda b, t: (b, 0)),
        ],
        scratch_shapes=[
            pltpu.VMEM((batch_block, H_pad), jnp.float32),                 # h carry
            pltpu.VMEM((batch_block, H_pad), jnp.float32),                 # c carry
            pltpu.VMEM((batch_block, inner_block, H_pad), jnp.float32),    # staging
        ],
    )

    cost = pl.CostEstimate(
        flops=2 * B_pad * S * (I + H_pad) * 4 * H_pad,
        transcendentals=5 * B_pad * S * H_pad,                 # 3 tanh-sigmoid + 2 tanh
        bytes_accessed=(x_p.size * itemsize
                        + (W_p.size + U_p.size) * itemsize + b_p.size * 4
                        + B_pad * S * H_pad * 4 + 4 * B_pad * H_pad * 4),
    )

    hidden_seq, h_t, c_t = pl.pallas_call(
        kernel,
        out_shape=(
            jax.ShapeDtypeStruct((B_pad, S, H_pad), out_dtype),
            jax.ShapeDtypeStruct((B_pad, H_pad), jnp.float32),
            jax.ShapeDtypeStruct((B_pad, H_pad), jnp.float32),
        ),
        grid_spec=grid_spec,
        compiler_params=pltpu.CompilerParams(
            dimension_semantics=("parallel", "arbitrary"),
            vmem_limit_bytes=vmem_limit),
        cost_estimate=cost,
    )(x_p, U_p, W_p, b_p, h0, c0)

    # Strip the hardware-alignment padding.
    return hidden_seq[:B, :, :H], (h_t[:B, :H], c_t[:B, :H])


# ----------------------------------------------------------------------------
# Parameter init (mirrors PeepholeLSTM._reset_parameters) and pure-JAX reference.
# ----------------------------------------------------------------------------

def init_params(key, input_size, hidden_size, critical_init=True):
    ks = jax.random.split(key, 8)
    if critical_init:
        std = math.sqrt(1e-05 / hidden_size)
        W_i, W_f, W_o, W_c = [
            jax.random.normal(k, (hidden_size, hidden_size), jnp.float32) * std
            for k in ks[:4]]
        U_i, U_f, U_o, U_c = [
            jax.random.normal(k, (hidden_size, input_size), jnp.float32) * std
            for k in ks[4:]]
        b_f_val = 5.0
    else:
        lim_w = math.sqrt(6.0 / (hidden_size + hidden_size))
        lim_u = math.sqrt(6.0 / (hidden_size + input_size))
        W_i, W_f, W_o, W_c = [
            jax.random.uniform(k, (hidden_size, hidden_size), jnp.float32,
                               -lim_w, lim_w) for k in ks[:4]]
        U_i, U_f, U_o, U_c = [
            jax.random.uniform(k, (hidden_size, input_size), jnp.float32,
                               -lim_u, lim_u) for k in ks[4:]]
        b_f_val = 1.0
    b_i = jnp.zeros((hidden_size,), jnp.float32)
    b_f = jnp.full((hidden_size,), b_f_val, jnp.float32)
    b_o = jnp.zeros((hidden_size,), jnp.float32)
    b_c = jnp.zeros((hidden_size,), jnp.float32)

    # PyTorch computes h @ W.T and x @ U.T; store W.T / U.T directly and pack the
    # four gates [i, f, o, c] along the last axis.
    W_all = jnp.concatenate([W_i.T, W_f.T, W_o.T, W_c.T], axis=1)   # (H, 4H)
    U_all = jnp.concatenate([U_i.T, U_f.T, U_o.T, U_c.T], axis=1)   # (I, 4H)
    b_all = jnp.concatenate([b_i, b_f, b_o, b_c])[None, :]          # (1, 4H)
    return {"W_all": W_all, "U_all": U_all, "b_all": b_all}


def reference_forward(x, params, matmul_dtype=jnp.float32, init_states=None):
    """Pure-JAX step-by-step reference. matmul_dtype controls MXU input precision."""
    B, S, I = x.shape
    H = params["W_all"].shape[0]
    W = params["W_all"].astype(matmul_dtype)
    U = params["U_all"].astype(matmul_dtype)
    b = params["b_all"].astype(jnp.float32)
    if init_states is None:
        h = jnp.zeros((B, H), jnp.float32)
        c = jnp.zeros((B, H), jnp.float32)
    else:
        h, c = init_states
    outs = []
    for t in range(S):
        x_t = x[:, t, :].astype(matmul_dtype)
        gates = (jnp.dot(h.astype(matmul_dtype), W, preferred_element_type=jnp.float32)
                 + jnp.dot(x_t, U, preferred_element_type=jnp.float32) + b)
        i_t = jax.nn.sigmoid(gates[:, 0 * H:1 * H])
        f_t = jax.nn.sigmoid(gates[:, 1 * H:2 * H])
        o_t = jax.nn.sigmoid(gates[:, 2 * H:3 * H])
        c_tilde = jnp.tanh(gates[:, 3 * H:4 * H])
        c = f_t * c + i_t * c_tilde
        h = o_t * jnp.tanh(c)
        outs.append(h)
    return jnp.stack(outs, axis=1), (h, c)


if __name__ == "__main__":
    batch, input_size, hidden_size = 2, 16, 32
    key = jax.random.PRNGKey(0)
    k_param, k_x1, k_x2 = jax.random.split(key, 3)
    params = init_params(k_param, input_size, hidden_size, critical_init=True)

    # Config A: default auto tiling -> single time chunk, fully unrolled inner loop.
    seq_len_a = 16
    x_a = jax.random.normal(k_x1, (batch, seq_len_a, input_size), jnp.float32)
    fwd_a = jax.jit(peephole_lstm_forward)
    seq_a, (h_a, c_a) = fwd_a(x_a, params)
    jax.block_until_ready((seq_a, h_a, c_a))

    # Config B: two time chunks (cross-chunk h/c carry in scratch) + the
    # fori_loop / aligned-block-store inner path.
    seq_len_b = 32
    x_b = jax.random.normal(k_x2, (batch, seq_len_b, input_size), jnp.float32)
    fwd_b = jax.jit(functools.partial(peephole_lstm_forward, time_chunk=16,
                                      unroll_threshold=8, inner_block=8))
    seq_b, (h_b, c_b) = fwd_b(x_b, params)
    jax.block_until_ready((seq_b, h_b, c_b))

    for (x, seq_o, h_o, c_o) in ((x_a, seq_a, h_a, c_a), (x_b, seq_b, h_b, c_b)):
        # 1) Kernel-mechanics check: reference using identical bf16 MXU inputs.
        r_seq, (r_h, r_c) = reference_forward(x, params, matmul_dtype=jnp.bfloat16)
        np.testing.assert_allclose(np.asarray(seq_o), np.asarray(r_seq),
                                   rtol=1e-3, atol=1e-4)
        np.testing.assert_allclose(np.asarray(h_o), np.asarray(r_h),
                                   rtol=1e-3, atol=1e-4)
        np.testing.assert_allclose(np.asarray(c_o), np.asarray(r_c),
                                   rtol=1e-3, atol=1e-4)
        # 2) Semantic check vs. full-f32 PyTorch-equivalent math (loose tolerance
        #    accounts for bf16 MXU inputs).
        f_seq, (f_h, f_c) = reference_forward(x, params, matmul_dtype=jnp.float32)
        np.testing.assert_allclose(np.asarray(seq_o), np.asarray(f_seq),
                                   rtol=5e-2, atol=5e-3)
        np.testing.assert_allclose(np.asarray(h_o), np.asarray(f_h),
                                   rtol=5e-2, atol=5e-3)
        np.testing.assert_allclose(np.asarray(c_o), np.asarray(f_c),
                                   rtol=5e-2, atol=5e-3)

    assert seq_a.shape == (batch, seq_len_a, hidden_size)
    assert h_a.shape == (batch, hidden_size) and c_a.shape == (batch, hidden_size)
    assert seq_b.shape == (batch, seq_len_b, hidden_size)
    print("KERNEL_OK")
</pallas_src>

<mosaic_0001>
module attributes {stable_mosaic.version = 11 : i64} {
  func.func @_lstm_recurrent_kernel(%arg0: i32, %arg1: i32, %arg2: memref<8x16x16xbf16, #tpu.memory_space<vmem>>, %arg3: memref<16x512xbf16, #tpu.memory_space<vmem>>, %arg4: memref<128x512xbf16, #tpu.memory_space<vmem>>, %arg5: memref<1x512xf32, #tpu.memory_space<vmem>>, %arg6: memref<8x128xf32, #tpu.memory_space<vmem>>, %arg7: memref<8x128xf32, #tpu.memory_space<vmem>>, %arg8: memref<8x16x128xf32, #tpu.memory_space<vmem>>, %arg9: memref<8x128xf32, #tpu.memory_space<vmem>>, %arg10: memref<8x128xf32, #tpu.memory_space<vmem>>, %arg11: memref<8x128xf32, #tpu.memory_space<vmem>>, %arg12: memref<8x128xf32, #tpu.memory_space<vmem>>, %arg13: memref<8x8x128xf32, #tpu.memory_space<vmem>>) attributes {dimension_semantics = [#tpu.dimension_semantics<parallel>, #tpu.dimension_semantics<arbitrary>], iteration_bounds = array<i64: 1, 1>, scalar_prefetch = 0 : i64, scratch_operands = 3 : i64, tpu.core_type = #tpu.core_type<tc>, window_params = [{transform_indices = @transform_0, window_bounds = array<i64: 8, 16, 16>}, {pipeline_mode = #tpu.pipeline_mode<synchronous>, transform_indices = @transform_1, window_bounds = array<i64: 16, 512>}, {pipeline_mode = #tpu.pipeline_mode<synchronous>, transform_indices = @transform_2, window_bounds = array<i64: 128, 512>}, {pipeline_mode = #tpu.pipeline_mode<synchronous>, transform_indices = @transform_3, window_bounds = array<i64: 1, 512>}, {transform_indices = @transform_4, window_bounds = array<i64: 8, 128>}, {transform_indices = @transform_5, window_bounds = array<i64: 8, 128>}, {transform_indices = @transform_6, window_bounds = array<i64: 8, 16, 128>}, {transform_indices = @transform_7, window_bounds = array<i64: 8, 128>}, {transform_indices = @transform_8, window_bounds = array<i64: 8, 128>}]} {
    %c0_i32 = arith.constant 0 : i32
    %0 = arith.cmpi eq, %arg1, %c0_i32 : i32
    %1 = arith.extui %0 : i1 to i32
    %c0_i32_0 = arith.constant 0 : i32
    %2 = arith.cmpi ne, %1, %c0_i32_0 : i32
    scf.if %2 {
      %c0_242 = arith.constant 0 : index
      %c0_243 = arith.constant 0 : index
      %659 = vector.load %arg6[%c0_242, %c0_243] : memref<8x128xf32, #tpu.memory_space<vmem>>, vector<8x128xf32>
      %c0_244 = arith.constant 0 : index
      %c0_245 = arith.constant 0 : index
      %660 = vector.load %arg11[%c0_244, %c0_245] : memref<8x128xf32, #tpu.memory_space<vmem>>, vector<8x128xf32>
      tpu.vector_store %arg11[%c0_244, %c0_245], %659 {strides = array<i32>} : memref<8x128xf32, #tpu.memory_space<vmem>>, vector<8x128xf32>,
      %c0_246 = arith.constant 0 : index
      %c0_247 = arith.constant 0 : index
      %661 = vector.load %arg7[%c0_246, %c0_247] : memref<8x128xf32, #tpu.memory_space<vmem>>, vector<8x128xf32>
      %c0_248 = arith.constant 0 : index
      %c0_249 = arith.constant 0 : index
      %662 = vector.load %arg12[%c0_248, %c0_249] : memref<8x128xf32, #tpu.memory_space<vmem>>, vector<8x128xf32>
      tpu.vector_store %arg12[%c0_248, %c0_249], %661 {strides = array<i32>} : memref<8x128xf32, #tpu.memory_space<vmem>>, vector<8x128xf32>,
    } else {
    }
    %c0 = arith.constant 0 : index
    %c0_1 = arith.constant 0 : index
    %3 = vector.load %arg5[%c0, %c0_1] : memref<1x512xf32, #tpu.memory_space<vmem>>, vector<1x512xf32>
    %c0_2 = arith.constant 0 : index
    %c0_3 = arith.constant 0 : index
    %c0_4 = arith.constant 0 : index
    %4 = vector.load %arg2[%c0_2, %c0_3, %c0_4] : memref<8x16x16xbf16, #tpu.memory_space<vmem>>, vector<8x16x16xbf16>
    %5 = vector.shape_cast %4 : vector<8x16x16xbf16> to vector<128x16xbf16>
    %c0_5 = arith.constant 0 : index
    %c0_6 = arith.constant 0 : index
    %6 = vector.load %arg3[%c0_5, %c0_6] : memref<16x512xbf16, #tpu.memory_space<vmem>>, vector<16x512xbf16>
    %cst = arith.constant dense<0.000000e+00> : vector<128x512xf32>
    %7 = tpu.matmul %5, %6, %cst {dimension_numbers = #tpu.dot_dimension_numbers<[1], [0], [0], [1], [0, 0, 1, 1], [], []>} : vector<128x16xbf16>, vector<16x512xbf16>, vector<128x512xf32> -> vector<128x512xf32>
    %8 = vector.shape_cast %7 : vector<128x512xf32> to vector<8x16x512xf32>
    %9 = vector.shape_cast %3 : vector<1x512xf32> to vector<1x1x512xf32>
    %10 = vector.broadcast %9 : vector<1x1x512xf32> to vector<8x16x512xf32>
    %11 = arith.addf %8, %10 : vector<8x16x512xf32>
    %c0_7 = arith.constant 0 : index
    %c0_8 = arith.constant 0 : index
    %12 = vector.load %arg11[%c0_7, %c0_8] : memref<8x128xf32, #tpu.memory_space<vmem>>, vector<8x128xf32>
    %c0_9 = arith.constant 0 : index
    %c0_10 = arith.constant 0 : index
    %13 = vector.load %arg12[%c0_9, %c0_10] : memref<8x128xf32, #tpu.memory_space<vmem>>, vector<8x128xf32>
    %14 = vector.extract_strided_slice %11 {offsets = [0, 0, 0], sizes = [8, 1, 512], strides = [1, 1, 1]} : vector<8x16x512xf32> to vector<8x1x512xf32>
    %15 = vector.shape_cast %14 : vector<8x1x512xf32> to vector<8x512xf32>
    %16 = arith.truncf %12 : vector<8x128xf32> to vector<8x128xbf16>
    %c0_11 = arith.constant 0 : index
    %c0_12 = arith.constant 0 : index
    %17 = vector.load %arg4[%c0_11, %c0_12] : memref<128x512xbf16, #tpu.memory_space<vmem>>, vector<128x512xbf16>
    %cst_13 = arith.constant dense<0.000000e+00> : vector<8x512xf32>
    %18 = tpu.matmul %16, %17, %cst_13 {dimension_numbers = #tpu.dot_dimension_numbers<[1], [0], [0], [1], [0, 0, 1, 1], [], []>} : vector<8x128xbf16>, vector<128x512xbf16>, vector<8x512xf32> -> vector<8x512xf32>
    %19 = arith.addf %15, %18 : vector<8x512xf32>
    %20 = vector.extract_strided_slice %19 {offsets = [0, 0], sizes = [8, 128], strides = [1, 1]} : vector<8x512xf32> to vector<8x128xf32>
    %cst_14 = arith.constant 5.000000e-01 : f32
    %21 = vector.broadcast %cst_14 : f32 to vector<8x128xf32>
    %22 = arith.mulf %21, %20 : vector<8x128xf32>
    %23 = math.tanh %22 : vector<8x128xf32>
    %cst_15 = arith.constant 5.000000e-01 : f32
    %24 = vector.broadcast %cst_15 : f32 to vector<8x128xf32>
    %25 = arith.mulf %24, %23 : vector<8x128xf32>
    %cst_16 = arith.constant 5.000000e-01 : f32
    %26 = vector.broadcast %cst_16 : f32 to vector<8x128xf32>
    %27 = arith.addf %25, %26 : vector<8x128xf32>
    %28 = vector.extract_strided_slice %19 {offsets = [0, 128], sizes = [8, 128], strides = [1, 1]} : vector<8x512xf32> to vector<8x128xf32>
    %cst_17 = arith.constant 5.000000e-01 : f32
    %29 = vector.broadcast %cst_17 : f32 to vector<8x128xf32>
    %30 = arith.mulf %29, %28 : vector<8x128xf32>
    %31 = math.tanh %30 : vector<8x128xf32>
    %cst_18 = arith.constant 5.000000e-01 : f32
    %32 = vector.broadcast %cst_18 : f32 to vector<8x128xf32>
    %33 = arith.mulf %32, %31 : vector<8x128xf32>
    %cst_19 = arith.constant 5.000000e-01 : f32
    %34 = vector.broadcast %cst_19 : f32 to vector<8x128xf32>
    %35 = arith.addf %33, %34 : vector<8x128xf32>
    %36 = vector.extract_strided_slice %19 {offsets = [0, 256], sizes = [8, 128], strides = [1, 1]} : vector<8x512xf32> to vector<8x128xf32>
    %cst_20 = arith.constant 5.000000e-01 : f32
    %37 = vector.broadcast %cst_20 : f32 to vector<8x128xf32>
    %38 = arith.mulf %37, %36 : vector<8x128xf32>
    %39 = math.tanh %38 : vector<8x128xf32>
    %cst_21 = arith.constant 5.000000e-01 : f32
    %40 = vector.broadcast %cst_21 : f32 to vector<8x128xf32>
    %41 = arith.mulf %40, %39 : vector<8x128xf32>
    %cst_22 = arith.constant 5.000000e-01 : f32
    %42 = vector.broadcast %cst_22 : f32 to vector<8x128xf32>
    %43 = arith.addf %41, %42 : vector<8x128xf32>
    %44 = vector.extract_strided_slice %19 {offsets = [0, 384], sizes = [8, 128], strides = [1, 1]} : vector<8x512xf32> to vector<8x128xf32>
    %45 = math.tanh %44 : vector<8x128xf32>
    %46 = arith.mulf %35, %13 : vector<8x128xf32>
    %47 = arith.mulf %27, %45 : vector<8x128xf32>
    %48 = arith.addf %46, %47 : vector<8x128xf32>
    %49 = math.tanh %48 : vector<8x128xf32>
    %50 = arith.mulf %43, %49 : vector<8x128xf32>
    %c0_23 = arith.constant 0 : index
    %c0_24 = arith.constant 0 : index
    %c0_25 = arith.constant 0 : index
    %51 = vector.load %arg8[%c0_23, %c0_24, %c0_25] : memref<8x16x128xf32, #tpu.memory_space<vmem>>, vector<8x1x128xf32>
    %52 = vector.shape_cast %51 : vector<8x1x128xf32> to vector<8x128xf32>
    %53 = vector.shape_cast %50 : vector<8x128xf32> to vector<8x1x128xf32>
    tpu.vector_store %arg8[%c0_23, %c0_24, %c0_25], %53 {strides = array<i32>} : memref<8x16x128xf32, #tpu.memory_space<vmem>>, vector<8x1x128xf32>,
    %54 = vector.extract_strided_slice %11 {offsets = [0, 1, 0], sizes = [8, 1, 512], strides = [1, 1, 1]} : vector<8x16x512xf32> to vector<8x1x512xf32>
    %55 = vector.shape_cast %54 : vector<8x1x512xf32> to vector<8x512xf32>
    %56 = arith.truncf %50 : vector<8x128xf32> to vector<8x128xbf16>
    %c0_26 = arith.constant 0 : index
    %c0_27 = arith.constant 0 : index
    %57 = vector.load %arg4[%c0_26, %c0_27] : memref<128x512xbf16, #tpu.memory_space<vmem>>, vector<128x512xbf16>
    %cst_28 = arith.constant dense<0.000000e+00> : vector<8x512xf32>
    %58 = tpu.matmul %56, %57, %cst_28 {dimension_numbers = #tpu.dot_dimension_numbers<[1], [0], [0], [1], [0, 0, 1, 1], [], []>} : vector<8x128xbf16>, vector<128x512xbf16>, vector<8x512xf32> -> vector<8x512xf32>
    %59 = arith.addf %55, %58 : vector<8x512xf32>
    %60 = vector.extract_strided_slice %59 {offsets = [0, 0], sizes = [8, 128], strides = [1, 1]} : vector<8x512xf32> to vector<8x128xf32>
    %cst_29 = arith.constant 5.000000e-01 : f32
    %61 = vector.broadcast %cst_29 : f32 to vector<8x128xf32>
    %62 = arith.mulf %61, %60 : vector<8x128xf32>
    %63 = math.tanh %62 : vector<8x128xf32>
    %cst_30 = arith.constant 5.000000e-01 : f32
    %64 = vector.broadcast %cst_30 : f32 to vector<8x128xf32>
    %65 = arith.mulf %64, %63 : vector<8x128xf32>
    %cst_31 = arith.constant 5.000000e-01 : f32
    %66 = vector.broadcast %cst_31 : f32 to vector<8x128xf32>
    %67 = arith.addf %65, %66 : vector<8x128xf32>
    %68 = vector.extract_strided_slice %59 {offsets = [0, 128], sizes = [8, 128], strides = [1, 1]} : vector<8x512xf32> to vector<8x128xf32>
    %cst_32 = arith.constant 5.000000e-01 : f32
    %69 = vector.broadcast %cst_32 : f32 to vector<8x128xf32>
    %70 = arith.mulf %69, %68 : vector<8x128xf32>
    %71 = math.tanh %70 : vector<8x128xf32>
    %cst_33 = arith.constant 5.000000e-01 : f32
    %72 = vector.broadcast %cst_33 : f32 to vector<8x128xf32>
    %73 = arith.mulf %72, %71 : vector<8x128xf32>
    %cst_34 = arith.constant 5.000000e-01 : f32
    %74 = vector.broadcast %cst_34 : f32 to vector<8x128xf32>
    %75 = arith.addf %73, %74 : vector<8x128xf32>
    %76 = vector.extract_strided_slice %59 {offsets = [0, 256], sizes = [8, 128], strides = [1, 1]} : vector<8x512xf32> to vector<8x128xf32>
    %cst_35 = arith.constant 5.000000e-01 : f32
    %77 = vector.broadcast %cst_35 : f32 to vector<8x128xf32>
    %78 = arith.mulf %77, %76 : vector<8x128xf32>
    %79 = math.tanh %78 : vector<8x128xf32>
    %cst_36 = arith.constant 5.000000e-01 : f32
    %80 = vector.broadcast %cst_36 : f32 to vector<8x128xf32>
    %81 = arith.mulf %80, %79 : vector<8x128xf32>
    %cst_37 = arith.constant 5.000000e-01 : f32
    %82 = vector.broadcast %cst_37 : f32 to vector<8x128xf32>
    %83 = arith.addf %81, %82 : vector<8x128xf32>
    %84 = vector.extract_strided_slice %59 {offsets = [0, 384], sizes = [8, 128], strides = [1, 1]} : vector<8x512xf32> to vector<8x128xf32>
    %85 = math.tanh %84 : vector<8x128xf32>
    %86 = arith.mulf %75, %48 : vector<8x128xf32>
    %87 = arith.mulf %67, %85 : vector<8x128xf32>
    %88 = arith.addf %86, %87 : vector<8x128xf32>
    %89 = math.tanh %88 : vector<8x128xf32>
    %90 = arith.mulf %83, %89 : vector<8x128xf32>
    %c0_38 = arith.constant 0 : index
    %c1 = arith.constant 1 : index
    %c0_39 = arith.constant 0 : index
    %91 = vector.load %arg8[%c0_38, %c1, %c0_39] : memref<8x16x128xf32, #tpu.memory_space<vmem>>, vector<8x1x128xf32>
    %92 = vector.shape_cast %91 : vector<8x1x128xf32> to vector<8x128xf32>
    %93 = vector.shape_cast %90 : vector<8x128xf32> to vector<8x1x128xf32>
    tpu.vector_store %arg8[%c0_38, %c1, %c0_39], %93 {strides = array<i32>} : memref<8x16x128xf32, #tpu.memory_space<vmem>>, vector<8x1x128xf32>,
    %94 = vector.extract_strided_slice %11 {offsets = [0, 2, 0], sizes = [8, 1, 512], strides = [1, 1, 1]} : vector<8x16x512xf32> to vector<8x1x512xf32>
    %95 = vector.shape_cast %94 : vector<8x1x512xf32> to vector<8x512xf32>
    %96 = arith.truncf %90 : vector<8x128xf32> to vector<8x128xbf16>
    %c0_40 = arith.constant 0 : index
    %c0_41 = arith.constant 0 : index
    %97 = vector.load %arg4[%c0_40, %c0_41] : memref<128x512xbf16, #tpu.memory_space<vmem>>, vector<128x512xbf16>
    %cst_42 = arith.constant dense<0.000000e+00> : vector<8x512xf32>
    %98 = tpu.matmul %96, %97, %cst_42 {dimension_numbers = #tpu.dot_dimension_numbers<[1], [0], [0], [1], [0, 0, 1, 1], [], []>} : vector<8x128xbf16>, vector<128x512xbf16>, vector<8x512xf32> -> vector<8x512xf32>
    %99 = arith.addf %95, %98 : vector<8x512xf32>
    %100 = vector.extract_strided_slice %99 {offsets = [0, 0], sizes = [8, 128], strides = [1, 1]} : vector<8x512xf32> to vector<8x128xf32>
    %cst_43 = arith.constant 5.000000e-01 : f32
    %101 = vector.broadcast %cst_43 : f32 to vector<8x128xf32>
    %102 = arith.mulf %101, %100 : vector<8x128xf32>
    %103 = math.tanh %102 : vector<8x128xf32>
    %cst_44 = arith.constant 5.000000e-01 : f32
    %104 = vector.broadcast %cst_44 : f32 to vector<8x128xf32>
    %105 = arith.mulf %104, %103 : vector<8x128xf32>
    %cst_45 = arith.constant 5.000000e-01 : f32
    %106 = vector.broadcast %cst_45 : f32 to vector<8x128xf32>
    %107 = arith.addf %105, %106 : vector<8x128xf32>
    %108 = vector.extract_strided_slice %99 {offsets = [0, 128], sizes = [8, 128], strides = [1, 1]} : vector<8x512xf32> to vector<8x128xf32>
    %cst_46 = arith.constant 5.000000e-01 : f32
    %109 = vector.broadcast %cst_46 : f32 to vector<8x128xf32>
    %110 = arith.mulf %109, %108 : vector<8x128xf32>
    %111 = math.tanh %110 : vector<8x128xf32>
    %cst_47 = arith.constant 5.000000e-01 : f32
    %112 = vector.broadcast %cst_47 : f32 to vector<8x128xf32>
    %113 = arith.mulf %112, %111 : vector<8x128xf32>
    %cst_48 = arith.constant 5.000000e-01 : f32
    %114 = vector.broadcast %cst_48 : f32 to vector<8x128xf32>
    %115 = arith.addf %113, %114 : vector<8x128xf32>
    %116 = vector.extract_strided_slice %99 {offsets = [0, 256], sizes = [8, 128], strides = [1, 1]} : vector<8x512xf32> to vector<8x128xf32>
    %cst_49 = arith.constant 5.000000e-01 : f32
    %117 = vector.broadcast %cst_49 : f32 to vector<8x128xf32>
    %118 = arith.mulf %117, %116 : vector<8x128xf32>
    %119 = math.tanh %118 : vector<8x128xf32>
    %cst_50 = arith.constant 5.000000e-01 : f32
    %120 = vector.broadcast %cst_50 : f32 to vector<8x128xf32>
    %121 = arith.mulf %120, %119 : vector<8x128xf32>
    %cst_51 = arith.constant 5.000000e-01 : f32
    %122 = vector.broadcast %cst_51 : f32 to vector<8x128xf32>
    %123 = arith.addf %121, %122 : vector<8x128xf32>
    %124 = vector.extract_strided_slice %99 {offsets = [0, 384], sizes = [8, 128], strides = [1, 1]} : vector<8x512xf32> to vector<8x128xf32>
    %125 = math.tanh %124 : vector<8x128xf32>
    %126 = arith.mulf %115, %88 : vector<8x128xf32>
    %127 = arith.mulf %107, %125 : vector<8x128xf32>
    %128 = arith.addf %126, %127 : vector<8x128xf32>
    %129 = math.tanh %128 : vector<8x128xf32>
    %130 = arith.mulf %123, %129 : vector<8x128xf32>
    %c0_52 = arith.constant 0 : index
    %c2 = arith.constant 2 : index
    %c0_53 = arith.constant 0 : index
    %131 = vector.load %arg8[%c0_52, %c2, %c0_53] : memref<8x16x128xf32, #tpu.memory_space<vmem>>, vector<8x1x128xf32>
    %132 = vector.shape_cast %131 : vector<8x1x128xf32> to vector<8x128xf32>
    %133 = vector.shape_cast %130 : vector<8x128xf32> to vector<8x1x128xf32>
    tpu.vector_store %arg8[%c0_52, %c2, %c0_53], %133 {strides = array<i32>} : memref<8x16x128xf32, #tpu.memory_space<vmem>>, vector<8x1x128xf32>,
    %134 = vector.extract_strided_slice %11 {offsets = [0, 3, 0], sizes = [8, 1, 512], strides = [1, 1, 1]} : vector<8x16x512xf32> to vector<8x1x512xf32>
    %135 = vector.shape_cast %134 : vector<8x1x512xf32> to vector<8x512xf32>
    %136 = arith.truncf %130 : vector<8x128xf32> to vector<8x128xbf16>
    %c0_54 = arith.constant 0 : index
    %c0_55 = arith.constant 0 : index
    %137 = vector.load %arg4[%c0_54, %c0_55] : memref<128x512xbf16, #tpu.memory_space<vmem>>, vector<128x512xbf16>
    %cst_56 = arith.constant dense<0.000000e+00> : vector<8x512xf32>
    %138 = tpu.matmul %136, %137, %cst_56 {dimension_numbers = #tpu.dot_dimension_numbers<[1], [0], [0], [1], [0, 0, 1, 1], [], []>} : vector<8x128xbf16>, vector<128x512xbf16>, vector<8x512xf32> -> vector<8x512xf32>
    %139 = arith.addf %135, %138 : vector<8x512xf32>
    %140 = vector.extract_strided_slice %139 {offsets = [0, 0], sizes = [8, 128], strides = [1, 1]} : vector<8x512xf32> to vector<8x128xf32>
    %cst_57 = arith.constant 5.000000e-01 : f32
    %141 = vector.broadcast %cst_57 : f32 to vector<8x128xf32>
    %142 = arith.mulf %141, %140 : vector<8x128xf32>
    %143 = math.tanh %142 : vector<8x128xf32>
    %cst_58 = arith.constant 5.000000e-01 : f32
    %144 = vector.broadcast %cst_58 : f32 to vector<8x128xf32>
    %145 = arith.mulf %144, %143 : vector<8x128xf32>
    %cst_59 = arith.constant 5.000000e-01 : f32
    %146 = vector.broadcast %cst_59 : f32 to vector<8x128xf32>
    %147 = arith.addf %145, %146 : vector<8x128xf32>
    %148 = vector.extract_strided_slice %139 {offsets = [0, 128], sizes = [8, 128], strides = [1, 1]} : vector<8x512xf32> to vector<8x128xf32>
    %cst_60 = arith.constant 5.000000e-01 : f32
    %149 = vector.broadcast %cst_60 : f32 to vector<8x128xf32>
    %150 = arith.mulf %149, %148 : vector<8x128xf32>
    %151 = math.tanh %150 : vector<8x128xf32>
    %cst_61 = arith.constant 5.000000e-01 : f32
    %152 = vector.broadcast %cst_61 : f32 to vector<8x128xf32>
    %153 = arith.mulf %152, %151 : vector<8x128xf32>
    %cst_62 = arith.constant 5.000000e-01 : f32
    %154 = vector.broadcast %cst_62 : f32 to vector<8x128xf32>
    %155 = arith.addf %153, %154 : vector<8x128xf32>
    %156 = vector.extract_strided_slice %139 {offsets = [0, 256], sizes = [8, 128], strides = [1, 1]} : vector<8x512xf32> to vector<8x128xf32>
    %cst_63 = arith.constant 5.000000e-01 : f32
    %157 = vector.broadcast %cst_63 : f32 to vector<8x128xf32>
    %158 = arith.mulf %157, %156 : vector<8x128xf32>
    %159 = math.tanh %158 : vector<8x128xf32>
    %cst_64 = arith.constant 5.000000e-01 : f32
    %160 = vector.broadcast %cst_64 : f32 to vector<8x128xf32>
    %161 = arith.mulf %160, %159 : vector<8x128xf32>
    %cst_65 = arith.constant 5.000000e-01 : f32
    %162 = vector.broadcast %cst_65 : f32 to vector<8x128xf32>
    %163 = arith.addf %161, %162 : vector<8x128xf32>
    %164 = vector.extract_strided_slice %139 {offsets = [0, 384], sizes = [8, 128], strides = [1, 1]} : vector<8x512xf32> to vector<8x128xf32>
    %165 = math.tanh %164 : vector<8x128xf32>
    %166 = arith.mulf %155, %128 : vector<8x128xf32>
    %167 = arith.mulf %147, %165 : vector<8x128xf32>
    %168 = arith.addf %166, %167 : vector<8x128xf32>
    %169 = math.tanh %168 : vector<8x128xf32>
    %170 = arith.mulf %163, %169 : vector<8x128xf32>
    %c0_66 = arith.constant 0 : index
    %c3 = arith.constant 3 : index
    %c0_67 = arith.constant 0 : index
    %171 = vector.load %arg8[%c0_66, %c3, %c0_67] : memref<8x16x128xf32, #tpu.memory_space<vmem>>, vector<8x1x128xf32>
    %172 = vector.shape_cast %171 : vector<8x1x128xf32> to vector<8x128xf32>
    %173 = vector.shape_cast %170 : vector<8x128xf32> to vector<8x1x128xf32>
    tpu.vector_store %arg8[%c0_66, %c3, %c0_67], %173 {strides = array<i32>} : memref<8x16x128xf32, #tpu.memory_space<vmem>>, vector<8x1x128xf32>,
    %174 = vector.extract_strided_slice %11 {offsets = [0, 4, 0], sizes = [8, 1, 512], strides = [1, 1, 1]} : vector<8x16x512xf32> to vector<8x1x512xf32>
    %175 = vector.shape_cast %174 : vector<8x1x512xf32> to vector<8x512xf32>
    %176 = arith.truncf %170 : vector<8x128xf32> to vector<8x128xbf16>
    %c0_68 = arith.constant 0 : index
    %c0_69 = arith.constant 0 : index
    %177 = vector.load %arg4[%c0_68, %c0_69] : memref<128x512xbf16, #tpu.memory_space<vmem>>, vector<128x512xbf16>
    %cst_70 = arith.constant dense<0.000000e+00> : vector<8x512xf32>
    %178 = tpu.matmul %176, %177, %cst_70 {dimension_numbers = #tpu.dot_dimension_numbers<[1], [0], [0], [1], [0, 0, 1, 1], [], []>} : vector<8x128xbf16>, vector<128x512xbf16>, vector<8x512xf32> -> vector<8x512xf32>
    %179 = arith.addf %175, %178 : vector<8x512xf32>
    %180 = vector.extract_strided_slice %179 {offsets = [0, 0], sizes = [8, 128], strides = [1, 1]} : vector<8x512xf32> to vector<8x128xf32>
    %cst_71 = arith.constant 5.000000e-01 : f32
    %181 = vector.broadcast %cst_71 : f32 to vector<8x128xf32>
    %182 = arith.mulf %181, %180 : vector<8x128xf32>
    %183 = math.tanh %182 : vector<8x128xf32>
    %cst_72 = arith.constant 5.000000e-01 : f32
    %184 = vector.broadcast %cst_72 : f32 to vector<8x128xf32>
    %185 = arith.mulf %184, %183 : vector<8x128xf32>
    %cst_73 = arith.constant 5.000000e-01 : f32
    %186 = vector.broadcast %cst_73 : f32 to vector<8x128xf32>
    %187 = arith.addf %185, %186 : vector<8x128xf32>
    %188 = vector.extract_strided_slice %179 {offsets = [0, 128], sizes = [8, 128], strides = [1, 1]} : vector<8x512xf32> to vector<8x128xf32>
    %cst_74 = arith.constant 5.000000e-01 : f32
    %189 = vector.broadcast %cst_74 : f32 to vector<8x128xf32>
    %190 = arith.mulf %189, %188 : vector<8x128xf32>
    %191 = math.tanh %190 : vector<8x128xf32>
    %cst_75 = arith.constant 5.000000e-01 : f32
    %192 = vector.broadcast %cst_75 : f32 to vector<8x128xf32>
    %193 = arith.mulf %192, %191 : vector<8x128xf32>
    %cst_76 = arith.constant 5.000000e-01 : f32
    %194 = vector.broadcast %cst_76 : f32 to vector<8x128xf32>
    %195 = arith.addf %193, %194 : vector<8x128xf32>
    %196 = vector.extract_strided_slice %179 {offsets = [0, 256], sizes = [8, 128], strides = [1, 1]} : vector<8x512xf32> to vector<8x128xf32>
    %cst_77 = arith.constant 5.000000e-01 : f32
    %197 = vector.broadcast %cst_77 : f32 to vector<8x128xf32>
    %198 = arith.mulf %197, %196 : vector<8x128xf32>
    %199 = math.tanh %198 : vector<8x128xf32>
    %cst_78 = arith.constant 5.000000e-01 : f32
    %200 = vector.broadcast %cst_78 : f32 to vector<8x128xf32>
    %201 = arith.mulf %200, %199 : vector<8x128xf32>
    %cst_79 = arith.constant 5.000000e-01 : f32
    %202 = vector.broadcast %cst_79 : f32 to vector<8x128xf32>
    %203 = arith.addf %201, %202 : vector<8x128xf32>
    %204 = vector.extract_strided_slice %179 {offsets = [0, 384], sizes = [8, 128], strides = [1, 1]} : vector<8x512xf32> to vector<8x128xf32>
    %205 = math.tanh %204 : vector<8x128xf32>
    %206 = arith.mulf %195, %168 : vector<8x128xf32>
    %207 = arith.mulf %187, %205 : vector<8x128xf32>
    %208 = arith.addf %206, %207 : vector<8x128xf32>
    %209 = math.tanh %208 : vector<8x128xf32>
    %210 = arith.mulf %203, %209 : vector<8x128xf32>
    %c0_80 = arith.constant 0 : index
    %c4 = arith.constant 4 : index
    %c0_81 = arith.constant 0 : index
    %211 = vector.load %arg8[%c0_80, %c4, %c0_81] : memref<8x16x128xf32, #tpu.memory_space<vmem>>, vector<8x1x128xf32>
    %212 = vector.shape_cast %211 : vector<8x1x128xf32> to vector<8x128xf32>
    %213 = vector.shape_cast %210 : vector<8x128xf32> to vector<8x1x128xf32>
    tpu.vector_store %arg8[%c0_80, %c4, %c0_81], %213 {strides = array<i32>} : memref<8x16x128xf32, #tpu.memory_space<vmem>>, vector<8x1x128xf32>,
    %214 = vector.extract_strided_slice %11 {offsets = [0, 5, 0], sizes = [8, 1, 512], strides = [1, 1, 1]} : vector<8x16x512xf32> to vector<8x1x512xf32>
    %215 = vector.shape_cast %214 : vector<8x1x512xf32> to vector<8x512xf32>
    %216 = arith.truncf %210 : vector<8x128xf32> to vector<8x128xbf16>
    %c0_82 = arith.constant 0 : index
    %c0_83 = arith.constant 0 : index
    %217 = vector.load %arg4[%c0_82, %c0_83] : memref<128x512xbf16, #tpu.memory_space<vmem>>, vector<128x512xbf16>
    %cst_84 = arith.constant dense<0.000000e+00> : vector<8x512xf32>
    %218 = tpu.matmul %216, %217, %cst_84 {dimension_numbers = #tpu.dot_dimension_numbers<[1], [0], [0], [1], [0, 0, 1, 1], [], []>} : vector<8x128xbf16>, vector<128x512xbf16>, vector<8x512xf32> -> vector<8x512xf32>
    %219 = arith.addf %215, %218 : vector<8x512xf32>
    %220 = vector.extract_strided_slice %219 {offsets = [0, 0], sizes = [8, 128], strides = [1, 1]} : vector<8x512xf32> to vector<8x128xf32>
    %cst_85 = arith.constant 5.000000e-01 : f32
    %221 = vector.broadcast %cst_85 : f32 to vector<8x128xf32>
    %222 = arith.mulf %221, %220 : vector<8x128xf32>
    %223 = math.tanh %222 : vector<8x128xf32>
    %cst_86 = arith.constant 5.000000e-01 : f32
    %224 = vector.broadcast %cst_86 : f32 to vector<8x128xf32>
    %225 = arith.mulf %224, %223 : vector<8x128xf32>
    %cst_87 = arith.constant 5.000000e-01 : f32
    %226 = vector.broadcast %cst_87 : f32 to vector<8x128xf32>
    %227 = arith.addf %225, %226 : vector<8x128xf32>
    %228 = vector.extract_strided_slice %219 {offsets = [0, 128], sizes = [8, 128], strides = [1, 1]} : vector<8x512xf32> to vector<8x128xf32>
    %cst_88 = arith.constant 5.000000e-01 : f32
    %229 = vector.broadcast %cst_88 : f32 to vector<8x128xf32>
    %230 = arith.mulf %229, %228 : vector<8x128xf32>
    %231 = math.tanh %230 : vector<8x128xf32>
    %cst_89 = arith.constant 5.000000e-01 : f32
    %232 = vector.broadcast %cst_89 : f32 to vector<8x128xf32>
    %233 = arith.mulf %232, %231 : vector<8x128xf32>
    %cst_90 = arith.constant 5.000000e-01 : f32
    %234 = vector.broadcast %cst_90 : f32 to vector<8x128xf32>
    %235 = arith.addf %233, %234 : vector<8x128xf32>
    %236 = vector.extract_strided_slice %219 {offsets = [0, 256], sizes = [8, 128], strides = [1, 1]} : vector<8x512xf32> to vector<8x128xf32>
    %cst_91 = arith.constant 5.000000e-01 : f32
    %237 = vector.broadcast %cst_91 : f32 to vector<8x128xf32>
    %238 = arith.mulf %237, %236 : vector<8x128xf32>
    %239 = math.tanh %238 : vector<8x128xf32>
    %cst_92 = arith.constant 5.000000e-01 : f32
    %240 = vector.broadcast %cst_92 : f32 to vector<8x128xf32>
    %241 = arith.mulf %240, %239 : vector<8x128xf32>
    %cst_93 = arith.constant 5.000000e-01 : f32
    %242 = vector.broadcast %cst_93 : f32 to vector<8x128xf32>
    %243 = arith.addf %241, %242 : vector<8x128xf32>
    %244 = vector.extract_strided_slice %219 {offsets = [0, 384], sizes = [8, 128], strides = [1, 1]} : vector<8x512xf32> to vector<8x128xf32>
    %245 = math.tanh %244 : vector<8x128xf32>
    %246 = arith.mulf %235, %208 : vector<8x128xf32>
    %247 = arith.mulf %227, %245 : vector<8x128xf32>
    %248 = arith.addf %246, %247 : vector<8x128xf32>
    %249 = math.tanh %248 : vector<8x128xf32>
    %250 = arith.mulf %243, %249 : vector<8x128xf32>
    %c0_94 = arith.constant 0 : index
    %c5 = arith.constant 5 : index
    %c0_95 = arith.constant 0 : index
    %251 = vector.load %arg8[%c0_94, %c5, %c0_95] : memref<8x16x128xf32, #tpu.memory_space<vmem>>, vector<8x1x128xf32>
    %252 = vector.shape_cast %251 : vector<8x1x128xf32> to vector<8x128xf32>
    %253 = vector.shape_cast %250 : vector<8x128xf32> to vector<8x1x128xf32>
    tpu.vector_store %arg8[%c0_94, %c5, %c0_95], %253 {strides = array<i32>} : memref<8x16x128xf32, #tpu.memory_space<vmem>>, vector<8x1x128xf32>,
    %254 = vector.extract_strided_slice %11 {offsets = [0, 6, 0], sizes = [8, 1, 512], strides = [1, 1, 1]} : vector<8x16x512xf32> to vector<8x1x512xf32>
    %255 = vector.shape_cast %254 : vector<8x1x512xf32> to vector<8x512xf32>
    %256 = arith.truncf %250 : vector<8x128xf32> to vector<8x128xbf16>
    %c0_96 = arith.constant 0 : index
    %c0_97 = arith.constant 0 : index
    %257 = vector.load %arg4[%c0_96, %c0_97] : memref<128x512xbf16, #tpu.memory_space<vmem>>, vector<128x512xbf16>
    %cst_98 = arith.constant dense<0.000000e+00> : vector<8x512xf32>
    %258 = tpu.matmul %256, %257, %cst_98 {dimension_numbers = #tpu.dot_dimension_numbers<[1], [0], [0], [1], [0, 0, 1, 1], [], []>} : vector<8x128xbf16>, vector<128x512xbf16>, vector<8x512xf32> -> vector<8x512xf32>
    %259 = arith.addf %255, %258 : vector<8x512xf32>
    %260 = vector.extract_strided_slice %259 {offsets = [0, 0], sizes = [8, 128], strides = [1, 1]} : vector<8x512xf32> to vector<8x128xf32>
    %cst_99 = arith.constant 5.000000e-01 : f32
    %261 = vector.broadcast %cst_99 : f32 to vector<8x128xf32>
    %262 = arith.mulf %261, %260 : vector<8x128xf32>
    %263 = math.tanh %262 : vector<8x128xf32>
    %cst_100 = arith.constant 5.000000e-01 : f32
    %264 = vector.broadcast %cst_100 : f32 to vector<8x128xf32>
    %265 = arith.mulf %264, %263 : vector<8x128xf32>
    %cst_101 = arith.constant 5.000000e-01 : f32
    %266 = vector.broadcast %cst_101 : f32 to vector<8x128xf32>
    %267 = arith.addf %265, %266 : vector<8x128xf32>
    %268 = vector.extract_strided_slice %259 {offsets = [0, 128], sizes = [8, 128], strides = [1, 1]} : vector<8x512xf32> to vector<8x128xf32>
    %cst_102 = arith.constant 5.000000e-01 : f32
    %269 = vector.broadcast %cst_102 : f32 to vector<8x128xf32>
    %270 = arith.mulf %269, %268 : vector<8x128xf32>
    %271 = math.tanh %270 : vector<8x128xf32>
    %cst_103 = arith.constant 5.000000e-01 : f32
    %272 = vector.broadcast %cst_103 : f32 to vector<8x128xf32>
    %273 = arith.mulf %272, %271 : vector<8x128xf32>
    %cst_104 = arith.constant 5.000000e-01 : f32
    %274 = vector.broadcast %cst_104 : f32 to vector<8x128xf32>
    %275 = arith.addf %273, %274 : vector<8x128xf32>
    %276 = vector.extract_strided_slice %259 {offsets = [0, 256], sizes = [8, 128], strides = [1, 1]} : vector<8x512xf32> to vector<8x128xf32>
    %cst_105 = arith.constant 5.000000e-01 : f32
    %277 = vector.broadcast %cst_105 : f32 to vector<8x128xf32>
    %278 = arith.mulf %277, %276 : vector<8x128xf32>
    %279 = math.tanh %278 : vector<8x128xf32>
    %cst_106 = arith.constant 5.000000e-01 : f32
    %280 = vector.broadcast %cst_106 : f32 to vector<8x128xf32>
    %281 = arith.mulf %280, %279 : vector<8x128xf32>
    %cst_107 = arith.constant 5.000000e-01 : f32
    %282 = vector.broadcast %cst_107 : f32 to vector<8x128xf32>
    %283 = arith.addf %281, %282 : vector<8x128xf32>
    %284 = vector.extract_strided_slice %259 {offsets = [0, 384], sizes = [8, 128], strides = [1, 1]} : vector<8x512xf32> to vector<8x128xf32>
    %285 = math.tanh %284 : vector<8x128xf32>
    %286 = arith.mulf %275, %248 : vector<8x128xf32>
    %287 = arith.mulf %267, %285 : vector<8x128xf32>
    %288 = arith.addf %286, %287 : vector<8x128xf32>
    %289 = math.tanh %288 : vector<8x128xf32>
    %290 = arith.mulf %283, %289 : vector<8x128xf32>
    %c0_108 = arith.constant 0 : index
    %c6 = arith.constant 6 : index
    %c0_109 = arith.constant 0 : index
    %291 = vector.load %arg8[%c0_108, %c6, %c0_109] : memref<8x16x128xf32, #tpu.memory_space<vmem>>, vector<8x1x128xf32>
    %292 = vector.shape_cast %291 : vector<8x1x128xf32> to vector<8x128xf32>
    %293 = vector.shape_cast %290 : vector<8x128xf32> to vector<8x1x128xf32>
    tpu.vector_store %arg8[%c0_108, %c6, %c0_109], %293 {strides = array<i32>} : memref<8x16x128xf32, #tpu.memory_space<vmem>>, vector<8x1x128xf32>,
    %294 = vector.extract_strided_slice %11 {offsets = [0, 7, 0], sizes = [8, 1, 512], strides = [1, 1, 1]} : vector<8x16x512xf32> to vector<8x1x512xf32>
    %295 = vector.shape_cast %294 : vector<8x1x512xf32> to vector<8x512xf32>
    %296 = arith.truncf %290 : vector<8x128xf32> to vector<8x128xbf16>
    %c0_110 = arith.constant 0 : index
    %c0_111 = arith.constant 0 : index
    %297 = vector.load %arg4[%c0_110, %c0_111] : memref<128x512xbf16, #tpu.memory_space<vmem>>, vector<128x512xbf16>
    %cst_112 = arith.constant dense<0.000000e+00> : vector<8x512xf32>
    %298 = tpu.matmul %296, %297, %cst_112 {dimension_numbers = #tpu.dot_dimension_numbers<[1], [0], [0], [1], [0, 0, 1, 1], [], []>} : vector<8x128xbf16>, vector<128x512xbf16>, vector<8x512xf32> -> vector<8x512xf32>
    %299 = arith.addf %295, %298 : vector<8x512xf32>
    %300 = vector.extract_strided_slice %299 {offsets = [0, 0], sizes = [8, 128], strides = [1, 1]} : vector<8x512xf32> to vector<8x128xf32>
    %cst_113 = arith.constant 5.000000e-01 : f32
    %301 = vector.broadcast %cst_113 : f32 to vector<8x128xf32>
    %302 = arith.mulf %301, %300 : vector<8x128xf32>
    %303 = math.tanh %302 : vector<8x128xf32>
    %cst_114 = arith.constant 5.000000e-01 : f32
    %304 = vector.broadcast %cst_114 : f32 to vector<8x128xf32>
    %305 = arith.mulf %304, %303 : vector<8x128xf32>
    %cst_115 = arith.constant 5.000000e-01 : f32
    %306 = vector.broadcast %cst_115 : f32 to vector<8x128xf32>
    %307 = arith.addf %305, %306 : vector<8x128xf32>
    %308 = vector.extract_strided_slice %299 {offsets = [0, 128], sizes = [8, 128], strides = [1, 1]} : vector<8x512xf32> to vector<8x128xf32>
    %cst_116 = arith.constant 5.000000e-01 : f32
    %309 = vector.broadcast %cst_116 : f32 to vector<8x128xf32>
    %310 = arith.mulf %309, %308 : vector<8x128xf32>
    %311 = math.tanh %310 : vector<8x128xf32>
    %cst_117 = arith.constant 5.000000e-01 : f32
    %312 = vector.broadcast %cst_117 : f32 to vector<8x128xf32>
    %313 = arith.mulf %312, %311 : vector<8x128xf32>
    %cst_118 = arith.constant 5.000000e-01 : f32
    %314 = vector.broadcast %cst_118 : f32 to vector<8x128xf32>
    %315 = arith.addf %313, %314 : vector<8x128xf32>
    %316 = vector.extract_strided_slice %299 {offsets = [0, 256], sizes = [8, 128], strides = [1, 1]} : vector<8x512xf32> to vector<8x128xf32>
    %cst_119 = arith.constant 5.000000e-01 : f32
    %317 = vector.broadcast %cst_119 : f32 to vector<8x128xf32>
    %318 = arith.mulf %317, %316 : vector<8x128xf32>
    %319 = math.tanh %318 : vector<8x128xf32>
    %cst_120 = arith.constant 5.000000e-01 : f32
    %320 = vector.broadcast %cst_120 : f32 to vector<8x128xf32>
    %321 = arith.mulf %320, %319 : vector<8x128xf32>
    %cst_121 = arith.constant 5.000000e-01 : f32
    %322 = vector.broadcast %cst_121 : f32 to vector<8x128xf32>
    %323 = arith.addf %321, %322 : vector<8x128xf32>
    %324 = vector.extract_strided_slice %299 {offsets = [0, 384], sizes = [8, 128], strides = [1, 1]} : vector<8x512xf32> to vector<8x128xf32>
    %325 = math.tanh %324 : vector<8x128xf32>
    %326 = arith.mulf %315, %288 : vector<8x128xf32>
    %327 = arith.mulf %307, %325 : vector<8x128xf32>
    %328 = arith.addf %326, %327 : vector<8x128xf32>
    %329 = math.tanh %328 : vector<8x128xf32>
    %330 = arith.mulf %323, %329 : vector<8x128xf32>
    %c0_122 = arith.constant 0 : index
    %c7 = arith.constant 7 : index
    %c0_123 = arith.constant 0 : index
    %331 = vector.load %arg8[%c0_122, %c7, %c0_123] : memref<8x16x128xf32, #tpu.memory_space<vmem>>, vector<8x1x128xf32>
    %332 = vector.shape_cast %331 : vector<8x1x128xf32> to vector<8x128xf32>
    %333 = vector.shape_cast %330 : vector<8x128xf32> to vector<8x1x128xf32>
    tpu.vector_store %arg8[%c0_122, %c7, %c0_123], %333 {strides = array<i32>} : memref<8x16x128xf32, #tpu.memory_space<vmem>>, vector<8x1x128xf32>,
    %334 = vector.extract_strided_slice %11 {offsets = [0, 8, 0], sizes = [8, 1, 512], strides = [1, 1, 1]} : vector<8x16x512xf32> to vector<8x1x512xf32>
    %335 = vector.shape_cast %334 : vector<8x1x512xf32> to vector<8x512xf32>
    %336 = arith.truncf %330 : vector<8x128xf32> to vector<8x128xbf16>
    %c0_124 = arith.constant 0 : index
    %c0_125 = arith.constant 0 : index
    %337 = vector.load %arg4[%c0_124, %c0_125] : memref<128x512xbf16, #tpu.memory_space<vmem>>, vector<128x512xbf16>
    %cst_126 = arith.constant dense<0.000000e+00> : vector<8x512xf32>
    %338 = tpu.matmul %336, %337, %cst_126 {dimension_numbers = #tpu.dot_dimension_numbers<[1], [0], [0], [1], [0, 0, 1, 1], [], []>} : vector<8x128xbf16>, vector<128x512xbf16>, vector<8x512xf32> -> vector<8x512xf32>
    %339 = arith.addf %335, %338 : vector<8x512xf32>
    %340 = vector.extract_strided_slice %339 {offsets = [0, 0], sizes = [8, 128], strides = [1, 1]} : vector<8x512xf32> to vector<8x128xf32>
    %cst_127 = arith.constant 5.000000e-01 : f32
    %341 = vector.broadcast %cst_127 : f32 to vector<8x128xf32>
    %342 = arith.mulf %341, %340 : vector<8x128xf32>
    %343 = math.tanh %342 : vector<8x128xf32>
    %cst_128 = arith.constant 5.000000e-01 : f32
    %344 = vector.broadcast %cst_128 : f32 to vector<8x128xf32>
    %345 = arith.mulf %344, %343 : vector<8x128xf32>
    %cst_129 = arith.constant 5.000000e-01 : f32
    %346 = vector.broadcast %cst_129 : f32 to vector<8x128xf32>
    %347 = arith.addf %345, %346 : vector<8x128xf32>
    %348 = vector.extract_strided_slice %339 {offsets = [0, 128], sizes = [8, 128], strides = [1, 1]} : vector<8x512xf32> to vector<8x128xf32>
    %cst_130 = arith.constant 5.000000e-01 : f32
    %349 = vector.broadcast %cst_130 : f32 to vector<8x128xf32>
    %350 = arith.mulf %349, %348 : vector<8x128xf32>
    %351 = math.tanh %350 : vector<8x128xf32>
    %cst_131 = arith.constant 5.000000e-01 : f32
    %352 = vector.broadcast %cst_131 : f32 to vector<8x128xf32>
    %353 = arith.mulf %352, %351 : vector<8x128xf32>
    %cst_132 = arith.constant 5.000000e-01 : f32
    %354 = vector.broadcast %cst_132 : f32 to vector<8x128xf32>
    %355 = arith.addf %353, %354 : vector<8x128xf32>
    %356 = vector.extract_strided_slice %339 {offsets = [0, 256], sizes = [8, 128], strides = [1, 1]} : vector<8x512xf32> to vector<8x128xf32>
    %cst_133 = arith.constant 5.000000e-01 : f32
    %357 = vector.broadcast %cst_133 : f32 to vector<8x128xf32>
    %358 = arith.mulf %357, %356 : vector<8x128xf32>
    %359 = math.tanh %358 : vector<8x128xf32>
    %cst_134 = arith.constant 5.000000e-01 : f32
    %360 = vector.broadcast %cst_134 : f32 to vector<8x128xf32>
    %361 = arith.mulf %360, %359 : vector<8x128xf32>
    %cst_135 = arith.constant 5.000000e-01 : f32
    %362 = vector.broadcast %cst_135 : f32 to vector<8x128xf32>
    %363 = arith.addf %361, %362 : vector<8x128xf32>
    %364 = vector.extract_strided_slice %339 {offsets = [0, 384], sizes = [8, 128], strides = [1, 1]} : vector<8x512xf32> to vector<8x128xf32>
    %365 = math.tanh %364 : vector<8x128xf32>
    %366 = arith.mulf %355, %328 : vector<8x128xf32>
    %367 = arith.mulf %347, %365 : vector<8x128xf32>
    %368 = arith.addf %366, %367 : vector<8x128xf32>
    %369 = math.tanh %368 : vector<8x128xf32>
    %370 = arith.mulf %363, %369 : vector<8x128xf32>
    %c0_136 = arith.constant 0 : index
    %c8 = arith.constant 8 : index
    %c0_137 = arith.constant 0 : index
    %371 = vector.load %arg8[%c0_136, %c8, %c0_137] : memref<8x16x128xf32, #tpu.memory_space<vmem>>, vector<8x1x128xf32>
    %372 = vector.shape_cast %371 : vector<8x1x128xf32> to vector<8x128xf32>
    %373 = vector.shape_cast %370 : vector<8x128xf32> to vector<8x1x128xf32>
    tpu.vector_store %arg8[%c0_136, %c8, %c0_137], %373 {strides = array<i32>} : memref<8x16x128xf32, #tpu.memory_space<vmem>>, vector<8x1x128xf32>,
    %374 = vector.extract_strided_slice %11 {offsets = [0, 9, 0], sizes = [8, 1, 512], strides = [1, 1, 1]} : vector<8x16x512xf32> to vector<8x1x512xf32>
    %375 = vector.shape_cast %374 : vector<8x1x512xf32> to vector<8x512xf32>
    %376 = arith.truncf %370 : vector<8x128xf32> to vector<8x128xbf16>
    %c0_138 = arith.constant 0 : index
    %c0_139 = arith.constant 0 : index
    %377 = vector.load %arg4[%c0_138, %c0_139] : memref<128x512xbf16, #tpu.memory_space<vmem>>, vector<128x512xbf16>
    %cst_140 = arith.constant dense<0.000000e+00> : vector<8x512xf32>
    %378 = tpu.matmul %376, %377, %cst_140 {dimension_numbers = #tpu.dot_dimension_numbers<[1], [0], [0], [1], [0, 0, 1, 1], [], []>} : vector<8x128xbf16>, vector<128x512xbf16>, vector<8x512xf32> -> vector<8x512xf32>
    %379 = arith.addf %375, %378 : vector<8x512xf32>
    %380 = vector.extract_strided_slice %379 {offsets = [0, 0], sizes = [8, 128], strides = [1, 1]} : vector<8x512xf32> to vector<8x128xf32>
    %cst_141 = arith.constant 5.000000e-01 : f32
    %381 = vector.broadcast %cst_141 : f32 to vector<8x128xf32>
    %382 = arith.mulf %381, %380 : vector<8x128xf32>
    %383 = math.tanh %382 : vector<8x128xf32>
    %cst_142 = arith.constant 5.000000e-01 : f32
    %384 = vector.broadcast %cst_142 : f32 to vector<8x128xf32>
    %385 = arith.mulf %384, %383 : vector<8x128xf32>
    %cst_143 = arith.constant 5.000000e-01 : f32
    %386 = vector.broadcast %cst_143 : f32 to vector<8x128xf32>
    %387 = arith.addf %385, %386 : vector<8x128xf32>
    %388 = vector.extract_strided_slice %379 {offsets = [0, 128], sizes = [8, 128], strides = [1, 1]} : vector<8x512xf32> to vector<8x128xf32>
    %cst_144 = arith.constant 5.000000e-01 : f32
    %389 = vector.broadcast %cst_144 : f32 to vector<8x128xf32>
    %390 = arith.mulf %389, %388 : vector<8x128xf32>
    %391 = math.tanh %390 : vector<8x128xf32>
    %cst_145 = arith.constant 5.000000e-01 : f32
    %392 = vector.broadcast %cst_145 : f32 to vector<8x128xf32>
    %393 = arith.mulf %392, %391 : vector<8x128xf32>
    %cst_146 = arith.constant 5.000000e-01 : f32
    %394 = vector.broadcast %cst_146 : f32 to vector<8x128xf32>
    %395 = arith.addf %393, %394 : vector<8x128xf32>
    %396 = vector.extract_strided_slice %379 {offsets = [0, 256], sizes = [8, 128], strides = [1, 1]} : vector<8x512xf32> to vector<8x128xf32>
    %cst_147 = arith.constant 5.000000e-01 : f32
    %397 = vector.broadcast %cst_147 : f32 to vector<8x128xf32>
    %398 = arith.mulf %397, %396 : vector<8x128xf32>
    %399 = math.tanh %398 : vector<8x128xf32>
    %cst_148 = arith.constant 5.000000e-01 : f32
    %400 = vector.broadcast %cst_148 : f32 to vector<8x128xf32>
    %401 = arith.mulf %400, %399 : vector<8x128xf32>
    %cst_149 = arith.constant 5.000000e-01 : f32
    %402 = vector.broadcast %cst_149 : f32 to vector<8x128xf32>
    %403 = arith.addf %401, %402 : vector<8x128xf32>
    %404 = vector.extract_strided_slice %379 {offsets = [0, 384], sizes = [8, 128], strides = [1, 1]} : vector<8x512xf32> to vector<8x128xf32>
    %405 = math.tanh %404 : vector<8x128xf32>
    %406 = arith.mulf %395, %368 : vector<8x128xf32>
    %407 = arith.mulf %387, %405 : vector<8x128xf32>
    %408 = arith.addf %406, %407 : vector<8x128xf32>
    %409 = math.tanh %408 : vector<8x128xf32>
    %410 = arith.mulf %403, %409 : vector<8x128xf32>
    %c0_150 = arith.constant 0 : index
    %c9 = arith.constant 9 : index
    %c0_151 = arith.constant 0 : index
    %411 = vector.load %arg8[%c0_150, %c9, %c0_151] : memref<8x16x128xf32, #tpu.memory_space<vmem>>, vector<8x1x128xf32>
    %412 = vector.shape_cast %411 : vector<8x1x128xf32> to vector<8x128xf32>
    %413 = vector.shape_cast %410 : vector<8x128xf32> to vector<8x1x128xf32>
    tpu.vector_store %arg8[%c0_150, %c9, %c0_151], %413 {strides = array<i32>} : memref<8x16x128xf32, #tpu.memory_space<vmem>>, vector<8x1x128xf32>,
    %414 = vector.extract_strided_slice %11 {offsets = [0, 10, 0], sizes = [8, 1, 512], strides = [1, 1, 1]} : vector<8x16x512xf32> to vector<8x1x512xf32>
    %415 = vector.shape_cast %414 : vector<8x1x512xf32> to vector<8x512xf32>
    %416 = arith.truncf %410 : vector<8x128xf32> to vector<8x128xbf16>
    %c0_152 = arith.constant 0 : index
    %c0_153 = arith.constant 0 : index
    %417 = vector.load %arg4[%c0_152, %c0_153] : memref<128x512xbf16, #tpu.memory_space<vmem>>, vector<128x512xbf16>
    %cst_154 = arith.constant dense<0.000000e+00> : vector<8x512xf32>
    %418 = tpu.matmul %416, %417, %cst_154 {dimension_numbers = #tpu.dot_dimension_numbers<[1], [0], [0], [1], [0, 0, 1, 1], [], []>} : vector<8x128xbf16>, vector<128x512xbf16>, vector<8x512xf32> -> vector<8x512xf32>
    %419 = arith.addf %415, %418 : vector<8x512xf32>
    %420 = vector.extract_strided_slice %419 {offsets = [0, 0], sizes = [8, 128], strides = [1, 1]} : vector<8x512xf32> to vector<8x128xf32>
    %cst_155 = arith.constant 5.000000e-01 : f32
    %421 = vector.broadcast %cst_155 : f32 to vector<8x128xf32>
    %422 = arith.mulf %421, %420 : vector<8x128xf32>
    %423 = math.tanh %422 : vector<8x128xf32>
    %cst_156 = arith.constant 5.000000e-01 : f32
    %424 = vector.broadcast %cst_156 : f32 to vector<8x128xf32>
    %425 = arith.mulf %424, %423 : vector<8x128xf32>
    %cst_157 = arith.constant 5.000000e-01 : f32
    %426 = vector.broadcast %cst_157 : f32 to vector<8x128xf32>
    %427 = arith.addf %425, %426 : vector<8x128xf32>
    %428 = vector.extract_strided_slice %419 {offsets = [0, 128], sizes = [8, 128], strides = [1, 1]} : vector<8x512xf32> to vector<8x128xf32>
    %cst_158 = arith.constant 5.000000e-01 : f32
    %429 = vector.broadcast %cst_158 : f32 to vector<8x128xf32>
    %430 = arith.mulf %429, %428 : vector<8x128xf32>
    %431 = math.tanh %430 : vector<8x128xf32>
    %cst_159 = arith.constant 5.000000e-01 : f32
    %432 = vector.broadcast %cst_159 : f32 to vector<8x128xf32>
    %433 = arith.mulf %432, %431 : vector<8x128xf32>
    %cst_160 = arith.constant 5.000000e-01 : f32
    %434 = vector.broadcast %cst_160 : f32 to vector<8x128xf32>
    %435 = arith.addf %433, %434 : vector<8x128xf32>
    %436 = vector.extract_strided_slice %419 {offsets = [0, 256], sizes = [8, 128], strides = [1, 1]} : vector<8x512xf32> to vector<8x128xf32>
    %cst_161 = arith.constant 5.000000e-01 : f32
    %437 = vector.broadcast %cst_161 : f32 to vector<8x128xf32>
    %438 = arith.mulf %437, %436 : vector<8x128xf32>
    %439 = math.tanh %438 : vector<8x128xf32>
    %cst_162 = arith.constant 5.000000e-01 : f32
    %440 = vector.broadcast %cst_162 : f32 to vector<8x128xf32>
    %441 = arith.mulf %440, %439 : vector<8x128xf32>
    %cst_163 = arith.constant 5.000000e-01 : f32
    %442 = vector.broadcast %cst_163 : f32 to vector<8x128xf32>
    %443 = arith.addf %441, %442 : vector<8x128xf32>
    %444 = vector.extract_strided_slice %419 {offsets = [0, 384], sizes = [8, 128], strides = [1, 1]} : vector<8x512xf32> to vector<8x128xf32>
    %445 = math.tanh %444 : vector<8x128xf32>
    %446 = arith.mulf %435, %408 : vector<8x128xf32>
    %447 = arith.mulf %427, %445 : vector<8x128xf32>
    %448 = arith.addf %446, %447 : vector<8x128xf32>
    %449 = math.tanh %448 : vector<8x128xf32>
    %450 = arith.mulf %443, %449 : vector<8x128xf32>
    %c0_164 = arith.constant 0 : index
    %c10 = arith.constant 10 : index
    %c0_165 = arith.constant 0 : index
    %451 = vector.load %arg8[%c0_164, %c10, %c0_165] : memref<8x16x128xf32, #tpu.memory_space<vmem>>, vector<8x1x128xf32>
    %452 = vector.shape_cast %451 : vector<8x1x128xf32> to vector<8x128xf32>
    %453 = vector.shape_cast %450 : vector<8x128xf32> to vector<8x1x128xf32>
    tpu.vector_store %arg8[%c0_164, %c10, %c0_165], %453 {strides = array<i32>} : memref<8x16x128xf32, #tpu.memory_space<vmem>>, vector<8x1x128xf32>,
    %454 = vector.extract_strided_slice %11 {offsets = [0, 11, 0], sizes = [8, 1, 512], strides = [1, 1, 1]} : vector<8x16x512xf32> to vector<8x1x512xf32>
    %455 = vector.shape_cast %454 : vector<8x1x512xf32> to vector<8x512xf32>
    %456 = arith.truncf %450 : vector<8x128xf32> to vector<8x128xbf16>
    %c0_166 = arith.constant 0 : index
    %c0_167 = arith.constant 0 : index
    %457 = vector.load %arg4[%c0_166, %c0_167] : memref<128x512xbf16, #tpu.memory_space<vmem>>, vector<128x512xbf16>
    %cst_168 = arith.constant dense<0.000000e+00> : vector<8x512xf32>
    %458 = tpu.matmul %456, %457, %cst_168 {dimension_numbers = #tpu.dot_dimension_numbers<[1], [0], [0], [1], [0, 0, 1, 1], [], []>} : vector<8x128xbf16>, vector<128x512xbf16>, vector<8x512xf32> -> vector<8x512xf32>
    %459 = arith.addf %455, %458 : vector<8x512xf32>
    %460 = vector.extract_strided_slice %459 {offsets = [0, 0], sizes = [8, 128], strides = [1, 1]} : vector<8x512xf32> to vector<8x128xf32>
    %cst_169 = arith.constant 5.000000e-01 : f32
    %461 = vector.broadcast %cst_169 : f32 to vector<8x128xf32>
    %462 = arith.mulf %461, %460 : vector<8x128xf32>
    %463 = math.tanh %462 : vector<8x128xf32>
    %cst_170 = arith.constant 5.000000e-01 : f32
    %464 = vector.broadcast %cst_170 : f32 to vector<8x128xf32>
    %465 = arith.mulf %464, %463 : vector<8x128xf32>
    %cst_171 = arith.constant 5.000000e-01 : f32
    %466 = vector.broadcast %cst_171 : f32 to vector<8x128xf32>
    %467 = arith.addf %465, %466 : vector<8x128xf32>
    %468 = vector.extract_strided_slice %459 {offsets = [0, 128], sizes = [8, 128], strides = [1, 1]} : vector<8x512xf32> to vector<8x128xf32>
    %cst_172 = arith.constant 5.000000e-01 : f32
    %469 = vector.broadcast %cst_172 : f32 to vector<8x128xf32>
    %470 = arith.mulf %469, %468 : vector<8x128xf32>
    %471 = math.tanh %470 : vector<8x128xf32>
    %cst_173 = arith.constant 5.000000e-01 : f32
    %472 = vector.broadcast %cst_173 : f32 to vector<8x128xf32>
    %473 = arith.mulf %472, %471 : vector<8x128xf32>
    %cst_174 = arith.constant 5.000000e-01 : f32
    %474 = vector.broadcast %cst_174 : f32 to vector<8x128xf32>
    %475 = arith.addf %473, %474 : vector<8x128xf32>
    %476 = vector.extract_strided_slice %459 {offsets = [0, 256], sizes = [8, 128], strides = [1, 1]} : vector<8x512xf32> to vector<8x128xf32>
    %cst_175 = arith.constant 5.000000e-01 : f32
    %477 = vector.broadcast %cst_175 : f32 to vector<8x128xf32>
    %478 = arith.mulf %477, %476 : vector<8x128xf32>
    %479 = math.tanh %478 : vector<8x128xf32>
    %cst_176 = arith.constant 5.000000e-01 : f32
    %480 = vector.broadcast %cst_176 : f32 to vector<8x128xf32>
    %481 = arith.mulf %480, %479 : vector<8x128xf32>
    %cst_177 = arith.constant 5.000000e-01 : f32
    %482 = vector.broadcast %cst_177 : f32 to vector<8x128xf32>
    %483 = arith.addf %481, %482 : vector<8x128xf32>
    %484 = vector.extract_strided_slice %459 {offsets = [0, 384], sizes = [8, 128], strides = [1, 1]} : vector<8x512xf32> to vector<8x128xf32>
    %485 = math.tanh %484 : vector<8x128xf32>
    %486 = arith.mulf %475, %448 : vector<8x128xf32>
    %487 = arith.mulf %467, %485 : vector<8x128xf32>
    %488 = arith.addf %486, %487 : vector<8x128xf32>
    %489 = math.tanh %488 : vector<8x128xf32>
    %490 = arith.mulf %483, %489 : vector<8x128xf32>
    %c0_178 = arith.constant 0 : index
    %c11 = arith.constant 11 : index
    %c0_179 = arith.constant 0 : index
    %491 = vector.load %arg8[%c0_178, %c11, %c0_179] : memref<8x16x128xf32, #tpu.memory_space<vmem>>, vector<8x1x128xf32>
    %492 = vector.shape_cast %491 : vector<8x1x128xf32> to vector<8x128xf32>
    %493 = vector.shape_cast %490 : vector<8x128xf32> to vector<8x1x128xf32>
    tpu.vector_store %arg8[%c0_178, %c11, %c0_179], %493 {strides = array<i32>} : memref<8x16x128xf32, #tpu.memory_space<vmem>>, vector<8x1x128xf32>,
    %494 = vector.extract_strided_slice %11 {offsets = [0, 12, 0], sizes = [8, 1, 512], strides = [1, 1, 1]} : vector<8x16x512xf32> to vector<8x1x512xf32>
    %495 = vector.shape_cast %494 : vector<8x1x512xf32> to vector<8x512xf32>
    %496 = arith.truncf %490 : vector<8x128xf32> to vector<8x128xbf16>
    %c0_180 = arith.constant 0 : index
    %c0_181 = arith.constant 0 : index
    %497 = vector.load %arg4[%c0_180, %c0_181] : memref<128x512xbf16, #tpu.memory_space<vmem>>, vector<128x512xbf16>
    %cst_182 = arith.constant dense<0.000000e+00> : vector<8x512xf32>
    %498 = tpu.matmul %496, %497, %cst_182 {dimension_numbers = #tpu.dot_dimension_numbers<[1], [0], [0], [1], [0, 0, 1, 1], [], []>} : vector<8x128xbf16>, vector<128x512xbf16>, vector<8x512xf32> -> vector<8x512xf32>
    %499 = arith.addf %495, %498 : vector<8x512xf32>
    %500 = vector.extract_strided_slice %499 {offsets = [0, 0], sizes = [8, 128], strides = [1, 1]} : vector<8x512xf32> to vector<8x128xf32>
    %cst_183 = arith.constant 5.000000e-01 : f32
    %501 = vector.broadcast %cst_183 : f32 to vector<8x128xf32>
    %502 = arith.mulf %501, %500 : vector<8x128xf32>
    %503 = math.tanh %502 : vector<8x128xf32>
    %cst_184 = arith.constant 5.000000e-01 : f32
    %504 = vector.broadcast %cst_184 : f32 to vector<8x128xf32>
    %505 = arith.mulf %504, %503 : vector<8x128xf32>
    %cst_185 = arith.constant 5.000000e-01 : f32
    %506 = vector.broadcast %cst_185 : f32 to vector<8x128xf32>
    %507 = arith.addf %505, %506 : vector<8x128xf32>
    %508 = vector.extract_strided_slice %499 {offsets = [0, 128], sizes = [8, 128], strides = [1, 1]} : vector<8x512xf32> to vector<8x128xf32>
    %cst_186 = arith.constant 5.000000e-01 : f32
    %509 = vector.broadcast %cst_186 : f32 to vector<8x128xf32>
    %510 = arith.mulf %509, %508 : vector<8x128xf32>
    %511 = math.tanh %510 : vector<8x128xf32>
    %cst_187 = arith.constant 5.000000e-01 : f32
    %512 = vector.broadcast %cst_187 : f32 to vector<8x128xf32>
    %513 = arith.mulf %512, %511 : vector<8x128xf32>
    %cst_188 = arith.constant 5.000000e-01 : f32
    %514 = vector.broadcast %cst_188 : f32 to vector<8x128xf32>
    %515 = arith.addf %513, %514 : vector<8x128xf32>
    %516 = vector.extract_strided_slice %499 {offsets = [0, 256], sizes = [8, 128], strides = [1, 1]} : vector<8x512xf32> to vector<8x128xf32>
    %cst_189 = arith.constant 5.000000e-01 : f32
    %517 = vector.broadcast %cst_189 : f32 to vector<8x128xf32>
    %518 = arith.mulf %517, %516 : vector<8x128xf32>
    %519 = math.tanh %518 : vector<8x128xf32>
    %cst_190 = arith.constant 5.000000e-01 : f32
    %520 = vector.broadcast %cst_190 : f32 to vector<8x128xf32>
    %521 = arith.mulf %520, %519 : vector<8x128xf32>
    %cst_191 = arith.constant 5.000000e-01 : f32
    %522 = vector.broadcast %cst_191 : f32 to vector<8x128xf32>
    %523 = arith.addf %521, %522 : vector<8x128xf32>
    %524 = vector.extract_strided_slice %499 {offsets = [0, 384], sizes = [8, 128], strides = [1, 1]} : vector<8x512xf32> to vector<8x128xf32>
    %525 = math.tanh %524 : vector<8x128xf32>
    %526 = arith.mulf %515, %488 : vector<8x128xf32>
    %527 = arith.mulf %507, %525 : vector<8x128xf32>
    %528 = arith.addf %526, %527 : vector<8x128xf32>
    %529 = math.tanh %528 : vector<8x128xf32>
    %530 = arith.mulf %523, %529 : vector<8x128xf32>
    %c0_192 = arith.constant 0 : index
    %c12 = arith.constant 12 : index
    %c0_193 = arith.constant 0 : index
    %531 = vector.load %arg8[%c0_192, %c12, %c0_193] : memref<8x16x128xf32, #tpu.memory_space<vmem>>, vector<8x1x128xf32>
    %532 = vector.shape_cast %531 : vector<8x1x128xf32> to vector<8x128xf32>
    %533 = vector.shape_cast %530 : vector<8x128xf32> to vector<8x1x128xf32>
    tpu.vector_store %arg8[%c0_192, %c12, %c0_193], %533 {strides = array<i32>} : memref<8x16x128xf32, #tpu.memory_space<vmem>>, vector<8x1x128xf32>,
    %534 = vector.extract_strided_slice %11 {offsets = [0, 13, 0], sizes = [8, 1, 512], strides = [1, 1, 1]} : vector<8x16x512xf32> to vector<8x1x512xf32>
    %535 = vector.shape_cast %534 : vector<8x1x512xf32> to vector<8x512xf32>
    %536 = arith.truncf %530 : vector<8x128xf32> to vector<8x128xbf16>
    %c0_194 = arith.constant 0 : index
    %c0_195 = arith.constant 0 : index
    %537 = vector.load %arg4[%c0_194, %c0_195] : memref<128x512xbf16, #tpu.memory_space<vmem>>, vector<128x512xbf16>
    %cst_196 = arith.constant dense<0.000000e+00> : vector<8x512xf32>
    %538 = tpu.matmul %536, %537, %cst_196 {dimension_numbers = #tpu.dot_dimension_numbers<[1], [0], [0], [1], [0, 0, 1, 1], [], []>} : vector<8x128xbf16>, vector<128x512xbf16>, vector<8x512xf32> -> vector<8x512xf32>
    %539 = arith.addf %535, %538 : vector<8x512xf32>
    %540 = vector.extract_strided_slice %539 {offsets = [0, 0], sizes = [8, 128], strides = [1, 1]} : vector<8x512xf32> to vector<8x128xf32>
    %cst_197 = arith.constant 5.000000e-01 : f32
    %541 = vector.broadcast %cst_197 : f32 to vector<8x128xf32>
    %542 = arith.mulf %541, %540 : vector<8x128xf32>
    %543 = math.tanh %542 : vector<8x128xf32>
    %cst_198 = arith.constant 5.000000e-01 : f32
    %544 = vector.broadcast %cst_198 : f32 to vector<8x128xf32>
    %545 = arith.mulf %544, %543 : vector<8x128xf32>
    %cst_199 = arith.constant 5.000000e-01 : f32
    %546 = vector.broadcast %cst_199 : f32 to vector<8x128xf32>
    %547 = arith.addf %545, %546 : vector<8x128xf32>
    %548 = vector.extract_strided_slice %539 {offsets = [0, 128], sizes = [8, 128], strides = [1, 1]} : vector<8x512xf32> to vector<8x128xf32>
    %cst_200 = arith.constant 5.000000e-01 : f32
    %549 = vector.broadcast %cst_200 : f32 to vector<8x128xf32>
    %550 = arith.mulf %549, %548 : vector<8x128xf32>
    %551 = math.tanh %550 : vector<8x128xf32>
    %cst_201 = arith.constant 5.000000e-01 : f32
    %552 = vector.broadcast %cst_201 : f32 to vector<8x128xf32>
    %553 = arith.mulf %552, %551 : vector<8x128xf32>
    %cst_202 = arith.constant 5.000000e-01 : f32
    %554 = vector.broadcast %cst_202 : f32 to vector<8x128xf32>
    %555 = arith.addf %553, %554 : vector<8x128xf32>
    %556 = vector.extract_strided_slice %539 {offsets = [0, 256], sizes = [8, 128], strides = [1, 1]} : vector<8x512xf32> to vector<8x128xf32>
    %cst_203 = arith.constant 5.000000e-01 : f32
    %557 = vector.broadcast %cst_203 : f32 to vector<8x128xf32>
    %558 = arith.mulf %557, %556 : vector<8x128xf32>
    %559 = math.tanh %558 : vector<8x128xf32>
    %cst_204 = arith.constant 5.000000e-01 : f32
    %560 = vector.broadcast %cst_204 : f32 to vector<8x128xf32>
    %561 = arith.mulf %560, %559 : vector<8x128xf32>
    %cst_205 = arith.constant 5.000000e-01 : f32
    %562 = vector.broadcast %cst_205 : f32 to vector<8x128xf32>
    %563 = arith.addf %561, %562 : vector<8x128xf32>
    %564 = vector.extract_strided_slice %539 {offsets = [0, 384], sizes = [8, 128], strides = [1, 1]} : vector<8x512xf32> to vector<8x128xf32>
    %565 = math.tanh %564 : vector<8x128xf32>
    %566 = arith.mulf %555, %528 : vector<8x128xf32>
    %567 = arith.mulf %547, %565 : vector<8x128xf32>
    %568 = arith.addf %566, %567 : vector<8x128xf32>
    %569 = math.tanh %568 : vector<8x128xf32>
    %570 = arith.mulf %563, %569 : vector<8x128xf32>
    %c0_206 = arith.constant 0 : index
    %c13 = arith.constant 13 : index
    %c0_207 = arith.constant 0 : index
    %571 = vector.load %arg8[%c0_206, %c13, %c0_207] : memref<8x16x128xf32, #tpu.memory_space<vmem>>, vector<8x1x128xf32>
    %572 = vector.shape_cast %571 : vector<8x1x128xf32> to vector<8x128xf32>
    %573 = vector.shape_cast %570 : vector<8x128xf32> to vector<8x1x128xf32>
    tpu.vector_store %arg8[%c0_206, %c13, %c0_207], %573 {strides = array<i32>} : memref<8x16x128xf32, #tpu.memory_space<vmem>>, vector<8x1x128xf32>,
    %574 = vector.extract_strided_slice %11 {offsets = [0, 14, 0], sizes = [8, 1, 512], strides = [1, 1, 1]} : vector<8x16x512xf32> to vector<8x1x512xf32>
    %575 = vector.shape_cast %574 : vector<8x1x512xf32> to vector<8x512xf32>
    %576 = arith.truncf %570 : vector<8x128xf32> to vector<8x128xbf16>
    %c0_208 = arith.constant 0 : index
    %c0_209 = arith.constant 0 : index
    %577 = vector.load %arg4[%c0_208, %c0_209] : memref<128x512xbf16, #tpu.memory_space<vmem>>, vector<128x512xbf16>
    %cst_210 = arith.constant dense<0.000000e+00> : vector<8x512xf32>
    %578 = tpu.matmul %576, %577, %cst_210 {dimension_numbers = #tpu.dot_dimension_numbers<[1], [0], [0], [1], [0, 0, 1, 1], [], []>} : vector<8x128xbf16>, vector<128x512xbf16>, vector<8x512xf32> -> vector<8x512xf32>
    %579 = arith.addf %575, %578 : vector<8x512xf32>
    %580 = vector.extract_strided_slice %579 {offsets = [0, 0], sizes = [8, 128], strides = [1, 1]} : vector<8x512xf32> to vector<8x128xf32>
    %cst_211 = arith.constant 5.000000e-01 : f32
    %581 = vector.broadcast %cst_211 : f32 to vector<8x128xf32>
    %582 = arith.mulf %581, %580 : vector<8x128xf32>
    %583 = math.tanh %582 : vector<8x128xf32>
    %cst_212 = arith.constant 5.000000e-01 : f32
    %584 = vector.broadcast %cst_212 : f32 to vector<8x128xf32>
    %585 = arith.mulf %584, %583 : vector<8x128xf32>
    %cst_213 = arith.constant 5.000000e-01 : f32
    %586 = vector.broadcast %cst_213 : f32 to vector<8x128xf32>
    %587 = arith.addf %585, %586 : vector<8x128xf32>
    %588 = vector.extract_strided_slice %579 {offsets = [0, 128], sizes = [8, 128], strides = [1, 1]} : vector<8x512xf32> to vector<8x128xf32>
    %cst_214 = arith.constant 5.000000e-01 : f32
    %589 = vector.broadcast %cst_214 : f32 to vector<8x128xf32>
    %590 = arith.mulf %589, %588 : vector<8x128xf32>
    %591 = math.tanh %590 : vector<8x128xf32>
    %cst_215 = arith.constant 5.000000e-01 : f32
    %592 = vector.broadcast %cst_215 : f32 to vector<8x128xf32>
    %593 = arith.mulf %592, %591 : vector<8x128xf32>
    %cst_216 = arith.constant 5.000000e-01 : f32
    %594 = vector.broadcast %cst_216 : f32 to vector<8x128xf32>
    %595 = arith.addf %593, %594 : vector<8x128xf32>
    %596 = vector.extract_strided_slice %579 {offsets = [0, 256], sizes = [8, 128], strides = [1, 1]} : vector<8x512xf32> to vector<8x128xf32>
    %cst_217 = arith.constant 5.000000e-01 : f32
    %597 = vector.broadcast %cst_217 : f32 to vector<8x128xf32>
    %598 = arith.mulf %597, %596 : vector<8x128xf32>
    %599 = math.tanh %598 : vector<8x128xf32>
    %cst_218 = arith.constant 5.000000e-01 : f32
    %600 = vector.broadcast %cst_218 : f32 to vector<8x128xf32>
    %601 = arith.mulf %600, %599 : vector<8x128xf32>
    %cst_219 = arith.constant 5.000000e-01 : f32
    %602 = vector.broadcast %cst_219 : f32 to vector<8x128xf32>
    %603 = arith.addf %601, %602 : vector<8x128xf32>
    %604 = vector.extract_strided_slice %579 {offsets = [0, 384], sizes = [8, 128], strides = [1, 1]} : vector<8x512xf32> to vector<8x128xf32>
    %605 = math.tanh %604 : vector<8x128xf32>
    %606 = arith.mulf %595, %568 : vector<8x128xf32>
    %607 = arith.mulf %587, %605 : vector<8x128xf32>
    %608 = arith.addf %606, %607 : vector<8x128xf32>
    %609 = math.tanh %608 : vector<8x128xf32>
    %610 = arith.mulf %603, %609 : vector<8x128xf32>
    %c0_220 = arith.constant 0 : index
    %c14 = arith.constant 14 : index
    %c0_221 = arith.constant 0 : index
    %611 = vector.load %arg8[%c0_220, %c14, %c0_221] : memref<8x16x128xf32, #tpu.memory_space<vmem>>, vector<8x1x128xf32>
    %612 = vector.shape_cast %611 : vector<8x1x128xf32> to vector<8x128xf32>
    %613 = vector.shape_cast %610 : vector<8x128xf32> to vector<8x1x128xf32>
    tpu.vector_store %arg8[%c0_220, %c14, %c0_221], %613 {strides = array<i32>} : memref<8x16x128xf32, #tpu.memory_space<vmem>>, vector<8x1x128xf32>,
    %614 = vector.extract_strided_slice %11 {offsets = [0, 15, 0], sizes = [8, 1, 512], strides = [1, 1, 1]} : vector<8x16x512xf32> to vector<8x1x512xf32>
    %615 = vector.shape_cast %614 : vector<8x1x512xf32> to vector<8x512xf32>
    %616 = arith.truncf %610 : vector<8x128xf32> to vector<8x128xbf16>
    %c0_222 = arith.constant 0 : index
    %c0_223 = arith.constant 0 : index
    %617 = vector.load %arg4[%c0_222, %c0_223] : memref<128x512xbf16, #tpu.memory_space<vmem>>, vector<128x512xbf16>
    %cst_224 = arith.constant dense<0.000000e+00> : vector<8x512xf32>
    %618 = tpu.matmul %616, %617, %cst_224 {dimension_numbers = #tpu.dot_dimension_numbers<[1], [0], [0], [1], [0, 0, 1, 1], [], []>} : vector<8x128xbf16>, vector<128x512xbf16>, vector<8x512xf32> -> vector<8x512xf32>
    %619 = arith.addf %615, %618 : vector<8x512xf32>
    %620 = vector.extract_strided_slice %619 {offsets = [0, 0], sizes = [8, 128], strides = [1, 1]} : vector<8x512xf32> to vector<8x128xf32>
    %cst_225 = arith.constant 5.000000e-01 : f32
    %621 = vector.broadcast %cst_225 : f32 to vector<8x128xf32>
    %622 = arith.mulf %621, %620 : vector<8x128xf32>
    %623 = math.tanh %622 : vector<8x128xf32>
    %cst_226 = arith.constant 5.000000e-01 : f32
    %624 = vector.broadcast %cst_226 : f32 to vector<8x128xf32>
    %625 = arith.mulf %624, %623 : vector<8x128xf32>
    %cst_227 = arith.constant 5.000000e-01 : f32
    %626 = vector.broadcast %cst_227 : f32 to vector<8x128xf32>
    %627 = arith.addf %625, %626 : vector<8x128xf32>
    %628 = vector.extract_strided_slice %619 {offsets = [0, 128], sizes = [8, 128], strides = [1, 1]} : vector<8x512xf32> to vector<8x128xf32>
    %cst_228 = arith.constant 5.000000e-01 : f32
    %629 = vector.broadcast %cst_228 : f32 to vector<8x128xf32>
    %630 = arith.mulf %629, %628 : vector<8x128xf32>
    %631 = math.tanh %630 : vector<8x128xf32>
    %cst_229 = arith.constant 5.000000e-01 : f32
    %632 = vector.broadcast %cst_229 : f32 to vector<8x128xf32>
    %633 = arith.mulf %632, %631 : vector<8x128xf32>
    %cst_230 = arith.constant 5.000000e-01 : f32
    %634 = vector.broadcast %cst_230 : f32 to vector<8x128xf32>
    %635 = arith.addf %633, %634 : vector<8x128xf32>
    %636 = vector.extract_strided_slice %619 {offsets = [0, 256], sizes = [8, 128], strides = [1, 1]} : vector<8x512xf32> to vector<8x128xf32>
    %cst_231 = arith.constant 5.000000e-01 : f32
    %637 = vector.broadcast %cst_231 : f32 to vector<8x128xf32>
    %638 = arith.mulf %637, %636 : vector<8x128xf32>
    %639 = math.tanh %638 : vector<8x128xf32>
    %cst_232 = arith.constant 5.000000e-01 : f32
    %640 = vector.broadcast %cst_232 : f32 to vector<8x128xf32>
    %641 = arith.mulf %640, %639 : vector<8x128xf32>
    %cst_233 = arith.constant 5.000000e-01 : f32
    %642 = vector.broadcast %cst_233 : f32 to vector<8x128xf32>
    %643 = arith.addf %641, %642 : vector<8x128xf32>
    %644 = vector.extract_strided_slice %619 {offsets = [0, 384], sizes = [8, 128], strides = [1, 1]} : vector<8x512xf32> to vector<8x128xf32>
    %645 = math.tanh %644 : vector<8x128xf32>
    %646 = arith.mulf %635, %608 : vector<8x128xf32>
    %647 = arith.mulf %627, %645 : vector<8x128xf32>
    %648 = arith.addf %646, %647 : vector<8x128xf32>
    %649 = math.tanh %648 : vector<8x128xf32>
    %650 = arith.mulf %643, %649 : vector<8x128xf32>
    %c0_234 = arith.constant 0 : index
    %c15 = arith.constant 15 : index
    %c0_235 = arith.constant 0 : index
    %651 = vector.load %arg8[%c0_234, %c15, %c0_235] : memref<8x16x128xf32, #tpu.memory_space<vmem>>, vector<8x1x128xf32>
    %652 = vector.shape_cast %651 : vector<8x1x128xf32> to vector<8x128xf32>
    %653 = vector.shape_cast %650 : vector<8x128xf32> to vector<8x1x128xf32>
    tpu.vector_store %arg8[%c0_234, %c15, %c0_235], %653 {strides = array<i32>} : memref<8x16x128xf32, #tpu.memory_space<vmem>>, vector<8x1x128xf32>,
    %c0_236 = arith.constant 0 : index
    %c0_237 = arith.constant 0 : index
    %654 = vector.load %arg11[%c0_236, %c0_237] : memref<8x128xf32, #tpu.memory_space<vmem>>, vector<8x128xf32>
    tpu.vector_store %arg11[%c0_236, %c0_237], %650 {strides = array<i32>} : memref<8x128xf32, #tpu.memory_space<vmem>>, vector<8x128xf32>,
    %c0_238 = arith.constant 0 : index
    %c0_239 = arith.constant 0 : index
    %655 = vector.load %arg12[%c0_238, %c0_239] : memref<8x128xf32, #tpu.memory_space<vmem>>, vector<8x128xf32>
    tpu.vector_store %arg12[%c0_238, %c0_239], %648 {strides = array<i32>} : memref<8x128xf32, #tpu.memory_space<vmem>>, vector<8x128xf32>,
    %c0_i32_240 = arith.constant 0 : i32
    %656 = arith.cmpi eq, %arg1, %c0_i32_240 : i32
    %657 = arith.extui %656 : i1 to i32
    %c0_i32_241 = arith.constant 0 : i32
    %658 = arith.cmpi ne, %657, %c0_i32_241 : i32
    scf.if %658 {
      %c0_242 = arith.constant 0 : index
      %c0_243 = arith.constant 0 : index
      %659 = vector.load %arg9[%c0_242, %c0_243] : memref<8x128xf32, #tpu.memory_space<vmem>>, vector<8x128xf32>
      tpu.vector_store %arg9[%c0_242, %c0_243], %650 {strides = array<i32>} : memref<8x128xf32, #tpu.memory_space<vmem>>, vector<8x128xf32>,
      %c0_244 = arith.constant 0 : index
      %c0_245 = arith.constant 0 : index
      %660 = vector.load %arg10[%c0_244, %c0_245] : memref<8x128xf32, #tpu.memory_space<vmem>>, vector<8x128xf32>
      tpu.vector_store %arg10[%c0_244, %c0_245], %648 {strides = array<i32>} : memref<8x128xf32, #tpu.memory_space<vmem>>, vector<8x128xf32>,
    } else {
    }
    return
  }
  func.func @transform_0(%arg0: i32, %arg1: i32) -> (i32, i32, i32) {
    %c0_i32 = arith.constant 0 : i32
    %c0_i32_0 = arith.constant 0 : i32
    return %arg0, %arg1, %c0_i32 : i32, i32, i32
  }
  func.func @transform_1(%arg0: i32, %arg1: i32) -> (i32, i32) {
    %c0_i32 = arith.constant 0 : i32
    %c0_i32_0 = arith.constant 0 : i32
    %c0_i32_1 = arith.constant 0 : i32
    return %c0_i32, %c0_i32_0 : i32, i32
  }
  func.func @transform_2(%arg0: i32, %arg1: i32) -> (i32, i32) {
    %c0_i32 = arith.constant 0 : i32
    %c0_i32_0 = arith.constant 0 : i32
    %c0_i32_1 = arith.constant 0 : i32
    return %c0_i32, %c0_i32_0 : i32, i32
  }
  func.func @transform_3(%arg0: i32, %arg1: i32) -> (i32, i32) {
    %c0_i32 = arith.constant 0 : i32
    %c0_i32_0 = arith.constant 0 : i32
    %c0_i32_1 = arith.constant 0 : i32
    return %c0_i32, %c0_i32_0 : i32, i32
  }
  func.func @transform_4(%arg0: i32, %arg1: i32) -> (i32, i32) {
    %c0_i32 = arith.constant 0 : i32
    %c0_i32_0 = arith.constant 0 : i32
    return %arg0, %c0_i32 : i32, i32
  }
  func.func @transform_5(%arg0: i32, %arg1: i32) -> (i32, i32) {
    %c0_i32 = arith.constant 0 : i32
    %c0_i32_0 = arith.constant 0 : i32
    return %arg0, %c0_i32 : i32, i32
  }
  func.func @transform_6(%arg0: i32, %arg1: i32) -> (i32, i32, i32) {
    %c0_i32 = arith.constant 0 : i32
    %c0_i32_0 = arith.constant 0 : i32
    return %arg0, %arg1, %c0_i32 : i32, i32, i32
  }
  func.func @transform_7(%arg0: i32, %arg1: i32) -> (i32, i32) {
    %c0_i32 = arith.constant 0 : i32
    %c0_i32_0 = arith.constant 0 : i32
    return %arg0, %c0_i32 : i32, i32
  }
  func.func @transform_8(%arg0: i32, %arg1: i32) -> (i32, i32) {
    %c0_i32 = arith.constant 0 : i32
    %c0_i32_0 = arith.constant 0 : i32
    return %arg0, %c0_i32 : i32, i32
  }
}

</mosaic_0001>

<llo_original>
// kernel: peephole_lstm_forward.1
$region0: #{peephole_lstm_forward.1}
  #allocation0 [shape = 'u32[]', space=smem, size = 0x4, offset = 0x4, fixed_abs, tag = 'smem constant byte address 0x4 - core index']
  #allocation1 [shape = 'u32[144,128]{1,0:T(1,128)}', space=vmem, size = 0x12000, scoped, tag = 'internal scratch']
  #allocation2 [shape = 'f32[8,128]{1,0:T(8,128)}', space=vmem, size = 0x1000, scoped, tag = 'scratch operand']
  #allocation3 [shape = 'f32[8,128]{1,0:T(8,128)}', space=vmem, size = 0x1000, scoped, tag = 'scratch operand']
  #allocation4 [shape = 'f32[8,8,128]{2,1,0:T(8,128)}', space=vmem, size = 0x8000, scoped, tag = 'scratch operand']
  %s0 = inlined_call_operand.vmem [shape: bf16[8,16,16], index: 0, kind: input, shape index: {}]
  %s1 = inlined_call_operand.vmem [shape: bf16[16,512], index: 1, kind: input, shape index: {}]
  %s2 = inlined_call_operand.vmem [shape: bf16[128,512], index: 2, kind: input, shape index: {}]
  %s3 = inlined_call_operand.vmem [shape: f32[1,512], index: 3, kind: input, shape index: {}]
  %s4 = inlined_call_operand.vmem [shape: f32[8,128], index: 4, kind: input, shape index: {}, may-alias: {4,5}]
  %s5 = inlined_call_operand.vmem [shape: f32[8,128], index: 5, kind: input, shape index: {}, may-alias: {4,5}]
  %s6 = inlined_call_operand.vmem [shape: f32[8,16,128], index: 6, kind: output, shape index: {0}]
  %s7 = inlined_call_operand.vmem [shape: f32[8,128], index: 7, kind: output, shape index: {1}]
  %s8 = inlined_call_operand.vmem [shape: f32[8,128], index: 8, kind: output, shape index: {2}]
  %9 = xla_tuple %s6, %s7, %s8
  %s10 = sld [smem:[#allocation0]]
  $region58: #{peephole_lstm_forward.1} parent=0
    _
  %s12 = ssub.s32 1, %s10
  %s13 = scalar_select 0, %s12, %s10
  // Predicated region
  $region2: #{peephole_lstm_forward.1} parent=0 // pred_check
    _
  $region3: #{peephole_lstm_forward.1} parent=0 // pred_check_branch
    %15 = sbr.rel (0) target = $region5
  $region4: #{peephole_lstm_forward.1} parent=0 // pred_region
    _
  $region5: #{peephole_lstm_forward.1} parent=0 // pred_fallthru
    _
  // Predicated region
  $region6: #{peephole_lstm_forward.1} parent=0 // pred_check
    _
  $region7: #{peephole_lstm_forward.1} parent=0 // pred_check_branch
    %17 = sbr.rel (0) target = $region9
  $region8: #{peephole_lstm_forward.1} parent=0 // pred_region
    _
  $region9: #{peephole_lstm_forward.1} parent=0 // pred_fallthru
    _
  // Predicated region
  $region10: #{peephole_lstm_forward.1} parent=0 // pred_check
    _
  $region11: #{peephole_lstm_forward.1} parent=0 // pred_check_branch
    %19 = sbr.rel (0) target = $region13
  $region12: #{peephole_lstm_forward.1} parent=0 // pred_region
    _
  $region13: #{peephole_lstm_forward.1} parent=0 // pred_fallthru
    _
  // Predicated region
  $region14: #{peephole_lstm_forward.1} parent=0 // pred_check
    _
  $region15: #{peephole_lstm_forward.1} parent=0 // pred_check_branch
    %21 = sbr.rel (0) target = $region17
  $region16: #{peephole_lstm_forward.1} parent=0 // pred_region
    _
  $region17: #{peephole_lstm_forward.1} parent=0 // pred_fallthru
    _
  // Predicated region
  $region18: #{peephole_lstm_forward.1} parent=0 // pred_check
    _
  $region19: #{peephole_lstm_forward.1} parent=0 // pred_check_branch
    %23 = sbr.rel (0) target = $region21
  $region20: #{peephole_lstm_forward.1} parent=0 // pred_region
    _
  $region21: #{peephole_lstm_forward.1} parent=0 // pred_fallthru
    _
  // Predicated region
  $region22: #{peephole_lstm_forward.1} parent=0 // pred_check
    _
  $region23: #{peephole_lstm_forward.1} parent=0 // pred_check_branch
    %25 = sbr.rel (0) target = $region25
  $region24: #{peephole_lstm_forward.1} parent=0 // pred_region
    _
  $region25: #{peephole_lstm_forward.1} parent=0 // pred_fallthru
    _
  %p27 = scmp.eq.s32.totalorder 0, 0
  // Predicated region
  $region26: #{peephole_lstm_forward.1} parent=0 // pred_check
    %p28 = pneg %p27
  $region27: #{peephole_lstm_forward.1} parent=0 // pred_check_branch
    %30 = sbr.rel (%p28) target = $region29
  $region28: #{peephole_lstm_forward.1} parent=0 // pred_region
    %v31 = vld [vmem:[%s4] sm:$0xff]
    %32 = vst [vmem:[#allocation2] sm:$0xff] %v31
    %v33 = vld [vmem:[%s5] sm:$0xff]
    %34 = vst [vmem:[#allocation3] sm:$0xff] %v33
  $region29: #{peephole_lstm_forward.1} parent=0 // pred_fallthru
    _
  %v35 = vld [vmem:[%s3] sm:$0xf]
  %v36 = vld [vmem:[%s0] sm:$0xf]
  %v37 = vld [vmem:[%s0 + $0x4] sm:$0xf]
  %v38 = vld [vmem:[%s0 + $0x8] sm:$0xf]
  %v39 = vld [vmem:[%s0 + $0xc] sm:$0xf]
  %v40 = vld [vmem:[%s0 + $0x10] sm:$0xf]
  %v41 = vld [vmem:[%s0 + $0x14] sm:$0xf]
  %v42 = vld [vmem:[%s0 + $0x18] sm:$0xf]
  %v43 = vld [vmem:[%s0 + $0x1c] sm:$0xf]
  %v44 = vld [vmem:[%s0 + $0x20] sm:$0xf]
  %v45 = vld [vmem:[%s0 + $0x24] sm:$0xf]
  %v46 = vld [vmem:[%s0 + $0x28] sm:$0xf]
  %v47 = vld [vmem:[%s0 + $0x2c] sm:$0xf]
  %v48 = vld [vmem:[%s0 + $0x30] sm:$0xf]
  %v49 = vld [vmem:[%s0 + $0x34] sm:$0xf]
  %v50 = vld [vmem:[%s0 + $0x38] sm:$0xf]
  %v51 = vld [vmem:[%s0 + $0x3c] sm:$0xf]
  %v52 = vld [vmem:[%s1] sm:$0xff]
  %v53 = vld [vmem:[%s1 + $0x8] sm:$0xff]
  %v54 = vld [vmem:[%s1 + $0x10] sm:$0xff]
  %v55 = vld [vmem:[%s1 + $0x18] sm:$0xff]
  %v72 = vunpack.c.l.b16 %v36
  %v73 = vunpack.c.l.b16 %v37
  %v74 = vunpack.c.l.b16 %v38
  %v75 = vunpack.c.l.b16 %v39
  %v76 = vunpack.c.l.b16 %v40
  %v77 = vunpack.c.l.b16 %v41
  %v78 = vunpack.c.l.b16 %v42
  %v79 = vunpack.c.l.b16 %v43
  %v80 = vunpack.c.l.b16 %v44
  %v81 = vunpack.c.l.b16 %v45
  %v82 = vunpack.c.l.b16 %v46
  %v83 = vunpack.c.l.b16 %v47
  %v84 = vunpack.c.l.b16 %v48
  %v85 = vunpack.c.l.b16 %v49
  %v86 = vunpack.c.l.b16 %v50
  %v87 = vunpack.c.l.b16 %v51
  %v88 = vpack.c.b16 %v73, %v72
  %v89 = vpack.c.b16 %v75, %v74
  %v90 = vpack.c.b16 %v77, %v76
  %v91 = vpack.c.b16 %v79, %v78
  %v92 = vpack.c.b16 %v81, %v80
  %v93 = vpack.c.b16 %v83, %v82
  %v94 = vpack.c.b16 %v85, %v84
  %v95 = vpack.c.b16 %v87, %v86
  %v100 = vunpack.c.l.b16 %v52
  %v101 = vunpack.c.h.b16 %v52
  %v102 = vunpack.c.l.b16 %v53
  %v103 = vunpack.c.h.b16 %v53
  %v104 = vunpack.c.l.b16 %v54
  %v105 = vunpack.c.h.b16 %v54
  %v106 = vunpack.c.l.b16 %v55
  %v107 = vunpack.c.h.b16 %v55
  %v108 = vpack.c.b16 %v104, %v100
  %v109 = vpack.c.b16 %v105, %v101
  %v110 = vpack.c.b16 %v106, %v102
  %v111 = vpack.c.b16 %v107, %v103
  %vm116 = vcmask 130048
  %v118 = vsel %vm116, %v88, 0
  %v121 = vsel %vm116, %v89, 0
  %v124 = vsel %vm116, %v90, 0
  %v127 = vsel %vm116, %v91, 0
  %v130 = vsel %vm116, %v92, 0
  %v133 = vsel %vm116, %v93, 0
  %v136 = vsel %vm116, %v94, 0
  %v139 = vsel %vm116, %v95, 0
  %141 = vmatprep.subr.bf16.mxu0 0
  %142 = vmatpush1.bf16.msra.mxu0 0
  %143 = vmatprep.subr.bf16.mxu0 0
  %144 = vmatpush1.bf16.msra.mxu0 0
  %145 = vmatprep.subr.bf16.mxu0 0
  %146 = vmatpush1.bf16.msra.mxu0 0
  %147 = vmatprep.subr.bf16.mxu0 0
  %148 = vmatpush1.bf16.msra.mxu0 0
  %149 = vmatprep.subr.bf16.mxu0 0
  %150 = vmatpush1.bf16.msra.mxu0 0
  %151 = vmatprep.subr.bf16.mxu0 0
  %152 = vmatpush1.bf16.msra.mxu0 0
  %153 = vmatprep.subr.bf16.mxu0 0
  %154 = vmatpush1.bf16.msra.mxu0 0
  %155 = vmatprep.subr.bf16.mxu0 %v109
  %156 = vmatpush1.bf16.msra.mxu0 %v108
  %157 = vmatprep.subr.bf16.mxu0 0
  %158 = vmatpush2.bf16.msra.mxu0 0
  %159 = vmatprep.subr.bf16.mxu0 0
  %160 = vmatpush2.bf16.msra.mxu0 0
  %161 = vmatprep.subr.bf16.mxu0 0
  %162 = vmatpush2.bf16.msra.mxu0 0
  %163 = vmatprep.subr.bf16.mxu0 0
  %164 = vmatpush2.bf16.msra.mxu0 0
  %165 = vmatprep.subr.bf16.mxu0 0
  %166 = vmatpush2.bf16.msra.mxu0 0
  %167 = vmatprep.subr.bf16.mxu0 0
  %168 = vmatpush2.bf16.msra.mxu0 0
  %169 = vmatprep.subr.bf16.mxu0 0
  %170 = vmatpush2.bf16.msra.mxu0 0
  %171 = vmatprep.subr.bf16.mxu0 0
  %172 = vmatpush2.bf16.msra.mxu0 0
  %173 = vmatprep.mubr.bf16.mxu0 0
  %174 = vmatmul.mubr.bf16.gmra.mxu0 %v118
  %v175 = vpop.f32.mrf.mxu0
  %v176 = vadd.f32 0.0, %v175
  %v177 = vpop.f32.mrf.mxu0
  %v178 = vadd.f32 0.0, %v177
  %v179 = vpop.f32.mrf.mxu0
  %v180 = vadd.f32 0.0, %v179
  %v181 = vpop.f32.mrf.mxu0
  %v182 = vadd.f32 0.0, %v181
  %183 = vmatprep.mubr.bf16.mxu0 0
  %184 = vmatmul.mubr.bf16.gmra.mxu0 %v121
  %v185 = vpop.f32.mrf.mxu0
  %v186 = vadd.f32 0.0, %v185
  %v187 = vpop.f32.mrf.mxu0
  %v188 = vadd.f32 0.0, %v187
  %v189 = vpop.f32.mrf.mxu0
  %v190 = vadd.f32 0.0, %v189
  %v191 = vpop.f32.mrf.mxu0
  %v192 = vadd.f32 0.0, %v191
  %193 = vmatprep.mubr.bf16.mxu0 0
  %194 = vmatmul.mubr.bf16.gmra.mxu0 %v124
  %v195 = vpop.f32.mrf.mxu0
  %v196 = vadd.f32 0.0, %v195
  %v197 = vpop.f32.mrf.mxu0
  %v198 = vadd.f32 0.0, %v197
  %v199 = vpop.f32.mrf.mxu0
  %v200 = vadd.f32 0.0, %v199
  %v201 = vpop.f32.mrf.mxu0
  %v202 = vadd.f32 0.0, %v201
  %203 = vmatprep.mubr.bf16.mxu0 0
  %204 = vmatmul.mubr.bf16.gmra.mxu0 %v127
  %v205 = vpop.f32.mrf.mxu0
  %v206 = vadd.f32 0.0, %v205
  %v207 = vpop.f32.mrf.mxu0
  %v208 = vadd.f32 0.0, %v207
  %v209 = vpop.f32.mrf.mxu0
  %v210 = vadd.f32 0.0, %v209
  %v211 = vpop.f32.mrf.mxu0
  %v212 = vadd.f32 0.0, %v211
  %213 = vmatprep.mubr.bf16.mxu0 0
  %214 = vmatmul.mubr.bf16.gmra.mxu0 %v130
  %v215 = vpop.f32.mrf.mxu0
  %v216 = vadd.f32 0.0, %v215
  %v217 = vpop.f32.mrf.mxu0
  %v218 = vadd.f32 0.0, %v217
  %v219 = vpop.f32.mrf.mxu0
  %v220 = vadd.f32 0.0, %v219
  %v221 = vpop.f32.mrf.mxu0
  %v222 = vadd.f32 0.0, %v221
  %223 = vmatprep.mubr.bf16.mxu0 0
  %224 = vmatmul.mubr.bf16.gmra.mxu0 %v133
  %v225 = vpop.f32.mrf.mxu0
  %v226 = vadd.f32 0.0, %v225
  %v227 = vpop.f32.mrf.mxu0
  %v228 = vadd.f32 0.0, %v227
  %v229 = vpop.f32.mrf.mxu0
  %v230 = vadd.f32 0.0, %v229
  %v231 = vpop.f32.mrf.mxu0
  %v232 = vadd.f32 0.0, %v231
  %233 = vmatprep.mubr.bf16.mxu0 0
  %234 = vmatmul.mubr.bf16.gmra.mxu0 %v136
  %v235 = vpop.f32.mrf.mxu0
  %v236 = vadd.f32 0.0, %v235
  %v237 = vpop.f32.mrf.mxu0
  %v238 = vadd.f32 0.0, %v237
  %v239 = vpop.f32.mrf.mxu0
  %v240 = vadd.f32 0.0, %v239
  %v241 = vpop.f32.mrf.mxu0
  %v242 = vadd.f32 0.0, %v241
  %243 = vmatprep.mubr.bf16.mxu0 0
  %244 = vmatmul.mubr.bf16.gmra.mxu0 %v139
  %v245 = vpop.f32.mrf.mxu0
  %v246 = vadd.f32 0.0, %v245
  %v247 = vpop.f32.mrf.mxu0
  %v248 = vadd.f32 0.0, %v247
  %v249 = vpop.f32.mrf.mxu0
  %v250 = vadd.f32 0.0, %v249
  %v251 = vpop.f32.mrf.mxu0
  %v252 = vadd.f32 0.0, %v251
  %253 = vdwg.mxu0
  %254 = vmatprep.subr.bf16.mxu0 0
  %255 = vmatpush1.bf16.msra.mxu0 0
  %256 = vmatprep.subr.bf16.mxu0 0
  %257 = vmatpush1.bf16.msra.mxu0 0
  %258 = vmatprep.subr.bf16.mxu0 0
  %259 = vmatpush1.bf16.msra.mxu0 0
  %260 = vmatprep.subr.bf16.mxu0 0
  %261 = vmatpush1.bf16.msra.mxu0 0
  %262 = vmatprep.subr.bf16.mxu0 0
  %263 = vmatpush1.bf16.msra.mxu0 0
  %264 = vmatprep.subr.bf16.mxu0 0
  %265 = vmatpush1.bf16.msra.mxu0 0
  %266 = vmatprep.subr.bf16.mxu0 0
  %267 = vmatpush1.bf16.msra.mxu0 0
  %268 = vmatprep.subr.bf16.mxu0 %v111
  %269 = vmatpush1.bf16.msra.mxu0 %v110
  %270 = vmatprep.subr.bf16.mxu0 0
  %271 = vmatpush2.bf16.msra.mxu0 0
  %272 = vmatprep.subr.bf16.mxu0 0
  %273 = vmatpush2.bf16.msra.mxu0 0
  %274 = vmatprep.subr.bf16.mxu0 0
  %275 = vmatpush2.bf16.msra.mxu0 0
  %276 = vmatprep.subr.bf16.mxu0 0
  %277 = vmatpush2.bf16.msra.mxu0 0
  %278 = vmatprep.subr.bf16.mxu0 0
  %279 = vmatpush2.bf16.msra.mxu0 0
  %280 = vmatprep.subr.bf16.mxu0 0
  %281 = vmatpush2.bf16.msra.mxu0 0
  %282 = vmatprep.subr.bf16.mxu0 0
  %283 = vmatpush2.bf16.msra.mxu0 0
  %284 = vmatprep.subr.bf16.mxu0 0
  %285 = vmatpush2.bf16.msra.mxu0 0
  %286 = vmatprep.mubr.bf16.mxu0 0
  %287 = vmatmul.mubr.bf16.gmra.mxu0 %v118
  %v288 = vpop.f32.mrf.mxu0
  %v289 = vadd.f32 0.0, %v288
  %v290 = vpop.f32.mrf.mxu0
  %v291 = vadd.f32 0.0, %v290
  %v292 = vpop.f32.mrf.mxu0
  %v293 = vadd.f32 0.0, %v292
  %v294 = vpop.f32.mrf.mxu0
  %v295 = vadd.f32 0.0, %v294
  %296 = vmatprep.mubr.bf16.mxu0 0
  %297 = vmatmul.mubr.bf16.gmra.mxu0 %v121
  %v298 = vpop.f32.mrf.mxu0
  %v299 = vadd.f32 0.0, %v298
  %v300 = vpop.f32.mrf.mxu0
  %v301 = vadd.f32 0.0, %v300
  %v302 = vpop.f32.mrf.mxu0
  %v303 = vadd.f32 0.0, %v302
  %v304 = vpop.f32.mrf.mxu0
  %v305 = vadd.f32 0.0, %v304
  %306 = vmatprep.mubr.bf16.mxu0 0
  %307 = vmatmul.mubr.bf16.gmra.mxu0 %v124
  %v308 = vpop.f32.mrf.mxu0
  %v309 = vadd.f32 0.0, %v308
  %v310 = vpop.f32.mrf.mxu0
  %v311 = vadd.f32 0.0, %v310
  %v312 = vpop.f32.mrf.mxu0
  %v313 = vadd.f32 0.0, %v312
  %v314 = vpop.f32.mrf.mxu0
  %v315 = vadd.f32 0.0, %v314
  %316 = vmatprep.mubr.bf16.mxu0 0
  %317 = vmatmul.mubr.bf16.gmra.mxu0 %v127
  %v318 = vpop.f32.mrf.mxu0
  %v319 = vadd.f32 0.0, %v318
  %v320 = vpop.f32.mrf.mxu0
  %v321 = vadd.f32 0.0, %v320
  %v322 = vpop.f32.mrf.mxu0
  %v323 = vadd.f32 0.0, %v322
  %v324 = vpop.f32.mrf.mxu0
  %v325 = vadd.f32 0.0, %v324
  %326 = vmatprep.mubr.bf16.mxu0 0
  %327 = vmatmul.mubr.bf16.gmra.mxu0 %v130
  %v328 = vpop.f32.mrf.mxu0
  %v329 = vadd.f32 0.0, %v328
  %v330 = vpop.f32.mrf.mxu0
  %v331 = vadd.f32 0.0, %v330
  %v332 = vpop.f32.mrf.mxu0
  %v333 = vadd.f32 0.0, %v332
  %v334 = vpop.f32.mrf.mxu0
  %v335 = vadd.f32 0.0, %v334
  %336 = vmatprep.mubr.bf16.mxu0 0
  %337 = vmatmul.mubr.bf16.gmra.mxu0 %v133
  %v338 = vpop.f32.mrf.mxu0
  %v339 = vadd.f32 0.0, %v338
  %v340 = vpop.f32.mrf.mxu0
  %v341 = vadd.f32 0.0, %v340
  %v342 = vpop.f32.mrf.mxu0
  %v343 = vadd.f32 0.0, %v342
  %v344 = vpop.f32.mrf.mxu0
  %v345 = vadd.f32 0.0, %v344
  %346 = vmatprep.mubr.bf16.mxu0 0
  %347 = vmatmul.mubr.bf16.gmra.mxu0 %v136
  %v348 = vpop.f32.mrf.mxu0
  %v349 = vadd.f32 0.0, %v348
  %v350 = vpop.f32.mrf.mxu0
  %v351 = vadd.f32 0.0, %v350
  %v352 = vpop.f32.mrf.mxu0
  %v353 = vadd.f32 0.0, %v352
  %v354 = vpop.f32.mrf.mxu0
  %v355 = vadd.f32 0.0, %v354
  %356 = vmatprep.mubr.bf16.mxu0 0
  %357 = vmatmul.mubr.bf16.gmra.mxu0 %v139
  %v358 = vpop.f32.mrf.mxu0
  %v359 = vadd.f32 0.0, %v358
  %v360 = vpop.f32.mrf.mxu0
  %v361 = vadd.f32 0.0, %v360
  %v362 = vpop.f32.mrf.mxu0
  %v363 = vadd.f32 0.0, %v362
  %v364 = vpop.f32.mrf.mxu0
  %v365 = vadd.f32 0.0, %v364
  %366 = vdwg.mxu0
  %v368 = vlaneseq
  %v369 = vshrl.u32 %v368, 7
  %v370 = vsub.s32 0, %v369
  %v371 = vrot.slane %v35, %v370
  %v372 = vlaneseq
  %v373 = vshrl.u32 %v372, 7
  %v374 = vsub.s32 1, %v373
  %v375 = vrot.slane %v35, %v374
  %v376 = vlaneseq
  %v377 = vshrl.u32 %v376, 7
  %v378 = vsub.s32 2, %v377
  %v379 = vrot.slane %v35, %v378
  %v380 = vlaneseq
  %v381 = vshrl.u32 %v380, 7
  %v382 = vsub.s32 3, %v381
  %v383 = vrot.slane %v35, %v382
  %v388 = vadd.f32 %v176, %v371
  %v389 = vadd.f32 %v178, %v375
  %v390 = vadd.f32 %v289, %v379
  %v391 = vadd.f32 %v291, %v383
  %v392 = vadd.f32 %v180, %v371
  %v393 = vadd.f32 %v182, %v375
  %v394 = vadd.f32 %v293, %v379
  %v395 = vadd.f32 %v295, %v383
  %v396 = vadd.f32 %v186, %v371
  %v397 = vadd.f32 %v188, %v375
  %v398 = vadd.f32 %v299, %v379
  %v399 = vadd.f32 %v301, %v383
  %v400 = vadd.f32 %v190, %v371
  %v401 = vadd.f32 %v192, %v375
  %v402 = vadd.f32 %v303, %v379
  %v403 = vadd.f32 %v305, %v383
  %v404 = vadd.f32 %v196, %v371
  %v405 = vadd.f32 %v198, %v375
  %v406 = vadd.f32 %v309, %v379
  %v407 = vadd.f32 %v311, %v383
  %v408 = vadd.f32 %v200, %v371
  %v409 = vadd.f32 %v202, %v375
  %v410 = vadd.f32 %v313, %v379
  %v411 = vadd.f32 %v315, %v383
  %v412 = vadd.f32 %v206, %v371
  %v413 = vadd.f32 %v208, %v375
  %v414 = vadd.f32 %v319, %v379
  %v415 = vadd.f32 %v321, %v383
  %v416 = vadd.f32 %v210, %v371
  %v417 = vadd.f32 %v212, %v375
  %v418 = vadd.f32 %v323, %v379
  %v419 = vadd.f32 %v325, %v383
  %v420 = vadd.f32 %v216, %v371
  %v421 = vadd.f32 %v218, %v375
  %v422 = vadd.f32 %v329, %v379
  %v423 = vadd.f32 %v331, %v383
  %v424 = vadd.f32 %v220, %v371
  %v425 = vadd.f32 %v222, %v375
  %v426 = vadd.f32 %v333, %v379
  %v427 = vadd.f32 %v335, %v383
  %v428 = vadd.f32 %v226, %v371
  %v429 = vadd.f32 %v228, %v375
  %v430 = vadd.f32 %v339, %v379
  %v431 = vadd.f32 %v341, %v383
  %v432 = vadd.f32 %v230, %v371
  %v433 = vadd.f32 %v232, %v375
  %v434 = vadd.f32 %v343, %v379
  %v435 = vadd.f32 %v345, %v383
  %v436 = vadd.f32 %v236, %v371
  %v437 = vadd.f32 %v238, %v375
  %v438 = vadd.f32 %v349, %v379
  %v439 = vadd.f32 %v351, %v383
  %v440 = vadd.f32 %v240, %v371
  %v441 = vadd.f32 %v242, %v375
  %v442 = vadd.f32 %v353, %v379
  %v443 = vadd.f32 %v355, %v383
  %v444 = vadd.f32 %v246, %v371
  %v445 = vadd.f32 %v248, %v375
  %v446 = vadd.f32 %v359, %v379
  %v447 = vadd.f32 %v361, %v383
  %v448 = vadd.f32 %v250, %v371
  %v449 = vadd.f32 %v252, %v375
  %v450 = vadd.f32 %v363, %v379
  %v451 = vadd.f32 %v365, %v383
  %v452 = vld [vmem:[#allocation2] sm:$0xff]
  %v453 = vld [vmem:[#allocation3] sm:$0xff]
  %v454 = vpack.c.bf16 %v452, %v452
  %v455 = vld [vmem:[%s2] sm:$0xff]
  %v456 = vld [vmem:[%s2 + $0x8] sm:$0xff]
  %v457 = vld [vmem:[%s2 + $0x10] sm:$0xff]
  %v458 = vld [vmem:[%s2 + $0x18] sm:$0xff]
  %v459 = vld [vmem:[%s2 + $0x20] sm:$0xff]
  %v460 = vld [vmem:[%s2 + $0x28] sm:$0xff]
  %v461 = vld [vmem:[%s2 + $0x30] sm:$0xff]
  %v462 = vld [vmem:[%s2 + $0x38] sm:$0xff]
  %v463 = vld [vmem:[%s2 + $0x40] sm:$0xff]
  %v464 = vld [vmem:[%s2 + $0x48] sm:$0xff]
  %v465 = vld [vmem:[%s2 + $0x50] sm:$0xff]
  %v466 = vld [vmem:[%s2 + $0x58] sm:$0xff]
  %v467 = vld [vmem:[%s2 + $0x60] sm:$0xff]
  %v468 = vld [vmem:[%s2 + $0x68] sm:$0xff]
  %v469 = vld [vmem:[%s2 + $0x70] sm:$0xff]
  %v470 = vld [vmem:[%s2 + $0x78] sm:$0xff]
  %v471 = vld [vmem:[%s2 + $0x80] sm:$0xff]
  %v472 = vld [vmem:[%s2 + $0x88] sm:$0xff]
  %v473 = vld [vmem:[%s2 + $0x90] sm:$0xff]
  %v474 = vld [vmem:[%s2 + $0x98] sm:$0xff]
  %v475 = vld [vmem:[%s2 + $0xa0] sm:$0xff]
  %v476 = vld [vmem:[%s2 + $0xa8] sm:$0xff]
  %v477 = vld [vmem:[%s2 + $0xb0] sm:$0xff]
  %v478 = vld [vmem:[%s2 + $0xb8] sm:$0xff]
  %v479 = vld [vmem:[%s2 + $0xc0] sm:$0xff]
  %v480 = vld [vmem:[%s2 + $0xc8] sm:$0xff]
  %v481 = vld [vmem:[%s2 + $0xd0] sm:$0xff]
  %v482 = vld [vmem:[%s2 + $0xd8] sm:$0xff]
  %v483 = vld [vmem:[%s2 + $0xe0] sm:$0xff]
  %v484 = vld [vmem:[%s2 + $0xe8] sm:$0xff]
  %v485 = vld [vmem:[%s2 + $0xf0] sm:$0xff]
  %v486 = vld [vmem:[%s2 + $0xf8] sm:$0xff]
  %v519 = vunpack.c.l.b16 %v455
  %v520 = vunpack.c.h.b16 %v455
  %v521 = vunpack.c.l.b16 %v456
  %v522 = vunpack.c.h.b16 %v456
  %v523 = vunpack.c.l.b16 %v457
  %v524 = vunpack.c.h.b16 %v457
  %v525 = vunpack.c.l.b16 %v458
  %v526 = vunpack.c.h.b16 %v458
  %v527 = vunpack.c.l.b16 %v459
  %v528 = vunpack.c.h.b16 %v459
  %v529 = vunpack.c.l.b16 %v460
  %v530 = vunpack.c.h.b16 %v460
  %v531 = vunpack.c.l.b16 %v461
  %v532 = vunpack.c.h.b16 %v461
  %v533 = vunpack.c.l.b16 %v462
  %v534 = vunpack.c.h.b16 %v462
  %v535 = vunpack.c.l.b16 %v463
  %v536 = vunpack.c.h.b16 %v463
  %v537 = vunpack.c.l.b16 %v464
  %v538 = vunpack.c.h.b16 %v464
  %v539 = vunpack.c.l.b16 %v465
  %v540 = vunpack.c.h.b16 %v465
  %v541 = vunpack.c.l.b16 %v466
  %v542 = vunpack.c.h.b16 %v466
  %v543 = vunpack.c.l.b16 %v467
  %v544 = vunpack.c.h.b16 %v467
  %v545 = vunpack.c.l.b16 %v468
  %v546 = vunpack.c.h.b16 %v468
  %v547 = vunpack.c.l.b16 %v469
  %v548 = vunpack.c.h.b16 %v469
  %v549 = vunpack.c.l.b16 %v470
  %v550 = vunpack.c.h.b16 %v470
  %v551 = vunpack.c.l.b16 %v471
  %v552 = vunpack.c.h.b16 %v471
  %v553 = vunpack.c.l.b16 %v472
  %v554 = vunpack.c.h.b16 %v472
  %v555 = vunpack.c.l.b16 %v473
  %v556 = vunpack.c.h.b16 %v473
  %v557 = vunpack.c.l.b16 %v474
  %v558 = vunpack.c.h.b16 %v474
  %v559 = vunpack.c.l.b16 %v475
  %v560 = vunpack.c.h.b16 %v475
  %v561 = vunpack.c.l.b16 %v476
  %v562 = vunpack.c.h.b16 %v476
  %v563 = vunpack.c.l.b16 %v477
  %v564 = vunpack.c.h.b16 %v477
  %v565 = vunpack.c.l.b16 %v478
  %v566 = vunpack.c.h.b16 %v478
  %v567 = vunpack.c.l.b16 %v479
  %v568 = vunpack.c.h.b16 %v479
  %v569 = vunpack.c.l.b16 %v480
  %v570 = vunpack.c.h.b16 %v480
  %v571 = vunpack.c.l.b16 %v481
  %v572 = vunpack.c.h.b16 %v481
  %v573 = vunpack.c.l.b16 %v482
  %v574 = vunpack.c.h.b16 %v482
  %v575 = vunpack.c.l.b16 %v483
  %v576 = vunpack.c.h.b16 %v483
  %v577 = vunpack.c.l.b16 %v484
  %v578 = vunpack.c.h.b16 %v484
  %v579 = vunpack.c.l.b16 %v485
  %v580 = vunpack.c.h.b16 %v485
  %v581 = vunpack.c.l.b16 %v486
  %v582 = vunpack.c.h.b16 %v486
  %v583 = vpack.c.b16 %v523, %v519
  %v584 = vpack.c.b16 %v524, %v520
  %v585 = vpack.c.b16 %v525, %v521
  %v586 = vpack.c.b16 %v526, %v522
  %v587 = vpack.c.b16 %v531, %v527
  %v588 = vpack.c.b16 %v532, %v528
  %v589 = vpack.c.b16 %v533, %v529
  %v590 = vpack.c.b16 %v534, %v530
  %v591 = vpack.c.b16 %v539, %v535
  %v592 = vpack.c.b16 %v540, %v536
  %v593 = vpack.c.b16 %v541, %v537
  %v594 = vpack.c.b16 %v542, %v538
  %v595 = vpack.c.b16 %v547, %v543
  %v596 = vpack.c.b16 %v548, %v544
  %v597 = vpack.c.b16 %v549, %v545
  %v598 = vpack.c.b16 %v550, %v546
  %v599 = vpack.c.b16 %v555, %v551
  %v600 = vpack.c.b16 %v556, %v552
  %v601 = vpack.c.b16 %v557, %v553
  %v602 = vpack.c.b16 %v558, %v554
  %v603 = vpack.c.b16 %v563, %v559
  %v604 = vpack.c.b16 %v564, %v560
  %v605 = vpack.c.b16 %v565, %v561
  %v606 = vpack.c.b16 %v566, %v562
  %v607 = vpack.c.b16 %v571, %v567
  %v608 = vpack.c.b16 %v572, %v568
  %v609 = vpack.c.b16 %v573, %v569
  %v610 = vpack.c.b16 %v574, %v570
  %v611 = vpack.c.b16 %v579, %v575
  %v612 = vpack.c.b16 %v580, %v576
  %v613 = vpack.c.b16 %v581, %v577
  %v614 = vpack.c.b16 %v582, %v578
  %647 = vmatprep.subr.bf16.mxu0 %v612
  %648 = vmatpush1.bf16.msra.mxu0 %v611
  %649 = vmatprep.subr.bf16.mxu0 %v608
  %650 = vmatpush1.bf16.msra.mxu0 %v607
  %651 = vmatprep.subr.bf16.mxu0 %v604
  %652 = vmatpush1.bf16.msra.mxu0 %v603
  %653 = vmatprep.subr.bf16.mxu0 %v600
  %654 = vmatpush1.bf16.msra.mxu0 %v599
  %655 = vmatprep.subr.bf16.mxu0 %v596
  %656 = vmatpush1.bf16.msra.mxu0 %v595
  %657 = vmatprep.subr.bf16.mxu0 %v592
  %658 = vmatpush1.bf16.msra.mxu0 %v591
  %659 = vmatprep.subr.bf16.mxu0 %v588
  %660 = vmatpush1.bf16.msra.mxu0 %v587
  %661 = vmatprep.subr.bf16.mxu0 %v584
  %662 = vmatpush1.bf16.msra.mxu0 %v583
  %663 = vmatprep.subr.bf16.mxu0 0
  %664 = vmatpush2.bf16.msra.mxu0 0
  %665 = vmatprep.subr.bf16.mxu0 0
  %666 = vmatpush2.bf16.msra.mxu0 0
  %667 = vmatprep.subr.bf16.mxu0 0
  %668 = vmatpush2.bf16.msra.mxu0 0
  %669 = vmatprep.subr.bf16.mxu0 0
  %670 = vmatpush2.bf16.msra.mxu0 0
  %671 = vmatprep.subr.bf16.mxu0 0
  %672 = vmatpush2.bf16.msra.mxu0 0
  %673 = vmatprep.subr.bf16.mxu0 0
  %674 = vmatpush2.bf16.msra.mxu0 0
  %675 = vmatprep.subr.bf16.mxu0 0
  %676 = vmatpush2.bf16.msra.mxu0 0
  %677 = vmatprep.subr.bf16.mxu0 0
  %678 = vmatpush2.bf16.msra.mxu0 0
  %679 = vmatprep.mubr.bf16.mxu0 0
  %680 = vmatmul.mubr.bf16.gmra.mxu0 %v454
  %v681 = vpop.f32.mrf.mxu0
  %v682 = vadd.f32 0.0, %v681
  %v683 = vpop.f32.mrf.mxu0
  %v684 = vadd.f32 0.0, %v683
  %v685 = vpop.f32.mrf.mxu0
  %v686 = vpop.f32.mrf.mxu0
  %687 = vdwg.mxu0
  %688 = vmatprep.subr.bf16.mxu0 %v614
  %689 = vmatpush1.bf16.msra.mxu0 %v613
  %690 = vmatprep.subr.bf16.mxu0 %v610
  %691 = vmatpush1.bf16.msra.mxu0 %v609
  %692 = vmatprep.subr.bf16.mxu0 %v606
  %693 = vmatpush1.bf16.msra.mxu0 %v605
  %694 = vmatprep.subr.bf16.mxu0 %v602
  %695 = vmatpush1.bf16.msra.mxu0 %v601
  %696 = vmatprep.subr.bf16.mxu0 %v598
  %697 = vmatpush1.bf16.msra.mxu0 %v597
  %698 = vmatprep.subr.bf16.mxu0 %v594
  %699 = vmatpush1.bf16.msra.mxu0 %v593
  %700 = vmatprep.subr.bf16.mxu0 %v590
  %701 = vmatpush1.bf16.msra.mxu0 %v589
  %702 = vmatprep.subr.bf16.mxu0 %v586
  %703 = vmatpush1.bf16.msra.mxu0 %v585
  %704 = vmatprep.subr.bf16.mxu0 0
  %705 = vmatpush2.bf16.msra.mxu0 0
  %706 = vmatprep.subr.bf16.mxu0 0
  %707 = vmatpush2.bf16.msra.mxu0 0
  %708 = vmatprep.subr.bf16.mxu0 0
  %709 = vmatpush2.bf16.msra.mxu0 0
  %710 = vmatprep.subr.bf16.mxu0 0
  %711 = vmatpush2.bf16.msra.mxu0 0
  %712 = vmatprep.subr.bf16.mxu0 0
  %713 = vmatpush2.bf16.msra.mxu0 0
  %714 = vmatprep.subr.bf16.mxu0 0
  %715 = vmatpush2.bf16.msra.mxu0 0
  %716 = vmatprep.subr.bf16.mxu0 0
  %717 = vmatpush2.bf16.msra.mxu0 0
  %718 = vmatprep.subr.bf16.mxu0 0
  %719 = vmatpush2.bf16.msra.mxu0 0
  %720 = vmatprep.mubr.bf16.mxu0 0
  %721 = vmatmul.mubr.bf16.gmra.mxu0 %v454
  %v722 = vpop.f32.mrf.mxu0
  %v723 = vadd.f32 0.0, %v722
  %v724 = vpop.f32.mrf.mxu0
  %v725 = vadd.f32 0.0, %v724
  %v726 = vpop.f32.mrf.mxu0
  %v727 = vpop.f32.mrf.mxu0
  %728 = vdwg.mxu0
  %v733 = vrot.slane %v682, 1
  %v734 = vrot.slane %v684, 1
  %v735 = vrot.slane %v723, 1
  %v736 = vrot.slane %v725, 1
  %v737 = vrot.slane %v682, 2
  %v738 = vrot.slane %v684, 2
  %v739 = vrot.slane %v723, 2
  %v740 = vrot.slane %v725, 2
  %v741 = vrot.slane %v682, 3
  %v742 = vrot.slane %v684, 3
  %v743 = vrot.slane %v723, 3
  %v744 = vrot.slane %v725, 3
  %v745 = vrot.slane %v682, 4
  %v746 = vrot.slane %v684, 4
  %v747 = vrot.slane %v723, 4
  %v748 = vrot.slane %v725, 4
  %v749 = vrot.slane %v682, 5
  %v750 = vrot.slane %v684, 5
  %v751 = vrot.slane %v723, 5
  %v752 = vrot.slane %v725, 5
  %v753 = vrot.slane %v682, 6
  %v754 = vrot.slane %v684, 6
  %v755 = vrot.slane %v723, 6
  %v756 = vrot.slane %v725, 6
  %v757 = vrot.slane %v682, 7
  %v758 = vrot.slane %v684, 7
  %v759 = vrot.slane %v723, 7
  %v760 = vrot.slane %v725, 7
  %v793 = vadd.f32 %v388, %v682
  %v794 = vadd.f32 %v389, %v684
  %v795 = vadd.f32 %v390, %v723
  %v796 = vadd.f32 %v391, %v725
  %v797 = vadd.f32 %v396, %v733
  %v798 = vadd.f32 %v397, %v734
  %v799 = vadd.f32 %v398, %v735
  %v800 = vadd.f32 %v399, %v736
  %v801 = vadd.f32 %v404, %v737
  %v802 = vadd.f32 %v405, %v738
  %v803 = vadd.f32 %v406, %v739
  %v804 = vadd.f32 %v407, %v740
  %v805 = vadd.f32 %v412, %v741
  %v806 = vadd.f32 %v413, %v742
  %v807 = vadd.f32 %v414, %v743
  %v808 = vadd.f32 %v415, %v744
  %v809 = vadd.f32 %v420, %v745
  %v810 = vadd.f32 %v421, %v746
  %v811 = vadd.f32 %v422, %v747
  %v812 = vadd.f32 %v423, %v748
  %v813 = vadd.f32 %v428, %v749
  %v814 = vadd.f32 %v429, %v750
  %v815 = vadd.f32 %v430, %v751
  %v816 = vadd.f32 %v431, %v752
  %v817 = vadd.f32 %v436, %v753
  %v818 = vadd.f32 %v437, %v754
  %v819 = vadd.f32 %v438, %v755
  %v820 = vadd.f32 %v439, %v756
  %v821 = vadd.f32 %v444, %v757
  %v822 = vadd.f32 %v445, %v758
  %v823 = vadd.f32 %v446, %v759
  %v824 = vadd.f32 %v447, %v760
  %v825 = vmul.f32 %v793, 0.5
  %v826 = vmul.f32 %v797, 0.5
  %v827 = vmul.f32 %v801, 0.5
  %v828 = vmul.f32 %v805, 0.5
  %v829 = vmul.f32 %v809, 0.5
  %v830 = vmul.f32 %v813, 0.5
  %v831 = vmul.f32 %v817, 0.5
  %v832 = vmul.f32 %v821, 0.5
  %v833 = vtanh.pop %v825
  %v834 = vtanh.pop %v826
  %v835 = vtanh.pop %v827
  %v836 = vtanh.pop %v828
  %v837 = vtanh.pop %v829
  %v838 = vtanh.pop %v830
  %v839 = vtanh.pop %v831
  %v840 = vtanh.pop %v832
  %v841 = vmul.f32 %v833, 0.5
  %v842 = vmul.f32 %v834, 0.5
  %v843 = vmul.f32 %v835, 0.5
  %v844 = vmul.f32 %v836, 0.5
  %v845 = vmul.f32 %v837, 0.5
  %v846 = vmul.f32 %v838, 0.5
  %v847 = vmul.f32 %v839, 0.5
  %v848 = vmul.f32 %v840, 0.5
  %v849 = vadd.f32 %v841, 0.5
  %v850 = vadd.f32 %v842, 0.5
  %v851 = vadd.f32 %v843, 0.5
  %v852 = vadd.f32 %v844, 0.5
  %v853 = vadd.f32 %v845, 0.5
  %v854 = vadd.f32 %v846, 0.5
  %v855 = vadd.f32 %v847, 0.5
  %v856 = vadd.f32 %v848, 0.5
  %v857 = vmul.f32 %v794, 0.5
  %v858 = vmul.f32 %v798, 0.5
  %v859 = vmul.f32 %v802, 0.5
  %v860 = vmul.f32 %v806, 0.5
  %v861 = vmul.f32 %v810, 0.5
  %v862 = vmul.f32 %v814, 0.5
  %v863 = vmul.f32 %v818, 0.5
  %v864 = vmul.f32 %v822, 0.5
  %v865 = vtanh.pop %v857
  %v866 = vtanh.pop %v858
  %v867 = vtanh.pop %v859
  %v868 = vtanh.pop %v860
  %v869 = vtanh.pop %v861
  %v870 = vtanh.pop %v862
  %v871 = vtanh.pop %v863
  %v872 = vtanh.pop %v864
  %v873 = vmul.f32 %v865, 0.5
  %v874 = vmul.f32 %v866, 0.5
  %v875 = vmul.f32 %v867, 0.5
  %v876 = vmul.f32 %v868, 0.5
  %v877 = vmul.f32 %v869, 0.5
  %v878 = vmul.f32 %v870, 0.5
  %v879 = vmul.f32 %v871, 0.5
  %v880 = vmul.f32 %v872, 0.5
  %v881 = vadd.f32 %v873, 0.5
  %v882 = vadd.f32 %v874, 0.5
  %v883 = vadd.f32 %v875, 0.5
  %v884 = vadd.f32 %v876, 0.5
  %v885 = vadd.f32 %v877, 0.5
  %v886 = vadd.f32 %v878, 0.5
  %v887 = vadd.f32 %v879, 0.5
  %v888 = vadd.f32 %v880, 0.5
  %v889 = vmul.f32 %v795, 0.5
  %v890 = vmul.f32 %v799, 0.5
  %v891 = vmul.f32 %v803, 0.5
  %v892 = vmul.f32 %v807, 0.5
  %v893 = vmul.f32 %v811, 0.5
  %v894 = vmul.f32 %v815, 0.5
  %v895 = vmul.f32 %v819, 0.5
  %v896 = vmul.f32 %v823, 0.5
  %v897 = vtanh.pop %v889
  %v898 = vtanh.pop %v890
  %v899 = vtanh.pop %v891
  %v900 = vtanh.pop %v892
  %v901 = vtanh.pop %v893
  %v902 = vtanh.pop %v894
  %v903 = vtanh.pop %v895
  %v904 = vtanh.pop %v896
  %v905 = vmul.f32 %v897, 0.5
  %v906 = vmul.f32 %v898, 0.5
  %v907 = vmul.f32 %v899, 0.5
  %v908 = vmul.f32 %v900, 0.5
  %v909 = vmul.f32 %v901, 0.5
  %v910 = vmul.f32 %v902, 0.5
  %v911 = vmul.f32 %v903, 0.5
  %v912 = vmul.f32 %v904, 0.5
  %v913 = vadd.f32 %v905, 0.5
  %v914 = vadd.f32 %v906, 0.5
  %v915 = vadd.f32 %v907, 0.5
  %v916 = vadd.f32 %v908, 0.5
  %v917 = vadd.f32 %v909, 0.5
  %v918 = vadd.f32 %v910, 0.5
  %v919 = vadd.f32 %v911, 0.5
  %v920 = vadd.f32 %v912, 0.5
  %v921 = vtanh.pop %v796
  %v922 = vtanh.pop %v800
  %v923 = vtanh.pop %v804
  %v924 = vtanh.pop %v808
  %v925 = vtanh.pop %v812
  %v926 = vtanh.pop %v816
  %v927 = vtanh.pop %v820
  %v928 = vtanh.pop %v824
  %v930 = vrot.slane %v453, 1
  %v931 = vrot.slane %v453, 2
  %v932 = vrot.slane %v453, 3
  %v933 = vrot.slane %v453, 4
  %v934 = vrot.slane %v453, 5
  %v935 = vrot.slane %v453, 6
  %v936 = vrot.slane %v453, 7
  %v945 = vmul.f32 %v881, %v453
  %v946 = vmul.f32 %v882, %v930
  %v947 = vmul.f32 %v883, %v931
  %v948 = vmul.f32 %v884, %v932
  %v949 = vmul.f32 %v885, %v933
  %v950 = vmul.f32 %v886, %v934
  %v951 = vmul.f32 %v887, %v935
  %v952 = vmul.f32 %v888, %v936
  %v953 = vmul.f32 %v849, %v921
  %v954 = vmul.f32 %v850, %v922
  %v955 = vmul.f32 %v851, %v923
  %v956 = vmul.f32 %v852, %v924
  %v957 = vmul.f32 %v853, %v925
  %v958 = vmul.f32 %v854, %v926
  %v959 = vmul.f32 %v855, %v927
  %v960 = vmul.f32 %v856, %v928
  %v961 = vadd.f32 %v945, %v953
  %v962 = vadd.f32 %v946, %v954
  %v963 = vadd.f32 %v947, %v955
  %v964 = vadd.f32 %v948, %v956
  %v965 = vadd.f32 %v949, %v957
  %v966 = vadd.f32 %v950, %v958
  %v967 = vadd.f32 %v951, %v959
  %v968 = vadd.f32 %v952, %v960
  %v969 = vtanh.pop %v961
  %v970 = vtanh.pop %v962
  %v971 = vtanh.pop %v963
  %v972 = vtanh.pop %v964
  %v973 = vtanh.pop %v965
  %v974 = vtanh.pop %v966
  %v975 = vtanh.pop %v967
  %v976 = vtanh.pop %v968
  %v977 = vmul.f32 %v913, %v969
  %v978 = vmul.f32 %v914, %v970
  %v979 = vmul.f32 %v915, %v971
  %v980 = vmul.f32 %v916, %v972
  %v981 = vmul.f32 %v917, %v973
  %v982 = vmul.f32 %v918, %v974
  %v983 = vmul.f32 %v919, %v975
  %v984 = vmul.f32 %v920, %v976
  %985 = vst [vmem:[%s6] sm:$0x1] %v977
  %986 = vst [vmem:[%s6 + $0x10] sm:$0x1] %v978
  %987 = vst [vmem:[%s6 + $0x20] sm:$0x1] %v979
  %988 = vst [vmem:[%s6 + $0x30] sm:$0x1] %v980
  %989 = vst [vmem:[%s6 + $0x40] sm:$0x1] %v981
  %990 = vst [vmem:[%s6 + $0x50] sm:$0x1] %v982
  %991 = vst [vmem:[%s6 + $0x60] sm:$0x1] %v983
  %992 = vst [vmem:[%s6 + $0x70] sm:$0x1] %v984
  %v993 = vpack.c.bf16 %v977, %v977
  %v994 = vpack.c.bf16 %v978, %v978
  %v995 = vpack.c.bf16 %v979, %v979
  %v996 = vpack.c.bf16 %v980, %v980
  %v997 = vpack.c.bf16 %v981, %v981
  %v998 = vpack.c.bf16 %v982, %v982
  %v999 = vpack.c.bf16 %v983, %v983
  %v1000 = vpack.c.bf16 %v984, %v984
  %v1001 = vld [vmem:[%s2] sm:$0xff]
  %v1002 = vld [vmem:[%s2 + $0x8] sm:$0xff]
  %v1003 = vld [vmem:[%s2 + $0x10] sm:$0xff]
  %v1004 = vld [vmem:[%s2 + $0x18] sm:$0xff]
  %v1005 = vld [vmem:[%s2 + $0x20] sm:$0xff]
  %v1006 = vld [vmem:[%s2 + $0x28] sm:$0xff]
  %v1007 = vld [vmem:[%s2 + $0x30] sm:$0xff]
  %v1008 = vld [vmem:[%s2 + $0x38] sm:$0xff]
  %v1009 = vld [vmem:[%s2 + $0x40] sm:$0xff]
  %v1010 = vld [vmem:[%s2 + $0x48] sm:$0xff]
  %v1011 = vld [vmem:[%s2 + $0x50] sm:$0xff]
  %v1012 = vld [vmem:[%s2 + $0x58] sm:$0xff]
  %v1013 = vld [vmem:[%s2 + $0x60] sm:$0xff]
  %v1014 = vld [vmem:[%s2 + $0x68] sm:$0xff]
  %v1015 = vld [vmem:[%s2 + $0x70] sm:$0xff]
  %v1016 = vld [vmem:[%s2 + $0x78] sm:$0xff]
  %v1017 = vld [vmem:[%s2 + $0x80] sm:$0xff]
  %v1018 = vld [vmem:[%s2 + $0x88] sm:$0xff]
  %v1019 = vld [vmem:[%s2 + $0x90] sm:$0xff]
  %v1020 = vld [vmem:[%s2 + $0x98] sm:$0xff]
  %v1021 = vld [vmem:[%s2 + $0xa0] sm:$0xff]
  %v1022 = vld [vmem:[%s2 + $0xa8] sm:$0xff]
  %v1023 = vld [vmem:[%s2 + $0xb0] sm:$0xff]
  %v1024 = vld [vmem:[%s2 + $0xb8] sm:$0xff]
  %v1025 = vld [vmem:[%s2 + $0xc0] sm:$0xff]
  %v1026 = vld [vmem:[%s2 + $0xc8] sm:$0xff]
  %v1027 = vld [vmem:[%s2 + $0xd0] sm:$0xff]
  %v1028 = vld [vmem:[%s2 + $0xd8] sm:$0xff]
  %v1029 = vld [vmem:[%s2 + $0xe0] sm:$0xff]
  %v1030 = vld [vmem:[%s2 + $0xe8] sm:$0xff]
  %v1031 = vld [vmem:[%s2 + $0xf0] sm:$0xff]
  %v1032 = vld [vmem:[%s2 + $0xf8] sm:$0xff]
  %v1041 = vunpack.c.l.b16 %v993
  %v1042 = vunpack.c.l.b16 %v994
  %v1043 = vunpack.c.l.b16 %v995
  %v1044 = vunpack.c.l.b16 %v996
  %v1045 = vunpack.c.l.b16 %v997
  %v1046 = vunpack.c.l.b16 %v998
  %v1047 = vunpack.c.l.b16 %v999
  %v1048 = vunpack.c.l.b16 %v1000
  %v1049 = vrot.slane %v1042, 7
  %vm1050 = vcmask 1041409
  %v1051 = vsel %vm1050, %v1049, %v1041
  %v1052 = vrot.slane %v1043, 6
  %vm1053 = vcmask 1042434
  %v1054 = vsel %vm1053, %v1052, %v1051
  %v1055 = vrot.slane %v1044, 5
  %vm1056 = vcmask 1043459
  %v1057 = vsel %vm1056, %v1055, %v1054
  %v1058 = vrot.slane %v1045, 4
  %vm1059 = vcmask 1044484
  %v1060 = vsel %vm1059, %v1058, %v1057
  %v1061 = vrot.slane %v1046, 3
  %vm1062 = vcmask 1045509
  %v1063 = vsel %vm1062, %v1061, %v1060
  %v1064 = vrot.slane %v1047, 2
  %vm1065 = vcmask 1046534
  %v1066 = vsel %vm1065, %v1064, %v1063
  %v1067 = vrot.slane %v1048, 1
  %vm1068 = vcmask 1047559
  %v1069 = vsel %vm1068, %v1067, %v1066
  %v1070 = vpack.c.b16 %v1069, %v1069
  %v1104 = vunpack.c.l.b16 %v1001
  %v1105 = vunpack.c.h.b16 %v1001
  %v1106 = vunpack.c.l.b16 %v1002
  %v1107 = vunpack.c.h.b16 %v1002
  %v1108 = vunpack.c.l.b16 %v1003
  %v1109 = vunpack.c.h.b16 %v1003
  %v1110 = vunpack.c.l.b16 %v1004
  %v1111 = vunpack.c.h.b16 %v1004
  %v1112 = vunpack.c.l.b16 %v1005
  %v1113 = vunpack.c.h.b16 %v1005
  %v1114 = vunpack.c.l.b16 %v1006
  %v1115 = vunpack.c.h.b16 %v1006
  %v1116 = vunpack.c.l.b16 %v1007
  %v1117 = vunpack.c.h.b16 %v1007
  %v1118 = vunpack.c.l.b16 %v1008
  %v1119 = vunpack.c.h.b16 %v1008
  %v1120 = vunpack.c.l.b16 %v1009
  %v1121 = vunpack.c.h.b16 %v1009
  %v1122 = vunpack.c.l.b16 %v1010
  %v1123 = vunpack.c.h.b16 %v1010
  %v1124 = vunpack.c.l.b16 %v1011
  %v1125 = vunpack.c.h.b16 %v1011
  %v1126 = vunpack.c.l.b16 %v1012
  %v1127 = vunpack.c.h.b16 %v1012
  %v1128 = vunpack.c.l.b16 %v1013
  %v1129 = vunpack.c.h.b16 %v1013
  %v1130 = vunpack.c.l.b16 %v1014
  %v1131 = vunpack.c.h.b16 %v1014
  %v1132 = vunpack.c.l.b16 %v1015
  %v1133 = vunpack.c.h.b16 %v1015
  %v1134 = vunpack.c.l.b16 %v1016
  %v1135 = vunpack.c.h.b16 %v1016
  %v1136 = vunpack.c.l.b16 %v1017
  %v1137 = vunpack.c.h.b16 %v1017
  %v1138 = vunpack.c.l.b16 %v1018
  %v1139 = vunpack.c.h.b16 %v1018
  %v1140 = vunpack.c.l.b16 %v1019
  %v1141 = vunpack.c.h.b16 %v1019
  %v1142 = vunpack.c.l.b16 %v1020
  %v1143 = vunpack.c.h.b16 %v1020
  %v1144 = vunpack.c.l.b16 %v1021
  %v1145 = vunpack.c.h.b16 %v1021
  %v1146 = vunpack.c.l.b16 %v1022
  %v1147 = vunpack.c.h.b16 %v1022
  %v1148 = vunpack.c.l.b16 %v1023
  %v1149 = vunpack.c.h.b16 %v1023
  %v1150 = vunpack.c.l.b16 %v1024
  %v1151 = vunpack.c.h.b16 %v1024
  %v1152 = vunpack.c.l.b16 %v1025
  %v1153 = vunpack.c.h.b16 %v1025
  %v1154 = vunpack.c.l.b16 %v1026
  %v1155 = vunpack.c.h.b16 %v1026
  %v1156 = vunpack.c.l.b16 %v1027
  %v1157 = vunpack.c.h.b16 %v1027
  %v1158 = vunpack.c.l.b16 %v1028
  %v1159 = vunpack.c.h.b16 %v1028
  %v1160 = vunpack.c.l.b16 %v1029
  %v1161 = vunpack.c.h.b16 %v1029
  %v1162 = vunpack.c.l.b16 %v1030
  %v1163 = vunpack.c.h.b16 %v1030
  %v1164 = vunpack.c.l.b16 %v1031
  %v1165 = vunpack.c.h.b16 %v1031
  %v1166 = vunpack.c.l.b16 %v1032
  %v1167 = vunpack.c.h.b16 %v1032
  %v1168 = vpack.c.b16 %v1108, %v1104
  %v1169 = vpack.c.b16 %v1109, %v1105
  %v1170 = vpack.c.b16 %v1110, %v1106
  %v1171 = vpack.c.b16 %v1111, %v1107
  %v1172 = vpack.c.b16 %v1116, %v1112
  %v1173 = vpack.c.b16 %v1117, %v1113
  %v1174 = vpack.c.b16 %v1118, %v1114
  %v1175 = vpack.c.b16 %v1119, %v1115
  %v1176 = vpack.c.b16 %v1124, %v1120
  %v1177 = vpack.c.b16 %v1125, %v1121
  %v1178 = vpack.c.b16 %v1126, %v1122
  %v1179 = vpack.c.b16 %v1127, %v1123
  %v1180 = vpack.c.b16 %v1132, %v1128
  %v1181 = vpack.c.b16 %v1133, %v1129
  %v1182 = vpack.c.b16 %v1134, %v1130
  %v1183 = vpack.c.b16 %v1135, %v1131
  %v1184 = vpack.c.b16 %v1140, %v1136
  %v1185 = vpack.c.b16 %v1141, %v1137
  %v1186 = vpack.c.b16 %v1142, %v1138
  %v1187 = vpack.c.b16 %v1143, %v1139
  %v1188 = vpack.c.b16 %v1148, %v1144
  %v1189 = vpack.c.b16 %v1149, %v1145
  %v1190 = vpack.c.b16 %v1150, %v1146
  %v1191 = vpack.c.b16 %v1151, %v1147
  %v1192 = vpack.c.b16 %v1156, %v1152
  %v1193 = vpack.c.b16 %v1157, %v1153
  %v1194 = vpack.c.b16 %v1158, %v1154
  %v1195 = vpack.c.b16 %v1159, %v1155
  %v1196 = vpack.c.b16 %v1164, %v1160
  %v1197 = vpack.c.b16 %v1165, %v1161
  %v1198 = vpack.c.b16 %v1166, %v1162
  %v1199 = vpack.c.b16 %v1167, %v1163
  %1232 = vmatprep.subr.bf16.mxu0 %v1197
  %1233 = vmatpush1.bf16.msra.mxu0 %v1196
  %1234 = vmatprep.subr.bf16.mxu0 %v1193
  %1235 = vmatpush1.bf16.msra.mxu0 %v1192
  %1236 = vmatprep.subr.bf16.mxu0 %v1189
  %1237 = vmatpush1.bf16.msra.mxu0 %v1188
  %1238 = vmatprep.subr.bf16.mxu0 %v1185
  %1239 = vmatpush1.bf16.msra.mxu0 %v1184
  %1240 = vmatprep.subr.bf16.mxu0 %v1181
  %1241 = vmatpush1.bf16.msra.mxu0 %v1180
  %1242 = vmatprep.subr.bf16.mxu0 %v1177
  %1243 = vmatpush1.bf16.msra.mxu0 %v1176
  %1244 = vmatprep.subr.bf16.mxu0 %v1173
  %1245 = vmatpush1.bf16.msra.mxu0 %v1172
  %1246 = vmatprep.subr.bf16.mxu0 %v1169
  %1247 = vmatpush1.bf16.msra.mxu0 %v1168
  %1248 = vmatprep.subr.bf16.mxu0 0
  %1249 = vmatpush2.bf16.msra.mxu0 0
  %1250 = vmatprep.subr.bf16.mxu0 0
  %1251 = vmatpush2.bf16.msra.mxu0 0
  %1252 = vmatprep.subr.bf16.mxu0 0
  %1253 = vmatpush2.bf16.msra.mxu0 0
  %1254 = vmatprep.subr.bf16.mxu0 0
  %1255 = vmatpush2.bf16.msra.mxu0 0
  %1256 = vmatprep.subr.bf16.mxu0 0
  %1257 = vmatpush2.bf16.msra.mxu0 0
  %1258 = vmatprep.subr.bf16.mxu0 0
  %1259 = vmatpush2.bf16.msra.mxu0 0
  %1260 = vmatprep.subr.bf16.mxu0 0
  %1261 = vmatpush2.bf16.msra.mxu0 0
  %1262 = vmatprep.subr.bf16.mxu0 0
  %1263 = vmatpush2.bf16.msra.mxu0 0
  %1264 = vmatprep.mubr.bf16.mxu0 0
  %1265 = vmatmul.mubr.bf16.gmra.mxu0 %v1070
  %v1266 = vpop.f32.mrf.mxu0
  %v1267 = vadd.f32 0.0, %v1266
  %v1268 = vpop.f32.mrf.mxu0
  %v1269 = vadd.f32 0.0, %v1268
  %v1270 = vpop.f32.mrf.mxu0
  %v1271 = vpop.f32.mrf.mxu0
  %1272 = vdwg.mxu0
  %1273 = vmatprep.subr.bf16.mxu0 %v1199
  %1274 = vmatpush1.bf16.msra.mxu0 %v1198
  %1275 = vmatprep.subr.bf16.mxu0 %v1195
  %1276 = vmatpush1.bf16.msra.mxu0 %v1194
  %1277 = vmatprep.subr.bf16.mxu0 %v1191
  %1278 = vmatpush1.bf16.msra.mxu0 %v1190
  %1279 = vmatprep.subr.bf16.mxu0 %v1187
  %1280 = vmatpush1.bf16.msra.mxu0 %v1186
  %1281 = vmatprep.subr.bf16.mxu0 %v1183
  %1282 = vmatpush1.bf16.msra.mxu0 %v1182
  %1283 = vmatprep.subr.bf16.mxu0 %v1179
  %1284 = vmatpush1.bf16.msra.mxu0 %v1178
  %1285 = vmatprep.subr.bf16.mxu0 %v1175
  %1286 = vmatpush1.bf16.msra.mxu0 %v1174
  %1287 = vmatprep.subr.bf16.mxu0 %v1171
  %1288 = vmatpush1.bf16.msra.mxu0 %v1170
  %1289 = vmatprep.subr.bf16.mxu0 0
  %1290 = vmatpush2.bf16.msra.mxu0 0
  %1291 = vmatprep.subr.bf16.mxu0 0
  %1292 = vmatpush2.bf16.msra.mxu0 0
  %1293 = vmatprep.subr.bf16.mxu0 0
  %1294 = vmatpush2.bf16.msra.mxu0 0
  %1295 = vmatprep.subr.bf16.mxu0 0
  %1296 = vmatpush2.bf16.msra.mxu0 0
  %1297 = vmatprep.subr.bf16.mxu0 0
  %1298 = vmatpush2.bf16.msra.mxu0 0
  %1299 = vmatprep.subr.bf16.mxu0 0
  %1300 = vmatpush2.bf16.msra.mxu0 0
  %1301 = vmatprep.subr.bf16.mxu0 0
  %1302 = vmatpush2.bf16.msra.mxu0 0
  %1303 = vmatprep.subr.bf16.mxu0 0
  %1304 = vmatpush2.bf16.msra.mxu0 0
  %1305 = vmatprep.mubr.bf16.mxu0 0
  %1306 = vmatmul.mubr.bf16.gmra.mxu0 %v1070
  %v1307 = vpop.f32.mrf.mxu0
  %v1308 = vadd.f32 0.0, %v1307
  %v1309 = vpop.f32.mrf.mxu0
  %v1310 = vadd.f32 0.0, %v1309
  %v1311 = vpop.f32.mrf.mxu0
  %v1312 = vpop.f32.mrf.mxu0
  %1313 = vdwg.mxu0
  %v1318 = vrot.slane %v1267, 7
  %v1319 = vrot.slane %v1269, 7
  %v1320 = vrot.slane %v1308, 7
  %v1321 = vrot.slane %v1310, 7
  %v1322 = vrot.slane %v1267, 1
  %v1323 = vrot.slane %v1269, 1
  %v1324 = vrot.slane %v1308, 1
  %v1325 = vrot.slane %v1310, 1
  %v1326 = vrot.slane %v1267, 2
  %v1327 = vrot.slane %v1269, 2
  %v1328 = vrot.slane %v1308, 2
  %v1329 = vrot.slane %v1310, 2
  %v1330 = vrot.slane %v1267, 3
  %v1331 = vrot.slane %v1269, 3
  %v1332 = vrot.slane %v1308, 3
  %v1333 = vrot.slane %v1310, 3
  %v1334 = vrot.slane %v1267, 4
  %v1335 = vrot.slane %v1269, 4
  %v1336 = vrot.slane %v1308, 4
  %v1337 = vrot.slane %v1310, 4
  %v1338 = vrot.slane %v1267, 5
  %v1339 = vrot.slane %v1269, 5
  %v1340 = vrot.slane %v1308, 5
  %v1341 = vrot.slane %v1310, 5
  %v1342 = vrot.slane %v1267, 6
  %v1343 = vrot.slane %v1269, 6
  %v1344 = vrot.slane %v1308, 6
  %v1345 = vrot.slane %v1310, 6
  %v1378 = vadd.f32 %v388, %v1318
  %v1379 = vadd.f32 %v389, %v1319
  %v1380 = vadd.f32 %v390, %v1320
  %v1381 = vadd.f32 %v391, %v1321
  %v1382 = vadd.f32 %v396, %v1267
  %v1383 = vadd.f32 %v397, %v1269
  %v1384 = vadd.f32 %v398, %v1308
  %v1385 = vadd.f32 %v399, %v1310
  %v1386 = vadd.f32 %v404, %v1322
  %v1387 = vadd.f32 %v405, %v1323
  %v1388 = vadd.f32 %v406, %v1324
  %v1389 = vadd.f32 %v407, %v1325
  %v1390 = vadd.f32 %v412, %v1326
  %v1391 = vadd.f32 %v413, %v1327
  %v1392 = vadd.f32 %v414, %v1328
  %v1393 = vadd.f32 %v415, %v1329
  %v1394 = vadd.f32 %v420, %v1330
  %v1395 = vadd.f32 %v421, %v1331
  %v1396 = vadd.f32 %v422, %v1332
  %v1397 = vadd.f32 %v423, %v1333
  %v1398 = vadd.f32 %v428, %v1334
  %v1399 = vadd.f32 %v429, %v1335
  %v1400 = vadd.f32 %v430, %v1336
  %v1401 = vadd.f32 %v431, %v1337
  %v1402 = vadd.f32 %v436, %v1338
  %v1403 = vadd.f32 %v437, %v1339
  %v1404 = vadd.f32 %v438, %v1340
  %v1405 = vadd.f32 %v439, %v1341
  %v1406 = vadd.f32 %v444, %v1342
  %v1407 = vadd.f32 %v445, %v1343
  %v1408 = vadd.f32 %v446, %v1344
  %v1409 = vadd.f32 %v447, %v1345
  %v1410 = vmul.f32 %v1378, 0.5
  %v1411 = vmul.f32 %v1382, 0.5
  %v1412 = vmul.f32 %v1386, 0.5
  %v1413 = vmul.f32 %v1390, 0.5
  %v1414 = vmul.f32 %v1394, 0.5
  %v1415 = vmul.f32 %v1398, 0.5
  %v1416 = vmul.f32 %v1402, 0.5
  %v1417 = vmul.f32 %v1406, 0.5
  %v1418 = vtanh.pop %v1410
  %v1419 = vtanh.pop %v1411
  %v1420 = vtanh.pop %v1412
  %v1421 = vtanh.pop %v1413
  %v1422 = vtanh.pop %v1414
  %v1423 = vtanh.pop %v1415
  %v1424 = vtanh.pop %v1416
  %v1425 = vtanh.pop %v1417
  %v1426 = vmul.f32 %v1418, 0.5
  %v1427 = vmul.f32 %v1419, 0.5
  %v1428 = vmul.f32 %v1420, 0.5
  %v1429 = vmul.f32 %v1421, 0.5
  %v1430 = vmul.f32 %v1422, 0.5
  %v1431 = vmul.f32 %v1423, 0.5
  %v1432 = vmul.f32 %v1424, 0.5
  %v1433 = vmul.f32 %v1425, 0.5
  %v1434 = vadd.f32 %v1426, 0.5
  %v1435 = vadd.f32 %v1427, 0.5
  %v1436 = vadd.f32 %v1428, 0.5
  %v1437 = vadd.f32 %v1429, 0.5
  %v1438 = vadd.f32 %v1430, 0.5
  %v1439 = vadd.f32 %v1431, 0.5
  %v1440 = vadd.f32 %v1432, 0.5
  %v1441 = vadd.f32 %v1433, 0.5
  %v1442 = vmul.f32 %v1379, 0.5
  %v1443 = vmul.f32 %v1383, 0.5
  %v1444 = vmul.f32 %v1387, 0.5
  %v1445 = vmul.f32 %v1391, 0.5
  %v1446 = vmul.f32 %v1395, 0.5
  %v1447 = vmul.f32 %v1399, 0.5
  %v1448 = vmul.f32 %v1403, 0.5
  %v1449 = vmul.f32 %v1407, 0.5
  %v1450 = vtanh.pop %v1442
  %v1451 = vtanh.pop %v1443
  %v1452 = vtanh.pop %v1444
  %v1453 = vtanh.pop %v1445
  %v1454 = vtanh.pop %v1446
  %v1455 = vtanh.pop %v1447
  %v1456 = vtanh.pop %v1448
  %v1457 = vtanh.pop %v1449
  %v1458 = vmul.f32 %v1450, 0.5
  %v1459 = vmul.f32 %v1451, 0.5
  %v1460 = vmul.f32 %v1452, 0.5
  %v1461 = vmul.f32 %v1453, 0.5
  %v1462 = vmul.f32 %v1454, 0.5
  %v1463 = vmul.f32 %v1455, 0.5
  %v1464 = vmul.f32 %v1456, 0.5
  %v1465 = vmul.f32 %v1457, 0.5
  %v1466 = vadd.f32 %v1458, 0.5
  %v1467 = vadd.f32 %v1459, 0.5
  %v1468 = vadd.f32 %v1460, 0.5
  %v1469 = vadd.f32 %v1461, 0.5
  %v1470 = vadd.f32 %v1462, 0.5
  %v1471 = vadd.f32 %v1463, 0.5
  %v1472 = vadd.f32 %v1464, 0.5
  %v1473 = vadd.f32 %v1465, 0.5
  %v1474 = vmul.f32 %v1380, 0.5
  %v1475 = vmul.f32 %v1384, 0.5
  %v1476 = vmul.f32 %v1388, 0.5
  %v1477 = vmul.f32 %v1392, 0.5
  %v1478 = vmul.f32 %v1396, 0.5
  %v1479 = vmul.f32 %v1400, 0.5
  %v1480 = vmul.f32 %v1404, 0.5
  %v1481 = vmul.f32 %v1408, 0.5
  %v1482 = vtanh.pop %v1474
  %v1483 = vtanh.pop %v1475
  %v1484 = vtanh.pop %v1476
  %v1485 = vtanh.pop %v1477
  %v1486 = vtanh.pop %v1478
  %v1487 = vtanh.pop %v1479
  %v1488 = vtanh.pop %v1480
  %v1489 = vtanh.pop %v1481
  %v1490 = vmul.f32 %v1482, 0.5
  %v1491 = vmul.f32 %v1483, 0.5
  %v1492 = vmul.f32 %v1484, 0.5
  %v1493 = vmul.f32 %v1485, 0.5
  %v1494 = vmul.f32 %v1486, 0.5
  %v1495 = vmul.f32 %v1487, 0.5
  %v1496 = vmul.f32 %v1488, 0.5
  %v1497 = vmul.f32 %v1489, 0.5
  %v1498 = vadd.f32 %v1490, 0.5
  %v1499 = vadd.f32 %v1491, 0.5
  %v1500 = vadd.f32 %v1492, 0.5
  %v1501 = vadd.f32 %v1493, 0.5
  %v1502 = vadd.f32 %v1494, 0.5
  %v1503 = vadd.f32 %v1495, 0.5
  %v1504 = vadd.f32 %v1496, 0.5
  %v1505 = vadd.f32 %v1497, 0.5
  %v1506 = vtanh.pop %v1381
  %v1507 = vtanh.pop %v1385
  %v1508 = vtanh.pop %v1389
  %v1509 = vtanh.pop %v1393
  %v1510 = vtanh.pop %v1397
  %v1511 = vtanh.pop %v1401
  %v1512 = vtanh.pop %v1405
  %v1513 = vtanh.pop %v1409
  %v1522 = vrot.slane %v961, 7
  %v1523 = vrot.slane %v962, 7
  %v1524 = vrot.slane %v963, 7
  %v1525 = vrot.slane %v964, 7
  %v1526 = vrot.slane %v965, 7
  %v1527 = vrot.slane %v966, 7
  %v1528 = vrot.slane %v967, 7
  %v1529 = vrot.slane %v968, 7
  %v1538 = vmul.f32 %v1466, %v1522
  %v1539 = vmul.f32 %v1467, %v1523
  %v1540 = vmul.f32 %v1468, %v1524
  %v1541 = vmul.f32 %v1469, %v1525
  %v1542 = vmul.f32 %v1470, %v1526
  %v1543 = vmul.f32 %v1471, %v1527
  %v1544 = vmul.f32 %v1472, %v1528
  %v1545 = vmul.f32 %v1473, %v1529
  %v1546 = vmul.f32 %v1434, %v1506
  %v1547 = vmul.f32 %v1435, %v1507
  %v1548 = vmul.f32 %v1436, %v1508
  %v1549 = vmul.f32 %v1437, %v1509
  %v1550 = vmul.f32 %v1438, %v1510
  %v1551 = vmul.f32 %v1439, %v1511
  %v1552 = vmul.f32 %v1440, %v1512
  %v1553 = vmul.f32 %v1441, %v1513
  %v1554 = vadd.f32 %v1538, %v1546
  %v1555 = vadd.f32 %v1539, %v1547
  %v1556 = vadd.f32 %v1540, %v1548
  %v1557 = vadd.f32 %v1541, %v1549
  %v1558 = vadd.f32 %v1542, %v1550
  %v1559 = vadd.f32 %v1543, %v1551
  %v1560 = vadd.f32 %v1544, %v1552
  %v1561 = vadd.f32 %v1545, %v1553
  %v1562 = vtanh.pop %v1554
  %v1563 = vtanh.pop %v1555
  %v1564 = vtanh.pop %v1556
  %v1565 = vtanh.pop %v1557
  %v1566 = vtanh.pop %v1558
  %v1567 = vtanh.pop %v1559
  %v1568 = vtanh.pop %v1560
  %v1569 = vtanh.pop %v1561
  %v1570 = vmul.f32 %v1498, %v1562
  %v1571 = vmul.f32 %v1499, %v1563
  %v1572 = vmul.f32 %v1500, %v1564
  %v1573 = vmul.f32 %v1501, %v1565
  %v1574 = vmul.f32 %v1502, %v1566
  %v1575 = vmul.f32 %v1503, %v1567
  %v1576 = vmul.f32 %v1504, %v1568
  %v1577 = vmul.f32 %v1505, %v1569
  %1578 = vst [vmem:[%s6] sm:$0x2] %v1570
  %1579 = vst [vmem:[%s6 + $0x10] sm:$0x2] %v1571
  %1580 = vst [vmem:[%s6 + $0x20] sm:$0x2] %v1572
  %1581 = vst [vmem:[%s6 + $0x30] sm:$0x2] %v1573
  %1582 = vst [vmem:[%s6 + $0x40] sm:$0x2] %v1574
  %1583 = vst [vmem:[%s6 + $0x50] sm:$0x2] %v1575
  %1584 = vst [vmem:[%s6 + $0x60] sm:$0x2] %v1576
  %1585 = vst [vmem:[%s6 + $0x70] sm:$0x2] %v1577
  %v1586 = vpack.c.bf16 %v1570, %v1570
  %v1587 = vpack.c.bf16 %v1571, %v1571
  %v1588 = vpack.c.bf16 %v1572, %v1572
  %v1589 = vpack.c.bf16 %v1573, %v1573
  %v1590 = vpack.c.bf16 %v1574, %v1574
  %v1591 = vpack.c.bf16 %v1575, %v1575
  %v1592 = vpack.c.bf16 %v1576, %v1576
  %v1593 = vpack.c.bf16 %v1577, %v1577
  %v1594 = vld [vmem:[%s2] sm:$0xff]
  %v1595 = vld [vmem:[%s2 + $0x8] sm:$0xff]
  %v1596 = vld [vmem:[%s2 + $0x10] sm:$0xff]
  %v1597 = vld [vmem:[%s2 + $0x18] sm:$0xff]
  %v1598 = vld [vmem:[%s2 + $0x20] sm:$0xff]
  %v1599 = vld [vmem:[%s2 + $0x28] sm:$0xff]
  %v1600 = vld [vmem:[%s2 + $0x30] sm:$0xff]
  %v1601 = vld [vmem:[%s2 + $0x38] sm:$0xff]
  %v1602 = vld [vmem:[%s2 + $0x40] sm:$0xff]
  %v1603 = vld [vmem:[%s2 + $0x48] sm:$0xff]
  %v1604 = vld [vmem:[%s2 + $0x50] sm:$0xff]
  %v1605 = vld [vmem:[%s2 + $0x58] sm:$0xff]
  %v1606 = vld [vmem:[%s2 + $0x60] sm:$0xff]
  %v1607 = vld [vmem:[%s2 + $0x68] sm:$0xff]
  %v1608 = vld [vmem:[%s2 + $0x70] sm:$0xff]
  %v1609 = vld [vmem:[%s2 + $0x78] sm:$0xff]
  %v1610 = vld [vmem:[%s2 + $0x80] sm:$0xff]
  %v1611 = vld [vmem:[%s2 + $0x88] sm:$0xff]
  %v1612 = vld [vmem:[%s2 + $0x90] sm:$0xff]
  %v1613 = vld [vmem:[%s2 + $0x98] sm:$0xff]
  %v1614 = vld [vmem:[%s2 + $0xa0] sm:$0xff]
  %v1615 = vld [vmem:[%s2 + $0xa8] sm:$0xff]
  %v1616 = vld [vmem:[%s2 + $0xb0] sm:$0xff]
  %v1617 = vld [vmem:[%s2 + $0xb8] sm:$0xff]
  %v1618 = vld [vmem:[%s2 + $0xc0] sm:$0xff]
  %v1619 = vld [vmem:[%s2 + $0xc8] sm:$0xff]
  %v1620 = vld [vmem:[%s2 + $0xd0] sm:$0xff]
  %v1621 = vld [vmem:[%s2 + $0xd8] sm:$0xff]
  %v1622 = vld [vmem:[%s2 + $0xe0] sm:$0xff]
  %v1623 = vld [vmem:[%s2 + $0xe8] sm:$0xff]
  %v1624 = vld [vmem:[%s2 + $0xf0] sm:$0xff]
  %v1625 = vld [vmem:[%s2 + $0xf8] sm:$0xff]
  %v1634 = vunpack.c.l.b16 %v1586
  %v1635 = vunpack.c.l.b16 %v1587
  %v1636 = vunpack.c.l.b16 %v1588
  %v1637 = vunpack.c.l.b16 %v1589
  %v1638 = vunpack.c.l.b16 %v1590
  %v1639 = vunpack.c.l.b16 %v1591
  %v1640 = vunpack.c.l.b16 %v1592
  %v1641 = vunpack.c.l.b16 %v1593
  %v1642 = vrot.slane %v1634, 1
  %v1643 = vsel %vm1050, %v1635, %v1642
  %v1644 = vrot.slane %v1636, 7
  %v1645 = vsel %vm1053, %v1644, %v1643
  %v1646 = vrot.slane %v1637, 6
  %v1647 = vsel %vm1056, %v1646, %v1645
  %v1648 = vrot.slane %v1638, 5
  %v1649 = vsel %vm1059, %v1648, %v1647
  %v1650 = vrot.slane %v1639, 4
  %v1651 = vsel %vm1062, %v1650, %v1649
  %v1652 = vrot.slane %v1640, 3
  %v1653 = vsel %vm1065, %v1652, %v1651
  %v1654 = vrot.slane %v1641, 2
  %v1655 = vsel %vm1068, %v1654, %v1653
  %v1656 = vpack.c.b16 %v1655, %v1655
  %v1690 = vunpack.c.l.b16 %v1594
  %v1691 = vunpack.c.h.b16 %v1594
  %v1692 = vunpack.c.l.b16 %v1595
  %v1693 = vunpack.c.h.b16 %v1595
  %v1694 = vunpack.c.l.b16 %v1596
  %v1695 = vunpack.c.h.b16 %v1596
  %v1696 = vunpack.c.l.b16 %v1597
  %v1697 = vunpack.c.h.b16 %v1597
  %v1698 = vunpack.c.l.b16 %v1598
  %v1699 = vunpack.c.h.b16 %v1598
  %v1700 = vunpack.c.l.b16 %v1599
  %v1701 = vunpack.c.h.b16 %v1599
  %v1702 = vunpack.c.l.b16 %v1600
  %v1703 = vunpack.c.h.b16 %v1600
  %v1704 = vunpack.c.l.b16 %v1601
  %v1705 = vunpack.c.h.b16 %v1601
  %v1706 = vunpack.c.l.b16 %v1602
  %v1707 = vunpack.c.h.b16 %v1602
  %v1708 = vunpack.c.l.b16 %v1603
  %v1709 = vunpack.c.h.b16 %v1603
  %v1710 = vunpack.c.l.b16 %v1604
  %v1711 = vunpack.c.h.b16 %v1604
  %v1712 = vunpack.c.l.b16 %v1605
  %v1713 = vunpack.c.h.b16 %v1605
  %v1714 = vunpack.c.l.b16 %v1606
  %v1715 = vunpack.c.h.b16 %v1606
  %v1716 = vunpack.c.l.b16 %v1607
  %v1717 = vunpack.c.h.b16 %v1607
  %v1718 = vunpack.c.l.b16 %v1608
  %v1719 = vunpack.c.h.b16 %v1608
  %v1720 = vunpack.c.l.b16 %v1609
  %v1721 = vunpack.c.h.b16 %v1609
  %v1722 = vunpack.c.l.b16 %v1610
  %v1723 = vunpack.c.h.b16 %v1610
  %v1724 = vunpack.c.l.b16 %v1611
  %v1725 = vunpack.c.h.b16 %v1611
  %v1726 = vunpack.c.l.b16 %v1612
  %v1727 = vunpack.c.h.b16 %v1612
  %v1728 = vunpack.c.l.b16 %v1613
  %v1729 = vunpack.c.h.b16 %v1613
  %v1730 = vunpack.c.l.b16 %v1614
  %v1731 = vunpack.c.h.b16 %v1614
  %v1732 = vunpack.c.l.b16 %v1615
  %v1733 = vunpack.c.h.b16 %v1615
  %v1734 = vunpack.c.l.b16 %v1616
  %v1735 = vunpack.c.h.b16 %v1616
  %v1736 = vunpack.c.l.b16 %v1617
  %v1737 = vunpack.c.h.b16 %v1617
  %v1738 = vunpack.c.l.b16 %v1618
  %v1739 = vunpack.c.h.b16 %v1618
  %v1740 = vunpack.c.l.b16 %v1619
  %v1741 = vunpack.c.h.b16 %v1619
  %v1742 = vunpack.c.l.b16 %v1620
  %v1743 = vunpack.c.h.b16 %v1620
  %v1744 = vunpack.c.l.b16 %v1621
  %v1745 = vunpack.c.h.b16 %v1621
  %v1746 = vunpack.c.l.b16 %v1622
  %v1747 = vunpack.c.h.b16 %v1622
  %v1748 = vunpack.c.l.b16 %v1623
  %v1749 = vunpack.c.h.b16 %v1623
  %v1750 = vunpack.c.l.b16 %v1624
  %v1751 = vunpack.c.h.b16 %v1624
  %v1752 = vunpack.c.l.b16 %v1625
  %v1753 = vunpack.c.h.b16 %v1625
  %v1754 = vpack.c.b16 %v1694, %v1690
  %v1755 = vpack.c.b16 %v1695, %v1691
  %v1756 = vpack.c.b16 %v1696, %v1692
  %v1757 = vpack.c.b16 %v1697, %v1693
  %v1758 = vpack.c.b16 %v1702, %v1698
  %v1759 = vpack.c.b16 %v1703, %v1699
  %v1760 = vpack.c.b16 %v1704, %v1700
  %v1761 = vpack.c.b16 %v1705, %v1701
  %v1762 = vpack.c.b16 %v1710, %v1706
  %v1763 = vpack.c.b16 %v1711, %v1707
  %v1764 = vpack.c.b16 %v1712, %v1708
  %v1765 = vpack.c.b16 %v1713, %v1709
  %v1766 = vpack.c.b16 %v1718, %v1714
  %v1767 = vpack.c.b16 %v1719, %v1715
  %v1768 = vpack.c.b16 %v1720, %v1716
  %v1769 = vpack.c.b16 %v1721, %v1717
  %v1770 = vpack.c.b16 %v1726, %v1722
  %v1771 = vpack.c.b16 %v1727, %v1723
  %v1772 = vpack.c.b16 %v1728, %v1724
  %v1773 = vpack.c.b16 %v1729, %v1725
  %v1774 = vpack.c.b16 %v1734, %v1730
  %v1775 = vpack.c.b16 %v1735, %v1731
  %v1776 = vpack.c.b16 %v1736, %v1732
  %v1777 = vpack.c.b16 %v1737, %v1733
  %v1778 = vpack.c.b16 %v1742, %v1738
  %v1779 = vpack.c.b16 %v1743, %v1739
  %v1780 = vpack.c.b16 %v1744, %v1740
  %v1781 = vpack.c.b16 %v1745, %v1741
  %v1782 = vpack.c.b16 %v1750, %v1746
  %v1783 = vpack.c.b16 %v1751, %v1747
  %v1784 = vpack.c.b16 %v1752, %v1748
  %v1785 = vpack.c.b16 %v1753, %v1749
  %1818 = vmatprep.subr.bf16.mxu0 %v1783
  %1819 = vmatpush1.bf16.msra.mxu0 %v1782
  %1820 = vmatprep.subr.bf16.mxu0 %v1779
  %1821 = vmatpush1.bf16.msra.mxu0 %v1778
  %1822 = vmatprep.subr.bf16.mxu0 %v1775
  %1823 = vmatpush1.bf16.msra.mxu0 %v1774
  %1824 = vmatprep.subr.bf16.mxu0 %v1771
  %1825 = vmatpush1.bf16.msra.mxu0 %v1770
  %1826 = vmatprep.subr.bf16.mxu0 %v1767
  %1827 = vmatpush1.bf16.msra.mxu0 %v1766
  %1828 = vmatprep.subr.bf16.mxu0 %v1763
  %1829 = vmatpush1.bf16.msra.mxu0 %v1762
  %1830 = vmatprep.subr.bf16.mxu0 %v1759
  %1831 = vmatpush1.bf16.msra.mxu0 %v1758
  %1832 = vmatprep.subr.bf16.mxu0 %v1755
  %1833 = vmatpush1.bf16.msra.mxu0 %v1754
  %1834 = vmatprep.subr.bf16.mxu0 0
  %1835 = vmatpush2.bf16.msra.mxu0 0
  %1836 = vmatprep.subr.bf16.mxu0 0
  %1837 = vmatpush2.bf16.msra.mxu0 0
  %1838 = vmatprep.subr.bf16.mxu0 0
  %1839 = vmatpush2.bf16.msra.mxu0 0
  %1840 = vmatprep.subr.bf16.mxu0 0
  %1841 = vmatpush2.bf16.msra.mxu0 0
  %1842 = vmatprep.subr.bf16.mxu0 0
  %1843 = vmatpush2.bf16.msra.mxu0 0
  %1844 = vmatprep.subr.bf16.mxu0 0
  %1845 = vmatpush2.bf16.msra.mxu0 0
  %1846 = vmatprep.subr.bf16.mxu0 0
  %1847 = vmatpush2.bf16.msra.mxu0 0
  %1848 = vmatprep.subr.bf16.mxu0 0
  %1849 = vmatpush2.bf16.msra.mxu0 0
  %1850 = vmatprep.mubr.bf16.mxu0 0
  %1851 = vmatmul.mubr.bf16.gmra.mxu0 %v1656
  %v1852 = vpop.f32.mrf.mxu0
  %v1853 = vadd.f32 0.0, %v1852
  %v1854 = vpop.f32.mrf.mxu0
  %v1855 = vadd.f32 0.0, %v1854
  %v1856 = vpop.f32.mrf.mxu0
  %v1857 = vpop.f32.mrf.mxu0
  %1858 = vdwg.mxu0
  %1859 = vmatprep.subr.bf16.mxu0 %v1785
  %1860 = vmatpush1.bf16.msra.mxu0 %v1784
  %1861 = vmatprep.subr.bf16.mxu0 %v1781
  %1862 = vmatpush1.bf16.msra.mxu0 %v1780
  %1863 = vmatprep.subr.bf16.mxu0 %v1777
  %1864 = vmatpush1.bf16.msra.mxu0 %v1776
  %1865 = vmatprep.subr.bf16.mxu0 %v1773
  %1866 = vmatpush1.bf16.msra.mxu0 %v1772
  %1867 = vmatprep.subr.bf16.mxu0 %v1769
  %1868 = vmatpush1.bf16.msra.mxu0 %v1768
  %1869 = vmatprep.subr.bf16.mxu0 %v1765
  %1870 = vmatpush1.bf16.msra.mxu0 %v1764
  %1871 = vmatprep.subr.bf16.mxu0 %v1761
  %1872 = vmatpush1.bf16.msra.mxu0 %v1760
  %1873 = vmatprep.subr.bf16.mxu0 %v1757
  %1874 = vmatpush1.bf16.msra.mxu0 %v1756
  %1875 = vmatprep.subr.bf16.mxu0 0
  %1876 = vmatpush2.bf16.msra.mxu0 0
  %1877 = vmatprep.subr.bf16.mxu0 0
  %1878 = vmatpush2.bf16.msra.mxu0 0
  %1879 = vmatprep.subr.bf16.mxu0 0
  %1880 = vmatpush2.bf16.msra.mxu0 0
  %1881 = vmatprep.subr.bf16.mxu0 0
  %1882 = vmatpush2.bf16.msra.mxu0 0
  %1883 = vmatprep.subr.bf16.mxu0 0
  %1884 = vmatpush2.bf16.msra.mxu0 0
  %1885 = vmatprep.subr.bf16.mxu0 0
  %1886 = vmatpush2.bf16.msra.mxu0 0
  %1887 = vmatprep.subr.bf16.mxu0 0
  %1888 = vmatpush2.bf16.msra.mxu0 0
  %1889 = vmatprep.subr.bf16.mxu0 0
  %1890 = vmatpush2.bf16.msra.mxu0 0
  %1891 = vmatprep.mubr.bf16.mxu0 0
  %1892 = vmatmul.mubr.bf16.gmra.mxu0 %v1656
  %v1893 = vpop.f32.mrf.mxu0
  %v1894 = vadd.f32 0.0, %v1893
  %v1895 = vpop.f32.mrf.mxu0
  %v1896 = vadd.f32 0.0, %v1895
  %v1897 = vpop.f32.mrf.mxu0
  %v1898 = vpop.f32.mrf.mxu0
  %1899 = vdwg.mxu0
  %v1904 = vrot.slane %v1853, 6
  %v1905 = vrot.slane %v1855, 6
  %v1906 = vrot.slane %v1894, 6
  %v1907 = vrot.slane %v1896, 6
  %v1908 = vrot.slane %v1853, 7
  %v1909 = vrot.slane %v1855, 7
  %v1910 = vrot.slane %v1894, 7
  %v1911 = vrot.slane %v1896, 7
  %v1912 = vrot.slane %v1853, 1
  %v1913 = vrot.slane %v1855, 1
  %v1914 = vrot.slane %v1894, 1
  %v1915 = vrot.slane %v1896, 1
  %v1916 = vrot.slane %v1853, 2
  %v1917 = vrot.slane %v1855, 2
  %v1918 = vrot.slane %v1894, 2
  %v1919 = vrot.slane %v1896, 2
  %v1920 = vrot.slane %v1853, 3
  %v1921 = vrot.slane %v1855, 3
  %v1922 = vrot.slane %v1894, 3
  %v1923 = vrot.slane %v1896, 3
  %v1924 = vrot.slane %v1853, 4
  %v1925 = vrot.slane %v1855, 4
  %v1926 = vrot.slane %v1894, 4
  %v1927 = vrot.slane %v1896, 4
  %v1928 = vrot.slane %v1853, 5
  %v1929 = vrot.slane %v1855, 5
  %v1930 = vrot.slane %v1894, 5
  %v1931 = vrot.slane %v1896, 5
  %v1964 = vadd.f32 %v388, %v1904
  %v1965 = vadd.f32 %v389, %v1905
  %v1966 = vadd.f32 %v390, %v1906
  %v1967 = vadd.f32 %v391, %v1907
  %v1968 = vadd.f32 %v396, %v1908
  %v1969 = vadd.f32 %v397, %v1909
  %v1970 = vadd.f32 %v398, %v1910
  %v1971 = vadd.f32 %v399, %v1911
  %v1972 = vadd.f32 %v404, %v1853
  %v1973 = vadd.f32 %v405, %v1855
  %v1974 = vadd.f32 %v406, %v1894
  %v1975 = vadd.f32 %v407, %v1896
  %v1976 = vadd.f32 %v412, %v1912
  %v1977 = vadd.f32 %v413, %v1913
  %v1978 = vadd.f32 %v414, %v1914
  %v1979 = vadd.f32 %v415, %v1915
  %v1980 = vadd.f32 %v420, %v1916
  %v1981 = vadd.f32 %v421, %v1917
  %v1982 = vadd.f32 %v422, %v1918
  %v1983 = vadd.f32 %v423, %v1919
  %v1984 = vadd.f32 %v428, %v1920
  %v1985 = vadd.f32 %v429, %v1921
  %v1986 = vadd.f32 %v430, %v1922
  %v1987 = vadd.f32 %v431, %v1923
  %v1988 = vadd.f32 %v436, %v1924
  %v1989 = vadd.f32 %v437, %v1925
  %v1990 = vadd.f32 %v438, %v1926
  %v1991 = vadd.f32 %v439, %v1927
  %v1992 = vadd.f32 %v444, %v1928
  %v1993 = vadd.f32 %v445, %v1929
  %v1994 = vadd.f32 %v446, %v1930
  %v1995 = vadd.f32 %v447, %v1931
  %v1996 = vmul.f32 %v1964, 0.5
  %v1997 = vmul.f32 %v1968, 0.5
  %v1998 = vmul.f32 %v1972, 0.5
  %v1999 = vmul.f32 %v1976, 0.5
  %v2000 = vmul.f32 %v1980, 0.5
  %v2001 = vmul.f32 %v1984, 0.5
  %v2002 = vmul.f32 %v1988, 0.5
  %v2003 = vmul.f32 %v1992, 0.5
  %v2004 = vtanh.pop %v1996
  %v2005 = vtanh.pop %v1997
  %v2006 = vtanh.pop %v1998
  %v2007 = vtanh.pop %v1999
  %v2008 = vtanh.pop %v2000
  %v2009 = vtanh.pop %v2001
  %v2010 = vtanh.pop %v2002
  %v2011 = vtanh.pop %v2003
  %v2012 = vmul.f32 %v2004, 0.5
  %v2013 = vmul.f32 %v2005, 0.5
  %v2014 = vmul.f32 %v2006, 0.5
  %v2015 = vmul.f32 %v2007, 0.5
  %v2016 = vmul.f32 %v2008, 0.5
  %v2017 = vmul.f32 %v2009, 0.5
  %v2018 = vmul.f32 %v2010, 0.5
  %v2019 = vmul.f32 %v2011, 0.5
  %v2020 = vadd.f32 %v2012, 0.5
  %v2021 = vadd.f32 %v2013, 0.5
  %v2022 = vadd.f32 %v2014, 0.5
  %v2023 = vadd.f32 %v2015, 0.5
  %v2024 = vadd.f32 %v2016, 0.5
  %v2025 = vadd.f32 %v2017, 0.5
  %v2026 = vadd.f32 %v2018, 0.5
  %v2027 = vadd.f32 %v2019, 0.5
  %v2028 = vmul.f32 %v1965, 0.5
  %v2029 = vmul.f32 %v1969, 0.5
  %v2030 = vmul.f32 %v1973, 0.5
  %v2031 = vmul.f32 %v1977, 0.5
  %v2032 = vmul.f32 %v1981, 0.5
  %v2033 = vmul.f32 %v1985, 0.5
  %v2034 = vmul.f32 %v1989, 0.5
  %v2035 = vmul.f32 %v1993, 0.5
  %v2036 = vtanh.pop %v2028
  %v2037 = vtanh.pop %v2029
  %v2038 = vtanh.pop %v2030
  %v2039 = vtanh.pop %v2031
  %v2040 = vtanh.pop %v2032
  %v2041 = vtanh.pop %v2033
  %v2042 = vtanh.pop %v2034
  %v2043 = vtanh.pop %v2035
  %v2044 = vmul.f32 %v2036, 0.5
  %v2045 = vmul.f32 %v2037, 0.5
  %v2046 = vmul.f32 %v2038, 0.5
  %v2047 = vmul.f32 %v2039, 0.5
  %v2048 = vmul.f32 %v2040, 0.5
  %v2049 = vmul.f32 %v2041, 0.5
  %v2050 = vmul.f32 %v2042, 0.5
  %v2051 = vmul.f32 %v2043, 0.5
  %v2052 = vadd.f32 %v2044, 0.5
  %v2053 = vadd.f32 %v2045, 0.5
  %v2054 = vadd.f32 %v2046, 0.5
  %v2055 = vadd.f32 %v2047, 0.5
  %v2056 = vadd.f32 %v2048, 0.5
  %v2057 = vadd.f32 %v2049, 0.5
  %v2058 = vadd.f32 %v2050, 0.5
  %v2059 = vadd.f32 %v2051, 0.5
  %v2060 = vmul.f32 %v1966, 0.5
  %v2061 = vmul.f32 %v1970, 0.5
  %v2062 = vmul.f32 %v1974, 0.5
  %v2063 = vmul.f32 %v1978, 0.5
  %v2064 = vmul.f32 %v1982, 0.5
  %v2065 = vmul.f32 %v1986, 0.5
  %v2066 = vmul.f32 %v1990, 0.5
  %v2067 = vmul.f32 %v1994, 0.5
  %v2068 = vtanh.pop %v2060
  %v2069 = vtanh.pop %v2061
  %v2070 = vtanh.pop %v2062
  %v2071 = vtanh.pop %v2063
  %v2072 = vtanh.pop %v2064
  %v2073 = vtanh.pop %v2065
  %v2074 = vtanh.pop %v2066
  %v2075 = vtanh.pop %v2067
  %v2076 = vmul.f32 %v2068, 0.5
  %v2077 = vmul.f32 %v2069, 0.5
  %v2078 = vmul.f32 %v2070, 0.5
  %v2079 = vmul.f32 %v2071, 0.5
  %v2080 = vmul.f32 %v2072, 0.5
  %v2081 = vmul.f32 %v2073, 0.5
  %v2082 = vmul.f32 %v2074, 0.5
  %v2083 = vmul.f32 %v2075, 0.5
  %v2084 = vadd.f32 %v2076, 0.5
  %v2085 = vadd.f32 %v2077, 0.5
  %v2086 = vadd.f32 %v2078, 0.5
  %v2087 = vadd.f32 %v2079, 0.5
  %v2088 = vadd.f32 %v2080, 0.5
  %v2089 = vadd.f32 %v2081, 0.5
  %v2090 = vadd.f32 %v2082, 0.5
  %v2091 = vadd.f32 %v2083, 0.5
  %v2092 = vtanh.pop %v1967
  %v2093 = vtanh.pop %v1971
  %v2094 = vtanh.pop %v1975
  %v2095 = vtanh.pop %v1979
  %v2096 = vtanh.pop %v1983
  %v2097 = vtanh.pop %v1987
  %v2098 = vtanh.pop %v1991
  %v2099 = vtanh.pop %v1995
  %v2108 = vrot.slane %v1554, 7
  %v2109 = vrot.slane %v1555, 7
  %v2110 = vrot.slane %v1556, 7
  %v2111 = vrot.slane %v1557, 7
  %v2112 = vrot.slane %v1558, 7
  %v2113 = vrot.slane %v1559, 7
  %v2114 = vrot.slane %v1560, 7
  %v2115 = vrot.slane %v1561, 7
  %v2124 = vmul.f32 %v2052, %v2108
  %v2125 = vmul.f32 %v2053, %v2109
  %v2126 = vmul.f32 %v2054, %v2110
  %v2127 = vmul.f32 %v2055, %v2111
  %v2128 = vmul.f32 %v2056, %v2112
  %v2129 = vmul.f32 %v2057, %v2113
  %v2130 = vmul.f32 %v2058, %v2114
  %v2131 = vmul.f32 %v2059, %v2115
  %v2132 = vmul.f32 %v2020, %v2092
  %v2133 = vmul.f32 %v2021, %v2093
  %v2134 = vmul.f32 %v2022, %v2094
  %v2135 = vmul.f32 %v2023, %v2095
  %v2136 = vmul.f32 %v2024, %v2096
  %v2137 = vmul.f32 %v2025, %v2097
  %v2138 = vmul.f32 %v2026, %v2098
  %v2139 = vmul.f32 %v2027, %v2099
  %v2140 = vadd.f32 %v2124, %v2132
  %v2141 = vadd.f32 %v2125, %v2133
  %v2142 = vadd.f32 %v2126, %v2134
  %v2143 = vadd.f32 %v2127, %v2135
  %v2144 = vadd.f32 %v2128, %v2136
  %v2145 = vadd.f32 %v2129, %v2137
  %v2146 = vadd.f32 %v2130, %v2138
  %v2147 = vadd.f32 %v2131, %v2139
  %v2148 = vtanh.pop %v2140
  %v2149 = vtanh.pop %v2141
  %v2150 = vtanh.pop %v2142
  %v2151 = vtanh.pop %v2143
  %v2152 = vtanh.pop %v2144
  %v2153 = vtanh.pop %v2145
  %v2154 = vtanh.pop %v2146
  %v2155 = vtanh.pop %v2147
  %v2156 = vmul.f32 %v2084, %v2148
  %v2157 = vmul.f32 %v2085, %v2149
  %v2158 = vmul.f32 %v2086, %v2150
  %v2159 = vmul.f32 %v2087, %v2151
  %v2160 = vmul.f32 %v2088, %v2152
  %v2161 = vmul.f32 %v2089, %v2153
  %v2162 = vmul.f32 %v2090, %v2154
  %v2163 = vmul.f32 %v2091, %v2155
  %2164 = vst [vmem:[%s6] sm:$0x4] %v2156
  %2165 = vst [vmem:[%s6 + $0x10] sm:$0x4] %v2157
  %2166 = vst [vmem:[%s6 + $0x20] sm:$0x4] %v2158
  %2167 = vst [vmem:[%s6 + $0x30] sm:$0x4] %v2159
  %2168 = vst [vmem:[%s6 + $0x40] sm:$0x4] %v2160
  %2169 = vst [vmem:[%s6 + $0x50] sm:$0x4] %v2161
  %2170 = vst [vmem:[%s6 + $0x60] sm:$0x4] %v2162
  %2171 = vst [vmem:[%s6 + $0x70] sm:$0x4] %v2163
  %v2172 = vpack.c.bf16 %v2156, %v2156
  %v2173 = vpack.c.bf16 %v2157, %v2157
  %v2174 = vpack.c.bf16 %v2158, %v2158
  %v2175 = vpack.c.bf16 %v2159, %v2159
  %v2176 = vpack.c.bf16 %v2160, %v2160
  %v2177 = vpack.c.bf16 %v2161, %v2161
  %v2178 = vpack.c.bf16 %v2162, %v2162
  %v2179 = vpack.c.bf16 %v2163, %v2163
  %v2180 = vld [vmem:[%s2] sm:$0xff]
  %v2181 = vld [vmem:[%s2 + $0x8] sm:$0xff]
  %v2182 = vld [vmem:[%s2 + $0x10] sm:$0xff]
  %v2183 = vld [vmem:[%s2 + $0x18] sm:$0xff]
  %v2184 = vld [vmem:[%s2 + $0x20] sm:$0xff]
  %v2185 = vld [vmem:[%s2 + $0x28] sm:$0xff]
  %v2186 = vld [vmem:[%s2 + $0x30] sm:$0xff]
  %v2187 = vld [vmem:[%s2 + $0x38] sm:$0xff]
  %v2188 = vld [vmem:[%s2 + $0x40] sm:$0xff]
  %v2189 = vld [vmem:[%s2 + $0x48] sm:$0xff]
  %v2190 = vld [vmem:[%s2 + $0x50] sm:$0xff]
  %v2191 = vld [vmem:[%s2 + $0x58] sm:$0xff]
  %v2192 = vld [vmem:[%s2 + $0x60] sm:$0xff]
  %v2193 = vld [vmem:[%s2 + $0x68] sm:$0xff]
  %v2194 = vld [vmem:[%s2 + $0x70] sm:$0xff]
  %v2195 = vld [vmem:[%s2 + $0x78] sm:$0xff]
  %v2196 = vld [vmem:[%s2 + $0x80] sm:$0xff]
  %v2197 = vld [vmem:[%s2 + $0x88] sm:$0xff]
  %v2198 = vld [vmem:[%s2 + $0x90] sm:$0xff]
  %v2199 = vld [vmem:[%s2 + $0x98] sm:$0xff]
  %v2200 = vld [vmem:[%s2 + $0xa0] sm:$0xff]
  %v2201 = vld [vmem:[%s2 + $0xa8] sm:$0xff]
  %v2202 = vld [vmem:[%s2 + $0xb0] sm:$0xff]
  %v2203 = vld [vmem:[%s2 + $0xb8] sm:$0xff]
  %v2204 = vld [vmem:[%s2 + $0xc0] sm:$0xff]
  %v2205 = vld [vmem:[%s2 + $0xc8] sm:$0xff]
  %v2206 = vld [vmem:[%s2 + $0xd0] sm:$0xff]
  %v2207 = vld [vmem:[%s2 + $0xd8] sm:$0xff]
  %v2208 = vld [vmem:[%s2 + $0xe0] sm:$0xff]
  %v2209 = vld [vmem:[%s2 + $0xe8] sm:$0xff]
  %v2210 = vld [vmem:[%s2 + $0xf0] sm:$0xff]
  %v2211 = vld [vmem:[%s2 + $0xf8] sm:$0xff]
  %v2220 = vunpack.c.l.b16 %v2172
  %v2221 = vunpack.c.l.b16 %v2173
  %v2222 = vunpack.c.l.b16 %v2174
  %v2223 = vunpack.c.l.b16 %v2175
  %v2224 = vunpack.c.l.b16 %v2176
  %v2225 = vunpack.c.l.b16 %v2177
  %v2226 = vunpack.c.l.b16 %v2178
  %v2227 = vunpack.c.l.b16 %v2179
  %v2228 = vrot.slane %v2220, 2
  %v2229 = vrot.slane %v2221, 1
  %v2230 = vsel %vm1050, %v2229, %v2228
  %v2231 = vsel %vm1053, %v2222, %v2230
  %v2232 = vrot.slane %v2223, 7
  %v2233 = vsel %vm1056, %v2232, %v2231
  %v2234 = vrot.slane %v2224, 6
  %v2235 = vsel %vm1059, %v2234, %v2233
  %v2236 = vrot.slane %v2225, 5
  %v2237 = vsel %vm1062, %v2236, %v2235
  %v2238 = vrot.slane %v2226, 4
  %v2239 = vsel %vm1065, %v2238, %v2237
  %v2240 = vrot.slane %v2227, 3
  %v2241 = vsel %vm1068, %v2240, %v2239
  %v2242 = vpack.c.b16 %v2241, %v2241
  %v2276 = vunpack.c.l.b16 %v2180
  %v2277 = vunpack.c.h.b16 %v2180
  %v2278 = vunpack.c.l.b16 %v2181
  %v2279 = vunpack.c.h.b16 %v2181
  %v2280 = vunpack.c.l.b16 %v2182
  %v2281 = vunpack.c.h.b16 %v2182
  %v2282 = vunpack.c.l.b16 %v2183
  %v2283 = vunpack.c.h.b16 %v2183
  %v2284 = vunpack.c.l.b16 %v2184
  %v2285 = vunpack.c.h.b16 %v2184
  %v2286 = vunpack.c.l.b16 %v2185
  %v2287 = vunpack.c.h.b16 %v2185
  %v2288 = vunpack.c.l.b16 %v2186
  %v2289 = vunpack.c.h.b16 %v2186
  %v2290 = vunpack.c.l.b16 %v2187
  %v2291 = vunpack.c.h.b16 %v2187
  %v2292 = vunpack.c.l.b16 %v2188
  %v2293 = vunpack.c.h.b16 %v2188
  %v2294 = vunpack.c.l.b16 %v2189
  %v2295 = vunpack.c.h.b16 %v2189
  %v2296 = vunpack.c.l.b16 %v2190
  %v2297 = vunpack.c.h.b16 %v2190
  %v2298 = vunpack.c.l.b16 %v2191
  %v2299 = vunpack.c.h.b16 %v2191
  %v2300 = vunpack.c.l.b16 %v2192
  %v2301 = vunpack.c.h.b16 %v2192
  %v2302 = vunpack.c.l.b16 %v2193
  %v2303 = vunpack.c.h.b16 %v2193
  %v2304 = vunpack.c.l.b16 %v2194
  %v2305 = vunpack.c.h.b16 %v2194
  %v2306 = vunpack.c.l.b16 %v2195
  %v2307 = vunpack.c.h.b16 %v2195
  %v2308 = vunpack.c.l.b16 %v2196
  %v2309 = vunpack.c.h.b16 %v2196
  %v2310 = vunpack.c.l.b16 %v2197
  %v2311 = vunpack.c.h.b16 %v2197
  %v2312 = vunpack.c.l.b16 %v2198
  %v2313 = vunpack.c.h.b16 %v2198
  %v2314 = vunpack.c.l.b16 %v2199
  %v2315 = vunpack.c.h.b16 %v2199
  %v2316 = vunpack.c.l.b16 %v2200
  %v2317 = vunpack.c.h.b16 %v2200
  %v2318 = vunpack.c.l.b16 %v2201
  %v2319 = vunpack.c.h.b16 %v2201
  %v2320 = vunpack.c.l.b16 %v2202
  %v2321 = vunpack.c.h.b16 %v2202
  %v2322 = vunpack.c.l.b16 %v2203
  %v2323 = vunpack.c.h.b16 %v2203
  %v2324 = vunpack.c.l.b16 %v2204
  %v2325 = vunpack.c.h.b16 %v2204
  %v2326 = vunpack.c.l.b16 %v2205
  %v2327 = vunpack.c.h.b16 %v2205
  %v2328 = vunpack.c.l.b16 %v2206
  %v2329 = vunpack.c.h.b16 %v2206
  %v2330 = vunpack.c.l.b16 %v2207
  %v2331 = vunpack.c.h.b16 %v2207
  %v2332 = vunpack.c.l.b16 %v2208
  %v2333 = vunpack.c.h.b16 %v2208
  %v2334 = vunpack.c.l.b16 %v2209
  %v2335 = vunpack.c.h.b16 %v2209
  %v2336 = vunpack.c.l.b16 %v2210
  %v2337 = vunpack.c.h.b16 %v2210
  %v2338 = vunpack.c.l.b16 %v2211
  %v2339 = vunpack.c.h.b16 %v2211
  %v2340 = vpack.c.b16 %v2280, %v2276
  %v2341 = vpack.c.b16 %v2281, %v2277
  %v2342 = vpack.c.b16 %v2282, %v2278
  %v2343 = vpack.c.b16 %v2283, %v2279
  %v2344 = vpack.c.b16 %v2288, %v2284
  %v2345 = vpack.c.b16 %v2289, %v2285
  %v2346 = vpack.c.b16 %v2290, %v2286
  %v2347 = vpack.c.b16 %v2291, %v2287
  %v2348 = vpack.c.b16 %v2296, %v2292
  %v2349 = vpack.c.b16 %v2297, %v2293
  %v2350 = vpack.c.b16 %v2298, %v2294
  %v2351 = vpack.c.b16 %v2299, %v2295
  %v2352 = vpack.c.b16 %v2304, %v2300
  %v2353 = vpack.c.b16 %v2305, %v2301
  %v2354 = vpack.c.b16 %v2306, %v2302
  %v2355 = vpack.c.b16 %v2307, %v2303
  %v2356 = vpack.c.b16 %v2312, %v2308
  %v2357 = vpack.c.b16 %v2313, %v2309
  %v2358 = vpack.c.b16 %v2314, %v2310
  %v2359 = vpack.c.b16 %v2315, %v2311
  %v2360 = vpack.c.b16 %v2320, %v2316
  %v2361 = vpack.c.b16 %v2321, %v2317
  %v2362 = vpack.c.b16 %v2322, %v2318
  %v2363 = vpack.c.b16 %v2323, %v2319
  %v2364 = vpack.c.b16 %v2328, %v2324
  %v2365 = vpack.c.b16 %v2329, %v2325
  %v2366 = vpack.c.b16 %v2330, %v2326
  %v2367 = vpack.c.b16 %v2331, %v2327
  %v2368 = vpack.c.b16 %v2336, %v2332
  %v2369 = vpack.c.b16 %v2337, %v2333
  %v2370 = vpack.c.b16 %v2338, %v2334
  %v2371 = vpack.c.b16 %v2339, %v2335
  %2404 = vmatprep.subr.bf16.mxu0 %v2369
  %2405 = vmatpush1.bf16.msra.mxu0 %v2368
  %2406 = vmatprep.subr.bf16.mxu0 %v2365
  %2407 = vmatpush1.bf16.msra.mxu0 %v2364
  %2408 = vmatprep.subr.bf16.mxu0 %v2361
  %2409 = vmatpush1.bf16.msra.mxu0 %v2360
  %2410 = vmatprep.subr.bf16.mxu0 %v2357
  %2411 = vmatpush1.bf16.msra.mxu0 %v2356
  %2412 = vmatprep.subr.bf16.mxu0 %v2353
  %2413 = vmatpush1.bf16.msra.mxu0 %v2352
  %2414 = vmatprep.subr.bf16.mxu0 %v2349
  %2415 = vmatpush1.bf16.msra.mxu0 %v2348
  %2416 = vmatprep.subr.bf16.mxu0 %v2345
  %2417 = vmatpush1.bf16.msra.mxu0 %v2344
  %2418 = vmatprep.subr.bf16.mxu0 %v2341
  %2419 = vmatpush1.bf16.msra.mxu0 %v2340
  %2420 = vmatprep.subr.bf16.mxu0 0
  %2421 = vmatpush2.bf16.msra.mxu0 0
  %2422 = vmatprep.subr.bf16.mxu0 0
  %2423 = vmatpush2.bf16.msra.mxu0 0
  %2424 = vmatprep.subr.bf16.mxu0 0
  %2425 = vmatpush2.bf16.msra.mxu0 0
  %2426 = vmatprep.subr.bf16.mxu0 0
  %2427 = vmatpush2.bf16.msra.mxu0 0
  %2428 = vmatprep.subr.bf16.mxu0 0
  %2429 = vmatpush2.bf16.msra.mxu0 0
  %2430 = vmatprep.subr.bf16.mxu0 0
  %2431 = vmatpush2.bf16.msra.mxu0 0
  %2432 = vmatprep.subr.bf16.mxu0 0
  %2433 = vmatpush2.bf16.msra.mxu0 0
  %2434 = vmatprep.subr.bf16.mxu0 0
  %2435 = vmatpush2.bf16.msra.mxu0 0
  %2436 = vmatprep.mubr.bf16.mxu0 0
  %2437 = vmatmul.mubr.bf16.gmra.mxu0 %v2242
  %v2438 = vpop.f32.mrf.mxu0
  %v2439 = vadd.f32 0.0, %v2438
  %v2440 = vpop.f32.mrf.mxu0
  %v2441 = vadd.f32 0.0, %v2440
  %v2442 = vpop.f32.mrf.mxu0
  %v2443 = vpop.f32.mrf.mxu0
  %2444 = vdwg.mxu0
  %2445 = vmatprep.subr.bf16.mxu0 %v2371
  %2446 = vmatpush1.bf16.msra.mxu0 %v2370
  %2447 = vmatprep.subr.bf16.mxu0 %v2367
  %2448 = vmatpush1.bf16.msra.mxu0 %v2366
  %2449 = vmatprep.subr.bf16.mxu0 %v2363
  %2450 = vmatpush1.bf16.msra.mxu0 %v2362
  %2451 = vmatprep.subr.bf16.mxu0 %v2359
  %2452 = vmatpush1.bf16.msra.mxu0 %v2358
  %2453 = vmatprep.subr.bf16.mxu0 %v2355
  %2454 = vmatpush1.bf16.msra.mxu0 %v2354
  %2455 = vmatprep.subr.bf16.mxu0 %v2351
  %2456 = vmatpush1.bf16.msra.mxu0 %v2350
  %2457 = vmatprep.subr.bf16.mxu0 %v2347
  %2458 = vmatpush1.bf16.msra.mxu0 %v2346
  %2459 = vmatprep.subr.bf16.mxu0 %v2343
  %2460 = vmatpush1.bf16.msra.mxu0 %v2342
  %2461 = vmatprep.subr.bf16.mxu0 0
  %2462 = vmatpush2.bf16.msra.mxu0 0
  %2463 = vmatprep.subr.bf16.mxu0 0
  %2464 = vmatpush2.bf16.msra.mxu0 0
  %2465 = vmatprep.subr.bf16.mxu0 0
  %2466 = vmatpush2.bf16.msra.mxu0 0
  %2467 = vmatprep.subr.bf16.mxu0 0
  %2468 = vmatpush2.bf16.msra.mxu0 0
  %2469 = vmatprep.subr.bf16.mxu0 0
  %2470 = vmatpush2.bf16.msra.mxu0 0
  %2471 = vmatprep.subr.bf16.mxu0 0
  %2472 = vmatpush2.bf16.msra.mxu0 0
  %2473 = vmatprep.subr.bf16.mxu0 0
  %2474 = vmatpush2.bf16.msra.mxu0 0
  %2475 = vmatprep.subr.bf16.mxu0 0
  %2476 = vmatpush2.bf16.msra.mxu0 0
  %2477 = vmatprep.mubr.bf16.mxu0 0
  %2478 = vmatmul.mubr.bf16.gmra.mxu0 %v2242
  %v2479 = vpop.f32.mrf.mxu0
  %v2480 = vadd.f32 0.0, %v2479
  %v2481 = vpop.f32.mrf.mxu0
  %v2482 = vadd.f32 0.0, %v2481
  %v2483 = vpop.f32.mrf.mxu0
  %v2484 = vpop.f32.mrf.mxu0
  %2485 = vdwg.mxu0
  %v2490 = vrot.slane %v2439, 5
  %v2491 = vrot.slane %v2441, 5
  %v2492 = vrot.slane %v2480, 5
  %v2493 = vrot.slane %v2482, 5
  %v2494 = vrot.slane %v2439, 6
  %v2495 = vrot.slane %v2441, 6
  %v2496 = vrot.slane %v2480, 6
  %v2497 = vrot.slane %v2482, 6
  %v2498 = vrot.slane %v2439, 7
  %v2499 = vrot.slane %v2441, 7
  %v2500 = vrot.slane %v2480, 7
  %v2501 = vrot.slane %v2482, 7
  %v2502 = vrot.slane %v2439, 1
  %v2503 = vrot.slane %v2441, 1
  %v2504 = vrot.slane %v2480, 1
  %v2505 = vrot.slane %v2482, 1
  %v2506 = vrot.slane %v2439, 2
  %v2507 = vrot.slane %v2441, 2
  %v2508 = vrot.slane %v2480, 2
  %v2509 = vrot.slane %v2482, 2
  %v2510 = vrot.slane %v2439, 3
  %v2511 = vrot.slane %v2441, 3
  %v2512 = vrot.slane %v2480, 3
  %v2513 = vrot.slane %v2482, 3
  %v2514 = vrot.slane %v2439, 4
  %v2515 = vrot.slane %v2441, 4
  %v2516 = vrot.slane %v2480, 4
  %v2517 = vrot.slane %v2482, 4
  %v2550 = vadd.f32 %v388, %v2490
  %v2551 = vadd.f32 %v389, %v2491
  %v2552 = vadd.f32 %v390, %v2492
  %v2553 = vadd.f32 %v391, %v2493
  %v2554 = vadd.f32 %v396, %v2494
  %v2555 = vadd.f32 %v397, %v2495
  %v2556 = vadd.f32 %v398, %v2496
  %v2557 = vadd.f32 %v399, %v2497
  %v2558 = vadd.f32 %v404, %v2498
  %v2559 = vadd.f32 %v405, %v2499
  %v2560 = vadd.f32 %v406, %v2500
  %v2561 = vadd.f32 %v407, %v2501
  %v2562 = vadd.f32 %v412, %v2439
  %v2563 = vadd.f32 %v413, %v2441
  %v2564 = vadd.f32 %v414, %v2480
  %v2565 = vadd.f32 %v415, %v2482
  %v2566 = vadd.f32 %v420, %v2502
  %v2567 = vadd.f32 %v421, %v2503
  %v2568 = vadd.f32 %v422, %v2504
  %v2569 = vadd.f32 %v423, %v2505
  %v2570 = vadd.f32 %v428, %v2506
  %v2571 = vadd.f32 %v429, %v2507
  %v2572 = vadd.f32 %v430, %v2508
  %v2573 = vadd.f32 %v431, %v2509
  %v2574 = vadd.f32 %v436, %v2510
  %v2575 = vadd.f32 %v437, %v2511
  %v2576 = vadd.f32 %v438, %v2512
  %v2577 = vadd.f32 %v439, %v2513
  %v2578 = vadd.f32 %v444, %v2514
  %v2579 = vadd.f32 %v445, %v2515
  %v2580 = vadd.f32 %v446, %v2516
  %v2581 = vadd.f32 %v447, %v2517
  %v2582 = vmul.f32 %v2550, 0.5
  %v2583 = vmul.f32 %v2554, 0.5
  %v2584 = vmul.f32 %v2558, 0.5
  %v2585 = vmul.f32 %v2562, 0.5
  %v2586 = vmul.f32 %v2566, 0.5
  %v2587 = vmul.f32 %v2570, 0.5
  %v2588 = vmul.f32 %v2574, 0.5
  %v2589 = vmul.f32 %v2578, 0.5
  %v2590 = vtanh.pop %v2582
  %v2591 = vtanh.pop %v2583
  %v2592 = vtanh.pop %v2584
  %v2593 = vtanh.pop %v2585
  %v2594 = vtanh.pop %v2586
  %v2595 = vtanh.pop %v2587
  %v2596 = vtanh.pop %v2588
  %v2597 = vtanh.pop %v2589
  %v2598 = vmul.f32 %v2590, 0.5
  %v2599 = vmul.f32 %v2591, 0.5
  %v2600 = vmul.f32 %v2592, 0.5
  %v2601 = vmul.f32 %v2593, 0.5
  %v2602 = vmul.f32 %v2594, 0.5
  %v2603 = vmul.f32 %v2595, 0.5
  %v2604 = vmul.f32 %v2596, 0.5
  %v2605 = vmul.f32 %v2597, 0.5
  %v2606 = vadd.f32 %v2598, 0.5
  %v2607 = vadd.f32 %v2599, 0.5
  %v2608 = vadd.f32 %v2600, 0.5
  %v2609 = vadd.f32 %v2601, 0.5
  %v2610 = vadd.f32 %v2602, 0.5
  %v2611 = vadd.f32 %v2603, 0.5
  %v2612 = vadd.f32 %v2604, 0.5
  %v2613 = vadd.f32 %v2605, 0.5
  %v2614 = vmul.f32 %v2551, 0.5
  %v2615 = vmul.f32 %v2555, 0.5
  %v2616 = vmul.f32 %v2559, 0.5
  %v2617 = vmul.f32 %v2563, 0.5
  %v2618 = vmul.f32 %v2567, 0.5
  %v2619 = vmul.f32 %v2571, 0.5
  %v2620 = vmul.f32 %v2575, 0.5
  %v2621 = vmul.f32 %v2579, 0.5
  %v2622 = vtanh.pop %v2614
  %v2623 = vtanh.pop %v2615
  %v2624 = vtanh.pop %v2616
  %v2625 = vtanh.pop %v2617
  %v2626 = vtanh.pop %v2618
  %v2627 = vtanh.pop %v2619
  %v2628 = vtanh.pop %v2620
  %v2629 = vtanh.pop %v2621
  %v2630 = vmul.f32 %v2622, 0.5
  %v2631 = vmul.f32 %v2623, 0.5
  %v2632 = vmul.f32 %v2624, 0.5
  %v2633 = vmul.f32 %v2625, 0.5
  %v2634 = vmul.f32 %v2626, 0.5
  %v2635 = vmul.f32 %v2627, 0.5
  %v2636 = vmul.f32 %v2628, 0.5
  %v2637 = vmul.f32 %v2629, 0.5
  %v2638 = vadd.f32 %v2630, 0.5
  %v2639 = vadd.f32 %v2631, 0.5
  %v2640 = vadd.f32 %v2632, 0.5
  %v2641 = vadd.f32 %v2633, 0.5
  %v2642 = vadd.f32 %v2634, 0.5
  %v2643 = vadd.f32 %v2635, 0.5
  %v2644 = vadd.f32 %v2636, 0.5
  %v2645 = vadd.f32 %v2637, 0.5
  %v2646 = vmul.f32 %v2552, 0.5
  %v2647 = vmul.f32 %v2556, 0.5
  %v2648 = vmul.f32 %v2560, 0.5
  %v2649 = vmul.f32 %v2564, 0.5
  %v2650 = vmul.f32 %v2568, 0.5
  %v2651 = vmul.f32 %v2572, 0.5
  %v2652 = vmul.f32 %v2576, 0.5
  %v2653 = vmul.f32 %v2580, 0.5
  %v2654 = vtanh.pop %v2646
  %v2655 = vtanh.pop %v2647
  %v2656 = vtanh.pop %v2648
  %v2657 = vtanh.pop %v2649
  %v2658 = vtanh.pop %v2650
  %v2659 = vtanh.pop %v2651
  %v2660 = vtanh.pop %v2652
  %v2661 = vtanh.pop %v2653
  %v2662 = vmul.f32 %v2654, 0.5
  %v2663 = vmul.f32 %v2655, 0.5
  %v2664 = vmul.f32 %v2656, 0.5
  %v2665 = vmul.f32 %v2657, 0.5
  %v2666 = vmul.f32 %v2658, 0.5
  %v2667 = vmul.f32 %v2659, 0.5
  %v2668 = vmul.f32 %v2660, 0.5
  %v2669 = vmul.f32 %v2661, 0.5
  %v2670 = vadd.f32 %v2662, 0.5
  %v2671 = vadd.f32 %v2663, 0.5
  %v2672 = vadd.f32 %v2664, 0.5
  %v2673 = vadd.f32 %v2665, 0.5
  %v2674 = vadd.f32 %v2666, 0.5
  %v2675 = vadd.f32 %v2667, 0.5
  %v2676 = vadd.f32 %v2668, 0.5
  %v2677 = vadd.f32 %v2669, 0.5
  %v2678 = vtanh.pop %v2553
  %v2679 = vtanh.pop %v2557
  %v2680 = vtanh.pop %v2561
  %v2681 = vtanh.pop %v2565
  %v2682 = vtanh.pop %v2569
  %v2683 = vtanh.pop %v2573
  %v2684 = vtanh.pop %v2577
  %v2685 = vtanh.pop %v2581
  %v2694 = vrot.slane %v2140, 7
  %v2695 = vrot.slane %v2141, 7
  %v2696 = vrot.slane %v2142, 7
  %v2697 = vrot.slane %v2143, 7
  %v2698 = vrot.slane %v2144, 7
  %v2699 = vrot.slane %v2145, 7
  %v2700 = vrot.slane %v2146, 7
  %v2701 = vrot.slane %v2147, 7
  %v2710 = vmul.f32 %v2638, %v2694
  %v2711 = vmul.f32 %v2639, %v2695
  %v2712 = vmul.f32 %v2640, %v2696
  %v2713 = vmul.f32 %v2641, %v2697
  %v2714 = vmul.f32 %v2642, %v2698
  %v2715 = vmul.f32 %v2643, %v2699
  %v2716 = vmul.f32 %v2644, %v2700
  %v2717 = vmul.f32 %v2645, %v2701
  %v2718 = vmul.f32 %v2606, %v2678
  %v2719 = vmul.f32 %v2607, %v2679
  %v2720 = vmul.f32 %v2608, %v2680
  %v2721 = vmul.f32 %v2609, %v2681
  %v2722 = vmul.f32 %v2610, %v2682
  %v2723 = vmul.f32 %v2611, %v2683
  %v2724 = vmul.f32 %v2612, %v2684
  %v2725 = vmul.f32 %v2613, %v2685
  %v2726 = vadd.f32 %v2710, %v2718
  %v2727 = vadd.f32 %v2711, %v2719
  %v2728 = vadd.f32 %v2712, %v2720
  %v2729 = vadd.f32 %v2713, %v2721
  %v2730 = vadd.f32 %v2714, %v2722
  %v2731 = vadd.f32 %v2715, %v2723
  %v2732 = vadd.f32 %v2716, %v2724
  %v2733 = vadd.f32 %v2717, %v2725
  %v2734 = vtanh.pop %v2726
  %v2735 = vtanh.pop %v2727
  %v2736 = vtanh.pop %v2728
  %v2737 = vtanh.pop %v2729
  %v2738 = vtanh.pop %v2730
  %v2739 = vtanh.pop %v2731
  %v2740 = vtanh.pop %v2732
  %v2741 = vtanh.pop %v2733
  %v2742 = vmul.f32 %v2670, %v2734
  %v2743 = vmul.f32 %v2671, %v2735
  %v2744 = vmul.f32 %v2672, %v2736
  %v2745 = vmul.f32 %v2673, %v2737
  %v2746 = vmul.f32 %v2674, %v2738
  %v2747 = vmul.f32 %v2675, %v2739
  %v2748 = vmul.f32 %v2676, %v2740
  %v2749 = vmul.f32 %v2677, %v2741
  %2750 = vst [vmem:[%s6] sm:$0x8] %v2742
  %2751 = vst [vmem:[%s6 + $0x10] sm:$0x8] %v2743
  %2752 = vst [vmem:[%s6 + $0x20] sm:$0x8] %v2744
  %2753 = vst [vmem:[%s6 + $0x30] sm:$0x8] %v2745
  %2754 = vst [vmem:[%s6 + $0x40] sm:$0x8] %v2746
  %2755 = vst [vmem:[%s6 + $0x50] sm:$0x8] %v2747
  %2756 = vst [vmem:[%s6 + $0x60] sm:$0x8] %v2748
  %2757 = vst [vmem:[%s6 + $0x70] sm:$0x8] %v2749
  %v2758 = vpack.c.bf16 %v2742, %v2742
  %v2759 = vpack.c.bf16 %v2743, %v2743
  %v2760 = vpack.c.bf16 %v2744, %v2744
  %v2761 = vpack.c.bf16 %v2745, %v2745
  %v2762 = vpack.c.bf16 %v2746, %v2746
  %v2763 = vpack.c.bf16 %v2747, %v2747
  %v2764 = vpack.c.bf16 %v2748, %v2748
  %v2765 = vpack.c.bf16 %v2749, %v2749
  %v2766 = vld [vmem:[%s2] sm:$0xff]
  %v2767 = vld [vmem:[%s2 + $0x8] sm:$0xff]
  %v2768 = vld [vmem:[%s2 + $0x10] sm:$0xff]
  %v2769 = vld [vmem:[%s2 + $0x18] sm:$0xff]
  %v2770 = vld [vmem:[%s2 + $0x20] sm:$0xff]
  %v2771 = vld [vmem:[%s2 + $0x28] sm:$0xff]
  %v2772 = vld [vmem:[%s2 + $0x30] sm:$0xff]
  %v2773 = vld [vmem:[%s2 + $0x38] sm:$0xff]
  %v2774 = vld [vmem:[%s2 + $0x40] sm:$0xff]
  %v2775 = vld [vmem:[%s2 + $0x48] sm:$0xff]
  %v2776 = vld [vmem:[%s2 + $0x50] sm:$0xff]
  %v2777 = vld [vmem:[%s2 + $0x58] sm:$0xff]
  %v2778 = vld [vmem:[%s2 + $0x60] sm:$0xff]
  %v2779 = vld [vmem:[%s2 + $0x68] sm:$0xff]
  %v2780 = vld [vmem:[%s2 + $0x70] sm:$0xff]
  %v2781 = vld [vmem:[%s2 + $0x78] sm:$0xff]
  %v2782 = vld [vmem:[%s2 + $0x80] sm:$0xff]
  %v2783 = vld [vmem:[%s2 + $0x88] sm:$0xff]
  %v2784 = vld [vmem:[%s2 + $0x90] sm:$0xff]
  %v2785 = vld [vmem:[%s2 + $0x98] sm:$0xff]
  %v2786 = vld [vmem:[%s2 + $0xa0] sm:$0xff]
  %v2787 = vld [vmem:[%s2 + $0xa8] sm:$0xff]
  %v2788 = vld [vmem:[%s2 + $0xb0] sm:$0xff]
  %v2789 = vld [vmem:[%s2 + $0xb8] sm:$0xff]
  %v2790 = vld [vmem:[%s2 + $0xc0] sm:$0xff]
  %v2791 = vld [vmem:[%s2 + $0xc8] sm:$0xff]
  %v2792 = vld [vmem:[%s2 + $0xd0] sm:$0xff]
  %v2793 = vld [vmem:[%s2 + $0xd8] sm:$0xff]
  %v2794 = vld [vmem:[%s2 + $0xe0] sm:$0xff]
  %v2795 = vld [vmem:[%s2 + $0xe8] sm:$0xff]
  %v2796 = vld [vmem:[%s2 + $0xf0] sm:$0xff]
  %v2797 = vld [vmem:[%s2 + $0xf8] sm:$0xff]
  %v2806 = vunpack.c.l.b16 %v2758
  %v2807 = vunpack.c.l.b16 %v2759
  %v2808 = vunpack.c.l.b16 %v2760
  %v2809 = vunpack.c.l.b16 %v2761
  %v2810 = vunpack.c.l.b16 %v2762
  %v2811 = vunpack.c.l.b16 %v2763
  %v2812 = vunpack.c.l.b16 %v2764
  %v2813 = vunpack.c.l.b16 %v2765
  %v2814 = vrot.slane %v2806, 3
  %v2815 = vrot.slane %v2807, 2
  %v2816 = vsel %vm1050, %v2815, %v2814
  %v2817 = vrot.slane %v2808, 1
  %v2818 = vsel %vm1053, %v2817, %v2816
  %v2819 = vsel %vm1056, %v2809, %v2818
  %v2820 = vrot.slane %v2810, 7
  %v2821 = vsel %vm1059, %v2820, %v2819
  %v2822 = vrot.slane %v2811, 6
  %v2823 = vsel %vm1062, %v2822, %v2821
  %v2824 = vrot.slane %v2812, 5
  %v2825 = vsel %vm1065, %v2824, %v2823
  %v2826 = vrot.slane %v2813, 4
  %v2827 = vsel %vm1068, %v2826, %v2825
  %v2828 = vpack.c.b16 %v2827, %v2827
  %v2862 = vunpack.c.l.b16 %v2766
  %v2863 = vunpack.c.h.b16 %v2766
  %v2864 = vunpack.c.l.b16 %v2767
  %v2865 = vunpack.c.h.b16 %v2767
  %v2866 = vunpack.c.l.b16 %v2768
  %v2867 = vunpack.c.h.b16 %v2768
  %v2868 = vunpack.c.l.b16 %v2769
  %v2869 = vunpack.c.h.b16 %v2769
  %v2870 = vunpack.c.l.b16 %v2770
  %v2871 = vunpack.c.h.b16 %v2770
  %v2872 = vunpack.c.l.b16 %v2771
  %v2873 = vunpack.c.h.b16 %v2771
  %v2874 = vunpack.c.l.b16 %v2772
  %v2875 = vunpack.c.h.b16 %v2772
  %v2876 = vunpack.c.l.b16 %v2773
  %v2877 = vunpack.c.h.b16 %v2773
  %v2878 = vunpack.c.l.b16 %v2774
  %v2879 = vunpack.c.h.b16 %v2774
  %v2880 = vunpack.c.l.b16 %v2775
  %v2881 = vunpack.c.h.b16 %v2775
  %v2882 = vunpack.c.l.b16 %v2776
  %v2883 = vunpack.c.h.b16 %v2776
  %v2884 = vunpack.c.l.b16 %v2777
  %v2885 = vunpack.c.h.b16 %v2777
  %v2886 = vunpack.c.l.b16 %v2778
  %v2887 = vunpack.c.h.b16 %v2778
  %v2888 = vunpack.c.l.b16 %v2779
  %v2889 = vunpack.c.h.b16 %v2779
  %v2890 = vunpack.c.l.b16 %v2780
  %v2891 = vunpack.c.h.b16 %v2780
  %v2892 = vunpack.c.l.b16 %v2781
  %v2893 = vunpack.c.h.b16 %v2781
  %v2894 = vunpack.c.l.b16 %v2782
  %v2895 = vunpack.c.h.b16 %v2782
  %v2896 = vunpack.c.l.b16 %v2783
  %v2897 = vunpack.c.h.b16 %v2783
  %v2898 = vunpack.c.l.b16 %v2784
  %v2899 = vunpack.c.h.b16 %v2784
  %v2900 = vunpack.c.l.b16 %v2785
  %v2901 = vunpack.c.h.b16 %v2785
  %v2902 = vunpack.c.l.b16 %v2786
  %v2903 = vunpack.c.h.b16 %v2786
  %v2904 = vunpack.c.l.b16 %v2787
  %v2905 = vunpack.c.h.b16 %v2787
  %v2906 = vunpack.c.l.b16 %v2788
  %v2907 = vunpack.c.h.b16 %v2788
  %v2908 = vunpack.c.l.b16 %v2789
  %v2909 = vunpack.c.h.b16 %v2789
  %v2910 = vunpack.c.l.b16 %v2790
  %v2911 = vunpack.c.h.b16 %v2790
  %v2912 = vunpack.c.l.b16 %v2791
  %v2913 = vunpack.c.h.b16 %v2791
  %v2914 = vunpack.c.l.b16 %v2792
  %v2915 = vunpack.c.h.b16 %v2792
  %v2916 = vunpack.c.l.b16 %v2793
  %v2917 = vunpack.c.h.b16 %v2793
  %v2918 = vunpack.c.l.b16 %v2794
  %v2919 = vunpack.c.h.b16 %v2794
  %v2920 = vunpack.c.l.b16 %v2795
  %v2921 = vunpack.c.h.b16 %v2795
  %v2922 = vunpack.c.l.b16 %v2796
  %v2923 = vunpack.c.h.b16 %v2796
  %v2924 = vunpack.c.l.b16 %v2797
  %v2925 = vunpack.c.h.b16 %v2797
  %v2926 = vpack.c.b16 %v2866, %v2862
  %v2927 = vpack.c.b16 %v2867, %v2863
  %v2928 = vpack.c.b16 %v2868, %v2864
  %v2929 = vpack.c.b16 %v2869, %v2865
  %v2930 = vpack.c.b16 %v2874, %v2870
  %v2931 = vpack.c.b16 %v2875, %v2871
  %v2932 = vpack.c.b16 %v2876, %v2872
  %v2933 = vpack.c.b16 %v2877, %v2873
  %v2934 = vpack.c.b16 %v2882, %v2878
  %v2935 = vpack.c.b16 %v2883, %v2879
  %v2936 = vpack.c.b16 %v2884, %v2880
  %v2937 = vpack.c.b16 %v2885, %v2881
  %v2938 = vpack.c.b16 %v2890, %v2886
  %v2939 = vpack.c.b16 %v2891, %v2887
  %v2940 = vpack.c.b16 %v2892, %v2888
  %v2941 = vpack.c.b16 %v2893, %v2889
  %v2942 = vpack.c.b16 %v2898, %v2894
  %v2943 = vpack.c.b16 %v2899, %v2895
  %v2944 = vpack.c.b16 %v2900, %v2896
  %v2945 = vpack.c.b16 %v2901, %v2897
  %v2946 = vpack.c.b16 %v2906, %v2902
  %v2947 = vpack.c.b16 %v2907, %v2903
  %v2948 = vpack.c.b16 %v2908, %v2904
  %v2949 = vpack.c.b16 %v2909, %v2905
  %v2950 = vpack.c.b16 %v2914, %v2910
  %v2951 = vpack.c.b16 %v2915, %v2911
  %v2952 = vpack.c.b16 %v2916, %v2912
  %v2953 = vpack.c.b16 %v2917, %v2913
  %v2954 = vpack.c.b16 %v2922, %v2918
  %v2955 = vpack.c.b16 %v2923, %v2919
  %v2956 = vpack.c.b16 %v2924, %v2920
  %v2957 = vpack.c.b16 %v2925, %v2921
  %2990 = vmatprep.subr.bf16.mxu0 %v2955
  %2991 = vmatpush1.bf16.msra.mxu0 %v2954
  %2992 = vmatprep.subr.bf16.mxu0 %v2951
  %2993 = vmatpush1.bf16.msra.mxu0 %v2950
  %2994 = vmatprep.subr.bf16.mxu0 %v2947
  %2995 = vmatpush1.bf16.msra.mxu0 %v2946
  %2996 = vmatprep.subr.bf16.mxu0 %v2943
  %2997 = vmatpush1.bf16.msra.mxu0 %v2942
  %2998 = vmatprep.subr.bf16.mxu0 %v2939
  %2999 = vmatpush1.bf16.msra.mxu0 %v2938
  %3000 = vmatprep.subr.bf16.mxu0 %v2935
  %3001 = vmatpush1.bf16.msra.mxu0 %v2934
  %3002 = vmatprep.subr.bf16.mxu0 %v2931
  %3003 = vmatpush1.bf16.msra.mxu0 %v2930
  %3004 = vmatprep.subr.bf16.mxu0 %v2927
  %3005 = vmatpush1.bf16.msra.mxu0 %v2926
  %3006 = vmatprep.subr.bf16.mxu0 0
  %3007 = vmatpush2.bf16.msra.mxu0 0
  %3008 = vmatprep.subr.bf16.mxu0 0
  %3009 = vmatpush2.bf16.msra.mxu0 0
  %3010 = vmatprep.subr.bf16.mxu0 0
  %3011 = vmatpush2.bf16.msra.mxu0 0
  %3012 = vmatprep.subr.bf16.mxu0 0
  %3013 = vmatpush2.bf16.msra.mxu0 0
  %3014 = vmatprep.subr.bf16.mxu0 0
  %3015 = vmatpush2.bf16.msra.mxu0 0
  %3016 = vmatprep.subr.bf16.mxu0 0
  %3017 = vmatpush2.bf16.msra.mxu0 0
  %3018 = vmatprep.subr.bf16.mxu0 0
  %3019 = vmatpush2.bf16.msra.mxu0 0
  %3020 = vmatprep.subr.bf16.mxu0 0
  %3021 = vmatpush2.bf16.msra.mxu0 0
  %3022 = vmatprep.mubr.bf16.mxu0 0
  %3023 = vmatmul.mubr.bf16.gmra.mxu0 %v2828
  %v3024 = vpop.f32.mrf.mxu0
  %v3025 = vadd.f32 0.0, %v3024
  %v3026 = vpop.f32.mrf.mxu0
  %v3027 = vadd.f32 0.0, %v3026
  %v3028 = vpop.f32.mrf.mxu0
  %v3029 = vpop.f32.mrf.mxu0
  %3030 = vdwg.mxu0
  %3031 = vmatprep.subr.bf16.mxu0 %v2957
  %3032 = vmatpush1.bf16.msra.mxu0 %v2956
  %3033 = vmatprep.subr.bf16.mxu0 %v2953
  %3034 = vmatpush1.bf16.msra.mxu0 %v2952
  %3035 = vmatprep.subr.bf16.mxu0 %v2949
  %3036 = vmatpush1.bf16.msra.mxu0 %v2948
  %3037 = vmatprep.subr.bf16.mxu0 %v2945
  %3038 = vmatpush1.bf16.msra.mxu0 %v2944
  %3039 = vmatprep.subr.bf16.mxu0 %v2941
  %3040 = vmatpush1.bf16.msra.mxu0 %v2940
  %3041 = vmatprep.subr.bf16.mxu0 %v2937
  %3042 = vmatpush1.bf16.msra.mxu0 %v2936
  %3043 = vmatprep.subr.bf16.mxu0 %v2933
  %3044 = vmatpush1.bf16.msra.mxu0 %v2932
  %3045 = vmatprep.subr.bf16.mxu0 %v2929
  %3046 = vmatpush1.bf16.msra.mxu0 %v2928
  %3047 = vmatprep.subr.bf16.mxu0 0
  %3048 = vmatpush2.bf16.msra.mxu0 0
  %3049 = vmatprep.subr.bf16.mxu0 0
  %3050 = vmatpush2.bf16.msra.mxu0 0
  %3051 = vmatprep.subr.bf16.mxu0 0
  %3052 = vmatpush2.bf16.msra.mxu0 0
  %3053 = vmatprep.subr.bf16.mxu0 0
  %3054 = vmatpush2.bf16.msra.mxu0 0
  %3055 = vmatprep.subr.bf16.mxu0 0
  %3056 = vmatpush2.bf16.msra.mxu0 0
  %3057 = vmatprep.subr.bf16.mxu0 0
  %3058 = vmatpush2.bf16.msra.mxu0 0
  %3059 = vmatprep.subr.bf16.mxu0 0
  %3060 = vmatpush2.bf16.msra.mxu0 0
  %3061 = vmatprep.subr.bf16.mxu0 0
  %3062 = vmatpush2.bf16.msra.mxu0 0
  %3063 = vmatprep.mubr.bf16.mxu0 0
  %3064 = vmatmul.mubr.bf16.gmra.mxu0 %v2828
  %v3065 = vpop.f32.mrf.mxu0
  %v3066 = vadd.f32 0.0, %v3065
  %v3067 = vpop.f32.mrf.mxu0
  %v3068 = vadd.f32 0.0, %v3067
  %v3069 = vpop.f32.mrf.mxu0
  %v3070 = vpop.f32.mrf.mxu0
  %3071 = vdwg.mxu0
  %v3076 = vrot.slane %v3025, 4
  %v3077 = vrot.slane %v3027, 4
  %v3078 = vrot.slane %v3066, 4
  %v3079 = vrot.slane %v3068, 4
  %v3080 = vrot.slane %v3025, 5
  %v3081 = vrot.slane %v3027, 5
  %v3082 = vrot.slane %v3066, 5
  %v3083 = vrot.slane %v3068, 5
  %v3084 = vrot.slane %v3025, 6
  %v3085 = vrot.slane %v3027, 6
  %v3086 = vrot.slane %v3066, 6
  %v3087 = vrot.slane %v3068, 6
  %v3088 = vrot.slane %v3025, 7
  %v3089 = vrot.slane %v3027, 7
  %v3090 = vrot.slane %v3066, 7
  %v3091 = vrot.slane %v3068, 7
  %v3092 = vrot.slane %v3025, 1
  %v3093 = vrot.slane %v3027, 1
  %v3094 = vrot.slane %v3066, 1
  %v3095 = vrot.slane %v3068, 1
  %v3096 = vrot.slane %v3025, 2
  %v3097 = vrot.slane %v3027, 2
  %v3098 = vrot.slane %v3066, 2
  %v3099 = vrot.slane %v3068, 2
  %v3100 = vrot.slane %v3025, 3
  %v3101 = vrot.slane %v3027, 3
  %v3102 = vrot.slane %v3066, 3
  %v3103 = vrot.slane %v3068, 3
  %v3136 = vadd.f32 %v388, %v3076
  %v3137 = vadd.f32 %v389, %v3077
  %v3138 = vadd.f32 %v390, %v3078
  %v3139 = vadd.f32 %v391, %v3079
  %v3140 = vadd.f32 %v396, %v3080
  %v3141 = vadd.f32 %v397, %v3081
  %v3142 = vadd.f32 %v398, %v3082
  %v3143 = vadd.f32 %v399, %v3083
  %v3144 = vadd.f32 %v404, %v3084
  %v3145 = vadd.f32 %v405, %v3085
  %v3146 = vadd.f32 %v406, %v3086
  %v3147 = vadd.f32 %v407, %v3087
  %v3148 = vadd.f32 %v412, %v3088
  %v3149 = vadd.f32 %v413, %v3089
  %v3150 = vadd.f32 %v414, %v3090
  %v3151 = vadd.f32 %v415, %v3091
  %v3152 = vadd.f32 %v420, %v3025
  %v3153 = vadd.f32 %v421, %v3027
  %v3154 = vadd.f32 %v422, %v3066
  %v3155 = vadd.f32 %v423, %v3068
  %v3156 = vadd.f32 %v428, %v3092
  %v3157 = vadd.f32 %v429, %v3093
  %v3158 = vadd.f32 %v430, %v3094
  %v3159 = vadd.f32 %v431, %v3095
  %v3160 = vadd.f32 %v436, %v3096
  %v3161 = vadd.f32 %v437, %v3097
  %v3162 = vadd.f32 %v438, %v3098
  %v3163 = vadd.f32 %v439, %v3099
  %v3164 = vadd.f32 %v444, %v3100
  %v3165 = vadd.f32 %v445, %v3101
  %v3166 = vadd.f32 %v446, %v3102
  %v3167 = vadd.f32 %v447, %v3103
  %v3168 = vmul.f32 %v3136, 0.5
  %v3169 = vmul.f32 %v3140, 0.5
  %v3170 = vmul.f32 %v3144, 0.5
  %v3171 = vmul.f32 %v3148, 0.5
  %v3172 = vmul.f32 %v3152, 0.5
  %v3173 = vmul.f32 %v3156, 0.5
  %v3174 = vmul.f32 %v3160, 0.5
  %v3175 = vmul.f32 %v3164, 0.5
  %v3176 = vtanh.pop %v3168
  %v3177 = vtanh.pop %v3169
  %v3178 = vtanh.pop %v3170
  %v3179 = vtanh.pop %v3171
  %v3180 = vtanh.pop %v3172
  %v3181 = vtanh.pop %v3173
  %v3182 = vtanh.pop %v3174
  %v3183 = vtanh.pop %v3175
  %v3184 = vmul.f32 %v3176, 0.5
  %v3185 = vmul.f32 %v3177, 0.5
  %v3186 = vmul.f32 %v3178, 0.5
  %v3187 = vmul.f32 %v3179, 0.5
  %v3188 = vmul.f32 %v3180, 0.5
  %v3189 = vmul.f32 %v3181, 0.5
  %v3190 = vmul.f32 %v3182, 0.5
  %v3191 = vmul.f32 %v3183, 0.5
  %v3192 = vadd.f32 %v3184, 0.5
  %v3193 = vadd.f32 %v3185, 0.5
  %v3194 = vadd.f32 %v3186, 0.5
  %v3195 = vadd.f32 %v3187, 0.5
  %v3196 = vadd.f32 %v3188, 0.5
  %v3197 = vadd.f32 %v3189, 0.5
  %v3198 = vadd.f32 %v3190, 0.5
  %v3199 = vadd.f32 %v3191, 0.5
  %v3200 = vmul.f32 %v3137, 0.5
  %v3201 = vmul.f32 %v3141, 0.5
  %v3202 = vmul.f32 %v3145, 0.5
  %v3203 = vmul.f32 %v3149, 0.5
  %v3204 = vmul.f32 %v3153, 0.5
  %v3205 = vmul.f32 %v3157, 0.5
  %v3206 = vmul.f32 %v3161, 0.5
  %v3207 = vmul.f32 %v3165, 0.5
  %v3208 = vtanh.pop %v3200
  %v3209 = vtanh.pop %v3201
  %v3210 = vtanh.pop %v3202
  %v3211 = vtanh.pop %v3203
  %v3212 = vtanh.pop %v3204
  %v3213 = vtanh.pop %v3205
  %v3214 = vtanh.pop %v3206
  %v3215 = vtanh.pop %v3207
  %v3216 = vmul.f32 %v3208, 0.5
  %v3217 = vmul.f32 %v3209, 0.5
  %v3218 = vmul.f32 %v3210, 0.5
  %v3219 = vmul.f32 %v3211, 0.5
  %v3220 = vmul.f32 %v3212, 0.5
  %v3221 = vmul.f32 %v3213, 0.5
  %v3222 = vmul.f32 %v3214, 0.5
  %v3223 = vmul.f32 %v3215, 0.5
  %v3224 = vadd.f32 %v3216, 0.5
  %v3225 = vadd.f32 %v3217, 0.5
  %v3226 = vadd.f32 %v3218, 0.5
  %v3227 = vadd.f32 %v3219, 0.5
  %v3228 = vadd.f32 %v3220, 0.5
  %v3229 = vadd.f32 %v3221, 0.5
  %v3230 = vadd.f32 %v3222, 0.5
  %v3231 = vadd.f32 %v3223, 0.5
  %v3232 = vmul.f32 %v3138, 0.5
  %v3233 = vmul.f32 %v3142, 0.5
  %v3234 = vmul.f32 %v3146, 0.5
  %v3235 = vmul.f32 %v3150, 0.5
  %v3236 = vmul.f32 %v3154, 0.5
  %v3237 = vmul.f32 %v3158, 0.5
  %v3238 = vmul.f32 %v3162, 0.5
  %v3239 = vmul.f32 %v3166, 0.5
  %v3240 = vtanh.pop %v3232
  %v3241 = vtanh.pop %v3233
  %v3242 = vtanh.pop %v3234
  %v3243 = vtanh.pop %v3235
  %v3244 = vtanh.pop %v3236
  %v3245 = vtanh.pop %v3237
  %v3246 = vtanh.pop %v3238
  %v3247 = vtanh.pop %v3239
  %v3248 = vmul.f32 %v3240, 0.5
  %v3249 = vmul.f32 %v3241, 0.5
  %v3250 = vmul.f32 %v3242, 0.5
  %v3251 = vmul.f32 %v3243, 0.5
  %v3252 = vmul.f32 %v3244, 0.5
  %v3253 = vmul.f32 %v3245, 0.5
  %v3254 = vmul.f32 %v3246, 0.5
  %v3255 = vmul.f32 %v3247, 0.5
  %v3256 = vadd.f32 %v3248, 0.5
  %v3257 = vadd.f32 %v3249, 0.5
  %v3258 = vadd.f32 %v3250, 0.5
  %v3259 = vadd.f32 %v3251, 0.5
  %v3260 = vadd.f32 %v3252, 0.5
  %v3261 = vadd.f32 %v3253, 0.5
  %v3262 = vadd.f32 %v3254, 0.5
  %v3263 = vadd.f32 %v3255, 0.5
  %v3264 = vtanh.pop %v3139
  %v3265 = vtanh.pop %v3143
  %v3266 = vtanh.pop %v3147
  %v3267 = vtanh.pop %v3151
  %v3268 = vtanh.pop %v3155
  %v3269 = vtanh.pop %v3159
  %v3270 = vtanh.pop %v3163
  %v3271 = vtanh.pop %v3167
  %v3280 = vrot.slane %v2726, 7
  %v3281 = vrot.slane %v2727, 7
  %v3282 = vrot.slane %v2728, 7
  %v3283 = vrot.slane %v2729, 7
  %v3284 = vrot.slane %v2730, 7
  %v3285 = vrot.slane %v2731, 7
  %v3286 = vrot.slane %v2732, 7
  %v3287 = vrot.slane %v2733, 7
  %v3296 = vmul.f32 %v3224, %v3280
  %v3297 = vmul.f32 %v3225, %v3281
  %v3298 = vmul.f32 %v3226, %v3282
  %v3299 = vmul.f32 %v3227, %v3283
  %v3300 = vmul.f32 %v3228, %v3284
  %v3301 = vmul.f32 %v3229, %v3285
  %v3302 = vmul.f32 %v3230, %v3286
  %v3303 = vmul.f32 %v3231, %v3287
  %v3304 = vmul.f32 %v3192, %v3264
  %v3305 = vmul.f32 %v3193, %v3265
  %v3306 = vmul.f32 %v3194, %v3266
  %v3307 = vmul.f32 %v3195, %v3267
  %v3308 = vmul.f32 %v3196, %v3268
  %v3309 = vmul.f32 %v3197, %v3269
  %v3310 = vmul.f32 %v3198, %v3270
  %v3311 = vmul.f32 %v3199, %v3271
  %v3312 = vadd.f32 %v3296, %v3304
  %v3313 = vadd.f32 %v3297, %v3305
  %v3314 = vadd.f32 %v3298, %v3306
  %v3315 = vadd.f32 %v3299, %v3307
  %v3316 = vadd.f32 %v3300, %v3308
  %v3317 = vadd.f32 %v3301, %v3309
  %v3318 = vadd.f32 %v3302, %v3310
  %v3319 = vadd.f32 %v3303, %v3311
  %v3320 = vtanh.pop %v3312
  %v3321 = vtanh.pop %v3313
  %v3322 = vtanh.pop %v3314
  %v3323 = vtanh.pop %v3315
  %v3324 = vtanh.pop %v3316
  %v3325 = vtanh.pop %v3317
  %v3326 = vtanh.pop %v3318
  %v3327 = vtanh.pop %v3319
  %v3328 = vmul.f32 %v3256, %v3320
  %v3329 = vmul.f32 %v3257, %v3321
  %v3330 = vmul.f32 %v3258, %v3322
  %v3331 = vmul.f32 %v3259, %v3323
  %v3332 = vmul.f32 %v3260, %v3324
  %v3333 = vmul.f32 %v3261, %v3325
  %v3334 = vmul.f32 %v3262, %v3326
  %v3335 = vmul.f32 %v3263, %v3327
  %3336 = vst [vmem:[%s6] sm:$0x10] %v3328
  %3337 = vst [vmem:[%s6 + $0x10] sm:$0x10] %v3329
  %3338 = vst [vmem:[%s6 + $0x20] sm:$0x10] %v3330
  %3339 = vst [vmem:[%s6 + $0x30] sm:$0x10] %v3331
  %3340 = vst [vmem:[%s6 + $0x40] sm:$0x10] %v3332
  %3341 = vst [vmem:[%s6 + $0x50] sm:$0x10] %v3333
  %3342 = vst [vmem:[%s6 + $0x60] sm:$0x10] %v3334
  %3343 = vst [vmem:[%s6 + $0x70] sm:$0x10] %v3335
  %v3344 = vpack.c.bf16 %v3328, %v3328
  %v3345 = vpack.c.bf16 %v3329, %v3329
  %v3346 = vpack.c.bf16 %v3330, %v3330
  %v3347 = vpack.c.bf16 %v3331, %v3331
  %v3348 = vpack.c.bf16 %v3332, %v3332
  %v3349 = vpack.c.bf16 %v3333, %v3333
  %v3350 = vpack.c.bf16 %v3334, %v3334
  %v3351 = vpack.c.bf16 %v3335, %v3335
  %v3352 = vld [vmem:[%s2] sm:$0xff]
  %v3353 = vld [vmem:[%s2 + $0x8] sm:$0xff]
  %v3354 = vld [vmem:[%s2 + $0x10] sm:$0xff]
  %v3355 = vld [vmem:[%s2 + $0x18] sm:$0xff]
  %v3356 = vld [vmem:[%s2 + $0x20] sm:$0xff]
  %v3357 = vld [vmem:[%s2 + $0x28] sm:$0xff]
  %v3358 = vld [vmem:[%s2 + $0x30] sm:$0xff]
  %v3359 = vld [vmem:[%s2 + $0x38] sm:$0xff]
  %v3360 = vld [vmem:[%s2 + $0x40] sm:$0xff]
  %v3361 = vld [vmem:[%s2 + $0x48] sm:$0xff]
  %v3362 = vld [vmem:[%s2 + $0x50] sm:$0xff]
  %v3363 = vld [vmem:[%s2 + $0x58] sm:$0xff]
  %v3364 = vld [vmem:[%s2 + $0x60] sm:$0xff]
  %v3365 = vld [vmem:[%s2 + $0x68] sm:$0xff]
  %v3366 = vld [vmem:[%s2 + $0x70] sm:$0xff]
  %v3367 = vld [vmem:[%s2 + $0x78] sm:$0xff]
  %v3368 = vld [vmem:[%s2 + $0x80] sm:$0xff]
  %v3369 = vld [vmem:[%s2 + $0x88] sm:$0xff]
  %v3370 = vld [vmem:[%s2 + $0x90] sm:$0xff]
  %v3371 = vld [vmem:[%s2 + $0x98] sm:$0xff]
  %v3372 = vld [vmem:[%s2 + $0xa0] sm:$0xff]
  %v3373 = vld [vmem:[%s2 + $0xa8] sm:$0xff]
  %v3374 = vld [vmem:[%s2 + $0xb0] sm:$0xff]
  %v3375 = vld [vmem:[%s2 + $0xb8] sm:$0xff]
  %v3376 = vld [vmem:[%s2 + $0xc0] sm:$0xff]
  %v3377 = vld [vmem:[%s2 + $0xc8] sm:$0xff]
  %v3378 = vld [vmem:[%s2 + $0xd0] sm:$0xff]
  %v3379 = vld [vmem:[%s2 + $0xd8] sm:$0xff]
  %v3380 = vld [vmem:[%s2 + $0xe0] sm:$0xff]
  %v3381 = vld [vmem:[%s2 + $0xe8] sm:$0xff]
  %v3382 = vld [vmem:[%s2 + $0xf0] sm:$0xff]
  %v3383 = vld [vmem:[%s2 + $0xf8] sm:$0xff]
  %v3392 = vunpack.c.l.b16 %v3344
  %v3393 = vunpack.c.l.b16 %v3345
  %v3394 = vunpack.c.l.b16 %v3346
  %v3395 = vunpack.c.l.b16 %v3347
  %v3396 = vunpack.c.l.b16 %v3348
  %v3397 = vunpack.c.l.b16 %v3349
  %v3398 = vunpack.c.l.b16 %v3350
  %v3399 = vunpack.c.l.b16 %v3351
  %v3400 = vrot.slane %v3392, 4
  %v3401 = vrot.slane %v3393, 3
  %v3402 = vsel %vm1050, %v3401, %v3400
  %v3403 = vrot.slane %v3394, 2
  %v3404 = vsel %vm1053, %v3403, %v3402
  %v3405 = vrot.slane %v3395, 1
  %v3406 = vsel %vm1056, %v3405, %v3404
  %v3407 = vsel %vm1059, %v3396, %v3406
  %v3408 = vrot.slane %v3397, 7
  %v3409 = vsel %vm1062, %v3408, %v3407
  %v3410 = vrot.slane %v3398, 6
  %v3411 = vsel %vm1065, %v3410, %v3409
  %v3412 = vrot.slane %v3399, 5
  %v3413 = vsel %vm1068, %v3412, %v3411
  %v3414 = vpack.c.b16 %v3413, %v3413
  %v3448 = vunpack.c.l.b16 %v3352
  %v3449 = vunpack.c.h.b16 %v3352
  %v3450 = vunpack.c.l.b16 %v3353
  %v3451 = vunpack.c.h.b16 %v3353
  %v3452 = vunpack.c.l.b16 %v3354
  %v3453 = vunpack.c.h.b16 %v3354
  %v3454 = vunpack.c.l.b16 %v3355
  %v3455 = vunpack.c.h.b16 %v3355
  %v3456 = vunpack.c.l.b16 %v3356
  %v3457 = vunpack.c.h.b16 %v3356
  %v3458 = vunpack.c.l.b16 %v3357
  %v3459 = vunpack.c.h.b16 %v3357
  %v3460 = vunpack.c.l.b16 %v3358
  %v3461 = vunpack.c.h.b16 %v3358
  %v3462 = vunpack.c.l.b16 %v3359
  %v3463 = vunpack.c.h.b16 %v3359
  %v3464 = vunpack.c.l.b16 %v3360
  %v3465 = vunpack.c.h.b16 %v3360
  %v3466 = vunpack.c.l.b16 %v3361
  %v3467 = vunpack.c.h.b16 %v3361
  %v3468 = vunpack.c.l.b16 %v3362
  %v3469 = vunpack.c.h.b16 %v3362
  %v3470 = vunpack.c.l.b16 %v3363
  %v3471 = vunpack.c.h.b16 %v3363
  %v3472 = vunpack.c.l.b16 %v3364
  %v3473 = vunpack.c.h.b16 %v3364
  %v3474 = vunpack.c.l.b16 %v3365
  %v3475 = vunpack.c.h.b16 %v3365
  %v3476 = vunpack.c.l.b16 %v3366
  %v3477 = vunpack.c.h.b16 %v3366
  %v3478 = vunpack.c.l.b16 %v3367
  %v3479 = vunpack.c.h.b16 %v3367
  %v3480 = vunpack.c.l.b16 %v3368
  %v3481 = vunpack.c.h.b16 %v3368
  %v3482 = vunpack.c.l.b16 %v3369
  %v3483 = vunpack.c.h.b16 %v3369
  %v3484 = vunpack.c.l.b16 %v3370
  %v3485 = vunpack.c.h.b16 %v3370
  %v3486 = vunpack.c.l.b16 %v3371
  %v3487 = vunpack.c.h.b16 %v3371
  %v3488 = vunpack.c.l.b16 %v3372
  %v3489 = vunpack.c.h.b16 %v3372
  %v3490 = vunpack.c.l.b16 %v3373
  %v3491 = vunpack.c.h.b16 %v3373
  %v3492 = vunpack.c.l.b16 %v3374
  %v3493 = vunpack.c.h.b16 %v3374
  %v3494 = vunpack.c.l.b16 %v3375
  %v3495 = vunpack.c.h.b16 %v3375
  %v3496 = vunpack.c.l.b16 %v3376
  %v3497 = vunpack.c.h.b16 %v3376
  %v3498 = vunpack.c.l.b16 %v3377
  %v3499 = vunpack.c.h.b16 %v3377
  %v3500 = vunpack.c.l.b16 %v3378
  %v3501 = vunpack.c.h.b16 %v3378
  %v3502 = vunpack.c.l.b16 %v3379
  %v3503 = vunpack.c.h.b16 %v3379
  %v3504 = vunpack.c.l.b16 %v3380
  %v3505 = vunpack.c.h.b16 %v3380
  %v3506 = vunpack.c.l.b16 %v3381
  %v3507 = vunpack.c.h.b16 %v3381
  %v3508 = vunpack.c.l.b16 %v3382
  %v3509 = vunpack.c.h.b16 %v3382
  %v3510 = vunpack.c.l.b16 %v3383
  %v3511 = vunpack.c.h.b16 %v3383
  %v3512 = vpack.c.b16 %v3452, %v3448
  %v3513 = vpack.c.b16 %v3453, %v3449
  %v3514 = vpack.c.b16 %v3454, %v3450
  %v3515 = vpack.c.b16 %v3455, %v3451
  %v3516 = vpack.c.b16 %v3460, %v3456
  %v3517 = vpack.c.b16 %v3461, %v3457
  %v3518 = vpack.c.b16 %v3462, %v3458
  %v3519 = vpack.c.b16 %v3463, %v3459
  %v3520 = vpack.c.b16 %v3468, %v3464
  %v3521 = vpack.c.b16 %v3469, %v3465
  %v3522 = vpack.c.b16 %v3470, %v3466
  %v3523 = vpack.c.b16 %v3471, %v3467
  %v3524 = vpack.c.b16 %v3476, %v3472
  %v3525 = vpack.c.b16 %v3477, %v3473
  %v3526 = vpack.c.b16 %v3478, %v3474
  %v3527 = vpack.c.b16 %v3479, %v3475
  %v3528 = vpack.c.b16 %v3484, %v3480
  %v3529 = vpack.c.b16 %v3485, %v3481
  %v3530 = vpack.c.b16 %v3486, %v3482
  %v3531 = vpack.c.b16 %v3487, %v3483
  %v3532 = vpack.c.b16 %v3492, %v3488
  %v3533 = vpack.c.b16 %v3493, %v3489
  %v3534 = vpack.c.b16 %v3494, %v3490
  %v3535 = vpack.c.b16 %v3495, %v3491
  %v3536 = vpack.c.b16 %v3500, %v3496
  %v3537 = vpack.c.b16 %v3501, %v3497
  %v3538 = vpack.c.b16 %v3502, %v3498
  %v3539 = vpack.c.b16 %v3503, %v3499
  %v3540 = vpack.c.b16 %v3508, %v3504
  %v3541 = vpack.c.b16 %v3509, %v3505
  %v3542 = vpack.c.b16 %v3510, %v3506
  %v3543 = vpack.c.b16 %v3511, %v3507
  %3576 = vmatprep.subr.bf16.mxu0 %v3541
  %3577 = vmatpush1.bf16.msra.mxu0 %v3540
  %3578 = vmatprep.subr.bf16.mxu0 %v3537
  %3579 = vmatpush1.bf16.msra.mxu0 %v3536
  %3580 = vmatprep.subr.bf16.mxu0 %v3533
  %3581 = vmatpush1.bf16.msra.mxu0 %v3532
  %3582 = vmatprep.subr.bf16.mxu0 %v3529
  %3583 = vmatpush1.bf16.msra.mxu0 %v3528
  %3584 = vmatprep.subr.bf16.mxu0 %v3525
  %3585 = vmatpush1.bf16.msra.mxu0 %v3524
  %3586 = vmatprep.subr.bf16.mxu0 %v3521
  %3587 = vmatpush1.bf16.msra.mxu0 %v3520
  %3588 = vmatprep.subr.bf16.mxu0 %v3517
  %3589 = vmatpush1.bf16.msra.mxu0 %v3516
  %3590 = vmatprep.subr.bf16.mxu0 %v3513
  %3591 = vmatpush1.bf16.msra.mxu0 %v3512
  %3592 = vmatprep.subr.bf16.mxu0 0
  %3593 = vmatpush2.bf16.msra.mxu0 0
  %3594 = vmatprep.subr.bf16.mxu0 0
  %3595 = vmatpush2.bf16.msra.mxu0 0
  %3596 = vmatprep.subr.bf16.mxu0 0
  %3597 = vmatpush2.bf16.msra.mxu0 0
  %3598 = vmatprep.subr.bf16.mxu0 0
  %3599 = vmatpush2.bf16.msra.mxu0 0
  %3600 = vmatprep.subr.bf16.mxu0 0
  %3601 = vmatpush2.bf16.msra.mxu0 0
  %3602 = vmatprep.subr.bf16.mxu0 0
  %3603 = vmatpush2.bf16.msra.mxu0 0
  %3604 = vmatprep.subr.bf16.mxu0 0
  %3605 = vmatpush2.bf16.msra.mxu0 0
  %3606 = vmatprep.subr.bf16.mxu0 0
  %3607 = vmatpush2.bf16.msra.mxu0 0
  %3608 = vmatprep.mubr.bf16.mxu0 0
  %3609 = vmatmul.mubr.bf16.gmra.mxu0 %v3414
  %v3610 = vpop.f32.mrf.mxu0
  %v3611 = vadd.f32 0.0, %v3610
  %v3612 = vpop.f32.mrf.mxu0
  %v3613 = vadd.f32 0.0, %v3612
  %v3614 = vpop.f32.mrf.mxu0
  %v3615 = vpop.f32.mrf.mxu0
  %3616 = vdwg.mxu0
  %3617 = vmatprep.subr.bf16.mxu0 %v3543
  %3618 = vmatpush1.bf16.msra.mxu0 %v3542
  %3619 = vmatprep.subr.bf16.mxu0 %v3539
  %3620 = vmatpush1.bf16.msra.mxu0 %v3538
  %3621 = vmatprep.subr.bf16.mxu0 %v3535
  %3622 = vmatpush1.bf16.msra.mxu0 %v3534
  %3623 = vmatprep.subr.bf16.mxu0 %v3531
  %3624 = vmatpush1.bf16.msra.mxu0 %v3530
  %3625 = vmatprep.subr.bf16.mxu0 %v3527
  %3626 = vmatpush1.bf16.msra.mxu0 %v3526
  %3627 = vmatprep.subr.bf16.mxu0 %v3523
  %3628 = vmatpush1.bf16.msra.mxu0 %v3522
  %3629 = vmatprep.subr.bf16.mxu0 %v3519
  %3630 = vmatpush1.bf16.msra.mxu0 %v3518
  %3631 = vmatprep.subr.bf16.mxu0 %v3515
  %3632 = vmatpush1.bf16.msra.mxu0 %v3514
  %3633 = vmatprep.subr.bf16.mxu0 0
  %3634 = vmatpush2.bf16.msra.mxu0 0
  %3635 = vmatprep.subr.bf16.mxu0 0
  %3636 = vmatpush2.bf16.msra.mxu0 0
  %3637 = vmatprep.subr.bf16.mxu0 0
  %3638 = vmatpush2.bf16.msra.mxu0 0
  %3639 = vmatprep.subr.bf16.mxu0 0
  %3640 = vmatpush2.bf16.msra.mxu0 0
  %3641 = vmatprep.subr.bf16.mxu0 0
  %3642 = vmatpush2.bf16.msra.mxu0 0
  %3643 = vmatprep.subr.bf16.mxu0 0
  %3644 = vmatpush2.bf16.msra.mxu0 0
  %3645 = vmatprep.subr.bf16.mxu0 0
  %3646 = vmatpush2.bf16.msra.mxu0 0
  %3647 = vmatprep.subr.bf16.mxu0 0
  %3648 = vmatpush2.bf16.msra.mxu0 0
  %3649 = vmatprep.mubr.bf16.mxu0 0
  %3650 = vmatmul.mubr.bf16.gmra.mxu0 %v3414
  %v3651 = vpop.f32.mrf.mxu0
  %v3652 = vadd.f32 0.0, %v3651
  %v3653 = vpop.f32.mrf.mxu0
  %v3654 = vadd.f32 0.0, %v3653
  %v3655 = vpop.f32.mrf.mxu0
  %v3656 = vpop.f32.mrf.mxu0
  %3657 = vdwg.mxu0
  %v3662 = vrot.slane %v3611, 3
  %v3663 = vrot.slane %v3613, 3
  %v3664 = vrot.slane %v3652, 3
  %v3665 = vrot.slane %v3654, 3
  %v3666 = vrot.slane %v3611, 4
  %v3667 = vrot.slane %v3613, 4
  %v3668 = vrot.slane %v3652, 4
  %v3669 = vrot.slane %v3654, 4
  %v3670 = vrot.slane %v3611, 5
  %v3671 = vrot.slane %v3613, 5
  %v3672 = vrot.slane %v3652, 5
  %v3673 = vrot.slane %v3654, 5
  %v3674 = vrot.slane %v3611, 6
  %v3675 = vrot.slane %v3613, 6
  %v3676 = vrot.slane %v3652, 6
  %v3677 = vrot.slane %v3654, 6
  %v3678 = vrot.slane %v3611, 7
  %v3679 = vrot.slane %v3613, 7
  %v3680 = vrot.slane %v3652, 7
  %v3681 = vrot.slane %v3654, 7
  %v3682 = vrot.slane %v3611, 1
  %v3683 = vrot.slane %v3613, 1
  %v3684 = vrot.slane %v3652, 1
  %v3685 = vrot.slane %v3654, 1
  %v3686 = vrot.slane %v3611, 2
  %v3687 = vrot.slane %v3613, 2
  %v3688 = vrot.slane %v3652, 2
  %v3689 = vrot.slane %v3654, 2
  %v3722 = vadd.f32 %v388, %v3662
  %v3723 = vadd.f32 %v389, %v3663
  %v3724 = vadd.f32 %v390, %v3664
  %v3725 = vadd.f32 %v391, %v3665
  %v3726 = vadd.f32 %v396, %v3666
  %v3727 = vadd.f32 %v397, %v3667
  %v3728 = vadd.f32 %v398, %v3668
  %v3729 = vadd.f32 %v399, %v3669
  %v3730 = vadd.f32 %v404, %v3670
  %v3731 = vadd.f32 %v405, %v3671
  %v3732 = vadd.f32 %v406, %v3672
  %v3733 = vadd.f32 %v407, %v3673
  %v3734 = vadd.f32 %v412, %v3674
  %v3735 = vadd.f32 %v413, %v3675
  %v3736 = vadd.f32 %v414, %v3676
  %v3737 = vadd.f32 %v415, %v3677
  %v3738 = vadd.f32 %v420, %v3678
  %v3739 = vadd.f32 %v421, %v3679
  %v3740 = vadd.f32 %v422, %v3680
  %v3741 = vadd.f32 %v423, %v3681
  %v3742 = vadd.f32 %v428, %v3611
  %v3743 = vadd.f32 %v429, %v3613
  %v3744 = vadd.f32 %v430, %v3652
  %v3745 = vadd.f32 %v431, %v3654
  %v3746 = vadd.f32 %v436, %v3682
  %v3747 = vadd.f32 %v437, %v3683
  %v3748 = vadd.f32 %v438, %v3684
  %v3749 = vadd.f32 %v439, %v3685
  %v3750 = vadd.f32 %v444, %v3686
  %v3751 = vadd.f32 %v445, %v3687
  %v3752 = vadd.f32 %v446, %v3688
  %v3753 = vadd.f32 %v447, %v3689
  %v3754 = vmul.f32 %v3722, 0.5
  %v3755 = vmul.f32 %v3726, 0.5
  %v3756 = vmul.f32 %v3730, 0.5
  %v3757 = vmul.f32 %v3734, 0.5
  %v3758 = vmul.f32 %v3738, 0.5
  %v3759 = vmul.f32 %v3742, 0.5
  %v3760 = vmul.f32 %v3746, 0.5
  %v3761 = vmul.f32 %v3750, 0.5
  %v3762 = vtanh.pop %v3754
  %v3763 = vtanh.pop %v3755
  %v3764 = vtanh.pop %v3756
  %v3765 = vtanh.pop %v3757
  %v3766 = vtanh.pop %v3758
  %v3767 = vtanh.pop %v3759
  %v3768 = vtanh.pop %v3760
  %v3769 = vtanh.pop %v3761
  %v3770 = vmul.f32 %v3762, 0.5
  %v3771 = vmul.f32 %v3763, 0.5
  %v3772 = vmul.f32 %v3764, 0.5
  %v3773 = vmul.f32 %v3765, 0.5
  %v3774 = vmul.f32 %v3766, 0.5
  %v3775 = vmul.f32 %v3767, 0.5
  %v3776 = vmul.f32 %v3768, 0.5
  %v3777 = vmul.f32 %v3769, 0.5
  %v3778 = vadd.f32 %v3770, 0.5
  %v3779 = vadd.f32 %v3771, 0.5
  %v3780 = vadd.f32 %v3772, 0.5
  %v3781 = vadd.f32 %v3773, 0.5
  %v3782 = vadd.f32 %v3774, 0.5
  %v3783 = vadd.f32 %v3775, 0.5
  %v3784 = vadd.f32 %v3776, 0.5
  %v3785 = vadd.f32 %v3777, 0.5
  %v3786 = vmul.f32 %v3723, 0.5
  %v3787 = vmul.f32 %v3727, 0.5
  %v3788 = vmul.f32 %v3731, 0.5
  %v3789 = vmul.f32 %v3735, 0.5
  %v3790 = vmul.f32 %v3739, 0.5
  %v3791 = vmul.f32 %v3743, 0.5
  %v3792 = vmul.f32 %v3747, 0.5
  %v3793 = vmul.f32 %v3751, 0.5
  %v3794 = vtanh.pop %v3786
  %v3795 = vtanh.pop %v3787
  %v3796 = vtanh.pop %v3788
  %v3797 = vtanh.pop %v3789
  %v3798 = vtanh.pop %v3790
  %v3799 = vtanh.pop %v3791
  %v3800 = vtanh.pop %v3792
  %v3801 = vtanh.pop %v3793
  %v3802 = vmul.f32 %v3794, 0.5
  %v3803 = vmul.f32 %v3795, 0.5
  %v3804 = vmul.f32 %v3796, 0.5
  %v3805 = vmul.f32 %v3797, 0.5
  %v3806 = vmul.f32 %v3798, 0.5
  %v3807 = vmul.f32 %v3799, 0.5
  %v3808 = vmul.f32 %v3800, 0.5
  %v3809 = vmul.f32 %v3801, 0.5
  %v3810 = vadd.f32 %v3802, 0.5
  %v3811 = vadd.f32 %v3803, 0.5
  %v3812 = vadd.f32 %v3804, 0.5
  %v3813 = vadd.f32 %v3805, 0.5
  %v3814 = vadd.f32 %v3806, 0.5
  %v3815 = vadd.f32 %v3807, 0.5
  %v3816 = vadd.f32 %v3808, 0.5
  %v3817 = vadd.f32 %v3809, 0.5
  %v3818 = vmul.f32 %v3724, 0.5
  %v3819 = vmul.f32 %v3728, 0.5
  %v3820 = vmul.f32 %v3732, 0.5
  %v3821 = vmul.f32 %v3736, 0.5
  %v3822 = vmul.f32 %v3740, 0.5
  %v3823 = vmul.f32 %v3744, 0.5
  %v3824 = vmul.f32 %v3748, 0.5
  %v3825 = vmul.f32 %v3752, 0.5
  %v3826 = vtanh.pop %v3818
  %v3827 = vtanh.pop %v3819
  %v3828 = vtanh.pop %v3820
  %v3829 = vtanh.pop %v3821
  %v3830 = vtanh.pop %v3822
  %v3831 = vtanh.pop %v3823
  %v3832 = vtanh.pop %v3824
  %v3833 = vtanh.pop %v3825
  %v3834 = vmul.f32 %v3826, 0.5
  %v3835 = vmul.f32 %v3827, 0.5
  %v3836 = vmul.f32 %v3828, 0.5
  %v3837 = vmul.f32 %v3829, 0.5
  %v3838 = vmul.f32 %v3830, 0.5
  %v3839 = vmul.f32 %v3831, 0.5
  %v3840 = vmul.f32 %v3832, 0.5
  %v3841 = vmul.f32 %v3833, 0.5
  %v3842 = vadd.f32 %v3834, 0.5
  %v3843 = vadd.f32 %v3835, 0.5
  %v3844 = vadd.f32 %v3836, 0.5
  %v3845 = vadd.f32 %v3837, 0.5
  %v3846 = vadd.f32 %v3838, 0.5
  %v3847 = vadd.f32 %v3839, 0.5
  %v3848 = vadd.f32 %v3840, 0.5
  %v3849 = vadd.f32 %v3841, 0.5
  %v3850 = vtanh.pop %v3725
  %v3851 = vtanh.pop %v3729
  %v3852 = vtanh.pop %v3733
  %v3853 = vtanh.pop %v3737
  %v3854 = vtanh.pop %v3741
  %v3855 = vtanh.pop %v3745
  %v3856 = vtanh.pop %v3749
  %v3857 = vtanh.pop %v3753
  %v3866 = vrot.slane %v3312, 7
  %v3867 = vrot.slane %v3313, 7
  %v3868 = vrot.slane %v3314, 7
  %v3869 = vrot.slane %v3315, 7
  %v3870 = vrot.slane %v3316, 7
  %v3871 = vrot.slane %v3317, 7
  %v3872 = vrot.slane %v3318, 7
  %v3873 = vrot.slane %v3319, 7
  %v3882 = vmul.f32 %v3810, %v3866
  %v3883 = vmul.f32 %v3811, %v3867
  %v3884 = vmul.f32 %v3812, %v3868
  %v3885 = vmul.f32 %v3813, %v3869
  %v3886 = vmul.f32 %v3814, %v3870
  %v3887 = vmul.f32 %v3815, %v3871
  %v3888 = vmul.f32 %v3816, %v3872
  %v3889 = vmul.f32 %v3817, %v3873
  %v3890 = vmul.f32 %v3778, %v3850
  %v3891 = vmul.f32 %v3779, %v3851
  %v3892 = vmul.f32 %v3780, %v3852
  %v3893 = vmul.f32 %v3781, %v3853
  %v3894 = vmul.f32 %v3782, %v3854
  %v3895 = vmul.f32 %v3783, %v3855
  %v3896 = vmul.f32 %v3784, %v3856
  %v3897 = vmul.f32 %v3785, %v3857
  %v3898 = vadd.f32 %v3882, %v3890
  %v3899 = vadd.f32 %v3883, %v3891
  %v3900 = vadd.f32 %v3884, %v3892
  %v3901 = vadd.f32 %v3885, %v3893
  %v3902 = vadd.f32 %v3886, %v3894
  %v3903 = vadd.f32 %v3887, %v3895
  %v3904 = vadd.f32 %v3888, %v3896
  %v3905 = vadd.f32 %v3889, %v3897
  %v3906 = vtanh.pop %v3898
  %v3907 = vtanh.pop %v3899
  %v3908 = vtanh.pop %v3900
  %v3909 = vtanh.pop %v3901
  %v3910 = vtanh.pop %v3902
  %v3911 = vtanh.pop %v3903
  %v3912 = vtanh.pop %v3904
  %v3913 = vtanh.pop %v3905
  %v3914 = vmul.f32 %v3842, %v3906
  %v3915 = vmul.f32 %v3843, %v3907
  %v3916 = vmul.f32 %v3844, %v3908
  %v3917 = vmul.f32 %v3845, %v3909
  %v3918 = vmul.f32 %v3846, %v3910
  %v3919 = vmul.f32 %v3847, %v3911
  %v3920 = vmul.f32 %v3848, %v3912
  %v3921 = vmul.f32 %v3849, %v3913
  %3922 = vst [vmem:[%s6] sm:$0x20] %v3914
  %3923 = vst [vmem:[%s6 + $0x10] sm:$0x20] %v3915
  %3924 = vst [vmem:[%s6 + $0x20] sm:$0x20] %v3916
  %3925 = vst [vmem:[%s6 + $0x30] sm:$0x20] %v3917
  %3926 = vst [vmem:[%s6 + $0x40] sm:$0x20] %v3918
  %3927 = vst [vmem:[%s6 + $0x50] sm:$0x20] %v3919
  %3928 = vst [vmem:[%s6 + $0x60] sm:$0x20] %v3920
  %3929 = vst [vmem:[%s6 + $0x70] sm:$0x20] %v3921
  %v3930 = vpack.c.bf16 %v3914, %v3914
  %v3931 = vpack.c.bf16 %v3915, %v3915
  %v3932 = vpack.c.bf16 %v3916, %v3916
  %v3933 = vpack.c.bf16 %v3917, %v3917
  %v3934 = vpack.c.bf16 %v3918, %v3918
  %v3935 = vpack.c.bf16 %v3919, %v3919
  %v3936 = vpack.c.bf16 %v3920, %v3920
  %v3937 = vpack.c.bf16 %v3921, %v3921
  %v3938 = vld [vmem:[%s2] sm:$0xff]
  %v3939 = vld [vmem:[%s2 + $0x8] sm:$0xff]
  %v3940 = vld [vmem:[%s2 + $0x10] sm:$0xff]
  %v3941 = vld [vmem:[%s2 + $0x18] sm:$0xff]
  %v3942 = vld [vmem:[%s2 + $0x20] sm:$0xff]
  %v3943 = vld [vmem:[%s2 + $0x28] sm:$0xff]
  %v3944 = vld [vmem:[%s2 + $0x30] sm:$0xff]
  %v3945 = vld [vmem:[%s2 + $0x38] sm:$0xff]
  %v3946 = vld [vmem:[%s2 + $0x40] sm:$0xff]
  %v3947 = vld [vmem:[%s2 + $0x48] sm:$0xff]
  %v3948 = vld [vmem:[%s2 + $0x50] sm:$0xff]
  %v3949 = vld [vmem:[%s2 + $0x58] sm:$0xff]
  %v3950 = vld [vmem:[%s2 + $0x60] sm:$0xff]
  %v3951 = vld [vmem:[%s2 + $0x68] sm:$0xff]
  %v3952 = vld [vmem:[%s2 + $0x70] sm:$0xff]
  %v3953 = vld [vmem:[%s2 + $0x78] sm:$0xff]
  %v3954 = vld [vmem:[%s2 + $0x80] sm:$0xff]
  %v3955 = vld [vmem:[%s2 + $0x88] sm:$0xff]
  %v3956 = vld [vmem:[%s2 + $0x90] sm:$0xff]
  %v3957 = vld [vmem:[%s2 + $0x98] sm:$0xff]
  %v3958 = vld [vmem:[%s2 + $0xa0] sm:$0xff]
  %v3959 = vld [vmem:[%s2 + $0xa8] sm:$0xff]
  %v3960 = vld [vmem:[%s2 + $0xb0] sm:$0xff]
  %v3961 = vld [vmem:[%s2 + $0xb8] sm:$0xff]
  %v3962 = vld [vmem:[%s2 + $0xc0] sm:$0xff]
  %v3963 = vld [vmem:[%s2 + $0xc8] sm:$0xff]
  %v3964 = vld [vmem:[%s2 + $0xd0] sm:$0xff]
  %v3965 = vld [vmem:[%s2 + $0xd8] sm:$0xff]
  %v3966 = vld [vmem:[%s2 + $0xe0] sm:$0xff]
  %v3967 = vld [vmem:[%s2 + $0xe8] sm:$0xff]
  %v3968 = vld [vmem:[%s2 + $0xf0] sm:$0xff]
  %v3969 = vld [vmem:[%s2 + $0xf8] sm:$0xff]
  %v3978 = vunpack.c.l.b16 %v3930
  %v3979 = vunpack.c.l.b16 %v3931
  %v3980 = vunpack.c.l.b16 %v3932
  %v3981 = vunpack.c.l.b16 %v3933
  %v3982 = vunpack.c.l.b16 %v3934
  %v3983 = vunpack.c.l.b16 %v3935
  %v3984 = vunpack.c.l.b16 %v3936
  %v3985 = vunpack.c.l.b16 %v3937
  %v3986 = vrot.slane %v3978, 5
  %v3987 = vrot.slane %v3979, 4
  %v3988 = vsel %vm1050, %v3987, %v3986
  %v3989 = vrot.slane %v3980, 3
  %v3990 = vsel %vm1053, %v3989, %v3988
  %v3991 = vrot.slane %v3981, 2
  %v3992 = vsel %vm1056, %v3991, %v3990
  %v3993 = vrot.slane %v3982, 1
  %v3994 = vsel %vm1059, %v3993, %v3992
  %v3995 = vsel %vm1062, %v3983, %v3994
  %v3996 = vrot.slane %v3984, 7
  %v3997 = vsel %vm1065, %v3996, %v3995
  %v3998 = vrot.slane %v3985, 6
  %v3999 = vsel %vm1068, %v3998, %v3997
  %v4000 = vpack.c.b16 %v3999, %v3999
  %v4034 = vunpack.c.l.b16 %v3938
  %v4035 = vunpack.c.h.b16 %v3938
  %v4036 = vunpack.c.l.b16 %v3939
  %v4037 = vunpack.c.h.b16 %v3939
  %v4038 = vunpack.c.l.b16 %v3940
  %v4039 = vunpack.c.h.b16 %v3940
  %v4040 = vunpack.c.l.b16 %v3941
  %v4041 = vunpack.c.h.b16 %v3941
  %v4042 = vunpack.c.l.b16 %v3942
  %v4043 = vunpack.c.h.b16 %v3942
  %v4044 = vunpack.c.l.b16 %v3943
  %v4045 = vunpack.c.h.b16 %v3943
  %v4046 = vunpack.c.l.b16 %v3944
  %v4047 = vunpack.c.h.b16 %v3944
  %v4048 = vunpack.c.l.b16 %v3945
  %v4049 = vunpack.c.h.b16 %v3945
  %v4050 = vunpack.c.l.b16 %v3946
  %v4051 = vunpack.c.h.b16 %v3946
  %v4052 = vunpack.c.l.b16 %v3947
  %v4053 = vunpack.c.h.b16 %v3947
  %v4054 = vunpack.c.l.b16 %v3948
  %v4055 = vunpack.c.h.b16 %v3948
  %v4056 = vunpack.c.l.b16 %v3949
  %v4057 = vunpack.c.h.b16 %v3949
  %v4058 = vunpack.c.l.b16 %v3950
  %v4059 = vunpack.c.h.b16 %v3950
  %v4060 = vunpack.c.l.b16 %v3951
  %v4061 = vunpack.c.h.b16 %v3951
  %v4062 = vunpack.c.l.b16 %v3952
  %v4063 = vunpack.c.h.b16 %v3952
  %v4064 = vunpack.c.l.b16 %v3953
  %v4065 = vunpack.c.h.b16 %v3953
  %v4066 = vunpack.c.l.b16 %v3954
  %v4067 = vunpack.c.h.b16 %v3954
  %v4068 = vunpack.c.l.b16 %v3955
  %v4069 = vunpack.c.h.b16 %v3955
  %v4070 = vunpack.c.l.b16 %v3956
  %v4071 = vunpack.c.h.b16 %v3956
  %v4072 = vunpack.c.l.b16 %v3957
  %v4073 = vunpack.c.h.b16 %v3957
  %v4074 = vunpack.c.l.b16 %v3958
  %v4075 = vunpack.c.h.b16 %v3958
  %v4076 = vunpack.c.l.b16 %v3959
  %v4077 = vunpack.c.h.b16 %v3959
  %v4078 = vunpack.c.l.b16 %v3960
  %v4079 = vunpack.c.h.b16 %v3960
  %v4080 = vunpack.c.l.b16 %v3961
  %v4081 = vunpack.c.h.b16 %v3961
  %v4082 = vunpack.c.l.b16 %v3962
  %v4083 = vunpack.c.h.b16 %v3962
  %v4084 = vunpack.c.l.b16 %v3963
  %v4085 = vunpack.c.h.b16 %v3963
  %v4086 = vunpack.c.l.b16 %v3964
  %v4087 = vunpack.c.h.b16 %v3964
  %v4088 = vunpack.c.l.b16 %v3965
  %v4089 = vunpack.c.h.b16 %v3965
  %v4090 = vunpack.c.l.b16 %v3966
  %v4091 = vunpack.c.h.b16 %v3966
  %v4092 = vunpack.c.l.b16 %v3967
  %v4093 = vunpack.c.h.b16 %v3967
  %v4094 = vunpack.c.l.b16 %v3968
  %v4095 = vunpack.c.h.b16 %v3968
  %v4096 = vunpack.c.l.b16 %v3969
  %v4097 = vunpack.c.h.b16 %v3969
  %v4098 = vpack.c.b16 %v4038, %v4034
  %v4099 = vpack.c.b16 %v4039, %v4035
  %v4100 = vpack.c.b16 %v4040, %v4036
  %v4101 = vpack.c.b16 %v4041, %v4037
  %v4102 = vpack.c.b16 %v4046, %v4042
  %v4103 = vpack.c.b16 %v4047, %v4043
  %v4104 = vpack.c.b16 %v4048, %v4044
  %v4105 = vpack.c.b16 %v4049, %v4045
  %v4106 = vpack.c.b16 %v4054, %v4050
  %v4107 = vpack.c.b16 %v4055, %v4051
  %v4108 = vpack.c.b16 %v4056, %v4052
  %v4109 = vpack.c.b16 %v4057, %v4053
  %v4110 = vpack.c.b16 %v4062, %v4058
  %v4111 = vpack.c.b16 %v4063, %v4059
  %v4112 = vpack.c.b16 %v4064, %v4060
  %v4113 = vpack.c.b16 %v4065, %v4061
  %v4114 = vpack.c.b16 %v4070, %v4066
  %v4115 = vpack.c.b16 %v4071, %v4067
  %v4116 = vpack.c.b16 %v4072, %v4068
  %v4117 = vpack.c.b16 %v4073, %v4069
  %v4118 = vpack.c.b16 %v4078, %v4074
  %v4119 = vpack.c.b16 %v4079, %v4075
  %v4120 = vpack.c.b16 %v4080, %v4076
  %v4121 = vpack.c.b16 %v4081, %v4077
  %v4122 = vpack.c.b16 %v4086, %v4082
  %v4123 = vpack.c.b16 %v4087, %v4083
  %v4124 = vpack.c.b16 %v4088, %v4084
  %v4125 = vpack.c.b16 %v4089, %v4085
  %v4126 = vpack.c.b16 %v4094, %v4090
  %v4127 = vpack.c.b16 %v4095, %v4091
  %v4128 = vpack.c.b16 %v4096, %v4092
  %v4129 = vpack.c.b16 %v4097, %v4093
  %4162 = vmatprep.subr.bf16.mxu0 %v4127
  %4163 = vmatpush1.bf16.msra.mxu0 %v4126
  %4164 = vmatprep.subr.bf16.mxu0 %v4123
  %4165 = vmatpush1.bf16.msra.mxu0 %v4122
  %4166 = vmatprep.subr.bf16.mxu0 %v4119
  %4167 = vmatpush1.bf16.msra.mxu0 %v4118
  %4168 = vmatprep.subr.bf16.mxu0 %v4115
  %4169 = vmatpush1.bf16.msra.mxu0 %v4114
  %4170 = vmatprep.subr.bf16.mxu0 %v4111
  %4171 = vmatpush1.bf16.msra.mxu0 %v4110
  %4172 = vmatprep.subr.bf16.mxu0 %v4107
  %4173 = vmatpush1.bf16.msra.mxu0 %v4106
  %4174 = vmatprep.subr.bf16.mxu0 %v4103
  %4175 = vmatpush1.bf16.msra.mxu0 %v4102
  %4176 = vmatprep.subr.bf16.mxu0 %v4099
  %4177 = vmatpush1.bf16.msra.mxu0 %v4098
  %4178 = vmatprep.subr.bf16.mxu0 0
  %4179 = vmatpush2.bf16.msra.mxu0 0
  %4180 = vmatprep.subr.bf16.mxu0 0
  %4181 = vmatpush2.bf16.msra.mxu0 0
  %4182 = vmatprep.subr.bf16.mxu0 0
  %4183 = vmatpush2.bf16.msra.mxu0 0
  %4184 = vmatprep.subr.bf16.mxu0 0
  %4185 = vmatpush2.bf16.msra.mxu0 0
  %4186 = vmatprep.subr.bf16.mxu0 0
  %4187 = vmatpush2.bf16.msra.mxu0 0
  %4188 = vmatprep.subr.bf16.mxu0 0
  %4189 = vmatpush2.bf16.msra.mxu0 0
  %4190 = vmatprep.subr.bf16.mxu0 0
  %4191 = vmatpush2.bf16.msra.mxu0 0
  %4192 = vmatprep.subr.bf16.mxu0 0
  %4193 = vmatpush2.bf16.msra.mxu0 0
  %4194 = vmatprep.mubr.bf16.mxu0 0
  %4195 = vmatmul.mubr.bf16.gmra.mxu0 %v4000
  %v4196 = vpop.f32.mrf.mxu0
  %v4197 = vadd.f32 0.0, %v4196
  %v4198 = vpop.f32.mrf.mxu0
  %v4199 = vadd.f32 0.0, %v4198
  %v4200 = vpop.f32.mrf.mxu0
  %v4201 = vpop.f32.mrf.mxu0
  %4202 = vdwg.mxu0
  %4203 = vmatprep.subr.bf16.mxu0 %v4129
  %4204 = vmatpush1.bf16.msra.mxu0 %v4128
  %4205 = vmatprep.subr.bf16.mxu0 %v4125
  %4206 = vmatpush1.bf16.msra.mxu0 %v4124
  %4207 = vmatprep.subr.bf16.mxu0 %v4121
  %4208 = vmatpush1.bf16.msra.mxu0 %v4120
  %4209 = vmatprep.subr.bf16.mxu0 %v4117
  %4210 = vmatpush1.bf16.msra.mxu0 %v4116
  %4211 = vmatprep.subr.bf16.mxu0 %v4113
  %4212 = vmatpush1.bf16.msra.mxu0 %v4112
  %4213 = vmatprep.subr.bf16.mxu0 %v4109
  %4214 = vmatpush1.bf16.msra.mxu0 %v4108
  %4215 = vmatprep.subr.bf16.mxu0 %v4105
  %4216 = vmatpush1.bf16.msra.mxu0 %v4104
  %4217 = vmatprep.subr.bf16.mxu0 %v4101
  %4218 = vmatpush1.bf16.msra.mxu0 %v4100
  %4219 = vmatprep.subr.bf16.mxu0 0
  %4220 = vmatpush2.bf16.msra.mxu0 0
  %4221 = vmatprep.subr.bf16.mxu0 0
  %4222 = vmatpush2.bf16.msra.mxu0 0
  %4223 = vmatprep.subr.bf16.mxu0 0
  %4224 = vmatpush2.bf16.msra.mxu0 0
  %4225 = vmatprep.subr.bf16.mxu0 0
  %4226 = vmatpush2.bf16.msra.mxu0 0
  %4227 = vmatprep.subr.bf16.mxu0 0
  %4228 = vmatpush2.bf16.msra.mxu0 0
  %4229 = vmatprep.subr.bf16.mxu0 0
  %4230 = vmatpush2.bf16.msra.mxu0 0
  %4231 = vmatprep.subr.bf16.mxu0 0
  %4232 = vmatpush2.bf16.msra.mxu0 0
  %4233 = vmatprep.subr.bf16.mxu0 0
  %4234 = vmatpush2.bf16.msra.mxu0 0
  %4235 = vmatprep.mubr.bf16.mxu0 0
  %4236 = vmatmul.mubr.bf16.gmra.mxu0 %v4000
  %v4237 = vpop.f32.mrf.mxu0
  %v4238 = vadd.f32 0.0, %v4237
  %v4239 = vpop.f32.mrf.mxu0
  %v4240 = vadd.f32 0.0, %v4239
  %v4241 = vpop.f32.mrf.mxu0
  %v4242 = vpop.f32.mrf.mxu0
  %4243 = vdwg.mxu0
  %v4248 = vrot.slane %v4197, 2
  %v4249 = vrot.slane %v4199, 2
  %v4250 = vrot.slane %v4238, 2
  %v4251 = vrot.slane %v4240, 2
  %v4252 = vrot.slane %v4197, 3
  %v4253 = vrot.slane %v4199, 3
  %v4254 = vrot.slane %v4238, 3
  %v4255 = vrot.slane %v4240, 3
  %v4256 = vrot.slane %v4197, 4
  %v4257 = vrot.slane %v4199, 4
  %v4258 = vrot.slane %v4238, 4
  %v4259 = vrot.slane %v4240, 4
  %v4260 = vrot.slane %v4197, 5
  %v4261 = vrot.slane %v4199, 5
  %v4262 = vrot.slane %v4238, 5
  %v4263 = vrot.slane %v4240, 5
  %v4264 = vrot.slane %v4197, 6
  %v4265 = vrot.slane %v4199, 6
  %v4266 = vrot.slane %v4238, 6
  %v4267 = vrot.slane %v4240, 6
  %v4268 = vrot.slane %v4197, 7
  %v4269 = vrot.slane %v4199, 7
  %v4270 = vrot.slane %v4238, 7
  %v4271 = vrot.slane %v4240, 7
  %v4272 = vrot.slane %v4197, 1
  %v4273 = vrot.slane %v4199, 1
  %v4274 = vrot.slane %v4238, 1
  %v4275 = vrot.slane %v4240, 1
  %v4308 = vadd.f32 %v388, %v4248
  %v4309 = vadd.f32 %v389, %v4249
  %v4310 = vadd.f32 %v390, %v4250
  %v4311 = vadd.f32 %v391, %v4251
  %v4312 = vadd.f32 %v396, %v4252
  %v4313 = vadd.f32 %v397, %v4253
  %v4314 = vadd.f32 %v398, %v4254
  %v4315 = vadd.f32 %v399, %v4255
  %v4316 = vadd.f32 %v404, %v4256
  %v4317 = vadd.f32 %v405, %v4257
  %v4318 = vadd.f32 %v406, %v4258
  %v4319 = vadd.f32 %v407, %v4259
  %v4320 = vadd.f32 %v412, %v4260
  %v4321 = vadd.f32 %v413, %v4261
  %v4322 = vadd.f32 %v414, %v4262
  %v4323 = vadd.f32 %v415, %v4263
  %v4324 = vadd.f32 %v420, %v4264
  %v4325 = vadd.f32 %v421, %v4265
  %v4326 = vadd.f32 %v422, %v4266
  %v4327 = vadd.f32 %v423, %v4267
  %v4328 = vadd.f32 %v428, %v4268
  %v4329 = vadd.f32 %v429, %v4269
  %v4330 = vadd.f32 %v430, %v4270
  %v4331 = vadd.f32 %v431, %v4271
  %v4332 = vadd.f32 %v436, %v4197
  %v4333 = vadd.f32 %v437, %v4199
  %v4334 = vadd.f32 %v438, %v4238
  %v4335 = vadd.f32 %v439, %v4240
  %v4336 = vadd.f32 %v444, %v4272
  %v4337 = vadd.f32 %v445, %v4273
  %v4338 = vadd.f32 %v446, %v4274
  %v4339 = vadd.f32 %v447, %v4275
  %v4340 = vmul.f32 %v4308, 0.5
  %v4341 = vmul.f32 %v4312, 0.5
  %v4342 = vmul.f32 %v4316, 0.5
  %v4343 = vmul.f32 %v4320, 0.5
  %v4344 = vmul.f32 %v4324, 0.5
  %v4345 = vmul.f32 %v4328, 0.5
  %v4346 = vmul.f32 %v4332, 0.5
  %v4347 = vmul.f32 %v4336, 0.5
  %v4348 = vtanh.pop %v4340
  %v4349 = vtanh.pop %v4341
  %v4350 = vtanh.pop %v4342
  %v4351 = vtanh.pop %v4343
  %v4352 = vtanh.pop %v4344
  %v4353 = vtanh.pop %v4345
  %v4354 = vtanh.pop %v4346
  %v4355 = vtanh.pop %v4347
  %v4356 = vmul.f32 %v4348, 0.5
  %v4357 = vmul.f32 %v4349, 0.5
  %v4358 = vmul.f32 %v4350, 0.5
  %v4359 = vmul.f32 %v4351, 0.5
  %v4360 = vmul.f32 %v4352, 0.5
  %v4361 = vmul.f32 %v4353, 0.5
  %v4362 = vmul.f32 %v4354, 0.5
  %v4363 = vmul.f32 %v4355, 0.5
  %v4364 = vadd.f32 %v4356, 0.5
  %v4365 = vadd.f32 %v4357, 0.5
  %v4366 = vadd.f32 %v4358, 0.5
  %v4367 = vadd.f32 %v4359, 0.5
  %v4368 = vadd.f32 %v4360, 0.5
  %v4369 = vadd.f32 %v4361, 0.5
  %v4370 = vadd.f32 %v4362, 0.5
  %v4371 = vadd.f32 %v4363, 0.5
  %v4372 = vmul.f32 %v4309, 0.5
  %v4373 = vmul.f32 %v4313, 0.5
  %v4374 = vmul.f32 %v4317, 0.5
  %v4375 = vmul.f32 %v4321, 0.5
  %v4376 = vmul.f32 %v4325, 0.5
  %v4377 = vmul.f32 %v4329, 0.5
  %v4378 = vmul.f32 %v4333, 0.5
  %v4379 = vmul.f32 %v4337, 0.5
  %v4380 = vtanh.pop %v4372
  %v4381 = vtanh.pop %v4373
  %v4382 = vtanh.pop %v4374
  %v4383 = vtanh.pop %v4375
  %v4384 = vtanh.pop %v4376
  %v4385 = vtanh.pop %v4377
  %v4386 = vtanh.pop %v4378
  %v4387 = vtanh.pop %v4379
  %v4388 = vmul.f32 %v4380, 0.5
  %v4389 = vmul.f32 %v4381, 0.5
  %v4390 = vmul.f32 %v4382, 0.5
  %v4391 = vmul.f32 %v4383, 0.5
  %v4392 = vmul.f32 %v4384, 0.5
  %v4393 = vmul.f32 %v4385, 0.5
  %v4394 = vmul.f32 %v4386, 0.5
  %v4395 = vmul.f32 %v4387, 0.5
  %v4396 = vadd.f32 %v4388, 0.5
  %v4397 = vadd.f32 %v4389, 0.5
  %v4398 = vadd.f32 %v4390, 0.5
  %v4399 = vadd.f32 %v4391, 0.5
  %v4400 = vadd.f32 %v4392, 0.5
  %v4401 = vadd.f32 %v4393, 0.5
  %v4402 = vadd.f32 %v4394, 0.5
  %v4403 = vadd.f32 %v4395, 0.5
  %v4404 = vmul.f32 %v4310, 0.5
  %v4405 = vmul.f32 %v4314, 0.5
  %v4406 = vmul.f32 %v4318, 0.5
  %v4407 = vmul.f32 %v4322, 0.5
  %v4408 = vmul.f32 %v4326, 0.5
  %v4409 = vmul.f32 %v4330, 0.5
  %v4410 = vmul.f32 %v4334, 0.5
  %v4411 = vmul.f32 %v4338, 0.5
  %v4412 = vtanh.pop %v4404
  %v4413 = vtanh.pop %v4405
  %v4414 = vtanh.pop %v4406
  %v4415 = vtanh.pop %v4407
  %v4416 = vtanh.pop %v4408
  %v4417 = vtanh.pop %v4409
  %v4418 = vtanh.pop %v4410
  %v4419 = vtanh.pop %v4411
  %v4420 = vmul.f32 %v4412, 0.5
  %v4421 = vmul.f32 %v4413, 0.5
  %v4422 = vmul.f32 %v4414, 0.5
  %v4423 = vmul.f32 %v4415, 0.5
  %v4424 = vmul.f32 %v4416, 0.5
  %v4425 = vmul.f32 %v4417, 0.5
  %v4426 = vmul.f32 %v4418, 0.5
  %v4427 = vmul.f32 %v4419, 0.5
  %v4428 = vadd.f32 %v4420, 0.5
  %v4429 = vadd.f32 %v4421, 0.5
  %v4430 = vadd.f32 %v4422, 0.5
  %v4431 = vadd.f32 %v4423, 0.5
  %v4432 = vadd.f32 %v4424, 0.5
  %v4433 = vadd.f32 %v4425, 0.5
  %v4434 = vadd.f32 %v4426, 0.5
  %v4435 = vadd.f32 %v4427, 0.5
  %v4436 = vtanh.pop %v4311
  %v4437 = vtanh.pop %v4315
  %v4438 = vtanh.pop %v4319
  %v4439 = vtanh.pop %v4323
  %v4440 = vtanh.pop %v4327
  %v4441 = vtanh.pop %v4331
  %v4442 = vtanh.pop %v4335
  %v4443 = vtanh.pop %v4339
  %v4452 = vrot.slane %v3898, 7
  %v4453 = vrot.slane %v3899, 7
  %v4454 = vrot.slane %v3900, 7
  %v4455 = vrot.slane %v3901, 7
  %v4456 = vrot.slane %v3902, 7
  %v4457 = vrot.slane %v3903, 7
  %v4458 = vrot.slane %v3904, 7
  %v4459 = vrot.slane %v3905, 7
  %v4468 = vmul.f32 %v4396, %v4452
  %v4469 = vmul.f32 %v4397, %v4453
  %v4470 = vmul.f32 %v4398, %v4454
  %v4471 = vmul.f32 %v4399, %v4455
  %v4472 = vmul.f32 %v4400, %v4456
  %v4473 = vmul.f32 %v4401, %v4457
  %v4474 = vmul.f32 %v4402, %v4458
  %v4475 = vmul.f32 %v4403, %v4459
  %v4476 = vmul.f32 %v4364, %v4436
  %v4477 = vmul.f32 %v4365, %v4437
  %v4478 = vmul.f32 %v4366, %v4438
  %v4479 = vmul.f32 %v4367, %v4439
  %v4480 = vmul.f32 %v4368, %v4440
  %v4481 = vmul.f32 %v4369, %v4441
  %v4482 = vmul.f32 %v4370, %v4442
  %v4483 = vmul.f32 %v4371, %v4443
  %v4484 = vadd.f32 %v4468, %v4476
  %v4485 = vadd.f32 %v4469, %v4477
  %v4486 = vadd.f32 %v4470, %v4478
  %v4487 = vadd.f32 %v4471, %v4479
  %v4488 = vadd.f32 %v4472, %v4480
  %v4489 = vadd.f32 %v4473, %v4481
  %v4490 = vadd.f32 %v4474, %v4482
  %v4491 = vadd.f32 %v4475, %v4483
  %v4492 = vtanh.pop %v4484
  %v4493 = vtanh.pop %v4485
  %v4494 = vtanh.pop %v4486
  %v4495 = vtanh.pop %v4487
  %v4496 = vtanh.pop %v4488
  %v4497 = vtanh.pop %v4489
  %v4498 = vtanh.pop %v4490
  %v4499 = vtanh.pop %v4491
  %v4500 = vmul.f32 %v4428, %v4492
  %v4501 = vmul.f32 %v4429, %v4493
  %v4502 = vmul.f32 %v4430, %v4494
  %v4503 = vmul.f32 %v4431, %v4495
  %v4504 = vmul.f32 %v4432, %v4496
  %v4505 = vmul.f32 %v4433, %v4497
  %v4506 = vmul.f32 %v4434, %v4498
  %v4507 = vmul.f32 %v4435, %v4499
  %4508 = vst [vmem:[%s6] sm:$0x40] %v4500
  %4509 = vst [vmem:[%s6 + $0x10] sm:$0x40] %v4501
  %4510 = vst [vmem:[%s6 + $0x20] sm:$0x40] %v4502
  %4511 = vst [vmem:[%s6 + $0x30] sm:$0x40] %v4503
  %4512 = vst [vmem:[%s6 + $0x40] sm:$0x40] %v4504
  %4513 = vst [vmem:[%s6 + $0x50] sm:$0x40] %v4505
  %4514 = vst [vmem:[%s6 + $0x60] sm:$0x40] %v4506
  %4515 = vst [vmem:[%s6 + $0x70] sm:$0x40] %v4507
  %v4516 = vpack.c.bf16 %v4500, %v4500
  %v4517 = vpack.c.bf16 %v4501, %v4501
  %v4518 = vpack.c.bf16 %v4502, %v4502
  %v4519 = vpack.c.bf16 %v4503, %v4503
  %v4520 = vpack.c.bf16 %v4504, %v4504
  %v4521 = vpack.c.bf16 %v4505, %v4505
  %v4522 = vpack.c.bf16 %v4506, %v4506
  %v4523 = vpack.c.bf16 %v4507, %v4507
  %v4524 = vld [vmem:[%s2] sm:$0xff]
  %v4525 = vld [vmem:[%s2 + $0x8] sm:$0xff]
  %v4526 = vld [vmem:[%s2 + $0x10] sm:$0xff]
  %v4527 = vld [vmem:[%s2 + $0x18] sm:$0xff]
  %v4528 = vld [vmem:[%s2 + $0x20] sm:$0xff]
  %v4529 = vld [vmem:[%s2 + $0x28] sm:$0xff]
  %v4530 = vld [vmem:[%s2 + $0x30] sm:$0xff]
  %v4531 = vld [vmem:[%s2 + $0x38] sm:$0xff]
  %v4532 = vld [vmem:[%s2 + $0x40] sm:$0xff]
  %v4533 = vld [vmem:[%s2 + $0x48] sm:$0xff]
  %v4534 = vld [vmem:[%s2 + $0x50] sm:$0xff]
  %v4535 = vld [vmem:[%s2 + $0x58] sm:$0xff]
  %v4536 = vld [vmem:[%s2 + $0x60] sm:$0xff]
  %v4537 = vld [vmem:[%s2 + $0x68] sm:$0xff]
  %v4538 = vld [vmem:[%s2 + $0x70] sm:$0xff]
  %v4539 = vld [vmem:[%s2 + $0x78] sm:$0xff]
  %v4540 = vld [vmem:[%s2 + $0x80] sm:$0xff]
  %v4541 = vld [vmem:[%s2 + $0x88] sm:$0xff]
  %v4542 = vld [vmem:[%s2 + $0x90] sm:$0xff]
  %v4543 = vld [vmem:[%s2 + $0x98] sm:$0xff]
  %v4544 = vld [vmem:[%s2 + $0xa0] sm:$0xff]
  %v4545 = vld [vmem:[%s2 + $0xa8] sm:$0xff]
  %v4546 = vld [vmem:[%s2 + $0xb0] sm:$0xff]
  %v4547 = vld [vmem:[%s2 + $0xb8] sm:$0xff]
  %v4548 = vld [vmem:[%s2 + $0xc0] sm:$0xff]
  %v4549 = vld [vmem:[%s2 + $0xc8] sm:$0xff]
  %v4550 = vld [vmem:[%s2 + $0xd0] sm:$0xff]
  %v4551 = vld [vmem:[%s2 + $0xd8] sm:$0xff]
  %v4552 = vld [vmem:[%s2 + $0xe0] sm:$0xff]
  %v4553 = vld [vmem:[%s2 + $0xe8] sm:$0xff]
  %v4554 = vld [vmem:[%s2 + $0xf0] sm:$0xff]
  %v4555 = vld [vmem:[%s2 + $0xf8] sm:$0xff]
  %v4564 = vunpack.c.l.b16 %v4516
  %v4565 = vunpack.c.l.b16 %v4517
  %v4566 = vunpack.c.l.b16 %v4518
  %v4567 = vunpack.c.l.b16 %v4519
  %v4568 = vunpack.c.l.b16 %v4520
  %v4569 = vunpack.c.l.b16 %v4521
  %v4570 = vunpack.c.l.b16 %v4522
  %v4571 = vunpack.c.l.b16 %v4523
  %v4572 = vrot.slane %v4564, 6
  %v4573 = vrot.slane %v4565, 5
  %v4574 = vsel %vm1050, %v4573, %v4572
  %v4575 = vrot.slane %v4566, 4
  %v4576 = vsel %vm1053, %v4575, %v4574
  %v4577 = vrot.slane %v4567, 3
  %v4578 = vsel %vm1056, %v4577, %v4576
  %v4579 = vrot.slane %v4568, 2
  %v4580 = vsel %vm1059, %v4579, %v4578
  %v4581 = vrot.slane %v4569, 1
  %v4582 = vsel %vm1062, %v4581, %v4580
  %v4583 = vsel %vm1065, %v4570, %v4582
  %v4584 = vrot.slane %v4571, 7
  %v4585 = vsel %vm1068, %v4584, %v4583
  %v4586 = vpack.c.b16 %v4585, %v4585
  %v4620 = vunpack.c.l.b16 %v4524
  %v4621 = vunpack.c.h.b16 %v4524
  %v4622 = vunpack.c.l.b16 %v4525
  %v4623 = vunpack.c.h.b16 %v4525
  %v4624 = vunpack.c.l.b16 %v4526
  %v4625 = vunpack.c.h.b16 %v4526
  %v4626 = vunpack.c.l.b16 %v4527
  %v4627 = vunpack.c.h.b16 %v4527
  %v4628 = vunpack.c.l.b16 %v4528
  %v4629 = vunpack.c.h.b16 %v4528
  %v4630 = vunpack.c.l.b16 %v4529
  %v4631 = vunpack.c.h.b16 %v4529
  %v4632 = vunpack.c.l.b16 %v4530
  %v4633 = vunpack.c.h.b16 %v4530
  %v4634 = vunpack.c.l.b16 %v4531
  %v4635 = vunpack.c.h.b16 %v4531
  %v4636 = vunpack.c.l.b16 %v4532
  %v4637 = vunpack.c.h.b16 %v4532
  %v4638 = vunpack.c.l.b16 %v4533
  %v4639 = vunpack.c.h.b16 %v4533
  %v4640 = vunpack.c.l.b16 %v4534
  %v4641 = vunpack.c.h.b16 %v4534
  %v4642 = vunpack.c.l.b16 %v4535
  %v4643 = vunpack.c.h.b16 %v4535
  %v4644 = vunpack.c.l.b16 %v4536
  %v4645 = vunpack.c.h.b16 %v4536
  %v4646 = vunpack.c.l.b16 %v4537
  %v4647 = vunpack.c.h.b16 %v4537
  %v4648 = vunpack.c.l.b16 %v4538
  %v4649 = vunpack.c.h.b16 %v4538
  %v4650 = vunpack.c.l.b16 %v4539
  %v4651 = vunpack.c.h.b16 %v4539
  %v4652 = vunpack.c.l.b16 %v4540
  %v4653 = vunpack.c.h.b16 %v4540
  %v4654 = vunpack.c.l.b16 %v4541
  %v4655 = vunpack.c.h.b16 %v4541
  %v4656 = vunpack.c.l.b16 %v4542
  %v4657 = vunpack.c.h.b16 %v4542
  %v4658 = vunpack.c.l.b16 %v4543
  %v4659 = vunpack.c.h.b16 %v4543
  %v4660 = vunpack.c.l.b16 %v4544
  %v4661 = vunpack.c.h.b16 %v4544
  %v4662 = vunpack.c.l.b16 %v4545
  %v4663 = vunpack.c.h.b16 %v4545
  %v4664 = vunpack.c.l.b16 %v4546
  %v4665 = vunpack.c.h.b16 %v4546
  %v4666 = vunpack.c.l.b16 %v4547
  %v4667 = vunpack.c.h.b16 %v4547
  %v4668 = vunpack.c.l.b16 %v4548
  %v4669 = vunpack.c.h.b16 %v4548
  %v4670 = vunpack.c.l.b16 %v4549
  %v4671 = vunpack.c.h.b16 %v4549
  %v4672 = vunpack.c.l.b16 %v4550
  %v4673 = vunpack.c.h.b16 %v4550
  %v4674 = vunpack.c.l.b16 %v4551
  %v4675 = vunpack.c.h.b16 %v4551
  %v4676 = vunpack.c.l.b16 %v4552
  %v4677 = vunpack.c.h.b16 %v4552
  %v4678 = vunpack.c.l.b16 %v4553
  %v4679 = vunpack.c.h.b16 %v4553
  %v4680 = vunpack.c.l.b16 %v4554
  %v4681 = vunpack.c.h.b16 %v4554
  %v4682 = vunpack.c.l.b16 %v4555
  %v4683 = vunpack.c.h.b16 %v4555
  %v4684 = vpack.c.b16 %v4624, %v4620
  %v4685 = vpack.c.b16 %v4625, %v4621
  %v4686 = vpack.c.b16 %v4626, %v4622
  %v4687 = vpack.c.b16 %v4627, %v4623
  %v4688 = vpack.c.b16 %v4632, %v4628
  %v4689 = vpack.c.b16 %v4633, %v4629
  %v4690 = vpack.c.b16 %v4634, %v4630
  %v4691 = vpack.c.b16 %v4635, %v4631
  %v4692 = vpack.c.b16 %v4640, %v4636
  %v4693 = vpack.c.b16 %v4641, %v4637
  %v4694 = vpack.c.b16 %v4642, %v4638
  %v4695 = vpack.c.b16 %v4643, %v4639
  %v4696 = vpack.c.b16 %v4648, %v4644
  %v4697 = vpack.c.b16 %v4649, %v4645
  %v4698 = vpack.c.b16 %v4650, %v4646
  %v4699 = vpack.c.b16 %v4651, %v4647
  %v4700 = vpack.c.b16 %v4656, %v4652
  %v4701 = vpack.c.b16 %v4657, %v4653
  %v4702 = vpack.c.b16 %v4658, %v4654
  %v4703 = vpack.c.b16 %v4659, %v4655
  %v4704 = vpack.c.b16 %v4664, %v4660
  %v4705 = vpack.c.b16 %v4665, %v4661
  %v4706 = vpack.c.b16 %v4666, %v4662
  %v4707 = vpack.c.b16 %v4667, %v4663
  %v4708 = vpack.c.b16 %v4672, %v4668
  %v4709 = vpack.c.b16 %v4673, %v4669
  %v4710 = vpack.c.b16 %v4674, %v4670
  %v4711 = vpack.c.b16 %v4675, %v4671
  %v4712 = vpack.c.b16 %v4680, %v4676
  %v4713 = vpack.c.b16 %v4681, %v4677
  %v4714 = vpack.c.b16 %v4682, %v4678
  %v4715 = vpack.c.b16 %v4683, %v4679
  %4748 = vmatprep.subr.bf16.mxu0 %v4713
  %4749 = vmatpush1.bf16.msra.mxu0 %v4712
  %4750 = vmatprep.subr.bf16.mxu0 %v4709
  %4751 = vmatpush1.bf16.msra.mxu0 %v4708
  %4752 = vmatprep.subr.bf16.mxu0 %v4705
  %4753 = vmatpush1.bf16.msra.mxu0 %v4704
  %4754 = vmatprep.subr.bf16.mxu0 %v4701
  %4755 = vmatpush1.bf16.msra.mxu0 %v4700
  %4756 = vmatprep.subr.bf16.mxu0 %v4697
  %4757 = vmatpush1.bf16.msra.mxu0 %v4696
  %4758 = vmatprep.subr.bf16.mxu0 %v4693
  %4759 = vmatpush1.bf16.msra.mxu0 %v4692
  %4760 = vmatprep.subr.bf16.mxu0 %v4689
  %4761 = vmatpush1.bf16.msra.mxu0 %v4688
  %4762 = vmatprep.subr.bf16.mxu0 %v4685
  %4763 = vmatpush1.bf16.msra.mxu0 %v4684
  %4764 = vmatprep.subr.bf16.mxu0 0
  %4765 = vmatpush2.bf16.msra.mxu0 0
  %4766 = vmatprep.subr.bf16.mxu0 0
  %4767 = vmatpush2.bf16.msra.mxu0 0
  %4768 = vmatprep.subr.bf16.mxu0 0
  %4769 = vmatpush2.bf16.msra.mxu0 0
  %4770 = vmatprep.subr.bf16.mxu0 0
  %4771 = vmatpush2.bf16.msra.mxu0 0
  %4772 = vmatprep.subr.bf16.mxu0 0
  %4773 = vmatpush2.bf16.msra.mxu0 0
  %4774 = vmatprep.subr.bf16.mxu0 0
  %4775 = vmatpush2.bf16.msra.mxu0 0
  %4776 = vmatprep.subr.bf16.mxu0 0
  %4777 = vmatpush2.bf16.msra.mxu0 0
  %4778 = vmatprep.subr.bf16.mxu0 0
  %4779 = vmatpush2.bf16.msra.mxu0 0
  %4780 = vmatprep.mubr.bf16.mxu0 0
  %4781 = vmatmul.mubr.bf16.gmra.mxu0 %v4586
  %v4782 = vpop.f32.mrf.mxu0
  %v4783 = vadd.f32 0.0, %v4782
  %v4784 = vpop.f32.mrf.mxu0
  %v4785 = vadd.f32 0.0, %v4784
  %v4786 = vpop.f32.mrf.mxu0
  %v4787 = vpop.f32.mrf.mxu0
  %4788 = vdwg.mxu0
  %4789 = vmatprep.subr.bf16.mxu0 %v4715
  %4790 = vmatpush1.bf16.msra.mxu0 %v4714
  %4791 = vmatprep.subr.bf16.mxu0 %v4711
  %4792 = vmatpush1.bf16.msra.mxu0 %v4710
  %4793 = vmatprep.subr.bf16.mxu0 %v4707
  %4794 = vmatpush1.bf16.msra.mxu0 %v4706
  %4795 = vmatprep.subr.bf16.mxu0 %v4703
  %4796 = vmatpush1.bf16.msra.mxu0 %v4702
  %4797 = vmatprep.subr.bf16.mxu0 %v4699
  %4798 = vmatpush1.bf16.msra.mxu0 %v4698
  %4799 = vmatprep.subr.bf16.mxu0 %v4695
  %4800 = vmatpush1.bf16.msra.mxu0 %v4694
  %4801 = vmatprep.subr.bf16.mxu0 %v4691
  %4802 = vmatpush1.bf16.msra.mxu0 %v4690
  %4803 = vmatprep.subr.bf16.mxu0 %v4687
  %4804 = vmatpush1.bf16.msra.mxu0 %v4686
  %4805 = vmatprep.subr.bf16.mxu0 0
  %4806 = vmatpush2.bf16.msra.mxu0 0
  %4807 = vmatprep.subr.bf16.mxu0 0
  %4808 = vmatpush2.bf16.msra.mxu0 0
  %4809 = vmatprep.subr.bf16.mxu0 0
  %4810 = vmatpush2.bf16.msra.mxu0 0
  %4811 = vmatprep.subr.bf16.mxu0 0
  %4812 = vmatpush2.bf16.msra.mxu0 0
  %4813 = vmatprep.subr.bf16.mxu0 0
  %4814 = vmatpush2.bf16.msra.mxu0 0
  %4815 = vmatprep.subr.bf16.mxu0 0
  %4816 = vmatpush2.bf16.msra.mxu0 0
  %4817 = vmatprep.subr.bf16.mxu0 0
  %4818 = vmatpush2.bf16.msra.mxu0 0
  %4819 = vmatprep.subr.bf16.mxu0 0
  %4820 = vmatpush2.bf16.msra.mxu0 0
  %4821 = vmatprep.mubr.bf16.mxu0 0
  %4822 = vmatmul.mubr.bf16.gmra.mxu0 %v4586
  %v4823 = vpop.f32.mrf.mxu0
  %v4824 = vadd.f32 0.0, %v4823
  %v4825 = vpop.f32.mrf.mxu0
  %v4826 = vadd.f32 0.0, %v4825
  %v4827 = vpop.f32.mrf.mxu0
  %v4828 = vpop.f32.mrf.mxu0
  %4829 = vdwg.mxu0
  %v4834 = vrot.slane %v4783, 1
  %v4835 = vrot.slane %v4785, 1
  %v4836 = vrot.slane %v4824, 1
  %v4837 = vrot.slane %v4826, 1
  %v4838 = vrot.slane %v4783, 2
  %v4839 = vrot.slane %v4785, 2
  %v4840 = vrot.slane %v4824, 2
  %v4841 = vrot.slane %v4826, 2
  %v4842 = vrot.slane %v4783, 3
  %v4843 = vrot.slane %v4785, 3
  %v4844 = vrot.slane %v4824, 3
  %v4845 = vrot.slane %v4826, 3
  %v4846 = vrot.slane %v4783, 4
  %v4847 = vrot.slane %v4785, 4
  %v4848 = vrot.slane %v4824, 4
  %v4849 = vrot.slane %v4826, 4
  %v4850 = vrot.slane %v4783, 5
  %v4851 = vrot.slane %v4785, 5
  %v4852 = vrot.slane %v4824, 5
  %v4853 = vrot.slane %v4826, 5
  %v4854 = vrot.slane %v4783, 6
  %v4855 = vrot.slane %v4785, 6
  %v4856 = vrot.slane %v4824, 6
  %v4857 = vrot.slane %v4826, 6
  %v4858 = vrot.slane %v4783, 7
  %v4859 = vrot.slane %v4785, 7
  %v4860 = vrot.slane %v4824, 7
  %v4861 = vrot.slane %v4826, 7
  %v4894 = vadd.f32 %v388, %v4834
  %v4895 = vadd.f32 %v389, %v4835
  %v4896 = vadd.f32 %v390, %v4836
  %v4897 = vadd.f32 %v391, %v4837
  %v4898 = vadd.f32 %v396, %v4838
  %v4899 = vadd.f32 %v397, %v4839
  %v4900 = vadd.f32 %v398, %v4840
  %v4901 = vadd.f32 %v399, %v4841
  %v4902 = vadd.f32 %v404, %v4842
  %v4903 = vadd.f32 %v405, %v4843
  %v4904 = vadd.f32 %v406, %v4844
  %v4905 = vadd.f32 %v407, %v4845
  %v4906 = vadd.f32 %v412, %v4846
  %v4907 = vadd.f32 %v413, %v4847
  %v4908 = vadd.f32 %v414, %v4848
  %v4909 = vadd.f32 %v415, %v4849
  %v4910 = vadd.f32 %v420, %v4850
  %v4911 = vadd.f32 %v421, %v4851
  %v4912 = vadd.f32 %v422, %v4852
  %v4913 = vadd.f32 %v423, %v4853
  %v4914 = vadd.f32 %v428, %v4854
  %v4915 = vadd.f32 %v429, %v4855
  %v4916 = vadd.f32 %v430, %v4856
  %v4917 = vadd.f32 %v431, %v4857
  %v4918 = vadd.f32 %v436, %v4858
  %v4919 = vadd.f32 %v437, %v4859
  %v4920 = vadd.f32 %v438, %v4860
  %v4921 = vadd.f32 %v439, %v4861
  %v4922 = vadd.f32 %v444, %v4783
  %v4923 = vadd.f32 %v445, %v4785
  %v4924 = vadd.f32 %v446, %v4824
  %v4925 = vadd.f32 %v447, %v4826
  %v4926 = vmul.f32 %v4894, 0.5
  %v4927 = vmul.f32 %v4898, 0.5
  %v4928 = vmul.f32 %v4902, 0.5
  %v4929 = vmul.f32 %v4906, 0.5
  %v4930 = vmul.f32 %v4910, 0.5
  %v4931 = vmul.f32 %v4914, 0.5
  %v4932 = vmul.f32 %v4918, 0.5
  %v4933 = vmul.f32 %v4922, 0.5
  %v4934 = vtanh.pop %v4926
  %v4935 = vtanh.pop %v4927
  %v4936 = vtanh.pop %v4928
  %v4937 = vtanh.pop %v4929
  %v4938 = vtanh.pop %v4930
  %v4939 = vtanh.pop %v4931
  %v4940 = vtanh.pop %v4932
  %v4941 = vtanh.pop %v4933
  %v4942 = vmul.f32 %v4934, 0.5
  %v4943 = vmul.f32 %v4935, 0.5
  %v4944 = vmul.f32 %v4936, 0.5
  %v4945 = vmul.f32 %v4937, 0.5
  %v4946 = vmul.f32 %v4938, 0.5
  %v4947 = vmul.f32 %v4939, 0.5
  %v4948 = vmul.f32 %v4940, 0.5
  %v4949 = vmul.f32 %v4941, 0.5
  %v4950 = vadd.f32 %v4942, 0.5
  %v4951 = vadd.f32 %v4943, 0.5
  %v4952 = vadd.f32 %v4944, 0.5
  %v4953 = vadd.f32 %v4945, 0.5
  %v4954 = vadd.f32 %v4946, 0.5
  %v4955 = vadd.f32 %v4947, 0.5
  %v4956 = vadd.f32 %v4948, 0.5
  %v4957 = vadd.f32 %v4949, 0.5
  %v4958 = vmul.f32 %v4895, 0.5
  %v4959 = vmul.f32 %v4899, 0.5
  %v4960 = vmul.f32 %v4903, 0.5
  %v4961 = vmul.f32 %v4907, 0.5
  %v4962 = vmul.f32 %v4911, 0.5
  %v4963 = vmul.f32 %v4915, 0.5
  %v4964 = vmul.f32 %v4919, 0.5
  %v4965 = vmul.f32 %v4923, 0.5
  %v4966 = vtanh.pop %v4958
  %v4967 = vtanh.pop %v4959
  %v4968 = vtanh.pop %v4960
  %v4969 = vtanh.pop %v4961
  %v4970 = vtanh.pop %v4962
  %v4971 = vtanh.pop %v4963
  %v4972 = vtanh.pop %v4964
  %v4973 = vtanh.pop %v4965
  %v4974 = vmul.f32 %v4966, 0.5
  %v4975 = vmul.f32 %v4967, 0.5
  %v4976 = vmul.f32 %v4968, 0.5
  %v4977 = vmul.f32 %v4969, 0.5
  %v4978 = vmul.f32 %v4970, 0.5
  %v4979 = vmul.f32 %v4971, 0.5
  %v4980 = vmul.f32 %v4972, 0.5
  %v4981 = vmul.f32 %v4973, 0.5
  %v4982 = vadd.f32 %v4974, 0.5
  %v4983 = vadd.f32 %v4975, 0.5
  %v4984 = vadd.f32 %v4976, 0.5
  %v4985 = vadd.f32 %v4977, 0.5
  %v4986 = vadd.f32 %v4978, 0.5
  %v4987 = vadd.f32 %v4979, 0.5
  %v4988 = vadd.f32 %v4980, 0.5
  %v4989 = vadd.f32 %v4981, 0.5
  %v4990 = vmul.f32 %v4896, 0.5
  %v4991 = vmul.f32 %v4900, 0.5
  %v4992 = vmul.f32 %v4904, 0.5
  %v4993 = vmul.f32 %v4908, 0.5
  %v4994 = vmul.f32 %v4912, 0.5
  %v4995 = vmul.f32 %v4916, 0.5
  %v4996 = vmul.f32 %v4920, 0.5
  %v4997 = vmul.f32 %v4924, 0.5
  %v4998 = vtanh.pop %v4990
  %v4999 = vtanh.pop %v4991
  %v5000 = vtanh.pop %v4992
  %v5001 = vtanh.pop %v4993
  %v5002 = vtanh.pop %v4994
  %v5003 = vtanh.pop %v4995
  %v5004 = vtanh.pop %v4996
  %v5005 = vtanh.pop %v4997
  %v5006 = vmul.f32 %v4998, 0.5
  %v5007 = vmul.f32 %v4999, 0.5
  %v5008 = vmul.f32 %v5000, 0.5
  %v5009 = vmul.f32 %v5001, 0.5
  %v5010 = vmul.f32 %v5002, 0.5
  %v5011 = vmul.f32 %v5003, 0.5
  %v5012 = vmul.f32 %v5004, 0.5
  %v5013 = vmul.f32 %v5005, 0.5
  %v5014 = vadd.f32 %v5006, 0.5
  %v5015 = vadd.f32 %v5007, 0.5
  %v5016 = vadd.f32 %v5008, 0.5
  %v5017 = vadd.f32 %v5009, 0.5
  %v5018 = vadd.f32 %v5010, 0.5
  %v5019 = vadd.f32 %v5011, 0.5
  %v5020 = vadd.f32 %v5012, 0.5
  %v5021 = vadd.f32 %v5013, 0.5
  %v5022 = vtanh.pop %v4897
  %v5023 = vtanh.pop %v4901
  %v5024 = vtanh.pop %v4905
  %v5025 = vtanh.pop %v4909
  %v5026 = vtanh.pop %v4913
  %v5027 = vtanh.pop %v4917
  %v5028 = vtanh.pop %v4921
  %v5029 = vtanh.pop %v4925
  %v5038 = vrot.slane %v4484, 7
  %v5039 = vrot.slane %v4485, 7
  %v5040 = vrot.slane %v4486, 7
  %v5041 = vrot.slane %v4487, 7
  %v5042 = vrot.slane %v4488, 7
  %v5043 = vrot.slane %v4489, 7
  %v5044 = vrot.slane %v4490, 7
  %v5045 = vrot.slane %v4491, 7
  %v5054 = vmul.f32 %v4982, %v5038
  %v5055 = vmul.f32 %v4983, %v5039
  %v5056 = vmul.f32 %v4984, %v5040
  %v5057 = vmul.f32 %v4985, %v5041
  %v5058 = vmul.f32 %v4986, %v5042
  %v5059 = vmul.f32 %v4987, %v5043
  %v5060 = vmul.f32 %v4988, %v5044
  %v5061 = vmul.f32 %v4989, %v5045
  %v5062 = vmul.f32 %v4950, %v5022
  %v5063 = vmul.f32 %v4951, %v5023
  %v5064 = vmul.f32 %v4952, %v5024
  %v5065 = vmul.f32 %v4953, %v5025
  %v5066 = vmul.f32 %v4954, %v5026
  %v5067 = vmul.f32 %v4955, %v5027
  %v5068 = vmul.f32 %v4956, %v5028
  %v5069 = vmul.f32 %v4957, %v5029
  %v5070 = vadd.f32 %v5054, %v5062
  %v5071 = vadd.f32 %v5055, %v5063
  %v5072 = vadd.f32 %v5056, %v5064
  %v5073 = vadd.f32 %v5057, %v5065
  %v5074 = vadd.f32 %v5058, %v5066
  %v5075 = vadd.f32 %v5059, %v5067
  %v5076 = vadd.f32 %v5060, %v5068
  %v5077 = vadd.f32 %v5061, %v5069
  %v5078 = vtanh.pop %v5070
  %v5079 = vtanh.pop %v5071
  %v5080 = vtanh.pop %v5072
  %v5081 = vtanh.pop %v5073
  %v5082 = vtanh.pop %v5074
  %v5083 = vtanh.pop %v5075
  %v5084 = vtanh.pop %v5076
  %v5085 = vtanh.pop %v5077
  %v5086 = vmul.f32 %v5014, %v5078
  %v5087 = vmul.f32 %v5015, %v5079
  %v5088 = vmul.f32 %v5016, %v5080
  %v5089 = vmul.f32 %v5017, %v5081
  %v5090 = vmul.f32 %v5018, %v5082
  %v5091 = vmul.f32 %v5019, %v5083
  %v5092 = vmul.f32 %v5020, %v5084
  %v5093 = vmul.f32 %v5021, %v5085
  %5094 = vst [vmem:[%s6] sm:$0x80] %v5086
  %5095 = vst [vmem:[%s6 + $0x10] sm:$0x80] %v5087
  %5096 = vst [vmem:[%s6 + $0x20] sm:$0x80] %v5088
  %5097 = vst [vmem:[%s6 + $0x30] sm:$0x80] %v5089
  %5098 = vst [vmem:[%s6 + $0x40] sm:$0x80] %v5090
  %5099 = vst [vmem:[%s6 + $0x50] sm:$0x80] %v5091
  %5100 = vst [vmem:[%s6 + $0x60] sm:$0x80] %v5092
  %5101 = vst [vmem:[%s6 + $0x70] sm:$0x80] %v5093
  %v5102 = vpack.c.bf16 %v5086, %v5086
  %v5103 = vpack.c.bf16 %v5087, %v5087
  %v5104 = vpack.c.bf16 %v5088, %v5088
  %v5105 = vpack.c.bf16 %v5089, %v5089
  %v5106 = vpack.c.bf16 %v5090, %v5090
  %v5107 = vpack.c.bf16 %v5091, %v5091
  %v5108 = vpack.c.bf16 %v5092, %v5092
  %v5109 = vpack.c.bf16 %v5093, %v5093
  %v5110 = vld [vmem:[%s2] sm:$0xff]
  %v5111 = vld [vmem:[%s2 + $0x8] sm:$0xff]
  %v5112 = vld [vmem:[%s2 + $0x10] sm:$0xff]
  %v5113 = vld [vmem:[%s2 + $0x18] sm:$0xff]
  %v5114 = vld [vmem:[%s2 + $0x20] sm:$0xff]
  %v5115 = vld [vmem:[%s2 + $0x28] sm:$0xff]
  %v5116 = vld [vmem:[%s2 + $0x30] sm:$0xff]
  %v5117 = vld [vmem:[%s2 + $0x38] sm:$0xff]
  %v5118 = vld [vmem:[%s2 + $0x40] sm:$0xff]
  %v5119 = vld [vmem:[%s2 + $0x48] sm:$0xff]
  %v5120 = vld [vmem:[%s2 + $0x50] sm:$0xff]
  %v5121 = vld [vmem:[%s2 + $0x58] sm:$0xff]
  %v5122 = vld [vmem:[%s2 + $0x60] sm:$0xff]
  %v5123 = vld [vmem:[%s2 + $0x68] sm:$0xff]
  %v5124 = vld [vmem:[%s2 + $0x70] sm:$0xff]
  %v5125 = vld [vmem:[%s2 + $0x78] sm:$0xff]
  %v5126 = vld [vmem:[%s2 + $0x80] sm:$0xff]
  %v5127 = vld [vmem:[%s2 + $0x88] sm:$0xff]
  %v5128 = vld [vmem:[%s2 + $0x90] sm:$0xff]
  %v5129 = vld [vmem:[%s2 + $0x98] sm:$0xff]
  %v5130 = vld [vmem:[%s2 + $0xa0] sm:$0xff]
  %v5131 = vld [vmem:[%s2 + $0xa8] sm:$0xff]
  %v5132 = vld [vmem:[%s2 + $0xb0] sm:$0xff]
  %v5133 = vld [vmem:[%s2 + $0xb8] sm:$0xff]
  %v5134 = vld [vmem:[%s2 + $0xc0] sm:$0xff]
  %v5135 = vld [vmem:[%s2 + $0xc8] sm:$0xff]
  %v5136 = vld [vmem:[%s2 + $0xd0] sm:$0xff]
  %v5137 = vld [vmem:[%s2 + $0xd8] sm:$0xff]
  %v5138 = vld [vmem:[%s2 + $0xe0] sm:$0xff]
  %v5139 = vld [vmem:[%s2 + $0xe8] sm:$0xff]
  %v5140 = vld [vmem:[%s2 + $0xf0] sm:$0xff]
  %v5141 = vld [vmem:[%s2 + $0xf8] sm:$0xff]
  %v5150 = vunpack.c.l.b16 %v5102
  %v5151 = vunpack.c.l.b16 %v5103
  %v5152 = vunpack.c.l.b16 %v5104
  %v5153 = vunpack.c.l.b16 %v5105
  %v5154 = vunpack.c.l.b16 %v5106
  %v5155 = vunpack.c.l.b16 %v5107
  %v5156 = vunpack.c.l.b16 %v5108
  %v5157 = vunpack.c.l.b16 %v5109
  %v5158 = vrot.slane %v5150, 7
  %v5159 = vrot.slane %v5151, 6
  %v5160 = vsel %vm1050, %v5159, %v5158
  %v5161 = vrot.slane %v5152, 5
  %v5162 = vsel %vm1053, %v5161, %v5160
  %v5163 = vrot.slane %v5153, 4
  %v5164 = vsel %vm1056, %v5163, %v5162
  %v5165 = vrot.slane %v5154, 3
  %v5166 = vsel %vm1059, %v5165, %v5164
  %v5167 = vrot.slane %v5155, 2
  %v5168 = vsel %vm1062, %v5167, %v5166
  %v5169 = vrot.slane %v5156, 1
  %v5170 = vsel %vm1065, %v5169, %v5168
  %v5171 = vsel %vm1068, %v5157, %v5170
  %v5172 = vpack.c.b16 %v5171, %v5171
  %v5206 = vunpack.c.l.b16 %v5110
  %v5207 = vunpack.c.h.b16 %v5110
  %v5208 = vunpack.c.l.b16 %v5111
  %v5209 = vunpack.c.h.b16 %v5111
  %v5210 = vunpack.c.l.b16 %v5112
  %v5211 = vunpack.c.h.b16 %v5112
  %v5212 = vunpack.c.l.b16 %v5113
  %v5213 = vunpack.c.h.b16 %v5113
  %v5214 = vunpack.c.l.b16 %v5114
  %v5215 = vunpack.c.h.b16 %v5114
  %v5216 = vunpack.c.l.b16 %v5115
  %v5217 = vunpack.c.h.b16 %v5115
  %v5218 = vunpack.c.l.b16 %v5116
  %v5219 = vunpack.c.h.b16 %v5116
  %v5220 = vunpack.c.l.b16 %v5117
  %v5221 = vunpack.c.h.b16 %v5117
  %v5222 = vunpack.c.l.b16 %v5118
  %v5223 = vunpack.c.h.b16 %v5118
  %v5224 = vunpack.c.l.b16 %v5119
  %v5225 = vunpack.c.h.b16 %v5119
  %v5226 = vunpack.c.l.b16 %v5120
  %v5227 = vunpack.c.h.b16 %v5120
  %v5228 = vunpack.c.l.b16 %v5121
  %v5229 = vunpack.c.h.b16 %v5121
  %v5230 = vunpack.c.l.b16 %v5122
  %v5231 = vunpack.c.h.b16 %v5122
  %v5232 = vunpack.c.l.b16 %v5123
  %v5233 = vunpack.c.h.b16 %v5123
  %v5234 = vunpack.c.l.b16 %v5124
  %v5235 = vunpack.c.h.b16 %v5124
  %v5236 = vunpack.c.l.b16 %v5125
  %v5237 = vunpack.c.h.b16 %v5125
  %v5238 = vunpack.c.l.b16 %v5126
  %v5239 = vunpack.c.h.b16 %v5126
  %v5240 = vunpack.c.l.b16 %v5127
  %v5241 = vunpack.c.h.b16 %v5127
  %v5242 = vunpack.c.l.b16 %v5128
  %v5243 = vunpack.c.h.b16 %v5128
  %v5244 = vunpack.c.l.b16 %v5129
  %v5245 = vunpack.c.h.b16 %v5129
  %v5246 = vunpack.c.l.b16 %v5130
  %v5247 = vunpack.c.h.b16 %v5130
  %v5248 = vunpack.c.l.b16 %v5131
  %v5249 = vunpack.c.h.b16 %v5131
  %v5250 = vunpack.c.l.b16 %v5132
  %v5251 = vunpack.c.h.b16 %v5132
  %v5252 = vunpack.c.l.b16 %v5133
  %v5253 = vunpack.c.h.b16 %v5133
  %v5254 = vunpack.c.l.b16 %v5134
  %v5255 = vunpack.c.h.b16 %v5134
  %v5256 = vunpack.c.l.b16 %v5135
  %v5257 = vunpack.c.h.b16 %v5135
  %v5258 = vunpack.c.l.b16 %v5136
  %v5259 = vunpack.c.h.b16 %v5136
  %v5260 = vunpack.c.l.b16 %v5137
  %v5261 = vunpack.c.h.b16 %v5137
  %v5262 = vunpack.c.l.b16 %v5138
  %v5263 = vunpack.c.h.b16 %v5138
  %v5264 = vunpack.c.l.b16 %v5139
  %v5265 = vunpack.c.h.b16 %v5139
  %v5266 = vunpack.c.l.b16 %v5140
  %v5267 = vunpack.c.h.b16 %v5140
  %v5268 = vunpack.c.l.b16 %v5141
  %v5269 = vunpack.c.h.b16 %v5141
  %v5270 = vpack.c.b16 %v5210, %v5206
  %v5271 = vpack.c.b16 %v5211, %v5207
  %v5272 = vpack.c.b16 %v5212, %v5208
  %v5273 = vpack.c.b16 %v5213, %v5209
  %v5274 = vpack.c.b16 %v5218, %v5214
  %v5275 = vpack.c.b16 %v5219, %v5215
  %v5276 = vpack.c.b16 %v5220, %v5216
  %v5277 = vpack.c.b16 %v5221, %v5217
  %v5278 = vpack.c.b16 %v5226, %v5222
  %v5279 = vpack.c.b16 %v5227, %v5223
  %v5280 = vpack.c.b16 %v5228, %v5224
  %v5281 = vpack.c.b16 %v5229, %v5225
  %v5282 = vpack.c.b16 %v5234, %v5230
  %v5283 = vpack.c.b16 %v5235, %v5231
  %v5284 = vpack.c.b16 %v5236, %v5232
  %v5285 = vpack.c.b16 %v5237, %v5233
  %v5286 = vpack.c.b16 %v5242, %v5238
  %v5287 = vpack.c.b16 %v5243, %v5239
  %v5288 = vpack.c.b16 %v5244, %v5240
  %v5289 = vpack.c.b16 %v5245, %v5241
  %v5290 = vpack.c.b16 %v5250, %v5246
  %v5291 = vpack.c.b16 %v5251, %v5247
  %v5292 = vpack.c.b16 %v5252, %v5248
  %v5293 = vpack.c.b16 %v5253, %v5249
  %v5294 = vpack.c.b16 %v5258, %v5254
  %v5295 = vpack.c.b16 %v5259, %v5255
  %v5296 = vpack.c.b16 %v5260, %v5256
  %v5297 = vpack.c.b16 %v5261, %v5257
  %v5298 = vpack.c.b16 %v5266, %v5262
  %v5299 = vpack.c.b16 %v5267, %v5263
  %v5300 = vpack.c.b16 %v5268, %v5264
  %v5301 = vpack.c.b16 %v5269, %v5265
  %5334 = vmatprep.subr.bf16.mxu0 %v5299
  %5335 = vmatpush1.bf16.msra.mxu0 %v5298
  %5336 = vmatprep.subr.bf16.mxu0 %v5295
  %5337 = vmatpush1.bf16.msra.mxu0 %v5294
  %5338 = vmatprep.subr.bf16.mxu0 %v5291
  %5339 = vmatpush1.bf16.msra.mxu0 %v5290
  %5340 = vmatprep.subr.bf16.mxu0 %v5287
  %5341 = vmatpush1.bf16.msra.mxu0 %v5286
  %5342 = vmatprep.subr.bf16.mxu0 %v5283
  %5343 = vmatpush1.bf16.msra.mxu0 %v5282
  %5344 = vmatprep.subr.bf16.mxu0 %v5279
  %5345 = vmatpush1.bf16.msra.mxu0 %v5278
  %5346 = vmatprep.subr.bf16.mxu0 %v5275
  %5347 = vmatpush1.bf16.msra.mxu0 %v5274
  %5348 = vmatprep.subr.bf16.mxu0 %v5271
  %5349 = vmatpush1.bf16.msra.mxu0 %v5270
  %5350 = vmatprep.subr.bf16.mxu0 0
  %5351 = vmatpush2.bf16.msra.mxu0 0
  %5352 = vmatprep.subr.bf16.mxu0 0
  %5353 = vmatpush2.bf16.msra.mxu0 0
  %5354 = vmatprep.subr.bf16.mxu0 0
  %5355 = vmatpush2.bf16.msra.mxu0 0
  %5356 = vmatprep.subr.bf16.mxu0 0
  %5357 = vmatpush2.bf16.msra.mxu0 0
  %5358 = vmatprep.subr.bf16.mxu0 0
  %5359 = vmatpush2.bf16.msra.mxu0 0
  %5360 = vmatprep.subr.bf16.mxu0 0
  %5361 = vmatpush2.bf16.msra.mxu0 0
  %5362 = vmatprep.subr.bf16.mxu0 0
  %5363 = vmatpush2.bf16.msra.mxu0 0
  %5364 = vmatprep.subr.bf16.mxu0 0
  %5365 = vmatpush2.bf16.msra.mxu0 0
  %5366 = vmatprep.mubr.bf16.mxu0 0
  %5367 = vmatmul.mubr.bf16.gmra.mxu0 %v5172
  %v5368 = vpop.f32.mrf.mxu0
  %v5369 = vadd.f32 0.0, %v5368
  %v5370 = vpop.f32.mrf.mxu0
  %v5371 = vadd.f32 0.0, %v5370
  %v5372 = vpop.f32.mrf.mxu0
  %v5373 = vpop.f32.mrf.mxu0
  %5374 = vdwg.mxu0
  %5375 = vmatprep.subr.bf16.mxu0 %v5301
  %5376 = vmatpush1.bf16.msra.mxu0 %v5300
  %5377 = vmatprep.subr.bf16.mxu0 %v5297
  %5378 = vmatpush1.bf16.msra.mxu0 %v5296
  %5379 = vmatprep.subr.bf16.mxu0 %v5293
  %5380 = vmatpush1.bf16.msra.mxu0 %v5292
  %5381 = vmatprep.subr.bf16.mxu0 %v5289
  %5382 = vmatpush1.bf16.msra.mxu0 %v5288
  %5383 = vmatprep.subr.bf16.mxu0 %v5285
  %5384 = vmatpush1.bf16.msra.mxu0 %v5284
  %5385 = vmatprep.subr.bf16.mxu0 %v5281
  %5386 = vmatpush1.bf16.msra.mxu0 %v5280
  %5387 = vmatprep.subr.bf16.mxu0 %v5277
  %5388 = vmatpush1.bf16.msra.mxu0 %v5276
  %5389 = vmatprep.subr.bf16.mxu0 %v5273
  %5390 = vmatpush1.bf16.msra.mxu0 %v5272
  %5391 = vmatprep.subr.bf16.mxu0 0
  %5392 = vmatpush2.bf16.msra.mxu0 0
  %5393 = vmatprep.subr.bf16.mxu0 0
  %5394 = vmatpush2.bf16.msra.mxu0 0
  %5395 = vmatprep.subr.bf16.mxu0 0
  %5396 = vmatpush2.bf16.msra.mxu0 0
  %5397 = vmatprep.subr.bf16.mxu0 0
  %5398 = vmatpush2.bf16.msra.mxu0 0
  %5399 = vmatprep.subr.bf16.mxu0 0
  %5400 = vmatpush2.bf16.msra.mxu0 0
  %5401 = vmatprep.subr.bf16.mxu0 0
  %5402 = vmatpush2.bf16.msra.mxu0 0
  %5403 = vmatprep.subr.bf16.mxu0 0
  %5404 = vmatpush2.bf16.msra.mxu0 0
  %5405 = vmatprep.subr.bf16.mxu0 0
  %5406 = vmatpush2.bf16.msra.mxu0 0
  %5407 = vmatprep.mubr.bf16.mxu0 0
  %5408 = vmatmul.mubr.bf16.gmra.mxu0 %v5172
  %v5409 = vpop.f32.mrf.mxu0
  %v5410 = vadd.f32 0.0, %v5409
  %v5411 = vpop.f32.mrf.mxu0
  %v5412 = vadd.f32 0.0, %v5411
  %v5413 = vpop.f32.mrf.mxu0
  %v5414 = vpop.f32.mrf.mxu0
  %5415 = vdwg.mxu0
  %v5420 = vrot.slane %v5369, 1
  %v5421 = vrot.slane %v5371, 1
  %v5422 = vrot.slane %v5410, 1
  %v5423 = vrot.slane %v5412, 1
  %v5424 = vrot.slane %v5369, 2
  %v5425 = vrot.slane %v5371, 2
  %v5426 = vrot.slane %v5410, 2
  %v5427 = vrot.slane %v5412, 2
  %v5428 = vrot.slane %v5369, 3
  %v5429 = vrot.slane %v5371, 3
  %v5430 = vrot.slane %v5410, 3
  %v5431 = vrot.slane %v5412, 3
  %v5432 = vrot.slane %v5369, 4
  %v5433 = vrot.slane %v5371, 4
  %v5434 = vrot.slane %v5410, 4
  %v5435 = vrot.slane %v5412, 4
  %v5436 = vrot.slane %v5369, 5
  %v5437 = vrot.slane %v5371, 5
  %v5438 = vrot.slane %v5410, 5
  %v5439 = vrot.slane %v5412, 5
  %v5440 = vrot.slane %v5369, 6
  %v5441 = vrot.slane %v5371, 6
  %v5442 = vrot.slane %v5410, 6
  %v5443 = vrot.slane %v5412, 6
  %v5444 = vrot.slane %v5369, 7
  %v5445 = vrot.slane %v5371, 7
  %v5446 = vrot.slane %v5410, 7
  %v5447 = vrot.slane %v5412, 7
  %v5480 = vadd.f32 %v392, %v5369
  %v5481 = vadd.f32 %v393, %v5371
  %v5482 = vadd.f32 %v394, %v5410
  %v5483 = vadd.f32 %v395, %v5412
  %v5484 = vadd.f32 %v400, %v5420
  %v5485 = vadd.f32 %v401, %v5421
  %v5486 = vadd.f32 %v402, %v5422
  %v5487 = vadd.f32 %v403, %v5423
  %v5488 = vadd.f32 %v408, %v5424
  %v5489 = vadd.f32 %v409, %v5425
  %v5490 = vadd.f32 %v410, %v5426
  %v5491 = vadd.f32 %v411, %v5427
  %v5492 = vadd.f32 %v416, %v5428
  %v5493 = vadd.f32 %v417, %v5429
  %v5494 = vadd.f32 %v418, %v5430
  %v5495 = vadd.f32 %v419, %v5431
  %v5496 = vadd.f32 %v424, %v5432
  %v5497 = vadd.f32 %v425, %v5433
  %v5498 = vadd.f32 %v426, %v5434
  %v5499 = vadd.f32 %v427, %v5435
  %v5500 = vadd.f32 %v432, %v5436
  %v5501 = vadd.f32 %v433, %v5437
  %v5502 = vadd.f32 %v434, %v5438
  %v5503 = vadd.f32 %v435, %v5439
  %v5504 = vadd.f32 %v440, %v5440
  %v5505 = vadd.f32 %v441, %v5441
  %v5506 = vadd.f32 %v442, %v5442
  %v5507 = vadd.f32 %v443, %v5443
  %v5508 = vadd.f32 %v448, %v5444
  %v5509 = vadd.f32 %v449, %v5445
  %v5510 = vadd.f32 %v450, %v5446
  %v5511 = vadd.f32 %v451, %v5447
  %v5512 = vmul.f32 %v5480, 0.5
  %v5513 = vmul.f32 %v5484, 0.5
  %v5514 = vmul.f32 %v5488, 0.5
  %v5515 = vmul.f32 %v5492, 0.5
  %v5516 = vmul.f32 %v5496, 0.5
  %v5517 = vmul.f32 %v5500, 0.5
  %v5518 = vmul.f32 %v5504, 0.5
  %v5519 = vmul.f32 %v5508, 0.5
  %v5520 = vtanh.pop %v5512
  %v5521 = vtanh.pop %v5513
  %v5522 = vtanh.pop %v5514
  %v5523 = vtanh.pop %v5515
  %v5524 = vtanh.pop %v5516
  %v5525 = vtanh.pop %v5517
  %v5526 = vtanh.pop %v5518
  %v5527 = vtanh.pop %v5519
  %v5528 = vmul.f32 %v5520, 0.5
  %v5529 = vmul.f32 %v5521, 0.5
  %v5530 = vmul.f32 %v5522, 0.5
  %v5531 = vmul.f32 %v5523, 0.5
  %v5532 = vmul.f32 %v5524, 0.5
  %v5533 = vmul.f32 %v5525, 0.5
  %v5534 = vmul.f32 %v5526, 0.5
  %v5535 = vmul.f32 %v5527, 0.5
  %v5536 = vadd.f32 %v5528, 0.5
  %v5537 = vadd.f32 %v5529, 0.5
  %v5538 = vadd.f32 %v5530, 0.5
  %v5539 = vadd.f32 %v5531, 0.5
  %v5540 = vadd.f32 %v5532, 0.5
  %v5541 = vadd.f32 %v5533, 0.5
  %v5542 = vadd.f32 %v5534, 0.5
  %v5543 = vadd.f32 %v5535, 0.5
  %v5544 = vmul.f32 %v5481, 0.5
  %v5545 = vmul.f32 %v5485, 0.5
  %v5546 = vmul.f32 %v5489, 0.5
  %v5547 = vmul.f32 %v5493, 0.5
  %v5548 = vmul.f32 %v5497, 0.5
  %v5549 = vmul.f32 %v5501, 0.5
  %v5550 = vmul.f32 %v5505, 0.5
  %v5551 = vmul.f32 %v5509, 0.5
  %v5552 = vtanh.pop %v5544
  %v5553 = vtanh.pop %v5545
  %v5554 = vtanh.pop %v5546
  %v5555 = vtanh.pop %v5547
  %v5556 = vtanh.pop %v5548
  %v5557 = vtanh.pop %v5549
  %v5558 = vtanh.pop %v5550
  %v5559 = vtanh.pop %v5551
  %v5560 = vmul.f32 %v5552, 0.5
  %v5561 = vmul.f32 %v5553, 0.5
  %v5562 = vmul.f32 %v5554, 0.5
  %v5563 = vmul.f32 %v5555, 0.5
  %v5564 = vmul.f32 %v5556, 0.5
  %v5565 = vmul.f32 %v5557, 0.5
  %v5566 = vmul.f32 %v5558, 0.5
  %v5567 = vmul.f32 %v5559, 0.5
  %v5568 = vadd.f32 %v5560, 0.5
  %v5569 = vadd.f32 %v5561, 0.5
  %v5570 = vadd.f32 %v5562, 0.5
  %v5571 = vadd.f32 %v5563, 0.5
  %v5572 = vadd.f32 %v5564, 0.5
  %v5573 = vadd.f32 %v5565, 0.5
  %v5574 = vadd.f32 %v5566, 0.5
  %v5575 = vadd.f32 %v5567, 0.5
  %v5576 = vmul.f32 %v5482, 0.5
  %v5577 = vmul.f32 %v5486, 0.5
  %v5578 = vmul.f32 %v5490, 0.5
  %v5579 = vmul.f32 %v5494, 0.5
  %v5580 = vmul.f32 %v5498, 0.5
  %v5581 = vmul.f32 %v5502, 0.5
  %v5582 = vmul.f32 %v5506, 0.5
  %v5583 = vmul.f32 %v5510, 0.5
  %v5584 = vtanh.pop %v5576
  %v5585 = vtanh.pop %v5577
  %v5586 = vtanh.pop %v5578
  %v5587 = vtanh.pop %v5579
  %v5588 = vtanh.pop %v5580
  %v5589 = vtanh.pop %v5581
  %v5590 = vtanh.pop %v5582
  %v5591 = vtanh.pop %v5583
  %v5592 = vmul.f32 %v5584, 0.5
  %v5593 = vmul.f32 %v5585, 0.5
  %v5594 = vmul.f32 %v5586, 0.5
  %v5595 = vmul.f32 %v5587, 0.5
  %v5596 = vmul.f32 %v5588, 0.5
  %v5597 = vmul.f32 %v5589, 0.5
  %v5598 = vmul.f32 %v5590, 0.5
  %v5599 = vmul.f32 %v5591, 0.5
  %v5600 = vadd.f32 %v5592, 0.5
  %v5601 = vadd.f32 %v5593, 0.5
  %v5602 = vadd.f32 %v5594, 0.5
  %v5603 = vadd.f32 %v5595, 0.5
  %v5604 = vadd.f32 %v5596, 0.5
  %v5605 = vadd.f32 %v5597, 0.5
  %v5606 = vadd.f32 %v5598, 0.5
  %v5607 = vadd.f32 %v5599, 0.5
  %v5608 = vtanh.pop %v5483
  %v5609 = vtanh.pop %v5487
  %v5610 = vtanh.pop %v5491
  %v5611 = vtanh.pop %v5495
  %v5612 = vtanh.pop %v5499
  %v5613 = vtanh.pop %v5503
  %v5614 = vtanh.pop %v5507
  %v5615 = vtanh.pop %v5511
  %v5624 = vrot.slane %v5070, 7
  %v5625 = vrot.slane %v5071, 7
  %v5626 = vrot.slane %v5072, 7
  %v5627 = vrot.slane %v5073, 7
  %v5628 = vrot.slane %v5074, 7
  %v5629 = vrot.slane %v5075, 7
  %v5630 = vrot.slane %v5076, 7
  %v5631 = vrot.slane %v5077, 7
  %v5640 = vmul.f32 %v5568, %v5624
  %v5641 = vmul.f32 %v5569, %v5625
  %v5642 = vmul.f32 %v5570, %v5626
  %v5643 = vmul.f32 %v5571, %v5627
  %v5644 = vmul.f32 %v5572, %v5628
  %v5645 = vmul.f32 %v5573, %v5629
  %v5646 = vmul.f32 %v5574, %v5630
  %v5647 = vmul.f32 %v5575, %v5631
  %v5648 = vmul.f32 %v5536, %v5608
  %v5649 = vmul.f32 %v5537, %v5609
  %v5650 = vmul.f32 %v5538, %v5610
  %v5651 = vmul.f32 %v5539, %v5611
  %v5652 = vmul.f32 %v5540, %v5612
  %v5653 = vmul.f32 %v5541, %v5613
  %v5654 = vmul.f32 %v5542, %v5614
  %v5655 = vmul.f32 %v5543, %v5615
  %v5656 = vadd.f32 %v5640, %v5648
  %v5657 = vadd.f32 %v5641, %v5649
  %v5658 = vadd.f32 %v5642, %v5650
  %v5659 = vadd.f32 %v5643, %v5651
  %v5660 = vadd.f32 %v5644, %v5652
  %v5661 = vadd.f32 %v5645, %v5653
  %v5662 = vadd.f32 %v5646, %v5654
  %v5663 = vadd.f32 %v5647, %v5655
  %v5664 = vtanh.pop %v5656
  %v5665 = vtanh.pop %v5657
  %v5666 = vtanh.pop %v5658
  %v5667 = vtanh.pop %v5659
  %v5668 = vtanh.pop %v5660
  %v5669 = vtanh.pop %v5661
  %v5670 = vtanh.pop %v5662
  %v5671 = vtanh.pop %v5663
  %v5672 = vmul.f32 %v5600, %v5664
  %v5673 = vmul.f32 %v5601, %v5665
  %v5674 = vmul.f32 %v5602, %v5666
  %v5675 = vmul.f32 %v5603, %v5667
  %v5676 = vmul.f32 %v5604, %v5668
  %v5677 = vmul.f32 %v5605, %v5669
  %v5678 = vmul.f32 %v5606, %v5670
  %v5679 = vmul.f32 %v5607, %v5671
  %5680 = vst [vmem:[%s6 + $0x8] sm:$0x1] %v5672
  %5681 = vst [vmem:[%s6 + $0x18] sm:$0x1] %v5673
  %5682 = vst [vmem:[%s6 + $0x28] sm:$0x1] %v5674
  %5683 = vst [vmem:[%s6 + $0x38] sm:$0x1] %v5675
  %5684 = vst [vmem:[%s6 + $0x48] sm:$0x1] %v5676
  %5685 = vst [vmem:[%s6 + $0x58] sm:$0x1] %v5677
  %5686 = vst [vmem:[%s6 + $0x68] sm:$0x1] %v5678
  %5687 = vst [vmem:[%s6 + $0x78] sm:$0x1] %v5679
  %v5688 = vpack.c.bf16 %v5672, %v5672
  %v5689 = vpack.c.bf16 %v5673, %v5673
  %v5690 = vpack.c.bf16 %v5674, %v5674
  %v5691 = vpack.c.bf16 %v5675, %v5675
  %v5692 = vpack.c.bf16 %v5676, %v5676
  %v5693 = vpack.c.bf16 %v5677, %v5677
  %v5694 = vpack.c.bf16 %v5678, %v5678
  %v5695 = vpack.c.bf16 %v5679, %v5679
  %v5696 = vld [vmem:[%s2] sm:$0xff]
  %v5697 = vld [vmem:[%s2 + $0x8] sm:$0xff]
  %v5698 = vld [vmem:[%s2 + $0x10] sm:$0xff]
  %v5699 = vld [vmem:[%s2 + $0x18] sm:$0xff]
  %v5700 = vld [vmem:[%s2 + $0x20] sm:$0xff]
  %v5701 = vld [vmem:[%s2 + $0x28] sm:$0xff]
  %v5702 = vld [vmem:[%s2 + $0x30] sm:$0xff]
  %v5703 = vld [vmem:[%s2 + $0x38] sm:$0xff]
  %v5704 = vld [vmem:[%s2 + $0x40] sm:$0xff]
  %v5705 = vld [vmem:[%s2 + $0x48] sm:$0xff]
  %v5706 = vld [vmem:[%s2 + $0x50] sm:$0xff]
  %v5707 = vld [vmem:[%s2 + $0x58] sm:$0xff]
  %v5708 = vld [vmem:[%s2 + $0x60] sm:$0xff]
  %v5709 = vld [vmem:[%s2 + $0x68] sm:$0xff]
  %v5710 = vld [vmem:[%s2 + $0x70] sm:$0xff]
  %v5711 = vld [vmem:[%s2 + $0x78] sm:$0xff]
  %v5712 = vld [vmem:[%s2 + $0x80] sm:$0xff]
  %v5713 = vld [vmem:[%s2 + $0x88] sm:$0xff]
  %v5714 = vld [vmem:[%s2 + $0x90] sm:$0xff]
  %v5715 = vld [vmem:[%s2 + $0x98] sm:$0xff]
  %v5716 = vld [vmem:[%s2 + $0xa0] sm:$0xff]
  %v5717 = vld [vmem:[%s2 + $0xa8] sm:$0xff]
  %v5718 = vld [vmem:[%s2 + $0xb0] sm:$0xff]
  %v5719 = vld [vmem:[%s2 + $0xb8] sm:$0xff]
  %v5720 = vld [vmem:[%s2 + $0xc0] sm:$0xff]
  %v5721 = vld [vmem:[%s2 + $0xc8] sm:$0xff]
  %v5722 = vld [vmem:[%s2 + $0xd0] sm:$0xff]
  %v5723 = vld [vmem:[%s2 + $0xd8] sm:$0xff]
  %v5724 = vld [vmem:[%s2 + $0xe0] sm:$0xff]
  %v5725 = vld [vmem:[%s2 + $0xe8] sm:$0xff]
  %v5726 = vld [vmem:[%s2 + $0xf0] sm:$0xff]
  %v5727 = vld [vmem:[%s2 + $0xf8] sm:$0xff]
  %v5736 = vunpack.c.l.b16 %v5688
  %v5737 = vunpack.c.l.b16 %v5689
  %v5738 = vunpack.c.l.b16 %v5690
  %v5739 = vunpack.c.l.b16 %v5691
  %v5740 = vunpack.c.l.b16 %v5692
  %v5741 = vunpack.c.l.b16 %v5693
  %v5742 = vunpack.c.l.b16 %v5694
  %v5743 = vunpack.c.l.b16 %v5695
  %v5744 = vrot.slane %v5737, 7
  %v5745 = vsel %vm1050, %v5744, %v5736
  %v5746 = vrot.slane %v5738, 6
  %v5747 = vsel %vm1053, %v5746, %v5745
  %v5748 = vrot.slane %v5739, 5
  %v5749 = vsel %vm1056, %v5748, %v5747
  %v5750 = vrot.slane %v5740, 4
  %v5751 = vsel %vm1059, %v5750, %v5749
  %v5752 = vrot.slane %v5741, 3
  %v5753 = vsel %vm1062, %v5752, %v5751
  %v5754 = vrot.slane %v5742, 2
  %v5755 = vsel %vm1065, %v5754, %v5753
  %v5756 = vrot.slane %v5743, 1
  %v5757 = vsel %vm1068, %v5756, %v5755
  %v5758 = vpack.c.b16 %v5757, %v5757
  %v5792 = vunpack.c.l.b16 %v5696
  %v5793 = vunpack.c.h.b16 %v5696
  %v5794 = vunpack.c.l.b16 %v5697
  %v5795 = vunpack.c.h.b16 %v5697
  %v5796 = vunpack.c.l.b16 %v5698
  %v5797 = vunpack.c.h.b16 %v5698
  %v5798 = vunpack.c.l.b16 %v5699
  %v5799 = vunpack.c.h.b16 %v5699
  %v5800 = vunpack.c.l.b16 %v5700
  %v5801 = vunpack.c.h.b16 %v5700
  %v5802 = vunpack.c.l.b16 %v5701
  %v5803 = vunpack.c.h.b16 %v5701
  %v5804 = vunpack.c.l.b16 %v5702
  %v5805 = vunpack.c.h.b16 %v5702
  %v5806 = vunpack.c.l.b16 %v5703
  %v5807 = vunpack.c.h.b16 %v5703
  %v5808 = vunpack.c.l.b16 %v5704
  %v5809 = vunpack.c.h.b16 %v5704
  %v5810 = vunpack.c.l.b16 %v5705
  %v5811 = vunpack.c.h.b16 %v5705
  %v5812 = vunpack.c.l.b16 %v5706
  %v5813 = vunpack.c.h.b16 %v5706
  %v5814 = vunpack.c.l.b16 %v5707
  %v5815 = vunpack.c.h.b16 %v5707
  %v5816 = vunpack.c.l.b16 %v5708
  %v5817 = vunpack.c.h.b16 %v5708
  %v5818 = vunpack.c.l.b16 %v5709
  %v5819 = vunpack.c.h.b16 %v5709
  %v5820 = vunpack.c.l.b16 %v5710
  %v5821 = vunpack.c.h.b16 %v5710
  %v5822 = vunpack.c.l.b16 %v5711
  %v5823 = vunpack.c.h.b16 %v5711
  %v5824 = vunpack.c.l.b16 %v5712
  %v5825 = vunpack.c.h.b16 %v5712
  %v5826 = vunpack.c.l.b16 %v5713
  %v5827 = vunpack.c.h.b16 %v5713
  %v5828 = vunpack.c.l.b16 %v5714
  %v5829 = vunpack.c.h.b16 %v5714
  %v5830 = vunpack.c.l.b16 %v5715
  %v5831 = vunpack.c.h.b16 %v5715
  %v5832 = vunpack.c.l.b16 %v5716
  %v5833 = vunpack.c.h.b16 %v5716
  %v5834 = vunpack.c.l.b16 %v5717
  %v5835 = vunpack.c.h.b16 %v5717
  %v5836 = vunpack.c.l.b16 %v5718
  %v5837 = vunpack.c.h.b16 %v5718
  %v5838 = vunpack.c.l.b16 %v5719
  %v5839 = vunpack.c.h.b16 %v5719
  %v5840 = vunpack.c.l.b16 %v5720
  %v5841 = vunpack.c.h.b16 %v5720
  %v5842 = vunpack.c.l.b16 %v5721
  %v5843 = vunpack.c.h.b16 %v5721
  %v5844 = vunpack.c.l.b16 %v5722
  %v5845 = vunpack.c.h.b16 %v5722
  %v5846 = vunpack.c.l.b16 %v5723
  %v5847 = vunpack.c.h.b16 %v5723
  %v5848 = vunpack.c.l.b16 %v5724
  %v5849 = vunpack.c.h.b16 %v5724
  %v5850 = vunpack.c.l.b16 %v5725
  %v5851 = vunpack.c.h.b16 %v5725
  %v5852 = vunpack.c.l.b16 %v5726
  %v5853 = vunpack.c.h.b16 %v5726
  %v5854 = vunpack.c.l.b16 %v5727
  %v5855 = vunpack.c.h.b16 %v5727
  %v5856 = vpack.c.b16 %v5796, %v5792
  %v5857 = vpack.c.b16 %v5797, %v5793
  %v5858 = vpack.c.b16 %v5798, %v5794
  %v5859 = vpack.c.b16 %v5799, %v5795
  %v5860 = vpack.c.b16 %v5804, %v5800
  %v5861 = vpack.c.b16 %v5805, %v5801
  %v5862 = vpack.c.b16 %v5806, %v5802
  %v5863 = vpack.c.b16 %v5807, %v5803
  %v5864 = vpack.c.b16 %v5812, %v5808
  %v5865 = vpack.c.b16 %v5813, %v5809
  %v5866 = vpack.c.b16 %v5814, %v5810
  %v5867 = vpack.c.b16 %v5815, %v5811
  %v5868 = vpack.c.b16 %v5820, %v5816
  %v5869 = vpack.c.b16 %v5821, %v5817
  %v5870 = vpack.c.b16 %v5822, %v5818
  %v5871 = vpack.c.b16 %v5823, %v5819
  %v5872 = vpack.c.b16 %v5828, %v5824
  %v5873 = vpack.c.b16 %v5829, %v5825
  %v5874 = vpack.c.b16 %v5830, %v5826
  %v5875 = vpack.c.b16 %v5831, %v5827
  %v5876 = vpack.c.b16 %v5836, %v5832
  %v5877 = vpack.c.b16 %v5837, %v5833
  %v5878 = vpack.c.b16 %v5838, %v5834
  %v5879 = vpack.c.b16 %v5839, %v5835
  %v5880 = vpack.c.b16 %v5844, %v5840
  %v5881 = vpack.c.b16 %v5845, %v5841
  %v5882 = vpack.c.b16 %v5846, %v5842
  %v5883 = vpack.c.b16 %v5847, %v5843
  %v5884 = vpack.c.b16 %v5852, %v5848
  %v5885 = vpack.c.b16 %v5853, %v5849
  %v5886 = vpack.c.b16 %v5854, %v5850
  %v5887 = vpack.c.b16 %v5855, %v5851
  %5920 = vmatprep.subr.bf16.mxu0 %v5885
  %5921 = vmatpush1.bf16.msra.mxu0 %v5884
  %5922 = vmatprep.subr.bf16.mxu0 %v5881
  %5923 = vmatpush1.bf16.msra.mxu0 %v5880
  %5924 = vmatprep.subr.bf16.mxu0 %v5877
  %5925 = vmatpush1.bf16.msra.mxu0 %v5876
  %5926 = vmatprep.subr.bf16.mxu0 %v5873
  %5927 = vmatpush1.bf16.msra.mxu0 %v5872
  %5928 = vmatprep.subr.bf16.mxu0 %v5869
  %5929 = vmatpush1.bf16.msra.mxu0 %v5868
  %5930 = vmatprep.subr.bf16.mxu0 %v5865
  %5931 = vmatpush1.bf16.msra.mxu0 %v5864
  %5932 = vmatprep.subr.bf16.mxu0 %v5861
  %5933 = vmatpush1.bf16.msra.mxu0 %v5860
  %5934 = vmatprep.subr.bf16.mxu0 %v5857
  %5935 = vmatpush1.bf16.msra.mxu0 %v5856
  %5936 = vmatprep.subr.bf16.mxu0 0
  %5937 = vmatpush2.bf16.msra.mxu0 0
  %5938 = vmatprep.subr.bf16.mxu0 0
  %5939 = vmatpush2.bf16.msra.mxu0 0
  %5940 = vmatprep.subr.bf16.mxu0 0
  %5941 = vmatpush2.bf16.msra.mxu0 0
  %5942 = vmatprep.subr.bf16.mxu0 0
  %5943 = vmatpush2.bf16.msra.mxu0 0
  %5944 = vmatprep.subr.bf16.mxu0 0
  %5945 = vmatpush2.bf16.msra.mxu0 0
  %5946 = vmatprep.subr.bf16.mxu0 0
  %5947 = vmatpush2.bf16.msra.mxu0 0
  %5948 = vmatprep.subr.bf16.mxu0 0
  %5949 = vmatpush2.bf16.msra.mxu0 0
  %5950 = vmatprep.subr.bf16.mxu0 0
  %5951 = vmatpush2.bf16.msra.mxu0 0
  %5952 = vmatprep.mubr.bf16.mxu0 0
  %5953 = vmatmul.mubr.bf16.gmra.mxu0 %v5758
  %v5954 = vpop.f32.mrf.mxu0
  %v5955 = vadd.f32 0.0, %v5954
  %v5956 = vpop.f32.mrf.mxu0
  %v5957 = vadd.f32 0.0, %v5956
  %v5958 = vpop.f32.mrf.mxu0
  %v5959 = vpop.f32.mrf.mxu0
  %5960 = vdwg.mxu0
  %5961 = vmatprep.subr.bf16.mxu0 %v5887
  %5962 = vmatpush1.bf16.msra.mxu0 %v5886
  %5963 = vmatprep.subr.bf16.mxu0 %v5883
  %5964 = vmatpush1.bf16.msra.mxu0 %v5882
  %5965 = vmatprep.subr.bf16.mxu0 %v5879
  %5966 = vmatpush1.bf16.msra.mxu0 %v5878
  %5967 = vmatprep.subr.bf16.mxu0 %v5875
  %5968 = vmatpush1.bf16.msra.mxu0 %v5874
  %5969 = vmatprep.subr.bf16.mxu0 %v5871
  %5970 = vmatpush1.bf16.msra.mxu0 %v5870
  %5971 = vmatprep.subr.bf16.mxu0 %v5867
  %5972 = vmatpush1.bf16.msra.mxu0 %v5866
  %5973 = vmatprep.subr.bf16.mxu0 %v5863
  %5974 = vmatpush1.bf16.msra.mxu0 %v5862
  %5975 = vmatprep.subr.bf16.mxu0 %v5859
  %5976 = vmatpush1.bf16.msra.mxu0 %v5858
  %5977 = vmatprep.subr.bf16.mxu0 0
  %5978 = vmatpush2.bf16.msra.mxu0 0
  %5979 = vmatprep.subr.bf16.mxu0 0
  %5980 = vmatpush2.bf16.msra.mxu0 0
  %5981 = vmatprep.subr.bf16.mxu0 0
  %5982 = vmatpush2.bf16.msra.mxu0 0
  %5983 = vmatprep.subr.bf16.mxu0 0
  %5984 = vmatpush2.bf16.msra.mxu0 0
  %5985 = vmatprep.subr.bf16.mxu0 0
  %5986 = vmatpush2.bf16.msra.mxu0 0
  %5987 = vmatprep.subr.bf16.mxu0 0
  %5988 = vmatpush2.bf16.msra.mxu0 0
  %5989 = vmatprep.subr.bf16.mxu0 0
  %5990 = vmatpush2.bf16.msra.mxu0 0
  %5991 = vmatprep.subr.bf16.mxu0 0
  %5992 = vmatpush2.bf16.msra.mxu0 0
  %5993 = vmatprep.mubr.bf16.mxu0 0
  %5994 = vmatmul.mubr.bf16.gmra.mxu0 %v5758
  %v5995 = vpop.f32.mrf.mxu0
  %v5996 = vadd.f32 0.0, %v5995
  %v5997 = vpop.f32.mrf.mxu0
  %v5998 = vadd.f32 0.0, %v5997
  %v5999 = vpop.f32.mrf.mxu0
  %v6000 = vpop.f32.mrf.mxu0
  %6001 = vdwg.mxu0
  %v6006 = vrot.slane %v5955, 7
  %v6007 = vrot.slane %v5957, 7
  %v6008 = vrot.slane %v5996, 7
  %v6009 = vrot.slane %v5998, 7
  %v6010 = vrot.slane %v5955, 1
  %v6011 = vrot.slane %v5957, 1
  %v6012 = vrot.slane %v5996, 1
  %v6013 = vrot.slane %v5998, 1
  %v6014 = vrot.slane %v5955, 2
  %v6015 = vrot.slane %v5957, 2
  %v6016 = vrot.slane %v5996, 2
  %v6017 = vrot.slane %v5998, 2
  %v6018 = vrot.slane %v5955, 3
  %v6019 = vrot.slane %v5957, 3
  %v6020 = vrot.slane %v5996, 3
  %v6021 = vrot.slane %v5998, 3
  %v6022 = vrot.slane %v5955, 4
  %v6023 = vrot.slane %v5957, 4
  %v6024 = vrot.slane %v5996, 4
  %v6025 = vrot.slane %v5998, 4
  %v6026 = vrot.slane %v5955, 5
  %v6027 = vrot.slane %v5957, 5
  %v6028 = vrot.slane %v5996, 5
  %v6029 = vrot.slane %v5998, 5
  %v6030 = vrot.slane %v5955, 6
  %v6031 = vrot.slane %v5957, 6
  %v6032 = vrot.slane %v5996, 6
  %v6033 = vrot.slane %v5998, 6
  %v6066 = vadd.f32 %v392, %v6006
  %v6067 = vadd.f32 %v393, %v6007
  %v6068 = vadd.f32 %v394, %v6008
  %v6069 = vadd.f32 %v395, %v6009
  %v6070 = vadd.f32 %v400, %v5955
  %v6071 = vadd.f32 %v401, %v5957
  %v6072 = vadd.f32 %v402, %v5996
  %v6073 = vadd.f32 %v403, %v5998
  %v6074 = vadd.f32 %v408, %v6010
  %v6075 = vadd.f32 %v409, %v6011
  %v6076 = vadd.f32 %v410, %v6012
  %v6077 = vadd.f32 %v411, %v6013
  %v6078 = vadd.f32 %v416, %v6014
  %v6079 = vadd.f32 %v417, %v6015
  %v6080 = vadd.f32 %v418, %v6016
  %v6081 = vadd.f32 %v419, %v6017
  %v6082 = vadd.f32 %v424, %v6018
  %v6083 = vadd.f32 %v425, %v6019
  %v6084 = vadd.f32 %v426, %v6020
  %v6085 = vadd.f32 %v427, %v6021
  %v6086 = vadd.f32 %v432, %v6022
  %v6087 = vadd.f32 %v433, %v6023
  %v6088 = vadd.f32 %v434, %v6024
  %v6089 = vadd.f32 %v435, %v6025
  %v6090 = vadd.f32 %v440, %v6026
  %v6091 = vadd.f32 %v441, %v6027
  %v6092 = vadd.f32 %v442, %v6028
  %v6093 = vadd.f32 %v443, %v6029
  %v6094 = vadd.f32 %v448, %v6030
  %v6095 = vadd.f32 %v449, %v6031
  %v6096 = vadd.f32 %v450, %v6032
  %v6097 = vadd.f32 %v451, %v6033
  %v6098 = vmul.f32 %v6066, 0.5
  %v6099 = vmul.f32 %v6070, 0.5
  %v6100 = vmul.f32 %v6074, 0.5
  %v6101 = vmul.f32 %v6078, 0.5
  %v6102 = vmul.f32 %v6082, 0.5
  %v6103 = vmul.f32 %v6086, 0.5
  %v6104 = vmul.f32 %v6090, 0.5
  %v6105 = vmul.f32 %v6094, 0.5
  %v6106 = vtanh.pop %v6098
  %v6107 = vtanh.pop %v6099
  %v6108 = vtanh.pop %v6100
  %v6109 = vtanh.pop %v6101
  %v6110 = vtanh.pop %v6102
  %v6111 = vtanh.pop %v6103
  %v6112 = vtanh.pop %v6104
  %v6113 = vtanh.pop %v6105
  %v6114 = vmul.f32 %v6106, 0.5
  %v6115 = vmul.f32 %v6107, 0.5
  %v6116 = vmul.f32 %v6108, 0.5
  %v6117 = vmul.f32 %v6109, 0.5
  %v6118 = vmul.f32 %v6110, 0.5
  %v6119 = vmul.f32 %v6111, 0.5
  %v6120 = vmul.f32 %v6112, 0.5
  %v6121 = vmul.f32 %v6113, 0.5
  %v6122 = vadd.f32 %v6114, 0.5
  %v6123 = vadd.f32 %v6115, 0.5
  %v6124 = vadd.f32 %v6116, 0.5
  %v6125 = vadd.f32 %v6117, 0.5
  %v6126 = vadd.f32 %v6118, 0.5
  %v6127 = vadd.f32 %v6119, 0.5
  %v6128 = vadd.f32 %v6120, 0.5
  %v6129 = vadd.f32 %v6121, 0.5
  %v6130 = vmul.f32 %v6067, 0.5
  %v6131 = vmul.f32 %v6071, 0.5
  %v6132 = vmul.f32 %v6075, 0.5
  %v6133 = vmul.f32 %v6079, 0.5
  %v6134 = vmul.f32 %v6083, 0.5
  %v6135 = vmul.f32 %v6087, 0.5
  %v6136 = vmul.f32 %v6091, 0.5
  %v6137 = vmul.f32 %v6095, 0.5
  %v6138 = vtanh.pop %v6130
  %v6139 = vtanh.pop %v6131
  %v6140 = vtanh.pop %v6132
  %v6141 = vtanh.pop %v6133
  %v6142 = vtanh.pop %v6134
  %v6143 = vtanh.pop %v6135
  %v6144 = vtanh.pop %v6136
  %v6145 = vtanh.pop %v6137
  %v6146 = vmul.f32 %v6138, 0.5
  %v6147 = vmul.f32 %v6139, 0.5
  %v6148 = vmul.f32 %v6140, 0.5
  %v6149 = vmul.f32 %v6141, 0.5
  %v6150 = vmul.f32 %v6142, 0.5
  %v6151 = vmul.f32 %v6143, 0.5
  %v6152 = vmul.f32 %v6144, 0.5
  %v6153 = vmul.f32 %v6145, 0.5
  %v6154 = vadd.f32 %v6146, 0.5
  %v6155 = vadd.f32 %v6147, 0.5
  %v6156 = vadd.f32 %v6148, 0.5
  %v6157 = vadd.f32 %v6149, 0.5
  %v6158 = vadd.f32 %v6150, 0.5
  %v6159 = vadd.f32 %v6151, 0.5
  %v6160 = vadd.f32 %v6152, 0.5
  %v6161 = vadd.f32 %v6153, 0.5
  %v6162 = vmul.f32 %v6068, 0.5
  %v6163 = vmul.f32 %v6072, 0.5
  %v6164 = vmul.f32 %v6076, 0.5
  %v6165 = vmul.f32 %v6080, 0.5
  %v6166 = vmul.f32 %v6084, 0.5
  %v6167 = vmul.f32 %v6088, 0.5
  %v6168 = vmul.f32 %v6092, 0.5
  %v6169 = vmul.f32 %v6096, 0.5
  %v6170 = vtanh.pop %v6162
  %v6171 = vtanh.pop %v6163
  %v6172 = vtanh.pop %v6164
  %v6173 = vtanh.pop %v6165
  %v6174 = vtanh.pop %v6166
  %v6175 = vtanh.pop %v6167
  %v6176 = vtanh.pop %v6168
  %v6177 = vtanh.pop %v6169
  %v6178 = vmul.f32 %v6170, 0.5
  %v6179 = vmul.f32 %v6171, 0.5
  %v6180 = vmul.f32 %v6172, 0.5
  %v6181 = vmul.f32 %v6173, 0.5
  %v6182 = vmul.f32 %v6174, 0.5
  %v6183 = vmul.f32 %v6175, 0.5
  %v6184 = vmul.f32 %v6176, 0.5
  %v6185 = vmul.f32 %v6177, 0.5
  %v6186 = vadd.f32 %v6178, 0.5
  %v6187 = vadd.f32 %v6179, 0.5
  %v6188 = vadd.f32 %v6180, 0.5
  %v6189 = vadd.f32 %v6181, 0.5
  %v6190 = vadd.f32 %v6182, 0.5
  %v6191 = vadd.f32 %v6183, 0.5
  %v6192 = vadd.f32 %v6184, 0.5
  %v6193 = vadd.f32 %v6185, 0.5
  %v6194 = vtanh.pop %v6069
  %v6195 = vtanh.pop %v6073
  %v6196 = vtanh.pop %v6077
  %v6197 = vtanh.pop %v6081
  %v6198 = vtanh.pop %v6085
  %v6199 = vtanh.pop %v6089
  %v6200 = vtanh.pop %v6093
  %v6201 = vtanh.pop %v6097
  %v6210 = vrot.slane %v5656, 7
  %v6211 = vrot.slane %v5657, 7
  %v6212 = vrot.slane %v5658, 7
  %v6213 = vrot.slane %v5659, 7
  %v6214 = vrot.slane %v5660, 7
  %v6215 = vrot.slane %v5661, 7
  %v6216 = vrot.slane %v5662, 7
  %v6217 = vrot.slane %v5663, 7
  %v6226 = vmul.f32 %v6154, %v6210
  %v6227 = vmul.f32 %v6155, %v6211
  %v6228 = vmul.f32 %v6156, %v6212
  %v6229 = vmul.f32 %v6157, %v6213
  %v6230 = vmul.f32 %v6158, %v6214
  %v6231 = vmul.f32 %v6159, %v6215
  %v6232 = vmul.f32 %v6160, %v6216
  %v6233 = vmul.f32 %v6161, %v6217
  %v6234 = vmul.f32 %v6122, %v6194
  %v6235 = vmul.f32 %v6123, %v6195
  %v6236 = vmul.f32 %v6124, %v6196
  %v6237 = vmul.f32 %v6125, %v6197
  %v6238 = vmul.f32 %v6126, %v6198
  %v6239 = vmul.f32 %v6127, %v6199
  %v6240 = vmul.f32 %v6128, %v6200
  %v6241 = vmul.f32 %v6129, %v6201
  %v6242 = vadd.f32 %v6226, %v6234
  %v6243 = vadd.f32 %v6227, %v6235
  %v6244 = vadd.f32 %v6228, %v6236
  %v6245 = vadd.f32 %v6229, %v6237
  %v6246 = vadd.f32 %v6230, %v6238
  %v6247 = vadd.f32 %v6231, %v6239
  %v6248 = vadd.f32 %v6232, %v6240
  %v6249 = vadd.f32 %v6233, %v6241
  %v6250 = vtanh.pop %v6242
  %v6251 = vtanh.pop %v6243
  %v6252 = vtanh.pop %v6244
  %v6253 = vtanh.pop %v6245
  %v6254 = vtanh.pop %v6246
  %v6255 = vtanh.pop %v6247
  %v6256 = vtanh.pop %v6248
  %v6257 = vtanh.pop %v6249
  %v6258 = vmul.f32 %v6186, %v6250
  %v6259 = vmul.f32 %v6187, %v6251
  %v6260 = vmul.f32 %v6188, %v6252
  %v6261 = vmul.f32 %v6189, %v6253
  %v6262 = vmul.f32 %v6190, %v6254
  %v6263 = vmul.f32 %v6191, %v6255
  %v6264 = vmul.f32 %v6192, %v6256
  %v6265 = vmul.f32 %v6193, %v6257
  %6266 = vst [vmem:[%s6 + $0x8] sm:$0x2] %v6258
  %6267 = vst [vmem:[%s6 + $0x18] sm:$0x2] %v6259
  %6268 = vst [vmem:[%s6 + $0x28] sm:$0x2] %v6260
  %6269 = vst [vmem:[%s6 + $0x38] sm:$0x2] %v6261
  %6270 = vst [vmem:[%s6 + $0x48] sm:$0x2] %v6262
  %6271 = vst [vmem:[%s6 + $0x58] sm:$0x2] %v6263
  %6272 = vst [vmem:[%s6 + $0x68] sm:$0x2] %v6264
  %6273 = vst [vmem:[%s6 + $0x78] sm:$0x2] %v6265
  %v6274 = vpack.c.bf16 %v6258, %v6258
  %v6275 = vpack.c.bf16 %v6259, %v6259
  %v6276 = vpack.c.bf16 %v6260, %v6260
  %v6277 = vpack.c.bf16 %v6261, %v6261
  %v6278 = vpack.c.bf16 %v6262, %v6262
  %v6279 = vpack.c.bf16 %v6263, %v6263
  %v6280 = vpack.c.bf16 %v6264, %v6264
  %v6281 = vpack.c.bf16 %v6265, %v6265
  %v6282 = vld [vmem:[%s2] sm:$0xff]
  %v6283 = vld [vmem:[%s2 + $0x8] sm:$0xff]
  %v6284 = vld [vmem:[%s2 + $0x10] sm:$0xff]
  %v6285 = vld [vmem:[%s2 + $0x18] sm:$0xff]
  %v6286 = vld [vmem:[%s2 + $0x20] sm:$0xff]
  %v6287 = vld [vmem:[%s2 + $0x28] sm:$0xff]
  %v6288 = vld [vmem:[%s2 + $0x30] sm:$0xff]
  %v6289 = vld [vmem:[%s2 + $0x38] sm:$0xff]
  %v6290 = vld [vmem:[%s2 + $0x40] sm:$0xff]
  %v6291 = vld [vmem:[%s2 + $0x48] sm:$0xff]
  %v6292 = vld [vmem:[%s2 + $0x50] sm:$0xff]
  %v6293 = vld [vmem:[%s2 + $0x58] sm:$0xff]
  %v6294 = vld [vmem:[%s2 + $0x60] sm:$0xff]
  %v6295 = vld [vmem:[%s2 + $0x68] sm:$0xff]
  %v6296 = vld [vmem:[%s2 + $0x70] sm:$0xff]
  %v6297 = vld [vmem:[%s2 + $0x78] sm:$0xff]
  %v6298 = vld [vmem:[%s2 + $0x80] sm:$0xff]
  %v6299 = vld [vmem:[%s2 + $0x88] sm:$0xff]
  %v6300 = vld [vmem:[%s2 + $0x90] sm:$0xff]
  %v6301 = vld [vmem:[%s2 + $0x98] sm:$0xff]
  %v6302 = vld [vmem:[%s2 + $0xa0] sm:$0xff]
  %v6303 = vld [vmem:[%s2 + $0xa8] sm:$0xff]
  %v6304 = vld [vmem:[%s2 + $0xb0] sm:$0xff]
  %v6305 = vld [vmem:[%s2 + $0xb8] sm:$0xff]
  %v6306 = vld [vmem:[%s2 + $0xc0] sm:$0xff]
  %v6307 = vld [vmem:[%s2 + $0xc8] sm:$0xff]
  %v6308 = vld [vmem:[%s2 + $0xd0] sm:$0xff]
  %v6309 = vld [vmem:[%s2 + $0xd8] sm:$0xff]
  %v6310 = vld [vmem:[%s2 + $0xe0] sm:$0xff]
  %v6311 = vld [vmem:[%s2 + $0xe8] sm:$0xff]
  %v6312 = vld [vmem:[%s2 + $0xf0] sm:$0xff]
  %v6313 = vld [vmem:[%s2 + $0xf8] sm:$0xff]
  %v6322 = vunpack.c.l.b16 %v6274
  %v6323 = vunpack.c.l.b16 %v6275
  %v6324 = vunpack.c.l.b16 %v6276
  %v6325 = vunpack.c.l.b16 %v6277
  %v6326 = vunpack.c.l.b16 %v6278
  %v6327 = vunpack.c.l.b16 %v6279
  %v6328 = vunpack.c.l.b16 %v6280
  %v6329 = vunpack.c.l.b16 %v6281
  %v6330 = vrot.slane %v6322, 1
  %v6331 = vsel %vm1050, %v6323, %v6330
  %v6332 = vrot.slane %v6324, 7
  %v6333 = vsel %vm1053, %v6332, %v6331
  %v6334 = vrot.slane %v6325, 6
  %v6335 = vsel %vm1056, %v6334, %v6333
  %v6336 = vrot.slane %v6326, 5
  %v6337 = vsel %vm1059, %v6336, %v6335
  %v6338 = vrot.slane %v6327, 4
  %v6339 = vsel %vm1062, %v6338, %v6337
  %v6340 = vrot.slane %v6328, 3
  %v6341 = vsel %vm1065, %v6340, %v6339
  %v6342 = vrot.slane %v6329, 2
  %v6343 = vsel %vm1068, %v6342, %v6341
  %v6344 = vpack.c.b16 %v6343, %v6343
  %v6378 = vunpack.c.l.b16 %v6282
  %v6379 = vunpack.c.h.b16 %v6282
  %v6380 = vunpack.c.l.b16 %v6283
  %v6381 = vunpack.c.h.b16 %v6283
  %v6382 = vunpack.c.l.b16 %v6284
  %v6383 = vunpack.c.h.b16 %v6284
  %v6384 = vunpack.c.l.b16 %v6285
  %v6385 = vunpack.c.h.b16 %v6285
  %v6386 = vunpack.c.l.b16 %v6286
  %v6387 = vunpack.c.h.b16 %v6286
  %v6388 = vunpack.c.l.b16 %v6287
  %v6389 = vunpack.c.h.b16 %v6287
  %v6390 = vunpack.c.l.b16 %v6288
  %v6391 = vunpack.c.h.b16 %v6288
  %v6392 = vunpack.c.l.b16 %v6289
  %v6393 = vunpack.c.h.b16 %v6289
  %v6394 = vunpack.c.l.b16 %v6290
  %v6395 = vunpack.c.h.b16 %v6290
  %v6396 = vunpack.c.l.b16 %v6291
  %v6397 = vunpack.c.h.b16 %v6291
  %v6398 = vunpack.c.l.b16 %v6292
  %v6399 = vunpack.c.h.b16 %v6292
  %v6400 = vunpack.c.l.b16 %v6293
  %v6401 = vunpack.c.h.b16 %v6293
  %v6402 = vunpack.c.l.b16 %v6294
  %v6403 = vunpack.c.h.b16 %v6294
  %v6404 = vunpack.c.l.b16 %v6295
  %v6405 = vunpack.c.h.b16 %v6295
  %v6406 = vunpack.c.l.b16 %v6296
  %v6407 = vunpack.c.h.b16 %v6296
  %v6408 = vunpack.c.l.b16 %v6297
  %v6409 = vunpack.c.h.b16 %v6297
  %v6410 = vunpack.c.l.b16 %v6298
  %v6411 = vunpack.c.h.b16 %v6298
  %v6412 = vunpack.c.l.b16 %v6299
  %v6413 = vunpack.c.h.b16 %v6299
  %v6414 = vunpack.c.l.b16 %v6300
  %v6415 = vunpack.c.h.b16 %v6300
  %v6416 = vunpack.c.l.b16 %v6301
  %v6417 = vunpack.c.h.b16 %v6301
  %v6418 = vunpack.c.l.b16 %v6302
  %v6419 = vunpack.c.h.b16 %v6302
  %v6420 = vunpack.c.l.b16 %v6303
  %v6421 = vunpack.c.h.b16 %v6303
  %v6422 = vunpack.c.l.b16 %v6304
  %v6423 = vunpack.c.h.b16 %v6304
  %v6424 = vunpack.c.l.b16 %v6305
  %v6425 = vunpack.c.h.b16 %v6305
  %v6426 = vunpack.c.l.b16 %v6306
  %v6427 = vunpack.c.h.b16 %v6306
  %v6428 = vunpack.c.l.b16 %v6307
  %v6429 = vunpack.c.h.b16 %v6307
  %v6430 = vunpack.c.l.b16 %v6308
  %v6431 = vunpack.c.h.b16 %v6308
  %v6432 = vunpack.c.l.b16 %v6309
  %v6433 = vunpack.c.h.b16 %v6309
  %v6434 = vunpack.c.l.b16 %v6310
  %v6435 = vunpack.c.h.b16 %v6310
  %v6436 = vunpack.c.l.b16 %v6311
  %v6437 = vunpack.c.h.b16 %v6311
  %v6438 = vunpack.c.l.b16 %v6312
  %v6439 = vunpack.c.h.b16 %v6312
  %v6440 = vunpack.c.l.b16 %v6313
  %v6441 = vunpack.c.h.b16 %v6313
  %v6442 = vpack.c.b16 %v6382, %v6378
  %v6443 = vpack.c.b16 %v6383, %v6379
  %v6444 = vpack.c.b16 %v6384, %v6380
  %v6445 = vpack.c.b16 %v6385, %v6381
  %v6446 = vpack.c.b16 %v6390, %v6386
  %v6447 = vpack.c.b16 %v6391, %v6387
  %v6448 = vpack.c.b16 %v6392, %v6388
  %v6449 = vpack.c.b16 %v6393, %v6389
  %v6450 = vpack.c.b16 %v6398, %v6394
  %v6451 = vpack.c.b16 %v6399, %v6395
  %v6452 = vpack.c.b16 %v6400, %v6396
  %v6453 = vpack.c.b16 %v6401, %v6397
  %v6454 = vpack.c.b16 %v6406, %v6402
  %v6455 = vpack.c.b16 %v6407, %v6403
  %v6456 = vpack.c.b16 %v6408, %v6404
  %v6457 = vpack.c.b16 %v6409, %v6405
  %v6458 = vpack.c.b16 %v6414, %v6410
  %v6459 = vpack.c.b16 %v6415, %v6411
  %v6460 = vpack.c.b16 %v6416, %v6412
  %v6461 = vpack.c.b16 %v6417, %v6413
  %v6462 = vpack.c.b16 %v6422, %v6418
  %v6463 = vpack.c.b16 %v6423, %v6419
  %v6464 = vpack.c.b16 %v6424, %v6420
  %v6465 = vpack.c.b16 %v6425, %v6421
  %v6466 = vpack.c.b16 %v6430, %v6426
  %v6467 = vpack.c.b16 %v6431, %v6427
  %v6468 = vpack.c.b16 %v6432, %v6428
  %v6469 = vpack.c.b16 %v6433, %v6429
  %v6470 = vpack.c.b16 %v6438, %v6434
  %v6471 = vpack.c.b16 %v6439, %v6435
  %v6472 = vpack.c.b16 %v6440, %v6436
  %v6473 = vpack.c.b16 %v6441, %v6437
  %6506 = vmatprep.subr.bf16.mxu0 %v6471
  %6507 = vmatpush1.bf16.msra.mxu0 %v6470
  %6508 = vmatprep.subr.bf16.mxu0 %v6467
  %6509 = vmatpush1.bf16.msra.mxu0 %v6466
  %6510 = vmatprep.subr.bf16.mxu0 %v6463
  %6511 = vmatpush1.bf16.msra.mxu0 %v6462
  %6512 = vmatprep.subr.bf16.mxu0 %v6459
  %6513 = vmatpush1.bf16.msra.mxu0 %v6458
  %6514 = vmatprep.subr.bf16.mxu0 %v6455
  %6515 = vmatpush1.bf16.msra.mxu0 %v6454
  %6516 = vmatprep.subr.bf16.mxu0 %v6451
  %6517 = vmatpush1.bf16.msra.mxu0 %v6450
  %6518 = vmatprep.subr.bf16.mxu0 %v6447
  %6519 = vmatpush1.bf16.msra.mxu0 %v6446
  %6520 = vmatprep.subr.bf16.mxu0 %v6443
  %6521 = vmatpush1.bf16.msra.mxu0 %v6442
  %6522 = vmatprep.subr.bf16.mxu0 0
  %6523 = vmatpush2.bf16.msra.mxu0 0
  %6524 = vmatprep.subr.bf16.mxu0 0
  %6525 = vmatpush2.bf16.msra.mxu0 0
  %6526 = vmatprep.subr.bf16.mxu0 0
  %6527 = vmatpush2.bf16.msra.mxu0 0
  %6528 = vmatprep.subr.bf16.mxu0 0
  %6529 = vmatpush2.bf16.msra.mxu0 0
  %6530 = vmatprep.subr.bf16.mxu0 0
  %6531 = vmatpush2.bf16.msra.mxu0 0
  %6532 = vmatprep.subr.bf16.mxu0 0
  %6533 = vmatpush2.bf16.msra.mxu0 0
  %6534 = vmatprep.subr.bf16.mxu0 0
  %6535 = vmatpush2.bf16.msra.mxu0 0
  %6536 = vmatprep.subr.bf16.mxu0 0
  %6537 = vmatpush2.bf16.msra.mxu0 0
  %6538 = vmatprep.mubr.bf16.mxu0 0
  %6539 = vmatmul.mubr.bf16.gmra.mxu0 %v6344
  %v6540 = vpop.f32.mrf.mxu0
  %v6541 = vadd.f32 0.0, %v6540
  %v6542 = vpop.f32.mrf.mxu0
  %v6543 = vadd.f32 0.0, %v6542
  %v6544 = vpop.f32.mrf.mxu0
  %v6545 = vpop.f32.mrf.mxu0
  %6546 = vdwg.mxu0
  %6547 = vmatprep.subr.bf16.mxu0 %v6473
  %6548 = vmatpush1.bf16.msra.mxu0 %v6472
  %6549 = vmatprep.subr.bf16.mxu0 %v6469
  %6550 = vmatpush1.bf16.msra.mxu0 %v6468
  %6551 = vmatprep.subr.bf16.mxu0 %v6465
  %6552 = vmatpush1.bf16.msra.mxu0 %v6464
  %6553 = vmatprep.subr.bf16.mxu0 %v6461
  %6554 = vmatpush1.bf16.msra.mxu0 %v6460
  %6555 = vmatprep.subr.bf16.mxu0 %v6457
  %6556 = vmatpush1.bf16.msra.mxu0 %v6456
  %6557 = vmatprep.subr.bf16.mxu0 %v6453
  %6558 = vmatpush1.bf16.msra.mxu0 %v6452
  %6559 = vmatprep.subr.bf16.mxu0 %v6449
  %6560 = vmatpush1.bf16.msra.mxu0 %v6448
  %6561 = vmatprep.subr.bf16.mxu0 %v6445
  %6562 = vmatpush1.bf16.msra.mxu0 %v6444
  %6563 = vmatprep.subr.bf16.mxu0 0
  %6564 = vmatpush2.bf16.msra.mxu0 0
  %6565 = vmatprep.subr.bf16.mxu0 0
  %6566 = vmatpush2.bf16.msra.mxu0 0
  %6567 = vmatprep.subr.bf16.mxu0 0
  %6568 = vmatpush2.bf16.msra.mxu0 0
  %6569 = vmatprep.subr.bf16.mxu0 0
  %6570 = vmatpush2.bf16.msra.mxu0 0
  %6571 = vmatprep.subr.bf16.mxu0 0
  %6572 = vmatpush2.bf16.msra.mxu0 0
  %6573 = vmatprep.subr.bf16.mxu0 0
  %6574 = vmatpush2.bf16.msra.mxu0 0
  %6575 = vmatprep.subr.bf16.mxu0 0
  %6576 = vmatpush2.bf16.msra.mxu0 0
  %6577 = vmatprep.subr.bf16.mxu0 0
  %6578 = vmatpush2.bf16.msra.mxu0 0
  %6579 = vmatprep.mubr.bf16.mxu0 0
  %6580 = vmatmul.mubr.bf16.gmra.mxu0 %v6344
  %v6581 = vpop.f32.mrf.mxu0
  %v6582 = vadd.f32 0.0, %v6581
  %v6583 = vpop.f32.mrf.mxu0
  %v6584 = vadd.f32 0.0, %v6583
  %v6585 = vpop.f32.mrf.mxu0
  %v6586 = vpop.f32.mrf.mxu0
  %6587 = vdwg.mxu0
  %v6592 = vrot.slane %v6541, 6
  %v6593 = vrot.slane %v6543, 6
  %v6594 = vrot.slane %v6582, 6
  %v6595 = vrot.slane %v6584, 6
  %v6596 = vrot.slane %v6541, 7
  %v6597 = vrot.slane %v6543, 7
  %v6598 = vrot.slane %v6582, 7
  %v6599 = vrot.slane %v6584, 7
  %v6600 = vrot.slane %v6541, 1
  %v6601 = vrot.slane %v6543, 1
  %v6602 = vrot.slane %v6582, 1
  %v6603 = vrot.slane %v6584, 1
  %v6604 = vrot.slane %v6541, 2
  %v6605 = vrot.slane %v6543, 2
  %v6606 = vrot.slane %v6582, 2
  %v6607 = vrot.slane %v6584, 2
  %v6608 = vrot.slane %v6541, 3
  %v6609 = vrot.slane %v6543, 3
  %v6610 = vrot.slane %v6582, 3
  %v6611 = vrot.slane %v6584, 3
  %v6612 = vrot.slane %v6541, 4
  %v6613 = vrot.slane %v6543, 4
  %v6614 = vrot.slane %v6582, 4
  %v6615 = vrot.slane %v6584, 4
  %v6616 = vrot.slane %v6541, 5
  %v6617 = vrot.slane %v6543, 5
  %v6618 = vrot.slane %v6582, 5
  %v6619 = vrot.slane %v6584, 5
  %v6652 = vadd.f32 %v392, %v6592
  %v6653 = vadd.f32 %v393, %v6593
  %v6654 = vadd.f32 %v394, %v6594
  %v6655 = vadd.f32 %v395, %v6595
  %v6656 = vadd.f32 %v400, %v6596
  %v6657 = vadd.f32 %v401, %v6597
  %v6658 = vadd.f32 %v402, %v6598
  %v6659 = vadd.f32 %v403, %v6599
  %v6660 = vadd.f32 %v408, %v6541
  %v6661 = vadd.f32 %v409, %v6543
  %v6662 = vadd.f32 %v410, %v6582
  %v6663 = vadd.f32 %v411, %v6584
  %v6664 = vadd.f32 %v416, %v6600
  %v6665 = vadd.f32 %v417, %v6601
  %v6666 = vadd.f32 %v418, %v6602
  %v6667 = vadd.f32 %v419, %v6603
  %v6668 = vadd.f32 %v424, %v6604
  %v6669 = vadd.f32 %v425, %v6605
  %v6670 = vadd.f32 %v426, %v6606
  %v6671 = vadd.f32 %v427, %v6607
  %v6672 = vadd.f32 %v432, %v6608
  %v6673 = vadd.f32 %v433, %v6609
  %v6674 = vadd.f32 %v434, %v6610
  %v6675 = vadd.f32 %v435, %v6611
  %v6676 = vadd.f32 %v440, %v6612
  %v6677 = vadd.f32 %v441, %v6613
  %v6678 = vadd.f32 %v442, %v6614
  %v6679 = vadd.f32 %v443, %v6615
  %v6680 = vadd.f32 %v448, %v6616
  %v6681 = vadd.f32 %v449, %v6617
  %v6682 = vadd.f32 %v450, %v6618
  %v6683 = vadd.f32 %v451, %v6619
  %v6684 = vmul.f32 %v6652, 0.5
  %v6685 = vmul.f32 %v6656, 0.5
  %v6686 = vmul.f32 %v6660, 0.5
  %v6687 = vmul.f32 %v6664, 0.5
  %v6688 = vmul.f32 %v6668, 0.5
  %v6689 = vmul.f32 %v6672, 0.5
  %v6690 = vmul.f32 %v6676, 0.5
  %v6691 = vmul.f32 %v6680, 0.5
  %v6692 = vtanh.pop %v6684
  %v6693 = vtanh.pop %v6685
  %v6694 = vtanh.pop %v6686
  %v6695 = vtanh.pop %v6687
  %v6696 = vtanh.pop %v6688
  %v6697 = vtanh.pop %v6689
  %v6698 = vtanh.pop %v6690
  %v6699 = vtanh.pop %v6691
  %v6700 = vmul.f32 %v6692, 0.5
  %v6701 = vmul.f32 %v6693, 0.5
  %v6702 = vmul.f32 %v6694, 0.5
  %v6703 = vmul.f32 %v6695, 0.5
  %v6704 = vmul.f32 %v6696, 0.5
  %v6705 = vmul.f32 %v6697, 0.5
  %v6706 = vmul.f32 %v6698, 0.5
  %v6707 = vmul.f32 %v6699, 0.5
  %v6708 = vadd.f32 %v6700, 0.5
  %v6709 = vadd.f32 %v6701, 0.5
  %v6710 = vadd.f32 %v6702, 0.5
  %v6711 = vadd.f32 %v6703, 0.5
  %v6712 = vadd.f32 %v6704, 0.5
  %v6713 = vadd.f32 %v6705, 0.5
  %v6714 = vadd.f32 %v6706, 0.5
  %v6715 = vadd.f32 %v6707, 0.5
  %v6716 = vmul.f32 %v6653, 0.5
  %v6717 = vmul.f32 %v6657, 0.5
  %v6718 = vmul.f32 %v6661, 0.5
  %v6719 = vmul.f32 %v6665, 0.5
  %v6720 = vmul.f32 %v6669, 0.5
  %v6721 = vmul.f32 %v6673, 0.5
  %v6722 = vmul.f32 %v6677, 0.5
  %v6723 = vmul.f32 %v6681, 0.5
  %v6724 = vtanh.pop %v6716
  %v6725 = vtanh.pop %v6717
  %v6726 = vtanh.pop %v6718
  %v6727 = vtanh.pop %v6719
  %v6728 = vtanh.pop %v6720
  %v6729 = vtanh.pop %v6721
  %v6730 = vtanh.pop %v6722
  %v6731 = vtanh.pop %v6723
  %v6732 = vmul.f32 %v6724, 0.5
  %v6733 = vmul.f32 %v6725, 0.5
  %v6734 = vmul.f32 %v6726, 0.5
  %v6735 = vmul.f32 %v6727, 0.5
  %v6736 = vmul.f32 %v6728, 0.5
  %v6737 = vmul.f32 %v6729, 0.5
  %v6738 = vmul.f32 %v6730, 0.5
  %v6739 = vmul.f32 %v6731, 0.5
  %v6740 = vadd.f32 %v6732, 0.5
  %v6741 = vadd.f32 %v6733, 0.5
  %v6742 = vadd.f32 %v6734, 0.5
  %v6743 = vadd.f32 %v6735, 0.5
  %v6744 = vadd.f32 %v6736, 0.5
  %v6745 = vadd.f32 %v6737, 0.5
  %v6746 = vadd.f32 %v6738, 0.5
  %v6747 = vadd.f32 %v6739, 0.5
  %v6748 = vmul.f32 %v6654, 0.5
  %v6749 = vmul.f32 %v6658, 0.5
  %v6750 = vmul.f32 %v6662, 0.5
  %v6751 = vmul.f32 %v6666, 0.5
  %v6752 = vmul.f32 %v6670, 0.5
  %v6753 = vmul.f32 %v6674, 0.5
  %v6754 = vmul.f32 %v6678, 0.5
  %v6755 = vmul.f32 %v6682, 0.5
  %v6756 = vtanh.pop %v6748
  %v6757 = vtanh.pop %v6749
  %v6758 = vtanh.pop %v6750
  %v6759 = vtanh.pop %v6751
  %v6760 = vtanh.pop %v6752
  %v6761 = vtanh.pop %v6753
  %v6762 = vtanh.pop %v6754
  %v6763 = vtanh.pop %v6755
  %v6764 = vmul.f32 %v6756, 0.5
  %v6765 = vmul.f32 %v6757, 0.5
  %v6766 = vmul.f32 %v6758, 0.5
  %v6767 = vmul.f32 %v6759, 0.5
  %v6768 = vmul.f32 %v6760, 0.5
  %v6769 = vmul.f32 %v6761, 0.5
  %v6770 = vmul.f32 %v6762, 0.5
  %v6771 = vmul.f32 %v6763, 0.5
  %v6772 = vadd.f32 %v6764, 0.5
  %v6773 = vadd.f32 %v6765, 0.5
  %v6774 = vadd.f32 %v6766, 0.5
  %v6775 = vadd.f32 %v6767, 0.5
  %v6776 = vadd.f32 %v6768, 0.5
  %v6777 = vadd.f32 %v6769, 0.5
  %v6778 = vadd.f32 %v6770, 0.5
  %v6779 = vadd.f32 %v6771, 0.5
  %v6780 = vtanh.pop %v6655
  %v6781 = vtanh.pop %v6659
  %v6782 = vtanh.pop %v6663
  %v6783 = vtanh.pop %v6667
  %v6784 = vtanh.pop %v6671
  %v6785 = vtanh.pop %v6675
  %v6786 = vtanh.pop %v6679
  %v6787 = vtanh.pop %v6683
  %v6796 = vrot.slane %v6242, 7
  %v6797 = vrot.slane %v6243, 7
  %v6798 = vrot.slane %v6244, 7
  %v6799 = vrot.slane %v6245, 7
  %v6800 = vrot.slane %v6246, 7
  %v6801 = vrot.slane %v6247, 7
  %v6802 = vrot.slane %v6248, 7
  %v6803 = vrot.slane %v6249, 7
  %v6812 = vmul.f32 %v6740, %v6796
  %v6813 = vmul.f32 %v6741, %v6797
  %v6814 = vmul.f32 %v6742, %v6798
  %v6815 = vmul.f32 %v6743, %v6799
  %v6816 = vmul.f32 %v6744, %v6800
  %v6817 = vmul.f32 %v6745, %v6801
  %v6818 = vmul.f32 %v6746, %v6802
  %v6819 = vmul.f32 %v6747, %v6803
  %v6820 = vmul.f32 %v6708, %v6780
  %v6821 = vmul.f32 %v6709, %v6781
  %v6822 = vmul.f32 %v6710, %v6782
  %v6823 = vmul.f32 %v6711, %v6783
  %v6824 = vmul.f32 %v6712, %v6784
  %v6825 = vmul.f32 %v6713, %v6785
  %v6826 = vmul.f32 %v6714, %v6786
  %v6827 = vmul.f32 %v6715, %v6787
  %v6828 = vadd.f32 %v6812, %v6820
  %v6829 = vadd.f32 %v6813, %v6821
  %v6830 = vadd.f32 %v6814, %v6822
  %v6831 = vadd.f32 %v6815, %v6823
  %v6832 = vadd.f32 %v6816, %v6824
  %v6833 = vadd.f32 %v6817, %v6825
  %v6834 = vadd.f32 %v6818, %v6826
  %v6835 = vadd.f32 %v6819, %v6827
  %v6836 = vtanh.pop %v6828
  %v6837 = vtanh.pop %v6829
  %v6838 = vtanh.pop %v6830
  %v6839 = vtanh.pop %v6831
  %v6840 = vtanh.pop %v6832
  %v6841 = vtanh.pop %v6833
  %v6842 = vtanh.pop %v6834
  %v6843 = vtanh.pop %v6835
  %v6844 = vmul.f32 %v6772, %v6836
  %v6845 = vmul.f32 %v6773, %v6837
  %v6846 = vmul.f32 %v6774, %v6838
  %v6847 = vmul.f32 %v6775, %v6839
  %v6848 = vmul.f32 %v6776, %v6840
  %v6849 = vmul.f32 %v6777, %v6841
  %v6850 = vmul.f32 %v6778, %v6842
  %v6851 = vmul.f32 %v6779, %v6843
  %6852 = vst [vmem:[%s6 + $0x8] sm:$0x4] %v6844
  %6853 = vst [vmem:[%s6 + $0x18] sm:$0x4] %v6845
  %6854 = vst [vmem:[%s6 + $0x28] sm:$0x4] %v6846
  %6855 = vst [vmem:[%s6 + $0x38] sm:$0x4] %v6847
  %6856 = vst [vmem:[%s6 + $0x48] sm:$0x4] %v6848
  %6857 = vst [vmem:[%s6 + $0x58] sm:$0x4] %v6849
  %6858 = vst [vmem:[%s6 + $0x68] sm:$0x4] %v6850
  %6859 = vst [vmem:[%s6 + $0x78] sm:$0x4] %v6851
  %v6860 = vpack.c.bf16 %v6844, %v6844
  %v6861 = vpack.c.bf16 %v6845, %v6845
  %v6862 = vpack.c.bf16 %v6846, %v6846
  %v6863 = vpack.c.bf16 %v6847, %v6847
  %v6864 = vpack.c.bf16 %v6848, %v6848
  %v6865 = vpack.c.bf16 %v6849, %v6849
  %v6866 = vpack.c.bf16 %v6850, %v6850
  %v6867 = vpack.c.bf16 %v6851, %v6851
  %v6868 = vld [vmem:[%s2] sm:$0xff]
  %v6869 = vld [vmem:[%s2 + $0x8] sm:$0xff]
  %v6870 = vld [vmem:[%s2 + $0x10] sm:$0xff]
  %v6871 = vld [vmem:[%s2 + $0x18] sm:$0xff]
  %v6872 = vld [vmem:[%s2 + $0x20] sm:$0xff]
  %v6873 = vld [vmem:[%s2 + $0x28] sm:$0xff]
  %v6874 = vld [vmem:[%s2 + $0x30] sm:$0xff]
  %v6875 = vld [vmem:[%s2 + $0x38] sm:$0xff]
  %v6876 = vld [vmem:[%s2 + $0x40] sm:$0xff]
  %v6877 = vld [vmem:[%s2 + $0x48] sm:$0xff]
  %v6878 = vld [vmem:[%s2 + $0x50] sm:$0xff]
  %v6879 = vld [vmem:[%s2 + $0x58] sm:$0xff]
  %v6880 = vld [vmem:[%s2 + $0x60] sm:$0xff]
  %v6881 = vld [vmem:[%s2 + $0x68] sm:$0xff]
  %v6882 = vld [vmem:[%s2 + $0x70] sm:$0xff]
  %v6883 = vld [vmem:[%s2 + $0x78] sm:$0xff]
  %v6884 = vld [vmem:[%s2 + $0x80] sm:$0xff]
  %v6885 = vld [vmem:[%s2 + $0x88] sm:$0xff]
  %v6886 = vld [vmem:[%s2 + $0x90] sm:$0xff]
  %v6887 = vld [vmem:[%s2 + $0x98] sm:$0xff]
  %v6888 = vld [vmem:[%s2 + $0xa0] sm:$0xff]
  %v6889 = vld [vmem:[%s2 + $0xa8] sm:$0xff]
  %v6890 = vld [vmem:[%s2 + $0xb0] sm:$0xff]
  %v6891 = vld [vmem:[%s2 + $0xb8] sm:$0xff]
  %v6892 = vld [vmem:[%s2 + $0xc0] sm:$0xff]
  %v6893 = vld [vmem:[%s2 + $0xc8] sm:$0xff]
  %v6894 = vld [vmem:[%s2 + $0xd0] sm:$0xff]
  %v6895 = vld [vmem:[%s2 + $0xd8] sm:$0xff]
  %v6896 = vld [vmem:[%s2 + $0xe0] sm:$0xff]
  %v6897 = vld [vmem:[%s2 + $0xe8] sm:$0xff]
  %v6898 = vld [vmem:[%s2 + $0xf0] sm:$0xff]
  %v6899 = vld [vmem:[%s2 + $0xf8] sm:$0xff]
  %v6908 = vunpack.c.l.b16 %v6860
  %v6909 = vunpack.c.l.b16 %v6861
  %v6910 = vunpack.c.l.b16 %v6862
  %v6911 = vunpack.c.l.b16 %v6863
  %v6912 = vunpack.c.l.b16 %v6864
  %v6913 = vunpack.c.l.b16 %v6865
  %v6914 = vunpack.c.l.b16 %v6866
  %v6915 = vunpack.c.l.b16 %v6867
  %v6916 = vrot.slane %v6908, 2
  %v6917 = vrot.slane %v6909, 1
  %v6918 = vsel %vm1050, %v6917, %v6916
  %v6919 = vsel %vm1053, %v6910, %v6918
  %v6920 = vrot.slane %v6911, 7
  %v6921 = vsel %vm1056, %v6920, %v6919
  %v6922 = vrot.slane %v6912, 6
  %v6923 = vsel %vm1059, %v6922, %v6921
  %v6924 = vrot.slane %v6913, 5
  %v6925 = vsel %vm1062, %v6924, %v6923
  %v6926 = vrot.slane %v6914, 4
  %v6927 = vsel %vm1065, %v6926, %v6925
  %v6928 = vrot.slane %v6915, 3
  %v6929 = vsel %vm1068, %v6928, %v6927
  %v6930 = vpack.c.b16 %v6929, %v6929
  %v6964 = vunpack.c.l.b16 %v6868
  %v6965 = vunpack.c.h.b16 %v6868
  %v6966 = vunpack.c.l.b16 %v6869
  %v6967 = vunpack.c.h.b16 %v6869
  %v6968 = vunpack.c.l.b16 %v6870
  %v6969 = vunpack.c.h.b16 %v6870
  %v6970 = vunpack.c.l.b16 %v6871
  %v6971 = vunpack.c.h.b16 %v6871
  %v6972 = vunpack.c.l.b16 %v6872
  %v6973 = vunpack.c.h.b16 %v6872
  %v6974 = vunpack.c.l.b16 %v6873
  %v6975 = vunpack.c.h.b16 %v6873
  %v6976 = vunpack.c.l.b16 %v6874
  %v6977 = vunpack.c.h.b16 %v6874
  %v6978 = vunpack.c.l.b16 %v6875
  %v6979 = vunpack.c.h.b16 %v6875
  %v6980 = vunpack.c.l.b16 %v6876
  %v6981 = vunpack.c.h.b16 %v6876
  %v6982 = vunpack.c.l.b16 %v6877
  %v6983 = vunpack.c.h.b16 %v6877
  %v6984 = vunpack.c.l.b16 %v6878
  %v6985 = vunpack.c.h.b16 %v6878
  %v6986 = vunpack.c.l.b16 %v6879
  %v6987 = vunpack.c.h.b16 %v6879
  %v6988 = vunpack.c.l.b16 %v6880
  %v6989 = vunpack.c.h.b16 %v6880
  %v6990 = vunpack.c.l.b16 %v6881
  %v6991 = vunpack.c.h.b16 %v6881
  %v6992 = vunpack.c.l.b16 %v6882
  %v6993 = vunpack.c.h.b16 %v6882
  %v6994 = vunpack.c.l.b16 %v6883
  %v6995 = vunpack.c.h.b16 %v6883
  %v6996 = vunpack.c.l.b16 %v6884
  %v6997 = vunpack.c.h.b16 %v6884
  %v6998 = vunpack.c.l.b16 %v6885
  %v6999 = vunpack.c.h.b16 %v6885
  %v7000 = vunpack.c.l.b16 %v6886
  %v7001 = vunpack.c.h.b16 %v6886
  %v7002 = vunpack.c.l.b16 %v6887
  %v7003 = vunpack.c.h.b16 %v6887
  %v7004 = vunpack.c.l.b16 %v6888
  %v7005 = vunpack.c.h.b16 %v6888
  %v7006 = vunpack.c.l.b16 %v6889
  %v7007 = vunpack.c.h.b16 %v6889
  %v7008 = vunpack.c.l.b16 %v6890
  %v7009 = vunpack.c.h.b16 %v6890
  %v7010 = vunpack.c.l.b16 %v6891
  %v7011 = vunpack.c.h.b16 %v6891
  %v7012 = vunpack.c.l.b16 %v6892
  %v7013 = vunpack.c.h.b16 %v6892
  %v7014 = vunpack.c.l.b16 %v6893
  %v7015 = vunpack.c.h.b16 %v6893
  %v7016 = vunpack.c.l.b16 %v6894
  %v7017 = vunpack.c.h.b16 %v6894
  %v7018 = vunpack.c.l.b16 %v6895
  %v7019 = vunpack.c.h.b16 %v6895
  %v7020 = vunpack.c.l.b16 %v6896
  %v7021 = vunpack.c.h.b16 %v6896
  %v7022 = vunpack.c.l.b16 %v6897
  %v7023 = vunpack.c.h.b16 %v6897
  %v7024 = vunpack.c.l.b16 %v6898
  %v7025 = vunpack.c.h.b16 %v6898
  %v7026 = vunpack.c.l.b16 %v6899
  %v7027 = vunpack.c.h.b16 %v6899
  %v7028 = vpack.c.b16 %v6968, %v6964
  %v7029 = vpack.c.b16 %v6969, %v6965
  %v7030 = vpack.c.b16 %v6970, %v6966
  %v7031 = vpack.c.b16 %v6971, %v6967
  %v7032 = vpack.c.b16 %v6976, %v6972
  %v7033 = vpack.c.b16 %v6977, %v6973
  %v7034 = vpack.c.b16 %v6978, %v6974
  %v7035 = vpack.c.b16 %v6979, %v6975
  %v7036 = vpack.c.b16 %v6984, %v6980
  %v7037 = vpack.c.b16 %v6985, %v6981
  %v7038 = vpack.c.b16 %v6986, %v6982
  %v7039 = vpack.c.b16 %v6987, %v6983
  %v7040 = vpack.c.b16 %v6992, %v6988
  %v7041 = vpack.c.b16 %v6993, %v6989
  %v7042 = vpack.c.b16 %v6994, %v6990
  %v7043 = vpack.c.b16 %v6995, %v6991
  %v7044 = vpack.c.b16 %v7000, %v6996
  %v7045 = vpack.c.b16 %v7001, %v6997
  %v7046 = vpack.c.b16 %v7002, %v6998
  %v7047 = vpack.c.b16 %v7003, %v6999
  %v7048 = vpack.c.b16 %v7008, %v7004
  %v7049 = vpack.c.b16 %v7009, %v7005
  %v7050 = vpack.c.b16 %v7010, %v7006
  %v7051 = vpack.c.b16 %v7011, %v7007
  %v7052 = vpack.c.b16 %v7016, %v7012
  %v7053 = vpack.c.b16 %v7017, %v7013
  %v7054 = vpack.c.b16 %v7018, %v7014
  %v7055 = vpack.c.b16 %v7019, %v7015
  %v7056 = vpack.c.b16 %v7024, %v7020
  %v7057 = vpack.c.b16 %v7025, %v7021
  %v7058 = vpack.c.b16 %v7026, %v7022
  %v7059 = vpack.c.b16 %v7027, %v7023
  %7092 = vmatprep.subr.bf16.mxu0 %v7057
  %7093 = vmatpush1.bf16.msra.mxu0 %v7056
  %7094 = vmatprep.subr.bf16.mxu0 %v7053
  %7095 = vmatpush1.bf16.msra.mxu0 %v7052
  %7096 = vmatprep.subr.bf16.mxu0 %v7049
  %7097 = vmatpush1.bf16.msra.mxu0 %v7048
  %7098 = vmatprep.subr.bf16.mxu0 %v7045
  %7099 = vmatpush1.bf16.msra.mxu0 %v7044
  %7100 = vmatprep.subr.bf16.mxu0 %v7041
  %7101 = vmatpush1.bf16.msra.mxu0 %v7040
  %7102 = vmatprep.subr.bf16.mxu0 %v7037
  %7103 = vmatpush1.bf16.msra.mxu0 %v7036
  %7104 = vmatprep.subr.bf16.mxu0 %v7033
  %7105 = vmatpush1.bf16.msra.mxu0 %v7032
  %7106 = vmatprep.subr.bf16.mxu0 %v7029
  %7107 = vmatpush1.bf16.msra.mxu0 %v7028
  %7108 = vmatprep.subr.bf16.mxu0 0
  %7109 = vmatpush2.bf16.msra.mxu0 0
  %7110 = vmatprep.subr.bf16.mxu0 0
  %7111 = vmatpush2.bf16.msra.mxu0 0
  %7112 = vmatprep.subr.bf16.mxu0 0
  %7113 = vmatpush2.bf16.msra.mxu0 0
  %7114 = vmatprep.subr.bf16.mxu0 0
  %7115 = vmatpush2.bf16.msra.mxu0 0
  %7116 = vmatprep.subr.bf16.mxu0 0
  %7117 = vmatpush2.bf16.msra.mxu0 0
  %7118 = vmatprep.subr.bf16.mxu0 0
  %7119 = vmatpush2.bf16.msra.mxu0 0
  %7120 = vmatprep.subr.bf16.mxu0 0
  %7121 = vmatpush2.bf16.msra.mxu0 0
  %7122 = vmatprep.subr.bf16.mxu0 0
  %7123 = vmatpush2.bf16.msra.mxu0 0
  %7124 = vmatprep.mubr.bf16.mxu0 0
  %7125 = vmatmul.mubr.bf16.gmra.mxu0 %v6930
  %v7126 = vpop.f32.mrf.mxu0
  %v7127 = vadd.f32 0.0, %v7126
  %v7128 = vpop.f32.mrf.mxu0
  %v7129 = vadd.f32 0.0, %v7128
  %v7130 = vpop.f32.mrf.mxu0
  %v7131 = vpop.f32.mrf.mxu0
  %7132 = vdwg.mxu0
  %7133 = vmatprep.subr.bf16.mxu0 %v7059
  %7134 = vmatpush1.bf16.msra.mxu0 %v7058
  %7135 = vmatprep.subr.bf16.mxu0 %v7055
  %7136 = vmatpush1.bf16.msra.mxu0 %v7054
  %7137 = vmatprep.subr.bf16.mxu0 %v7051
  %7138 = vmatpush1.bf16.msra.mxu0 %v7050
  %7139 = vmatprep.subr.bf16.mxu0 %v7047
  %7140 = vmatpush1.bf16.msra.mxu0 %v7046
  %7141 = vmatprep.subr.bf16.mxu0 %v7043
  %7142 = vmatpush1.bf16.msra.mxu0 %v7042
  %7143 = vmatprep.subr.bf16.mxu0 %v7039
  %7144 = vmatpush1.bf16.msra.mxu0 %v7038
  %7145 = vmatprep.subr.bf16.mxu0 %v7035
  %7146 = vmatpush1.bf16.msra.mxu0 %v7034
  %7147 = vmatprep.subr.bf16.mxu0 %v7031
  %7148 = vmatpush1.bf16.msra.mxu0 %v7030
  %7149 = vmatprep.subr.bf16.mxu0 0
  %7150 = vmatpush2.bf16.msra.mxu0 0
  %7151 = vmatprep.subr.bf16.mxu0 0
  %7152 = vmatpush2.bf16.msra.mxu0 0
  %7153 = vmatprep.subr.bf16.mxu0 0
  %7154 = vmatpush2.bf16.msra.mxu0 0
  %7155 = vmatprep.subr.bf16.mxu0 0
  %7156 = vmatpush2.bf16.msra.mxu0 0
  %7157 = vmatprep.subr.bf16.mxu0 0
  %7158 = vmatpush2.bf16.msra.mxu0 0
  %7159 = vmatprep.subr.bf16.mxu0 0
  %7160 = vmatpush2.bf16.msra.mxu0 0
  %7161 = vmatprep.subr.bf16.mxu0 0
  %7162 = vmatpush2.bf16.msra.mxu0 0
  %7163 = vmatprep.subr.bf16.mxu0 0
  %7164 = vmatpush2.bf16.msra.mxu0 0
  %7165 = vmatprep.mubr.bf16.mxu0 0
  %7166 = vmatmul.mubr.bf16.gmra.mxu0 %v6930
  %v7167 = vpop.f32.mrf.mxu0
  %v7168 = vadd.f32 0.0, %v7167
  %v7169 = vpop.f32.mrf.mxu0
  %v7170 = vadd.f32 0.0, %v7169
  %v7171 = vpop.f32.mrf.mxu0
  %v7172 = vpop.f32.mrf.mxu0
  %7173 = vdwg.mxu0
  %v7178 = vrot.slane %v7127, 5
  %v7179 = vrot.slane %v7129, 5
  %v7180 = vrot.slane %v7168, 5
  %v7181 = vrot.slane %v7170, 5
  %v7182 = vrot.slane %v7127, 6
  %v7183 = vrot.slane %v7129, 6
  %v7184 = vrot.slane %v7168, 6
  %v7185 = vrot.slane %v7170, 6
  %v7186 = vrot.slane %v7127, 7
  %v7187 = vrot.slane %v7129, 7
  %v7188 = vrot.slane %v7168, 7
  %v7189 = vrot.slane %v7170, 7
  %v7190 = vrot.slane %v7127, 1
  %v7191 = vrot.slane %v7129, 1
  %v7192 = vrot.slane %v7168, 1
  %v7193 = vrot.slane %v7170, 1
  %v7194 = vrot.slane %v7127, 2
  %v7195 = vrot.slane %v7129, 2
  %v7196 = vrot.slane %v7168, 2
  %v7197 = vrot.slane %v7170, 2
  %v7198 = vrot.slane %v7127, 3
  %v7199 = vrot.slane %v7129, 3
  %v7200 = vrot.slane %v7168, 3
  %v7201 = vrot.slane %v7170, 3
  %v7202 = vrot.slane %v7127, 4
  %v7203 = vrot.slane %v7129, 4
  %v7204 = vrot.slane %v7168, 4
  %v7205 = vrot.slane %v7170, 4
  %v7238 = vadd.f32 %v392, %v7178
  %v7239 = vadd.f32 %v393, %v7179
  %v7240 = vadd.f32 %v394, %v7180
  %v7241 = vadd.f32 %v395, %v7181
  %v7242 = vadd.f32 %v400, %v7182
  %v7243 = vadd.f32 %v401, %v7183
  %v7244 = vadd.f32 %v402, %v7184
  %v7245 = vadd.f32 %v403, %v7185
  %v7246 = vadd.f32 %v408, %v7186
  %v7247 = vadd.f32 %v409, %v7187
  %v7248 = vadd.f32 %v410, %v7188
  %v7249 = vadd.f32 %v411, %v7189
  %v7250 = vadd.f32 %v416, %v7127
  %v7251 = vadd.f32 %v417, %v7129
  %v7252 = vadd.f32 %v418, %v7168
  %v7253 = vadd.f32 %v419, %v7170
  %v7254 = vadd.f32 %v424, %v7190
  %v7255 = vadd.f32 %v425, %v7191
  %v7256 = vadd.f32 %v426, %v7192
  %v7257 = vadd.f32 %v427, %v7193
  %v7258 = vadd.f32 %v432, %v7194
  %v7259 = vadd.f32 %v433, %v7195
  %v7260 = vadd.f32 %v434, %v7196
  %v7261 = vadd.f32 %v435, %v7197
  %v7262 = vadd.f32 %v440, %v7198
  %v7263 = vadd.f32 %v441, %v7199
  %v7264 = vadd.f32 %v442, %v7200
  %v7265 = vadd.f32 %v443, %v7201
  %v7266 = vadd.f32 %v448, %v7202
  %v7267 = vadd.f32 %v449, %v7203
  %v7268 = vadd.f32 %v450, %v7204
  %v7269 = vadd.f32 %v451, %v7205
  %v7270 = vmul.f32 %v7238, 0.5
  %v7271 = vmul.f32 %v7242, 0.5
  %v7272 = vmul.f32 %v7246, 0.5
  %v7273 = vmul.f32 %v7250, 0.5
  %v7274 = vmul.f32 %v7254, 0.5
  %v7275 = vmul.f32 %v7258, 0.5
  %v7276 = vmul.f32 %v7262, 0.5
  %v7277 = vmul.f32 %v7266, 0.5
  %v7278 = vtanh.pop %v7270
  %v7279 = vtanh.pop %v7271
  %v7280 = vtanh.pop %v7272
  %v7281 = vtanh.pop %v7273
  %v7282 = vtanh.pop %v7274
  %v7283 = vtanh.pop %v7275
  %v7284 = vtanh.pop %v7276
  %v7285 = vtanh.pop %v7277
  %v7286 = vmul.f32 %v7278, 0.5
  %v7287 = vmul.f32 %v7279, 0.5
  %v7288 = vmul.f32 %v7280, 0.5
  %v7289 = vmul.f32 %v7281, 0.5
  %v7290 = vmul.f32 %v7282, 0.5
  %v7291 = vmul.f32 %v7283, 0.5
  %v7292 = vmul.f32 %v7284, 0.5
  %v7293 = vmul.f32 %v7285, 0.5
  %v7294 = vadd.f32 %v7286, 0.5
  %v7295 = vadd.f32 %v7287, 0.5
  %v7296 = vadd.f32 %v7288, 0.5
  %v7297 = vadd.f32 %v7289, 0.5
  %v7298 = vadd.f32 %v7290, 0.5
  %v7299 = vadd.f32 %v7291, 0.5
  %v7300 = vadd.f32 %v7292, 0.5
  %v7301 = vadd.f32 %v7293, 0.5
  %v7302 = vmul.f32 %v7239, 0.5
  %v7303 = vmul.f32 %v7243, 0.5
  %v7304 = vmul.f32 %v7247, 0.5
  %v7305 = vmul.f32 %v7251, 0.5
  %v7306 = vmul.f32 %v7255, 0.5
  %v7307 = vmul.f32 %v7259, 0.5
  %v7308 = vmul.f32 %v7263, 0.5
  %v7309 = vmul.f32 %v7267, 0.5
  %v7310 = vtanh.pop %v7302
  %v7311 = vtanh.pop %v7303
  %v7312 = vtanh.pop %v7304
  %v7313 = vtanh.pop %v7305
  %v7314 = vtanh.pop %v7306
  %v7315 = vtanh.pop %v7307
  %v7316 = vtanh.pop %v7308
  %v7317 = vtanh.pop %v7309
  %v7318 = vmul.f32 %v7310, 0.5
  %v7319 = vmul.f32 %v7311, 0.5
  %v7320 = vmul.f32 %v7312, 0.5
  %v7321 = vmul.f32 %v7313, 0.5
  %v7322 = vmul.f32 %v7314, 0.5
  %v7323 = vmul.f32 %v7315, 0.5
  %v7324 = vmul.f32 %v7316, 0.5
  %v7325 = vmul.f32 %v7317, 0.5
  %v7326 = vadd.f32 %v7318, 0.5
  %v7327 = vadd.f32 %v7319, 0.5
  %v7328 = vadd.f32 %v7320, 0.5
  %v7329 = vadd.f32 %v7321, 0.5
  %v7330 = vadd.f32 %v7322, 0.5
  %v7331 = vadd.f32 %v7323, 0.5
  %v7332 = vadd.f32 %v7324, 0.5
  %v7333 = vadd.f32 %v7325, 0.5
  %v7334 = vmul.f32 %v7240, 0.5
  %v7335 = vmul.f32 %v7244, 0.5
  %v7336 = vmul.f32 %v7248, 0.5
  %v7337 = vmul.f32 %v7252, 0.5
  %v7338 = vmul.f32 %v7256, 0.5
  %v7339 = vmul.f32 %v7260, 0.5
  %v7340 = vmul.f32 %v7264, 0.5
  %v7341 = vmul.f32 %v7268, 0.5
  %v7342 = vtanh.pop %v7334
  %v7343 = vtanh.pop %v7335
  %v7344 = vtanh.pop %v7336
  %v7345 = vtanh.pop %v7337
  %v7346 = vtanh.pop %v7338
  %v7347 = vtanh.pop %v7339
  %v7348 = vtanh.pop %v7340
  %v7349 = vtanh.pop %v7341
  %v7350 = vmul.f32 %v7342, 0.5
  %v7351 = vmul.f32 %v7343, 0.5
  %v7352 = vmul.f32 %v7344, 0.5
  %v7353 = vmul.f32 %v7345, 0.5
  %v7354 = vmul.f32 %v7346, 0.5
  %v7355 = vmul.f32 %v7347, 0.5
  %v7356 = vmul.f32 %v7348, 0.5
  %v7357 = vmul.f32 %v7349, 0.5
  %v7358 = vadd.f32 %v7350, 0.5
  %v7359 = vadd.f32 %v7351, 0.5
  %v7360 = vadd.f32 %v7352, 0.5
  %v7361 = vadd.f32 %v7353, 0.5
  %v7362 = vadd.f32 %v7354, 0.5
  %v7363 = vadd.f32 %v7355, 0.5
  %v7364 = vadd.f32 %v7356, 0.5
  %v7365 = vadd.f32 %v7357, 0.5
  %v7366 = vtanh.pop %v7241
  %v7367 = vtanh.pop %v7245
  %v7368 = vtanh.pop %v7249
  %v7369 = vtanh.pop %v7253
  %v7370 = vtanh.pop %v7257
  %v7371 = vtanh.pop %v7261
  %v7372 = vtanh.pop %v7265
  %v7373 = vtanh.pop %v7269
  %v7382 = vrot.slane %v6828, 7
  %v7383 = vrot.slane %v6829, 7
  %v7384 = vrot.slane %v6830, 7
  %v7385 = vrot.slane %v6831, 7
  %v7386 = vrot.slane %v6832, 7
  %v7387 = vrot.slane %v6833, 7
  %v7388 = vrot.slane %v6834, 7
  %v7389 = vrot.slane %v6835, 7
  %v7398 = vmul.f32 %v7326, %v7382
  %v7399 = vmul.f32 %v7327, %v7383
  %v7400 = vmul.f32 %v7328, %v7384
  %v7401 = vmul.f32 %v7329, %v7385
  %v7402 = vmul.f32 %v7330, %v7386
  %v7403 = vmul.f32 %v7331, %v7387
  %v7404 = vmul.f32 %v7332, %v7388
  %v7405 = vmul.f32 %v7333, %v7389
  %v7406 = vmul.f32 %v7294, %v7366
  %v7407 = vmul.f32 %v7295, %v7367
  %v7408 = vmul.f32 %v7296, %v7368
  %v7409 = vmul.f32 %v7297, %v7369
  %v7410 = vmul.f32 %v7298, %v7370
  %v7411 = vmul.f32 %v7299, %v7371
  %v7412 = vmul.f32 %v7300, %v7372
  %v7413 = vmul.f32 %v7301, %v7373
  %v7414 = vadd.f32 %v7398, %v7406
  %v7415 = vadd.f32 %v7399, %v7407
  %v7416 = vadd.f32 %v7400, %v7408
  %v7417 = vadd.f32 %v7401, %v7409
  %v7418 = vadd.f32 %v7402, %v7410
  %v7419 = vadd.f32 %v7403, %v7411
  %v7420 = vadd.f32 %v7404, %v7412
  %v7421 = vadd.f32 %v7405, %v7413
  %v7422 = vtanh.pop %v7414
  %v7423 = vtanh.pop %v7415
  %v7424 = vtanh.pop %v7416
  %v7425 = vtanh.pop %v7417
  %v7426 = vtanh.pop %v7418
  %v7427 = vtanh.pop %v7419
  %v7428 = vtanh.pop %v7420
  %v7429 = vtanh.pop %v7421
  %v7430 = vmul.f32 %v7358, %v7422
  %v7431 = vmul.f32 %v7359, %v7423
  %v7432 = vmul.f32 %v7360, %v7424
  %v7433 = vmul.f32 %v7361, %v7425
  %v7434 = vmul.f32 %v7362, %v7426
  %v7435 = vmul.f32 %v7363, %v7427
  %v7436 = vmul.f32 %v7364, %v7428
  %v7437 = vmul.f32 %v7365, %v7429
  %7438 = vst [vmem:[%s6 + $0x8] sm:$0x8] %v7430
  %7439 = vst [vmem:[%s6 + $0x18] sm:$0x8] %v7431
  %7440 = vst [vmem:[%s6 + $0x28] sm:$0x8] %v7432
  %7441 = vst [vmem:[%s6 + $0x38] sm:$0x8] %v7433
  %7442 = vst [vmem:[%s6 + $0x48] sm:$0x8] %v7434
  %7443 = vst [vmem:[%s6 + $0x58] sm:$0x8] %v7435
  %7444 = vst [vmem:[%s6 + $0x68] sm:$0x8] %v7436
  %7445 = vst [vmem:[%s6 + $0x78] sm:$0x8] %v7437
  %v7446 = vpack.c.bf16 %v7430, %v7430
  %v7447 = vpack.c.bf16 %v7431, %v7431
  %v7448 = vpack.c.bf16 %v7432, %v7432
  %v7449 = vpack.c.bf16 %v7433, %v7433
  %v7450 = vpack.c.bf16 %v7434, %v7434
  %v7451 = vpack.c.bf16 %v7435, %v7435
  %v7452 = vpack.c.bf16 %v7436, %v7436
  %v7453 = vpack.c.bf16 %v7437, %v7437
  %v7454 = vld [vmem:[%s2] sm:$0xff]
  %v7455 = vld [vmem:[%s2 + $0x8] sm:$0xff]
  %v7456 = vld [vmem:[%s2 + $0x10] sm:$0xff]
  %v7457 = vld [vmem:[%s2 + $0x18] sm:$0xff]
  %v7458 = vld [vmem:[%s2 + $0x20] sm:$0xff]
  %v7459 = vld [vmem:[%s2 + $0x28] sm:$0xff]
  %v7460 = vld [vmem:[%s2 + $0x30] sm:$0xff]
  %v7461 = vld [vmem:[%s2 + $0x38] sm:$0xff]
  %v7462 = vld [vmem:[%s2 + $0x40] sm:$0xff]
  %v7463 = vld [vmem:[%s2 + $0x48] sm:$0xff]
  %v7464 = vld [vmem:[%s2 + $0x50] sm:$0xff]
  %v7465 = vld [vmem:[%s2 + $0x58] sm:$0xff]
  %v7466 = vld [vmem:[%s2 + $0x60] sm:$0xff]
  %v7467 = vld [vmem:[%s2 + $0x68] sm:$0xff]
  %v7468 = vld [vmem:[%s2 + $0x70] sm:$0xff]
  %v7469 = vld [vmem:[%s2 + $0x78] sm:$0xff]
  %v7470 = vld [vmem:[%s2 + $0x80] sm:$0xff]
  %v7471 = vld [vmem:[%s2 + $0x88] sm:$0xff]
  %v7472 = vld [vmem:[%s2 + $0x90] sm:$0xff]
  %v7473 = vld [vmem:[%s2 + $0x98] sm:$0xff]
  %v7474 = vld [vmem:[%s2 + $0xa0] sm:$0xff]
  %v7475 = vld [vmem:[%s2 + $0xa8] sm:$0xff]
  %v7476 = vld [vmem:[%s2 + $0xb0] sm:$0xff]
  %v7477 = vld [vmem:[%s2 + $0xb8] sm:$0xff]
  %v7478 = vld [vmem:[%s2 + $0xc0] sm:$0xff]
  %v7479 = vld [vmem:[%s2 + $0xc8] sm:$0xff]
  %v7480 = vld [vmem:[%s2 + $0xd0] sm:$0xff]
  %v7481 = vld [vmem:[%s2 + $0xd8] sm:$0xff]
  %v7482 = vld [vmem:[%s2 + $0xe0] sm:$0xff]
  %v7483 = vld [vmem:[%s2 + $0xe8] sm:$0xff]
  %v7484 = vld [vmem:[%s2 + $0xf0] sm:$0xff]
  %v7485 = vld [vmem:[%s2 + $0xf8] sm:$0xff]
  %v7494 = vunpack.c.l.b16 %v7446
  %v7495 = vunpack.c.l.b16 %v7447
  %v7496 = vunpack.c.l.b16 %v7448
  %v7497 = vunpack.c.l.b16 %v7449
  %v7498 = vunpack.c.l.b16 %v7450
  %v7499 = vunpack.c.l.b16 %v7451
  %v7500 = vunpack.c.l.b16 %v7452
  %v7501 = vunpack.c.l.b16 %v7453
  %v7502 = vrot.slane %v7494, 3
  %v7503 = vrot.slane %v7495, 2
  %v7504 = vsel %vm1050, %v7503, %v7502
  %v7505 = vrot.slane %v7496, 1
  %v7506 = vsel %vm1053, %v7505, %v7504
  %v7507 = vsel %vm1056, %v7497, %v7506
  %v7508 = vrot.slane %v7498, 7
  %v7509 = vsel %vm1059, %v7508, %v7507
  %v7510 = vrot.slane %v7499, 6
  %v7511 = vsel %vm1062, %v7510, %v7509
  %v7512 = vrot.slane %v7500, 5
  %v7513 = vsel %vm1065, %v7512, %v7511
  %v7514 = vrot.slane %v7501, 4
  %v7515 = vsel %vm1068, %v7514, %v7513
  %v7516 = vpack.c.b16 %v7515, %v7515
  %v7550 = vunpack.c.l.b16 %v7454
  %v7551 = vunpack.c.h.b16 %v7454
  %v7552 = vunpack.c.l.b16 %v7455
  %v7553 = vunpack.c.h.b16 %v7455
  %v7554 = vunpack.c.l.b16 %v7456
  %v7555 = vunpack.c.h.b16 %v7456
  %v7556 = vunpack.c.l.b16 %v7457
  %v7557 = vunpack.c.h.b16 %v7457
  %v7558 = vunpack.c.l.b16 %v7458
  %v7559 = vunpack.c.h.b16 %v7458
  %v7560 = vunpack.c.l.b16 %v7459
  %v7561 = vunpack.c.h.b16 %v7459
  %v7562 = vunpack.c.l.b16 %v7460
  %v7563 = vunpack.c.h.b16 %v7460
  %v7564 = vunpack.c.l.b16 %v7461
  %v7565 = vunpack.c.h.b16 %v7461
  %v7566 = vunpack.c.l.b16 %v7462
  %v7567 = vunpack.c.h.b16 %v7462
  %v7568 = vunpack.c.l.b16 %v7463
  %v7569 = vunpack.c.h.b16 %v7463
  %v7570 = vunpack.c.l.b16 %v7464
  %v7571 = vunpack.c.h.b16 %v7464
  %v7572 = vunpack.c.l.b16 %v7465
  %v7573 = vunpack.c.h.b16 %v7465
  %v7574 = vunpack.c.l.b16 %v7466
  %v7575 = vunpack.c.h.b16 %v7466
  %v7576 = vunpack.c.l.b16 %v7467
  %v7577 = vunpack.c.h.b16 %v7467
  %v7578 = vunpack.c.l.b16 %v7468
  %v7579 = vunpack.c.h.b16 %v7468
  %v7580 = vunpack.c.l.b16 %v7469
  %v7581 = vunpack.c.h.b16 %v7469
  %v7582 = vunpack.c.l.b16 %v7470
  %v7583 = vunpack.c.h.b16 %v7470
  %v7584 = vunpack.c.l.b16 %v7471
  %v7585 = vunpack.c.h.b16 %v7471
  %v7586 = vunpack.c.l.b16 %v7472
  %v7587 = vunpack.c.h.b16 %v7472
  %v7588 = vunpack.c.l.b16 %v7473
  %v7589 = vunpack.c.h.b16 %v7473
  %v7590 = vunpack.c.l.b16 %v7474
  %v7591 = vunpack.c.h.b16 %v7474
  %v7592 = vunpack.c.l.b16 %v7475
  %v7593 = vunpack.c.h.b16 %v7475
  %v7594 = vunpack.c.l.b16 %v7476
  %v7595 = vunpack.c.h.b16 %v7476
  %v7596 = vunpack.c.l.b16 %v7477
  %v7597 = vunpack.c.h.b16 %v7477
  %v7598 = vunpack.c.l.b16 %v7478
  %v7599 = vunpack.c.h.b16 %v7478
  %v7600 = vunpack.c.l.b16 %v7479
  %v7601 = vunpack.c.h.b16 %v7479
  %v7602 = vunpack.c.l.b16 %v7480
  %v7603 = vunpack.c.h.b16 %v7480
  %v7604 = vunpack.c.l.b16 %v7481
  %v7605 = vunpack.c.h.b16 %v7481
  %v7606 = vunpack.c.l.b16 %v7482
  %v7607 = vunpack.c.h.b16 %v7482
  %v7608 = vunpack.c.l.b16 %v7483
  %v7609 = vunpack.c.h.b16 %v7483
  %v7610 = vunpack.c.l.b16 %v7484
  %v7611 = vunpack.c.h.b16 %v7484
  %v7612 = vunpack.c.l.b16 %v7485
  %v7613 = vunpack.c.h.b16 %v7485
  %v7614 = vpack.c.b16 %v7554, %v7550
  %v7615 = vpack.c.b16 %v7555, %v7551
  %v7616 = vpack.c.b16 %v7556, %v7552
  %v7617 = vpack.c.b16 %v7557, %v7553
  %v7618 = vpack.c.b16 %v7562, %v7558
  %v7619 = vpack.c.b16 %v7563, %v7559
  %v7620 = vpack.c.b16 %v7564, %v7560
  %v7621 = vpack.c.b16 %v7565, %v7561
  %v7622 = vpack.c.b16 %v7570, %v7566
  %v7623 = vpack.c.b16 %v7571, %v7567
  %v7624 = vpack.c.b16 %v7572, %v7568
  %v7625 = vpack.c.b16 %v7573, %v7569
  %v7626 = vpack.c.b16 %v7578, %v7574
  %v7627 = vpack.c.b16 %v7579, %v7575
  %v7628 = vpack.c.b16 %v7580, %v7576
  %v7629 = vpack.c.b16 %v7581, %v7577
  %v7630 = vpack.c.b16 %v7586, %v7582
  %v7631 = vpack.c.b16 %v7587, %v7583
  %v7632 = vpack.c.b16 %v7588, %v7584
  %v7633 = vpack.c.b16 %v7589, %v7585
  %v7634 = vpack.c.b16 %v7594, %v7590
  %v7635 = vpack.c.b16 %v7595, %v7591
  %v7636 = vpack.c.b16 %v7596, %v7592
  %v7637 = vpack.c.b16 %v7597, %v7593
  %v7638 = vpack.c.b16 %v7602, %v7598
  %v7639 = vpack.c.b16 %v7603, %v7599
  %v7640 = vpack.c.b16 %v7604, %v7600
  %v7641 = vpack.c.b16 %v7605, %v7601
  %v7642 = vpack.c.b16 %v7610, %v7606
  %v7643 = vpack.c.b16 %v7611, %v7607
  %v7644 = vpack.c.b16 %v7612, %v7608
  %v7645 = vpack.c.b16 %v7613, %v7609
  %7678 = vmatprep.subr.bf16.mxu0 %v7643
  %7679 = vmatpush1.bf16.msra.mxu0 %v7642
  %7680 = vmatprep.subr.bf16.mxu0 %v7639
  %7681 = vmatpush1.bf16.msra.mxu0 %v7638
  %7682 = vmatprep.subr.bf16.mxu0 %v7635
  %7683 = vmatpush1.bf16.msra.mxu0 %v7634
  %7684 = vmatprep.subr.bf16.mxu0 %v7631
  %7685 = vmatpush1.bf16.msra.mxu0 %v7630
  %7686 = vmatprep.subr.bf16.mxu0 %v7627
  %7687 = vmatpush1.bf16.msra.mxu0 %v7626
  %7688 = vmatprep.subr.bf16.mxu0 %v7623
  %7689 = vmatpush1.bf16.msra.mxu0 %v7622
  %7690 = vmatprep.subr.bf16.mxu0 %v7619
  %7691 = vmatpush1.bf16.msra.mxu0 %v7618
  %7692 = vmatprep.subr.bf16.mxu0 %v7615
  %7693 = vmatpush1.bf16.msra.mxu0 %v7614
  %7694 = vmatprep.subr.bf16.mxu0 0
  %7695 = vmatpush2.bf16.msra.mxu0 0
  %7696 = vmatprep.subr.bf16.mxu0 0
  %7697 = vmatpush2.bf16.msra.mxu0 0
  %7698 = vmatprep.subr.bf16.mxu0 0
  %7699 = vmatpush2.bf16.msra.mxu0 0
  %7700 = vmatprep.subr.bf16.mxu0 0
  %7701 = vmatpush2.bf16.msra.mxu0 0
  %7702 = vmatprep.subr.bf16.mxu0 0
  %7703 = vmatpush2.bf16.msra.mxu0 0
  %7704 = vmatprep.subr.bf16.mxu0 0
  %7705 = vmatpush2.bf16.msra.mxu0 0
  %7706 = vmatprep.subr.bf16.mxu0 0
  %7707 = vmatpush2.bf16.msra.mxu0 0
  %7708 = vmatprep.subr.bf16.mxu0 0
  %7709 = vmatpush2.bf16.msra.mxu0 0
  %7710 = vmatprep.mubr.bf16.mxu0 0
  %7711 = vmatmul.mubr.bf16.gmra.mxu0 %v7516
  %v7712 = vpop.f32.mrf.mxu0
  %v7713 = vadd.f32 0.0, %v7712
  %v7714 = vpop.f32.mrf.mxu0
  %v7715 = vadd.f32 0.0, %v7714
  %v7716 = vpop.f32.mrf.mxu0
  %v7717 = vpop.f32.mrf.mxu0
  %7718 = vdwg.mxu0
  %7719 = vmatprep.subr.bf16.mxu0 %v7645
  %7720 = vmatpush1.bf16.msra.mxu0 %v7644
  %7721 = vmatprep.subr.bf16.mxu0 %v7641
  %7722 = vmatpush1.bf16.msra.mxu0 %v7640
  %7723 = vmatprep.subr.bf16.mxu0 %v7637
  %7724 = vmatpush1.bf16.msra.mxu0 %v7636
  %7725 = vmatprep.subr.bf16.mxu0 %v7633
  %7726 = vmatpush1.bf16.msra.mxu0 %v7632
  %7727 = vmatprep.subr.bf16.mxu0 %v7629
  %7728 = vmatpush1.bf16.msra.mxu0 %v7628
  %7729 = vmatprep.subr.bf16.mxu0 %v7625
  %7730 = vmatpush1.bf16.msra.mxu0 %v7624
  %7731 = vmatprep.subr.bf16.mxu0 %v7621
  %7732 = vmatpush1.bf16.msra.mxu0 %v7620
  %7733 = vmatprep.subr.bf16.mxu0 %v7617
  %7734 = vmatpush1.bf16.msra.mxu0 %v7616
  %7735 = vmatprep.subr.bf16.mxu0 0
  %7736 = vmatpush2.bf16.msra.mxu0 0
  %7737 = vmatprep.subr.bf16.mxu0 0
  %7738 = vmatpush2.bf16.msra.mxu0 0
  %7739 = vmatprep.subr.bf16.mxu0 0
  %7740 = vmatpush2.bf16.msra.mxu0 0
  %7741 = vmatprep.subr.bf16.mxu0 0
  %7742 = vmatpush2.bf16.msra.mxu0 0
  %7743 = vmatprep.subr.bf16.mxu0 0
  %7744 = vmatpush2.bf16.msra.mxu0 0
  %7745 = vmatprep.subr.bf16.mxu0 0
  %7746 = vmatpush2.bf16.msra.mxu0 0
  %7747 = vmatprep.subr.bf16.mxu0 0
  %7748 = vmatpush2.bf16.msra.mxu0 0
  %7749 = vmatprep.subr.bf16.mxu0 0
  %7750 = vmatpush2.bf16.msra.mxu0 0
  %7751 = vmatprep.mubr.bf16.mxu0 0
  %7752 = vmatmul.mubr.bf16.gmra.mxu0 %v7516
  %v7753 = vpop.f32.mrf.mxu0
  %v7754 = vadd.f32 0.0, %v7753
  %v7755 = vpop.f32.mrf.mxu0
  %v7756 = vadd.f32 0.0, %v7755
  %v7757 = vpop.f32.mrf.mxu0
  %v7758 = vpop.f32.mrf.mxu0
  %7759 = vdwg.mxu0
  %v7764 = vrot.slane %v7713, 4
  %v7765 = vrot.slane %v7715, 4
  %v7766 = vrot.slane %v7754, 4
  %v7767 = vrot.slane %v7756, 4
  %v7768 = vrot.slane %v7713, 5
  %v7769 = vrot.slane %v7715, 5
  %v7770 = vrot.slane %v7754, 5
  %v7771 = vrot.slane %v7756, 5
  %v7772 = vrot.slane %v7713, 6
  %v7773 = vrot.slane %v7715, 6
  %v7774 = vrot.slane %v7754, 6
  %v7775 = vrot.slane %v7756, 6
  %v7776 = vrot.slane %v7713, 7
  %v7777 = vrot.slane %v7715, 7
  %v7778 = vrot.slane %v7754, 7
  %v7779 = vrot.slane %v7756, 7
  %v7780 = vrot.slane %v7713, 1
  %v7781 = vrot.slane %v7715, 1
  %v7782 = vrot.slane %v7754, 1
  %v7783 = vrot.slane %v7756, 1
  %v7784 = vrot.slane %v7713, 2
  %v7785 = vrot.slane %v7715, 2
  %v7786 = vrot.slane %v7754, 2
  %v7787 = vrot.slane %v7756, 2
  %v7788 = vrot.slane %v7713, 3
  %v7789 = vrot.slane %v7715, 3
  %v7790 = vrot.slane %v7754, 3
  %v7791 = vrot.slane %v7756, 3
  %v7824 = vadd.f32 %v392, %v7764
  %v7825 = vadd.f32 %v393, %v7765
  %v7826 = vadd.f32 %v394, %v7766
  %v7827 = vadd.f32 %v395, %v7767
  %v7828 = vadd.f32 %v400, %v7768
  %v7829 = vadd.f32 %v401, %v7769
  %v7830 = vadd.f32 %v402, %v7770
  %v7831 = vadd.f32 %v403, %v7771
  %v7832 = vadd.f32 %v408, %v7772
  %v7833 = vadd.f32 %v409, %v7773
  %v7834 = vadd.f32 %v410, %v7774
  %v7835 = vadd.f32 %v411, %v7775
  %v7836 = vadd.f32 %v416, %v7776
  %v7837 = vadd.f32 %v417, %v7777
  %v7838 = vadd.f32 %v418, %v7778
  %v7839 = vadd.f32 %v419, %v7779
  %v7840 = vadd.f32 %v424, %v7713
  %v7841 = vadd.f32 %v425, %v7715
  %v7842 = vadd.f32 %v426, %v7754
  %v7843 = vadd.f32 %v427, %v7756
  %v7844 = vadd.f32 %v432, %v7780
  %v7845 = vadd.f32 %v433, %v7781
  %v7846 = vadd.f32 %v434, %v7782
  %v7847 = vadd.f32 %v435, %v7783
  %v7848 = vadd.f32 %v440, %v7784
  %v7849 = vadd.f32 %v441, %v7785
  %v7850 = vadd.f32 %v442, %v7786
  %v7851 = vadd.f32 %v443, %v7787
  %v7852 = vadd.f32 %v448, %v7788
  %v7853 = vadd.f32 %v449, %v7789
  %v7854 = vadd.f32 %v450, %v7790
  %v7855 = vadd.f32 %v451, %v7791
  %v7856 = vmul.f32 %v7824, 0.5
  %v7857 = vmul.f32 %v7828, 0.5
  %v7858 = vmul.f32 %v7832, 0.5
  %v7859 = vmul.f32 %v7836, 0.5
  %v7860 = vmul.f32 %v7840, 0.5
  %v7861 = vmul.f32 %v7844, 0.5
  %v7862 = vmul.f32 %v7848, 0.5
  %v7863 = vmul.f32 %v7852, 0.5
  %v7864 = vtanh.pop %v7856
  %v7865 = vtanh.pop %v7857
  %v7866 = vtanh.pop %v7858
  %v7867 = vtanh.pop %v7859
  %v7868 = vtanh.pop %v7860
  %v7869 = vtanh.pop %v7861
  %v7870 = vtanh.pop %v7862
  %v7871 = vtanh.pop %v7863
  %v7872 = vmul.f32 %v7864, 0.5
  %v7873 = vmul.f32 %v7865, 0.5
  %v7874 = vmul.f32 %v7866, 0.5
  %v7875 = vmul.f32 %v7867, 0.5
  %v7876 = vmul.f32 %v7868, 0.5
  %v7877 = vmul.f32 %v7869, 0.5
  %v7878 = vmul.f32 %v7870, 0.5
  %v7879 = vmul.f32 %v7871, 0.5
  %v7880 = vadd.f32 %v7872, 0.5
  %v7881 = vadd.f32 %v7873, 0.5
  %v7882 = vadd.f32 %v7874, 0.5
  %v7883 = vadd.f32 %v7875, 0.5
  %v7884 = vadd.f32 %v7876, 0.5
  %v7885 = vadd.f32 %v7877, 0.5
  %v7886 = vadd.f32 %v7878, 0.5
  %v7887 = vadd.f32 %v7879, 0.5
  %v7888 = vmul.f32 %v7825, 0.5
  %v7889 = vmul.f32 %v7829, 0.5
  %v7890 = vmul.f32 %v7833, 0.5
  %v7891 = vmul.f32 %v7837, 0.5
  %v7892 = vmul.f32 %v7841, 0.5
  %v7893 = vmul.f32 %v7845, 0.5
  %v7894 = vmul.f32 %v7849, 0.5
  %v7895 = vmul.f32 %v7853, 0.5
  %v7896 = vtanh.pop %v7888
  %v7897 = vtanh.pop %v7889
  %v7898 = vtanh.pop %v7890
  %v7899 = vtanh.pop %v7891
  %v7900 = vtanh.pop %v7892
  %v7901 = vtanh.pop %v7893
  %v7902 = vtanh.pop %v7894
  %v7903 = vtanh.pop %v7895
  %v7904 = vmul.f32 %v7896, 0.5
  %v7905 = vmul.f32 %v7897, 0.5
  %v7906 = vmul.f32 %v7898, 0.5
  %v7907 = vmul.f32 %v7899, 0.5
  %v7908 = vmul.f32 %v7900, 0.5
  %v7909 = vmul.f32 %v7901, 0.5
  %v7910 = vmul.f32 %v7902, 0.5
  %v7911 = vmul.f32 %v7903, 0.5
  %v7912 = vadd.f32 %v7904, 0.5
  %v7913 = vadd.f32 %v7905, 0.5
  %v7914 = vadd.f32 %v7906, 0.5
  %v7915 = vadd.f32 %v7907, 0.5
  %v7916 = vadd.f32 %v7908, 0.5
  %v7917 = vadd.f32 %v7909, 0.5
  %v7918 = vadd.f32 %v7910, 0.5
  %v7919 = vadd.f32 %v7911, 0.5
  %v7920 = vmul.f32 %v7826, 0.5
  %v7921 = vmul.f32 %v7830, 0.5
  %v7922 = vmul.f32 %v7834, 0.5
  %v7923 = vmul.f32 %v7838, 0.5
  %v7924 = vmul.f32 %v7842, 0.5
  %v7925 = vmul.f32 %v7846, 0.5
  %v7926 = vmul.f32 %v7850, 0.5
  %v7927 = vmul.f32 %v7854, 0.5
  %v7928 = vtanh.pop %v7920
  %v7929 = vtanh.pop %v7921
  %v7930 = vtanh.pop %v7922
  %v7931 = vtanh.pop %v7923
  %v7932 = vtanh.pop %v7924
  %v7933 = vtanh.pop %v7925
  %v7934 = vtanh.pop %v7926
  %v7935 = vtanh.pop %v7927
  %v7936 = vmul.f32 %v7928, 0.5
  %v7937 = vmul.f32 %v7929, 0.5
  %v7938 = vmul.f32 %v7930, 0.5
  %v7939 = vmul.f32 %v7931, 0.5
  %v7940 = vmul.f32 %v7932, 0.5
  %v7941 = vmul.f32 %v7933, 0.5
  %v7942 = vmul.f32 %v7934, 0.5
  %v7943 = vmul.f32 %v7935, 0.5
  %v7944 = vadd.f32 %v7936, 0.5
  %v7945 = vadd.f32 %v7937, 0.5
  %v7946 = vadd.f32 %v7938, 0.5
  %v7947 = vadd.f32 %v7939, 0.5
  %v7948 = vadd.f32 %v7940, 0.5
  %v7949 = vadd.f32 %v7941, 0.5
  %v7950 = vadd.f32 %v7942, 0.5
  %v7951 = vadd.f32 %v7943, 0.5
  %v7952 = vtanh.pop %v7827
  %v7953 = vtanh.pop %v7831
  %v7954 = vtanh.pop %v7835
  %v7955 = vtanh.pop %v7839
  %v7956 = vtanh.pop %v7843
  %v7957 = vtanh.pop %v7847
  %v7958 = vtanh.pop %v7851
  %v7959 = vtanh.pop %v7855
  %v7968 = vrot.slane %v7414, 7
  %v7969 = vrot.slane %v7415, 7
  %v7970 = vrot.slane %v7416, 7
  %v7971 = vrot.slane %v7417, 7
  %v7972 = vrot.slane %v7418, 7
  %v7973 = vrot.slane %v7419, 7
  %v7974 = vrot.slane %v7420, 7
  %v7975 = vrot.slane %v7421, 7
  %v7984 = vmul.f32 %v7912, %v7968
  %v7985 = vmul.f32 %v7913, %v7969
  %v7986 = vmul.f32 %v7914, %v7970
  %v7987 = vmul.f32 %v7915, %v7971
  %v7988 = vmul.f32 %v7916, %v7972
  %v7989 = vmul.f32 %v7917, %v7973
  %v7990 = vmul.f32 %v7918, %v7974
  %v7991 = vmul.f32 %v7919, %v7975
  %v7992 = vmul.f32 %v7880, %v7952
  %v7993 = vmul.f32 %v7881, %v7953
  %v7994 = vmul.f32 %v7882, %v7954
  %v7995 = vmul.f32 %v7883, %v7955
  %v7996 = vmul.f32 %v7884, %v7956
  %v7997 = vmul.f32 %v7885, %v7957
  %v7998 = vmul.f32 %v7886, %v7958
  %v7999 = vmul.f32 %v7887, %v7959
  %v8000 = vadd.f32 %v7984, %v7992
  %v8001 = vadd.f32 %v7985, %v7993
  %v8002 = vadd.f32 %v7986, %v7994
  %v8003 = vadd.f32 %v7987, %v7995
  %v8004 = vadd.f32 %v7988, %v7996
  %v8005 = vadd.f32 %v7989, %v7997
  %v8006 = vadd.f32 %v7990, %v7998
  %v8007 = vadd.f32 %v7991, %v7999
  %v8008 = vtanh.pop %v8000
  %v8009 = vtanh.pop %v8001
  %v8010 = vtanh.pop %v8002
  %v8011 = vtanh.pop %v8003
  %v8012 = vtanh.pop %v8004
  %v8013 = vtanh.pop %v8005
  %v8014 = vtanh.pop %v8006
  %v8015 = vtanh.pop %v8007
  %v8016 = vmul.f32 %v7944, %v8008
  %v8017 = vmul.f32 %v7945, %v8009
  %v8018 = vmul.f32 %v7946, %v8010
  %v8019 = vmul.f32 %v7947, %v8011
  %v8020 = vmul.f32 %v7948, %v8012
  %v8021 = vmul.f32 %v7949, %v8013
  %v8022 = vmul.f32 %v7950, %v8014
  %v8023 = vmul.f32 %v7951, %v8015
  %8024 = vst [vmem:[%s6 + $0x8] sm:$0x10] %v8016
  %8025 = vst [vmem:[%s6 + $0x18] sm:$0x10] %v8017
  %8026 = vst [vmem:[%s6 + $0x28] sm:$0x10] %v8018
  %8027 = vst [vmem:[%s6 + $0x38] sm:$0x10] %v8019
  %8028 = vst [vmem:[%s6 + $0x48] sm:$0x10] %v8020
  %8029 = vst [vmem:[%s6 + $0x58] sm:$0x10] %v8021
  %8030 = vst [vmem:[%s6 + $0x68] sm:$0x10] %v8022
  %8031 = vst [vmem:[%s6 + $0x78] sm:$0x10] %v8023
  %v8032 = vpack.c.bf16 %v8016, %v8016
  %v8033 = vpack.c.bf16 %v8017, %v8017
  %v8034 = vpack.c.bf16 %v8018, %v8018
  %v8035 = vpack.c.bf16 %v8019, %v8019
  %v8036 = vpack.c.bf16 %v8020, %v8020
  %v8037 = vpack.c.bf16 %v8021, %v8021
  %v8038 = vpack.c.bf16 %v8022, %v8022
  %v8039 = vpack.c.bf16 %v8023, %v8023
  %v8040 = vld [vmem:[%s2] sm:$0xff]
  %v8041 = vld [vmem:[%s2 + $0x8] sm:$0xff]
  %v8042 = vld [vmem:[%s2 + $0x10] sm:$0xff]
  %v8043 = vld [vmem:[%s2 + $0x18] sm:$0xff]
  %v8044 = vld [vmem:[%s2 + $0x20] sm:$0xff]
  %v8045 = vld [vmem:[%s2 + $0x28] sm:$0xff]
  %v8046 = vld [vmem:[%s2 + $0x30] sm:$0xff]
  %v8047 = vld [vmem:[%s2 + $0x38] sm:$0xff]
  %v8048 = vld [vmem:[%s2 + $0x40] sm:$0xff]
  %v8049 = vld [vmem:[%s2 + $0x48] sm:$0xff]
  %v8050 = vld [vmem:[%s2 + $0x50] sm:$0xff]
  %v8051 = vld [vmem:[%s2 + $0x58] sm:$0xff]
  %v8052 = vld [vmem:[%s2 + $0x60] sm:$0xff]
  %v8053 = vld [vmem:[%s2 + $0x68] sm:$0xff]
  %v8054 = vld [vmem:[%s2 + $0x70] sm:$0xff]
  %v8055 = vld [vmem:[%s2 + $0x78] sm:$0xff]
  %v8056 = vld [vmem:[%s2 + $0x80] sm:$0xff]
  %v8057 = vld [vmem:[%s2 + $0x88] sm:$0xff]
  %v8058 = vld [vmem:[%s2 + $0x90] sm:$0xff]
  %v8059 = vld [vmem:[%s2 + $0x98] sm:$0xff]
  %v8060 = vld [vmem:[%s2 + $0xa0] sm:$0xff]
  %v8061 = vld [vmem:[%s2 + $0xa8] sm:$0xff]
  %v8062 = vld [vmem:[%s2 + $0xb0] sm:$0xff]
  %v8063 = vld [vmem:[%s2 + $0xb8] sm:$0xff]
  %v8064 = vld [vmem:[%s2 + $0xc0] sm:$0xff]
  %v8065 = vld [vmem:[%s2 + $0xc8] sm:$0xff]
  %v8066 = vld [vmem:[%s2 + $0xd0] sm:$0xff]
  %v8067 = vld [vmem:[%s2 + $0xd8] sm:$0xff]
  %v8068 = vld [vmem:[%s2 + $0xe0] sm:$0xff]
  %v8069 = vld [vmem:[%s2 + $0xe8] sm:$0xff]
  %v8070 = vld [vmem:[%s2 + $0xf0] sm:$0xff]
  %v8071 = vld [vmem:[%s2 + $0xf8] sm:$0xff]
  %v8080 = vunpack.c.l.b16 %v8032
  %v8081 = vunpack.c.l.b16 %v8033
  %v8082 = vunpack.c.l.b16 %v8034
  %v8083 = vunpack.c.l.b16 %v8035
  %v8084 = vunpack.c.l.b16 %v8036
  %v8085 = vunpack.c.l.b16 %v8037
  %v8086 = vunpack.c.l.b16 %v8038
  %v8087 = vunpack.c.l.b16 %v8039
  %v8088 = vrot.slane %v8080, 4
  %v8089 = vrot.slane %v8081, 3
  %v8090 = vsel %vm1050, %v8089, %v8088
  %v8091 = vrot.slane %v8082, 2
  %v8092 = vsel %vm1053, %v8091, %v8090
  %v8093 = vrot.slane %v8083, 1
  %v8094 = vsel %vm1056, %v8093, %v8092
  %v8095 = vsel %vm1059, %v8084, %v8094
  %v8096 = vrot.slane %v8085, 7
  %v8097 = vsel %vm1062, %v8096, %v8095
  %v8098 = vrot.slane %v8086, 6
  %v8099 = vsel %vm1065, %v8098, %v8097
  %v8100 = vrot.slane %v8087, 5
  %v8101 = vsel %vm1068, %v8100, %v8099
  %v8102 = vpack.c.b16 %v8101, %v8101
  %v8136 = vunpack.c.l.b16 %v8040
  %v8137 = vunpack.c.h.b16 %v8040
  %v8138 = vunpack.c.l.b16 %v8041
  %v8139 = vunpack.c.h.b16 %v8041
  %v8140 = vunpack.c.l.b16 %v8042
  %v8141 = vunpack.c.h.b16 %v8042
  %v8142 = vunpack.c.l.b16 %v8043
  %v8143 = vunpack.c.h.b16 %v8043
  %v8144 = vunpack.c.l.b16 %v8044
  %v8145 = vunpack.c.h.b16 %v8044
  %v8146 = vunpack.c.l.b16 %v8045
  %v8147 = vunpack.c.h.b16 %v8045
  %v8148 = vunpack.c.l.b16 %v8046
  %v8149 = vunpack.c.h.b16 %v8046
  %v8150 = vunpack.c.l.b16 %v8047
  %v8151 = vunpack.c.h.b16 %v8047
  %v8152 = vunpack.c.l.b16 %v8048
  %v8153 = vunpack.c.h.b16 %v8048
  %v8154 = vunpack.c.l.b16 %v8049
  %v8155 = vunpack.c.h.b16 %v8049
  %v8156 = vunpack.c.l.b16 %v8050
  %v8157 = vunpack.c.h.b16 %v8050
  %v8158 = vunpack.c.l.b16 %v8051
  %v8159 = vunpack.c.h.b16 %v8051
  %v8160 = vunpack.c.l.b16 %v8052
  %v8161 = vunpack.c.h.b16 %v8052
  %v8162 = vunpack.c.l.b16 %v8053
  %v8163 = vunpack.c.h.b16 %v8053
  %v8164 = vunpack.c.l.b16 %v8054
  %v8165 = vunpack.c.h.b16 %v8054
  %v8166 = vunpack.c.l.b16 %v8055
  %v8167 = vunpack.c.h.b16 %v8055
  %v8168 = vunpack.c.l.b16 %v8056
  %v8169 = vunpack.c.h.b16 %v8056
  %v8170 = vunpack.c.l.b16 %v8057
  %v8171 = vunpack.c.h.b16 %v8057
  %v8172 = vunpack.c.l.b16 %v8058
  %v8173 = vunpack.c.h.b16 %v8058
  %v8174 = vunpack.c.l.b16 %v8059
  %v8175 = vunpack.c.h.b16 %v8059
  %v8176 = vunpack.c.l.b16 %v8060
  %v8177 = vunpack.c.h.b16 %v8060
  %v8178 = vunpack.c.l.b16 %v8061
  %v8179 = vunpack.c.h.b16 %v8061
  %v8180 = vunpack.c.l.b16 %v8062
  %v8181 = vunpack.c.h.b16 %v8062
  %v8182 = vunpack.c.l.b16 %v8063
  %v8183 = vunpack.c.h.b16 %v8063
  %v8184 = vunpack.c.l.b16 %v8064
  %v8185 = vunpack.c.h.b16 %v8064
  %v8186 = vunpack.c.l.b16 %v8065
  %v8187 = vunpack.c.h.b16 %v8065
  %v8188 = vunpack.c.l.b16 %v8066
  %v8189 = vunpack.c.h.b16 %v8066
  %v8190 = vunpack.c.l.b16 %v8067
  %v8191 = vunpack.c.h.b16 %v8067
  %v8192 = vunpack.c.l.b16 %v8068
  %v8193 = vunpack.c.h.b16 %v8068
  %v8194 = vunpack.c.l.b16 %v8069
  %v8195 = vunpack.c.h.b16 %v8069
  %v8196 = vunpack.c.l.b16 %v8070
  %v8197 = vunpack.c.h.b16 %v8070
  %v8198 = vunpack.c.l.b16 %v8071
  %v8199 = vunpack.c.h.b16 %v8071
  %v8200 = vpack.c.b16 %v8140, %v8136
  %v8201 = vpack.c.b16 %v8141, %v8137
  %v8202 = vpack.c.b16 %v8142, %v8138
  %v8203 = vpack.c.b16 %v8143, %v8139
  %v8204 = vpack.c.b16 %v8148, %v8144
  %v8205 = vpack.c.b16 %v8149, %v8145
  %v8206 = vpack.c.b16 %v8150, %v8146
  %v8207 = vpack.c.b16 %v8151, %v8147
  %v8208 = vpack.c.b16 %v8156, %v8152
  %v8209 = vpack.c.b16 %v8157, %v8153
  %v8210 = vpack.c.b16 %v8158, %v8154
  %v8211 = vpack.c.b16 %v8159, %v8155
  %v8212 = vpack.c.b16 %v8164, %v8160
  %v8213 = vpack.c.b16 %v8165, %v8161
  %v8214 = vpack.c.b16 %v8166, %v8162
  %v8215 = vpack.c.b16 %v8167, %v8163
  %v8216 = vpack.c.b16 %v8172, %v8168
  %v8217 = vpack.c.b16 %v8173, %v8169
  %v8218 = vpack.c.b16 %v8174, %v8170
  %v8219 = vpack.c.b16 %v8175, %v8171
  %v8220 = vpack.c.b16 %v8180, %v8176
  %v8221 = vpack.c.b16 %v8181, %v8177
  %v8222 = vpack.c.b16 %v8182, %v8178
  %v8223 = vpack.c.b16 %v8183, %v8179
  %v8224 = vpack.c.b16 %v8188, %v8184
  %v8225 = vpack.c.b16 %v8189, %v8185
  %v8226 = vpack.c.b16 %v8190, %v8186
  %v8227 = vpack.c.b16 %v8191, %v8187
  %v8228 = vpack.c.b16 %v8196, %v8192
  %v8229 = vpack.c.b16 %v8197, %v8193
  %v8230 = vpack.c.b16 %v8198, %v8194
  %v8231 = vpack.c.b16 %v8199, %v8195
  %8264 = vmatprep.subr.bf16.mxu0 %v8229
  %8265 = vmatpush1.bf16.msra.mxu0 %v8228
  %8266 = vmatprep.subr.bf16.mxu0 %v8225
  %8267 = vmatpush1.bf16.msra.mxu0 %v8224
  %8268 = vmatprep.subr.bf16.mxu0 %v8221
  %8269 = vmatpush1.bf16.msra.mxu0 %v8220
  %8270 = vmatprep.subr.bf16.mxu0 %v8217
  %8271 = vmatpush1.bf16.msra.mxu0 %v8216
  %8272 = vmatprep.subr.bf16.mxu0 %v8213
  %8273 = vmatpush1.bf16.msra.mxu0 %v8212
  %8274 = vmatprep.subr.bf16.mxu0 %v8209
  %8275 = vmatpush1.bf16.msra.mxu0 %v8208
  %8276 = vmatprep.subr.bf16.mxu0 %v8205
  %8277 = vmatpush1.bf16.msra.mxu0 %v8204
  %8278 = vmatprep.subr.bf16.mxu0 %v8201
  %8279 = vmatpush1.bf16.msra.mxu0 %v8200
  %8280 = vmatprep.subr.bf16.mxu0 0
  %8281 = vmatpush2.bf16.msra.mxu0 0
  %8282 = vmatprep.subr.bf16.mxu0 0
  %8283 = vmatpush2.bf16.msra.mxu0 0
  %8284 = vmatprep.subr.bf16.mxu0 0
  %8285 = vmatpush2.bf16.msra.mxu0 0
  %8286 = vmatprep.subr.bf16.mxu0 0
  %8287 = vmatpush2.bf16.msra.mxu0 0
  %8288 = vmatprep.subr.bf16.mxu0 0
  %8289 = vmatpush2.bf16.msra.mxu0 0
  %8290 = vmatprep.subr.bf16.mxu0 0
  %8291 = vmatpush2.bf16.msra.mxu0 0
  %8292 = vmatprep.subr.bf16.mxu0 0
  %8293 = vmatpush2.bf16.msra.mxu0 0
  %8294 = vmatprep.subr.bf16.mxu0 0
  %8295 = vmatpush2.bf16.msra.mxu0 0
  %8296 = vmatprep.mubr.bf16.mxu0 0
  %8297 = vmatmul.mubr.bf16.gmra.mxu0 %v8102
  %v8298 = vpop.f32.mrf.mxu0
  %v8299 = vadd.f32 0.0, %v8298
  %v8300 = vpop.f32.mrf.mxu0
  %v8301 = vadd.f32 0.0, %v8300
  %v8302 = vpop.f32.mrf.mxu0
  %v8303 = vpop.f32.mrf.mxu0
  %8304 = vdwg.mxu0
  %8305 = vmatprep.subr.bf16.mxu0 %v8231
  %8306 = vmatpush1.bf16.msra.mxu0 %v8230
  %8307 = vmatprep.subr.bf16.mxu0 %v8227
  %8308 = vmatpush1.bf16.msra.mxu0 %v8226
  %8309 = vmatprep.subr.bf16.mxu0 %v8223
  %8310 = vmatpush1.bf16.msra.mxu0 %v8222
  %8311 = vmatprep.subr.bf16.mxu0 %v8219
  %8312 = vmatpush1.bf16.msra.mxu0 %v8218
  %8313 = vmatprep.subr.bf16.mxu0 %v8215
  %8314 = vmatpush1.bf16.msra.mxu0 %v8214
  %8315 = vmatprep.subr.bf16.mxu0 %v8211
  %8316 = vmatpush1.bf16.msra.mxu0 %v8210
  %8317 = vmatprep.subr.bf16.mxu0 %v8207
  %8318 = vmatpush1.bf16.msra.mxu0 %v8206
  %8319 = vmatprep.subr.bf16.mxu0 %v8203
  %8320 = vmatpush1.bf16.msra.mxu0 %v8202
  %8321 = vmatprep.subr.bf16.mxu0 0
  %8322 = vmatpush2.bf16.msra.mxu0 0
  %8323 = vmatprep.subr.bf16.mxu0 0
  %8324 = vmatpush2.bf16.msra.mxu0 0
  %8325 = vmatprep.subr.bf16.mxu0 0
  %8326 = vmatpush2.bf16.msra.mxu0 0
  %8327 = vmatprep.subr.bf16.mxu0 0
  %8328 = vmatpush2.bf16.msra.mxu0 0
  %8329 = vmatprep.subr.bf16.mxu0 0
  %8330 = vmatpush2.bf16.msra.mxu0 0
  %8331 = vmatprep.subr.bf16.mxu0 0
  %8332 = vmatpush2.bf16.msra.mxu0 0
  %8333 = vmatprep.subr.bf16.mxu0 0
  %8334 = vmatpush2.bf16.msra.mxu0 0
  %8335 = vmatprep.subr.bf16.mxu0 0
  %8336 = vmatpush2.bf16.msra.mxu0 0
  %8337 = vmatprep.mubr.bf16.mxu0 0
  %8338 = vmatmul.mubr.bf16.gmra.mxu0 %v8102
  %v8339 = vpop.f32.mrf.mxu0
  %v8340 = vadd.f32 0.0, %v8339
  %v8341 = vpop.f32.mrf.mxu0
  %v8342 = vadd.f32 0.0, %v8341
  %v8343 = vpop.f32.mrf.mxu0
  %v8344 = vpop.f32.mrf.mxu0
  %8345 = vdwg.mxu0
  %v8350 = vrot.slane %v8299, 3
  %v8351 = vrot.slane %v8301, 3
  %v8352 = vrot.slane %v8340, 3
  %v8353 = vrot.slane %v8342, 3
  %v8354 = vrot.slane %v8299, 4
  %v8355 = vrot.slane %v8301, 4
  %v8356 = vrot.slane %v8340, 4
  %v8357 = vrot.slane %v8342, 4
  %v8358 = vrot.slane %v8299, 5
  %v8359 = vrot.slane %v8301, 5
  %v8360 = vrot.slane %v8340, 5
  %v8361 = vrot.slane %v8342, 5
  %v8362 = vrot.slane %v8299, 6
  %v8363 = vrot.slane %v8301, 6
  %v8364 = vrot.slane %v8340, 6
  %v8365 = vrot.slane %v8342, 6
  %v8366 = vrot.slane %v8299, 7
  %v8367 = vrot.slane %v8301, 7
  %v8368 = vrot.slane %v8340, 7
  %v8369 = vrot.slane %v8342, 7
  %v8370 = vrot.slane %v8299, 1
  %v8371 = vrot.slane %v8301, 1
  %v8372 = vrot.slane %v8340, 1
  %v8373 = vrot.slane %v8342, 1
  %v8374 = vrot.slane %v8299, 2
  %v8375 = vrot.slane %v8301, 2
  %v8376 = vrot.slane %v8340, 2
  %v8377 = vrot.slane %v8342, 2
  %v8410 = vadd.f32 %v392, %v8350
  %v8411 = vadd.f32 %v393, %v8351
  %v8412 = vadd.f32 %v394, %v8352
  %v8413 = vadd.f32 %v395, %v8353
  %v8414 = vadd.f32 %v400, %v8354
  %v8415 = vadd.f32 %v401, %v8355
  %v8416 = vadd.f32 %v402, %v8356
  %v8417 = vadd.f32 %v403, %v8357
  %v8418 = vadd.f32 %v408, %v8358
  %v8419 = vadd.f32 %v409, %v8359
  %v8420 = vadd.f32 %v410, %v8360
  %v8421 = vadd.f32 %v411, %v8361
  %v8422 = vadd.f32 %v416, %v8362
  %v8423 = vadd.f32 %v417, %v8363
  %v8424 = vadd.f32 %v418, %v8364
  %v8425 = vadd.f32 %v419, %v8365
  %v8426 = vadd.f32 %v424, %v8366
  %v8427 = vadd.f32 %v425, %v8367
  %v8428 = vadd.f32 %v426, %v8368
  %v8429 = vadd.f32 %v427, %v8369
  %v8430 = vadd.f32 %v432, %v8299
  %v8431 = vadd.f32 %v433, %v8301
  %v8432 = vadd.f32 %v434, %v8340
  %v8433 = vadd.f32 %v435, %v8342
  %v8434 = vadd.f32 %v440, %v8370
  %v8435 = vadd.f32 %v441, %v8371
  %v8436 = vadd.f32 %v442, %v8372
  %v8437 = vadd.f32 %v443, %v8373
  %v8438 = vadd.f32 %v448, %v8374
  %v8439 = vadd.f32 %v449, %v8375
  %v8440 = vadd.f32 %v450, %v8376
  %v8441 = vadd.f32 %v451, %v8377
  %v8442 = vmul.f32 %v8410, 0.5
  %v8443 = vmul.f32 %v8414, 0.5
  %v8444 = vmul.f32 %v8418, 0.5
  %v8445 = vmul.f32 %v8422, 0.5
  %v8446 = vmul.f32 %v8426, 0.5
  %v8447 = vmul.f32 %v8430, 0.5
  %v8448 = vmul.f32 %v8434, 0.5
  %v8449 = vmul.f32 %v8438, 0.5
  %v8450 = vtanh.pop %v8442
  %v8451 = vtanh.pop %v8443
  %v8452 = vtanh.pop %v8444
  %v8453 = vtanh.pop %v8445
  %v8454 = vtanh.pop %v8446
  %v8455 = vtanh.pop %v8447
  %v8456 = vtanh.pop %v8448
  %v8457 = vtanh.pop %v8449
  %v8458 = vmul.f32 %v8450, 0.5
  %v8459 = vmul.f32 %v8451, 0.5
  %v8460 = vmul.f32 %v8452, 0.5
  %v8461 = vmul.f32 %v8453, 0.5
  %v8462 = vmul.f32 %v8454, 0.5
  %v8463 = vmul.f32 %v8455, 0.5
  %v8464 = vmul.f32 %v8456, 0.5
  %v8465 = vmul.f32 %v8457, 0.5
  %v8466 = vadd.f32 %v8458, 0.5
  %v8467 = vadd.f32 %v8459, 0.5
  %v8468 = vadd.f32 %v8460, 0.5
  %v8469 = vadd.f32 %v8461, 0.5
  %v8470 = vadd.f32 %v8462, 0.5
  %v8471 = vadd.f32 %v8463, 0.5
  %v8472 = vadd.f32 %v8464, 0.5
  %v8473 = vadd.f32 %v8465, 0.5
  %v8474 = vmul.f32 %v8411, 0.5
  %v8475 = vmul.f32 %v8415, 0.5
  %v8476 = vmul.f32 %v8419, 0.5
  %v8477 = vmul.f32 %v8423, 0.5
  %v8478 = vmul.f32 %v8427, 0.5
  %v8479 = vmul.f32 %v8431, 0.5
  %v8480 = vmul.f32 %v8435, 0.5
  %v8481 = vmul.f32 %v8439, 0.5
  %v8482 = vtanh.pop %v8474
  %v8483 = vtanh.pop %v8475
  %v8484 = vtanh.pop %v8476
  %v8485 = vtanh.pop %v8477
  %v8486 = vtanh.pop %v8478
  %v8487 = vtanh.pop %v8479
  %v8488 = vtanh.pop %v8480
  %v8489 = vtanh.pop %v8481
  %v8490 = vmul.f32 %v8482, 0.5
  %v8491 = vmul.f32 %v8483, 0.5
  %v8492 = vmul.f32 %v8484, 0.5
  %v8493 = vmul.f32 %v8485, 0.5
  %v8494 = vmul.f32 %v8486, 0.5
  %v8495 = vmul.f32 %v8487, 0.5
  %v8496 = vmul.f32 %v8488, 0.5
  %v8497 = vmul.f32 %v8489, 0.5
  %v8498 = vadd.f32 %v8490, 0.5
  %v8499 = vadd.f32 %v8491, 0.5
  %v8500 = vadd.f32 %v8492, 0.5
  %v8501 = vadd.f32 %v8493, 0.5
  %v8502 = vadd.f32 %v8494, 0.5
  %v8503 = vadd.f32 %v8495, 0.5
  %v8504 = vadd.f32 %v8496, 0.5
  %v8505 = vadd.f32 %v8497, 0.5
  %v8506 = vmul.f32 %v8412, 0.5
  %v8507 = vmul.f32 %v8416, 0.5
  %v8508 = vmul.f32 %v8420, 0.5
  %v8509 = vmul.f32 %v8424, 0.5
  %v8510 = vmul.f32 %v8428, 0.5
  %v8511 = vmul.f32 %v8432, 0.5
  %v8512 = vmul.f32 %v8436, 0.5
  %v8513 = vmul.f32 %v8440, 0.5
  %v8514 = vtanh.pop %v8506
  %v8515 = vtanh.pop %v8507
  %v8516 = vtanh.pop %v8508
  %v8517 = vtanh.pop %v8509
  %v8518 = vtanh.pop %v8510
  %v8519 = vtanh.pop %v8511
  %v8520 = vtanh.pop %v8512
  %v8521 = vtanh.pop %v8513
  %v8522 = vmul.f32 %v8514, 0.5
  %v8523 = vmul.f32 %v8515, 0.5
  %v8524 = vmul.f32 %v8516, 0.5
  %v8525 = vmul.f32 %v8517, 0.5
  %v8526 = vmul.f32 %v8518, 0.5
  %v8527 = vmul.f32 %v8519, 0.5
  %v8528 = vmul.f32 %v8520, 0.5
  %v8529 = vmul.f32 %v8521, 0.5
  %v8530 = vadd.f32 %v8522, 0.5
  %v8531 = vadd.f32 %v8523, 0.5
  %v8532 = vadd.f32 %v8524, 0.5
  %v8533 = vadd.f32 %v8525, 0.5
  %v8534 = vadd.f32 %v8526, 0.5
  %v8535 = vadd.f32 %v8527, 0.5
  %v8536 = vadd.f32 %v8528, 0.5
  %v8537 = vadd.f32 %v8529, 0.5
  %v8538 = vtanh.pop %v8413
  %v8539 = vtanh.pop %v8417
  %v8540 = vtanh.pop %v8421
  %v8541 = vtanh.pop %v8425
  %v8542 = vtanh.pop %v8429
  %v8543 = vtanh.pop %v8433
  %v8544 = vtanh.pop %v8437
  %v8545 = vtanh.pop %v8441
  %v8554 = vrot.slane %v8000, 7
  %v8555 = vrot.slane %v8001, 7
  %v8556 = vrot.slane %v8002, 7
  %v8557 = vrot.slane %v8003, 7
  %v8558 = vrot.slane %v8004, 7
  %v8559 = vrot.slane %v8005, 7
  %v8560 = vrot.slane %v8006, 7
  %v8561 = vrot.slane %v8007, 7
  %v8570 = vmul.f32 %v8498, %v8554
  %v8571 = vmul.f32 %v8499, %v8555
  %v8572 = vmul.f32 %v8500, %v8556
  %v8573 = vmul.f32 %v8501, %v8557
  %v8574 = vmul.f32 %v8502, %v8558
  %v8575 = vmul.f32 %v8503, %v8559
  %v8576 = vmul.f32 %v8504, %v8560
  %v8577 = vmul.f32 %v8505, %v8561
  %v8578 = vmul.f32 %v8466, %v8538
  %v8579 = vmul.f32 %v8467, %v8539
  %v8580 = vmul.f32 %v8468, %v8540
  %v8581 = vmul.f32 %v8469, %v8541
  %v8582 = vmul.f32 %v8470, %v8542
  %v8583 = vmul.f32 %v8471, %v8543
  %v8584 = vmul.f32 %v8472, %v8544
  %v8585 = vmul.f32 %v8473, %v8545
  %v8586 = vadd.f32 %v8570, %v8578
  %v8587 = vadd.f32 %v8571, %v8579
  %v8588 = vadd.f32 %v8572, %v8580
  %v8589 = vadd.f32 %v8573, %v8581
  %v8590 = vadd.f32 %v8574, %v8582
  %v8591 = vadd.f32 %v8575, %v8583
  %v8592 = vadd.f32 %v8576, %v8584
  %v8593 = vadd.f32 %v8577, %v8585
  %v8594 = vtanh.pop %v8586
  %v8595 = vtanh.pop %v8587
  %v8596 = vtanh.pop %v8588
  %v8597 = vtanh.pop %v8589
  %v8598 = vtanh.pop %v8590
  %v8599 = vtanh.pop %v8591
  %v8600 = vtanh.pop %v8592
  %v8601 = vtanh.pop %v8593
  %v8602 = vmul.f32 %v8530, %v8594
  %v8603 = vmul.f32 %v8531, %v8595
  %v8604 = vmul.f32 %v8532, %v8596
  %v8605 = vmul.f32 %v8533, %v8597
  %v8606 = vmul.f32 %v8534, %v8598
  %v8607 = vmul.f32 %v8535, %v8599
  %v8608 = vmul.f32 %v8536, %v8600
  %v8609 = vmul.f32 %v8537, %v8601
  %8610 = vst [vmem:[%s6 + $0x8] sm:$0x20] %v8602
  %8611 = vst [vmem:[%s6 + $0x18] sm:$0x20] %v8603
  %8612 = vst [vmem:[%s6 + $0x28] sm:$0x20] %v8604
  %8613 = vst [vmem:[%s6 + $0x38] sm:$0x20] %v8605
  %8614 = vst [vmem:[%s6 + $0x48] sm:$0x20] %v8606
  %8615 = vst [vmem:[%s6 + $0x58] sm:$0x20] %v8607
  %8616 = vst [vmem:[%s6 + $0x68] sm:$0x20] %v8608
  %8617 = vst [vmem:[%s6 + $0x78] sm:$0x20] %v8609
  %v8618 = vpack.c.bf16 %v8602, %v8602
  %v8619 = vpack.c.bf16 %v8603, %v8603
  %v8620 = vpack.c.bf16 %v8604, %v8604
  %v8621 = vpack.c.bf16 %v8605, %v8605
  %v8622 = vpack.c.bf16 %v8606, %v8606
  %v8623 = vpack.c.bf16 %v8607, %v8607
  %v8624 = vpack.c.bf16 %v8608, %v8608
  %v8625 = vpack.c.bf16 %v8609, %v8609
  %v8626 = vld [vmem:[%s2] sm:$0xff]
  %v8627 = vld [vmem:[%s2 + $0x8] sm:$0xff]
  %v8628 = vld [vmem:[%s2 + $0x10] sm:$0xff]
  %v8629 = vld [vmem:[%s2 + $0x18] sm:$0xff]
  %v8630 = vld [vmem:[%s2 + $0x20] sm:$0xff]
  %v8631 = vld [vmem:[%s2 + $0x28] sm:$0xff]
  %v8632 = vld [vmem:[%s2 + $0x30] sm:$0xff]
  %v8633 = vld [vmem:[%s2 + $0x38] sm:$0xff]
  %v8634 = vld [vmem:[%s2 + $0x40] sm:$0xff]
  %v8635 = vld [vmem:[%s2 + $0x48] sm:$0xff]
  %v8636 = vld [vmem:[%s2 + $0x50] sm:$0xff]
  %v8637 = vld [vmem:[%s2 + $0x58] sm:$0xff]
  %v8638 = vld [vmem:[%s2 + $0x60] sm:$0xff]
  %v8639 = vld [vmem:[%s2 + $0x68] sm:$0xff]
  %v8640 = vld [vmem:[%s2 + $0x70] sm:$0xff]
  %v8641 = vld [vmem:[%s2 + $0x78] sm:$0xff]
  %v8642 = vld [vmem:[%s2 + $0x80] sm:$0xff]
  %v8643 = vld [vmem:[%s2 + $0x88] sm:$0xff]
  %v8644 = vld [vmem:[%s2 + $0x90] sm:$0xff]
  %v8645 = vld [vmem:[%s2 + $0x98] sm:$0xff]
  %v8646 = vld [vmem:[%s2 + $0xa0] sm:$0xff]
  %v8647 = vld [vmem:[%s2 + $0xa8] sm:$0xff]
  %v8648 = vld [vmem:[%s2 + $0xb0] sm:$0xff]
  %v8649 = vld [vmem:[%s2 + $0xb8] sm:$0xff]
  %v8650 = vld [vmem:[%s2 + $0xc0] sm:$0xff]
  %v8651 = vld [vmem:[%s2 + $0xc8] sm:$0xff]
  %v8652 = vld [vmem:[%s2 + $0xd0] sm:$0xff]
  %v8653 = vld [vmem:[%s2 + $0xd8] sm:$0xff]
  %v8654 = vld [vmem:[%s2 + $0xe0] sm:$0xff]
  %v8655 = vld [vmem:[%s2 + $0xe8] sm:$0xff]
  %v8656 = vld [vmem:[%s2 + $0xf0] sm:$0xff]
  %v8657 = vld [vmem:[%s2 + $0xf8] sm:$0xff]
  %v8666 = vunpack.c.l.b16 %v8618
  %v8667 = vunpack.c.l.b16 %v8619
  %v8668 = vunpack.c.l.b16 %v8620
  %v8669 = vunpack.c.l.b16 %v8621
  %v8670 = vunpack.c.l.b16 %v8622
  %v8671 = vunpack.c.l.b16 %v8623
  %v8672 = vunpack.c.l.b16 %v8624
  %v8673 = vunpack.c.l.b16 %v8625
  %v8674 = vrot.slane %v8666, 5
  %v8675 = vrot.slane %v8667, 4
  %v8676 = vsel %vm1050, %v8675, %v8674
  %v8677 = vrot.slane %v8668, 3
  %v8678 = vsel %vm1053, %v8677, %v8676
  %v8679 = vrot.slane %v8669, 2
  %v8680 = vsel %vm1056, %v8679, %v8678
  %v8681 = vrot.slane %v8670, 1
  %v8682 = vsel %vm1059, %v8681, %v8680
  %v8683 = vsel %vm1062, %v8671, %v8682
  %v8684 = vrot.slane %v8672, 7
  %v8685 = vsel %vm1065, %v8684, %v8683
  %v8686 = vrot.slane %v8673, 6
  %v8687 = vsel %vm1068, %v8686, %v8685
  %v8688 = vpack.c.b16 %v8687, %v8687
  %v8722 = vunpack.c.l.b16 %v8626
  %v8723 = vunpack.c.h.b16 %v8626
  %v8724 = vunpack.c.l.b16 %v8627
  %v8725 = vunpack.c.h.b16 %v8627
  %v8726 = vunpack.c.l.b16 %v8628
  %v8727 = vunpack.c.h.b16 %v8628
  %v8728 = vunpack.c.l.b16 %v8629
  %v8729 = vunpack.c.h.b16 %v8629
  %v8730 = vunpack.c.l.b16 %v8630
  %v8731 = vunpack.c.h.b16 %v8630
  %v8732 = vunpack.c.l.b16 %v8631
  %v8733 = vunpack.c.h.b16 %v8631
  %v8734 = vunpack.c.l.b16 %v8632
  %v8735 = vunpack.c.h.b16 %v8632
  %v8736 = vunpack.c.l.b16 %v8633
  %v8737 = vunpack.c.h.b16 %v8633
  %v8738 = vunpack.c.l.b16 %v8634
  %v8739 = vunpack.c.h.b16 %v8634
  %v8740 = vunpack.c.l.b16 %v8635
  %v8741 = vunpack.c.h.b16 %v8635
  %v8742 = vunpack.c.l.b16 %v8636
  %v8743 = vunpack.c.h.b16 %v8636
  %v8744 = vunpack.c.l.b16 %v8637
  %v8745 = vunpack.c.h.b16 %v8637
  %v8746 = vunpack.c.l.b16 %v8638
  %v8747 = vunpack.c.h.b16 %v8638
  %v8748 = vunpack.c.l.b16 %v8639
  %v8749 = vunpack.c.h.b16 %v8639
  %v8750 = vunpack.c.l.b16 %v8640
  %v8751 = vunpack.c.h.b16 %v8640
  %v8752 = vunpack.c.l.b16 %v8641
  %v8753 = vunpack.c.h.b16 %v8641
  %v8754 = vunpack.c.l.b16 %v8642
  %v8755 = vunpack.c.h.b16 %v8642
  %v8756 = vunpack.c.l.b16 %v8643
  %v8757 = vunpack.c.h.b16 %v8643
  %v8758 = vunpack.c.l.b16 %v8644
  %v8759 = vunpack.c.h.b16 %v8644
  %v8760 = vunpack.c.l.b16 %v8645
  %v8761 = vunpack.c.h.b16 %v8645
  %v8762 = vunpack.c.l.b16 %v8646
  %v8763 = vunpack.c.h.b16 %v8646
  %v8764 = vunpack.c.l.b16 %v8647
  %v8765 = vunpack.c.h.b16 %v8647
  %v8766 = vunpack.c.l.b16 %v8648
  %v8767 = vunpack.c.h.b16 %v8648
  %v8768 = vunpack.c.l.b16 %v8649
  %v8769 = vunpack.c.h.b16 %v8649
  %v8770 = vunpack.c.l.b16 %v8650
  %v8771 = vunpack.c.h.b16 %v8650
  %v8772 = vunpack.c.l.b16 %v8651
  %v8773 = vunpack.c.h.b16 %v8651
  %v8774 = vunpack.c.l.b16 %v8652
  %v8775 = vunpack.c.h.b16 %v8652
  %v8776 = vunpack.c.l.b16 %v8653
  %v8777 = vunpack.c.h.b16 %v8653
  %v8778 = vunpack.c.l.b16 %v8654
  %v8779 = vunpack.c.h.b16 %v8654
  %v8780 = vunpack.c.l.b16 %v8655
  %v8781 = vunpack.c.h.b16 %v8655
  %v8782 = vunpack.c.l.b16 %v8656
  %v8783 = vunpack.c.h.b16 %v8656
  %v8784 = vunpack.c.l.b16 %v8657
  %v8785 = vunpack.c.h.b16 %v8657
  %v8786 = vpack.c.b16 %v8726, %v8722
  %v8787 = vpack.c.b16 %v8727, %v8723
  %v8788 = vpack.c.b16 %v8728, %v8724
  %v8789 = vpack.c.b16 %v8729, %v8725
  %v8790 = vpack.c.b16 %v8734, %v8730
  %v8791 = vpack.c.b16 %v8735, %v8731
  %v8792 = vpack.c.b16 %v8736, %v8732
  %v8793 = vpack.c.b16 %v8737, %v8733
  %v8794 = vpack.c.b16 %v8742, %v8738
  %v8795 = vpack.c.b16 %v8743, %v8739
  %v8796 = vpack.c.b16 %v8744, %v8740
  %v8797 = vpack.c.b16 %v8745, %v8741
  %v8798 = vpack.c.b16 %v8750, %v8746
  %v8799 = vpack.c.b16 %v8751, %v8747
  %v8800 = vpack.c.b16 %v8752, %v8748
  %v8801 = vpack.c.b16 %v8753, %v8749
  %v8802 = vpack.c.b16 %v8758, %v8754
  %v8803 = vpack.c.b16 %v8759, %v8755
  %v8804 = vpack.c.b16 %v8760, %v8756
  %v8805 = vpack.c.b16 %v8761, %v8757
  %v8806 = vpack.c.b16 %v8766, %v8762
  %v8807 = vpack.c.b16 %v8767, %v8763
  %v8808 = vpack.c.b16 %v8768, %v8764
  %v8809 = vpack.c.b16 %v8769, %v8765
  %v8810 = vpack.c.b16 %v8774, %v8770
  %v8811 = vpack.c.b16 %v8775, %v8771
  %v8812 = vpack.c.b16 %v8776, %v8772
  %v8813 = vpack.c.b16 %v8777, %v8773
  %v8814 = vpack.c.b16 %v8782, %v8778
  %v8815 = vpack.c.b16 %v8783, %v8779
  %v8816 = vpack.c.b16 %v8784, %v8780
  %v8817 = vpack.c.b16 %v8785, %v8781
  %8850 = vmatprep.subr.bf16.mxu0 %v8815
  %8851 = vmatpush1.bf16.msra.mxu0 %v8814
  %8852 = vmatprep.subr.bf16.mxu0 %v8811
  %8853 = vmatpush1.bf16.msra.mxu0 %v8810
  %8854 = vmatprep.subr.bf16.mxu0 %v8807
  %8855 = vmatpush1.bf16.msra.mxu0 %v8806
  %8856 = vmatprep.subr.bf16.mxu0 %v8803
  %8857 = vmatpush1.bf16.msra.mxu0 %v8802
  %8858 = vmatprep.subr.bf16.mxu0 %v8799
  %8859 = vmatpush1.bf16.msra.mxu0 %v8798
  %8860 = vmatprep.subr.bf16.mxu0 %v8795
  %8861 = vmatpush1.bf16.msra.mxu0 %v8794
  %8862 = vmatprep.subr.bf16.mxu0 %v8791
  %8863 = vmatpush1.bf16.msra.mxu0 %v8790
  %8864 = vmatprep.subr.bf16.mxu0 %v8787
  %8865 = vmatpush1.bf16.msra.mxu0 %v8786
  %8866 = vmatprep.subr.bf16.mxu0 0
  %8867 = vmatpush2.bf16.msra.mxu0 0
  %8868 = vmatprep.subr.bf16.mxu0 0
  %8869 = vmatpush2.bf16.msra.mxu0 0
  %8870 = vmatprep.subr.bf16.mxu0 0
  %8871 = vmatpush2.bf16.msra.mxu0 0
  %8872 = vmatprep.subr.bf16.mxu0 0
  %8873 = vmatpush2.bf16.msra.mxu0 0
  %8874 = vmatprep.subr.bf16.mxu0 0
  %8875 = vmatpush2.bf16.msra.mxu0 0
  %8876 = vmatprep.subr.bf16.mxu0 0
  %8877 = vmatpush2.bf16.msra.mxu0 0
  %8878 = vmatprep.subr.bf16.mxu0 0
  %8879 = vmatpush2.bf16.msra.mxu0 0
  %8880 = vmatprep.subr.bf16.mxu0 0
  %8881 = vmatpush2.bf16.msra.mxu0 0
  %8882 = vmatprep.mubr.bf16.mxu0 0
  %8883 = vmatmul.mubr.bf16.gmra.mxu0 %v8688
  %v8884 = vpop.f32.mrf.mxu0
  %v8885 = vadd.f32 0.0, %v8884
  %v8886 = vpop.f32.mrf.mxu0
  %v8887 = vadd.f32 0.0, %v8886
  %v8888 = vpop.f32.mrf.mxu0
  %v8889 = vpop.f32.mrf.mxu0
  %8890 = vdwg.mxu0
  %8891 = vmatprep.subr.bf16.mxu0 %v8817
  %8892 = vmatpush1.bf16.msra.mxu0 %v8816
  %8893 = vmatprep.subr.bf16.mxu0 %v8813
  %8894 = vmatpush1.bf16.msra.mxu0 %v8812
  %8895 = vmatprep.subr.bf16.mxu0 %v8809
  %8896 = vmatpush1.bf16.msra.mxu0 %v8808
  %8897 = vmatprep.subr.bf16.mxu0 %v8805
  %8898 = vmatpush1.bf16.msra.mxu0 %v8804
  %8899 = vmatprep.subr.bf16.mxu0 %v8801
  %8900 = vmatpush1.bf16.msra.mxu0 %v8800
  %8901 = vmatprep.subr.bf16.mxu0 %v8797
  %8902 = vmatpush1.bf16.msra.mxu0 %v8796
  %8903 = vmatprep.subr.bf16.mxu0 %v8793
  %8904 = vmatpush1.bf16.msra.mxu0 %v8792
  %8905 = vmatprep.subr.bf16.mxu0 %v8789
  %8906 = vmatpush1.bf16.msra.mxu0 %v8788
  %8907 = vmatprep.subr.bf16.mxu0 0
  %8908 = vmatpush2.bf16.msra.mxu0 0
  %8909 = vmatprep.subr.bf16.mxu0 0
  %8910 = vmatpush2.bf16.msra.mxu0 0
  %8911 = vmatprep.subr.bf16.mxu0 0
  %8912 = vmatpush2.bf16.msra.mxu0 0
  %8913 = vmatprep.subr.bf16.mxu0 0
  %8914 = vmatpush2.bf16.msra.mxu0 0
  %8915 = vmatprep.subr.bf16.mxu0 0
  %8916 = vmatpush2.bf16.msra.mxu0 0
  %8917 = vmatprep.subr.bf16.mxu0 0
  %8918 = vmatpush2.bf16.msra.mxu0 0
  %8919 = vmatprep.subr.bf16.mxu0 0
  %8920 = vmatpush2.bf16.msra.mxu0 0
  %8921 = vmatprep.subr.bf16.mxu0 0
  %8922 = vmatpush2.bf16.msra.mxu0 0
  %8923 = vmatprep.mubr.bf16.mxu0 0
  %8924 = vmatmul.mubr.bf16.gmra.mxu0 %v8688
  %v8925 = vpop.f32.mrf.mxu0
  %v8926 = vadd.f32 0.0, %v8925
  %v8927 = vpop.f32.mrf.mxu0
  %v8928 = vadd.f32 0.0, %v8927
  %v8929 = vpop.f32.mrf.mxu0
  %v8930 = vpop.f32.mrf.mxu0
  %8931 = vdwg.mxu0
  %v8936 = vrot.slane %v8885, 2
  %v8937 = vrot.slane %v8887, 2
  %v8938 = vrot.slane %v8926, 2
  %v8939 = vrot.slane %v8928, 2
  %v8940 = vrot.slane %v8885, 3
  %v8941 = vrot.slane %v8887, 3
  %v8942 = vrot.slane %v8926, 3
  %v8943 = vrot.slane %v8928, 3
  %v8944 = vrot.slane %v8885, 4
  %v8945 = vrot.slane %v8887, 4
  %v8946 = vrot.slane %v8926, 4
  %v8947 = vrot.slane %v8928, 4
  %v8948 = vrot.slane %v8885, 5
  %v8949 = vrot.slane %v8887, 5
  %v8950 = vrot.slane %v8926, 5
  %v8951 = vrot.slane %v8928, 5
  %v8952 = vrot.slane %v8885, 6
  %v8953 = vrot.slane %v8887, 6
  %v8954 = vrot.slane %v8926, 6
  %v8955 = vrot.slane %v8928, 6
  %v8956 = vrot.slane %v8885, 7
  %v8957 = vrot.slane %v8887, 7
  %v8958 = vrot.slane %v8926, 7
  %v8959 = vrot.slane %v8928, 7
  %v8960 = vrot.slane %v8885, 1
  %v8961 = vrot.slane %v8887, 1
  %v8962 = vrot.slane %v8926, 1
  %v8963 = vrot.slane %v8928, 1
  %v8996 = vadd.f32 %v392, %v8936
  %v8997 = vadd.f32 %v393, %v8937
  %v8998 = vadd.f32 %v394, %v8938
  %v8999 = vadd.f32 %v395, %v8939
  %v9000 = vadd.f32 %v400, %v8940
  %v9001 = vadd.f32 %v401, %v8941
  %v9002 = vadd.f32 %v402, %v8942
  %v9003 = vadd.f32 %v403, %v8943
  %v9004 = vadd.f32 %v408, %v8944
  %v9005 = vadd.f32 %v409, %v8945
  %v9006 = vadd.f32 %v410, %v8946
  %v9007 = vadd.f32 %v411, %v8947
  %v9008 = vadd.f32 %v416, %v8948
  %v9009 = vadd.f32 %v417, %v8949
  %v9010 = vadd.f32 %v418, %v8950
  %v9011 = vadd.f32 %v419, %v8951
  %v9012 = vadd.f32 %v424, %v8952
  %v9013 = vadd.f32 %v425, %v8953
  %v9014 = vadd.f32 %v426, %v8954
  %v9015 = vadd.f32 %v427, %v8955
  %v9016 = vadd.f32 %v432, %v8956
  %v9017 = vadd.f32 %v433, %v8957
  %v9018 = vadd.f32 %v434, %v8958
  %v9019 = vadd.f32 %v435, %v8959
  %v9020 = vadd.f32 %v440, %v8885
  %v9021 = vadd.f32 %v441, %v8887
  %v9022 = vadd.f32 %v442, %v8926
  %v9023 = vadd.f32 %v443, %v8928
  %v9024 = vadd.f32 %v448, %v8960
  %v9025 = vadd.f32 %v449, %v8961
  %v9026 = vadd.f32 %v450, %v8962
  %v9027 = vadd.f32 %v451, %v8963
  %v9028 = vmul.f32 %v8996, 0.5
  %v9029 = vmul.f32 %v9000, 0.5
  %v9030 = vmul.f32 %v9004, 0.5
  %v9031 = vmul.f32 %v9008, 0.5
  %v9032 = vmul.f32 %v9012, 0.5
  %v9033 = vmul.f32 %v9016, 0.5
  %v9034 = vmul.f32 %v9020, 0.5
  %v9035 = vmul.f32 %v9024, 0.5
  %v9036 = vtanh.pop %v9028
  %v9037 = vtanh.pop %v9029
  %v9038 = vtanh.pop %v9030
  %v9039 = vtanh.pop %v9031
  %v9040 = vtanh.pop %v9032
  %v9041 = vtanh.pop %v9033
  %v9042 = vtanh.pop %v9034
  %v9043 = vtanh.pop %v9035
  %v9044 = vmul.f32 %v9036, 0.5
  %v9045 = vmul.f32 %v9037, 0.5
  %v9046 = vmul.f32 %v9038, 0.5
  %v9047 = vmul.f32 %v9039, 0.5
  %v9048 = vmul.f32 %v9040, 0.5
  %v9049 = vmul.f32 %v9041, 0.5
  %v9050 = vmul.f32 %v9042, 0.5
  %v9051 = vmul.f32 %v9043, 0.5
  %v9052 = vadd.f32 %v9044, 0.5
  %v9053 = vadd.f32 %v9045, 0.5
  %v9054 = vadd.f32 %v9046, 0.5
  %v9055 = vadd.f32 %v9047, 0.5
  %v9056 = vadd.f32 %v9048, 0.5
  %v9057 = vadd.f32 %v9049, 0.5
  %v9058 = vadd.f32 %v9050, 0.5
  %v9059 = vadd.f32 %v9051, 0.5
  %v9060 = vmul.f32 %v8997, 0.5
  %v9061 = vmul.f32 %v9001, 0.5
  %v9062 = vmul.f32 %v9005, 0.5
  %v9063 = vmul.f32 %v9009, 0.5
  %v9064 = vmul.f32 %v9013, 0.5
  %v9065 = vmul.f32 %v9017, 0.5
  %v9066 = vmul.f32 %v9021, 0.5
  %v9067 = vmul.f32 %v9025, 0.5
  %v9068 = vtanh.pop %v9060
  %v9069 = vtanh.pop %v9061
  %v9070 = vtanh.pop %v9062
  %v9071 = vtanh.pop %v9063
  %v9072 = vtanh.pop %v9064
  %v9073 = vtanh.pop %v9065
  %v9074 = vtanh.pop %v9066
  %v9075 = vtanh.pop %v9067
  %v9076 = vmul.f32 %v9068, 0.5
  %v9077 = vmul.f32 %v9069, 0.5
  %v9078 = vmul.f32 %v9070, 0.5
  %v9079 = vmul.f32 %v9071, 0.5
  %v9080 = vmul.f32 %v9072, 0.5
  %v9081 = vmul.f32 %v9073, 0.5
  %v9082 = vmul.f32 %v9074, 0.5
  %v9083 = vmul.f32 %v9075, 0.5
  %v9084 = vadd.f32 %v9076, 0.5
  %v9085 = vadd.f32 %v9077, 0.5
  %v9086 = vadd.f32 %v9078, 0.5
  %v9087 = vadd.f32 %v9079, 0.5
  %v9088 = vadd.f32 %v9080, 0.5
  %v9089 = vadd.f32 %v9081, 0.5
  %v9090 = vadd.f32 %v9082, 0.5
  %v9091 = vadd.f32 %v9083, 0.5
  %v9092 = vmul.f32 %v8998, 0.5
  %v9093 = vmul.f32 %v9002, 0.5
  %v9094 = vmul.f32 %v9006, 0.5
  %v9095 = vmul.f32 %v9010, 0.5
  %v9096 = vmul.f32 %v9014, 0.5
  %v9097 = vmul.f32 %v9018, 0.5
  %v9098 = vmul.f32 %v9022, 0.5
  %v9099 = vmul.f32 %v9026, 0.5
  %v9100 = vtanh.pop %v9092
  %v9101 = vtanh.pop %v9093
  %v9102 = vtanh.pop %v9094
  %v9103 = vtanh.pop %v9095
  %v9104 = vtanh.pop %v9096
  %v9105 = vtanh.pop %v9097
  %v9106 = vtanh.pop %v9098
  %v9107 = vtanh.pop %v9099
  %v9108 = vmul.f32 %v9100, 0.5
  %v9109 = vmul.f32 %v9101, 0.5
  %v9110 = vmul.f32 %v9102, 0.5
  %v9111 = vmul.f32 %v9103, 0.5
  %v9112 = vmul.f32 %v9104, 0.5
  %v9113 = vmul.f32 %v9105, 0.5
  %v9114 = vmul.f32 %v9106, 0.5
  %v9115 = vmul.f32 %v9107, 0.5
  %v9116 = vadd.f32 %v9108, 0.5
  %v9117 = vadd.f32 %v9109, 0.5
  %v9118 = vadd.f32 %v9110, 0.5
  %v9119 = vadd.f32 %v9111, 0.5
  %v9120 = vadd.f32 %v9112, 0.5
  %v9121 = vadd.f32 %v9113, 0.5
  %v9122 = vadd.f32 %v9114, 0.5
  %v9123 = vadd.f32 %v9115, 0.5
  %v9124 = vtanh.pop %v8999
  %v9125 = vtanh.pop %v9003
  %v9126 = vtanh.pop %v9007
  %v9127 = vtanh.pop %v9011
  %v9128 = vtanh.pop %v9015
  %v9129 = vtanh.pop %v9019
  %v9130 = vtanh.pop %v9023
  %v9131 = vtanh.pop %v9027
  %v9140 = vrot.slane %v8586, 7
  %v9141 = vrot.slane %v8587, 7
  %v9142 = vrot.slane %v8588, 7
  %v9143 = vrot.slane %v8589, 7
  %v9144 = vrot.slane %v8590, 7
  %v9145 = vrot.slane %v8591, 7
  %v9146 = vrot.slane %v8592, 7
  %v9147 = vrot.slane %v8593, 7
  %v9156 = vmul.f32 %v9084, %v9140
  %v9157 = vmul.f32 %v9085, %v9141
  %v9158 = vmul.f32 %v9086, %v9142
  %v9159 = vmul.f32 %v9087, %v9143
  %v9160 = vmul.f32 %v9088, %v9144
  %v9161 = vmul.f32 %v9089, %v9145
  %v9162 = vmul.f32 %v9090, %v9146
  %v9163 = vmul.f32 %v9091, %v9147
  %v9164 = vmul.f32 %v9052, %v9124
  %v9165 = vmul.f32 %v9053, %v9125
  %v9166 = vmul.f32 %v9054, %v9126
  %v9167 = vmul.f32 %v9055, %v9127
  %v9168 = vmul.f32 %v9056, %v9128
  %v9169 = vmul.f32 %v9057, %v9129
  %v9170 = vmul.f32 %v9058, %v9130
  %v9171 = vmul.f32 %v9059, %v9131
  %v9172 = vadd.f32 %v9156, %v9164
  %v9173 = vadd.f32 %v9157, %v9165
  %v9174 = vadd.f32 %v9158, %v9166
  %v9175 = vadd.f32 %v9159, %v9167
  %v9176 = vadd.f32 %v9160, %v9168
  %v9177 = vadd.f32 %v9161, %v9169
  %v9178 = vadd.f32 %v9162, %v9170
  %v9179 = vadd.f32 %v9163, %v9171
  %v9180 = vtanh.pop %v9172
  %v9181 = vtanh.pop %v9173
  %v9182 = vtanh.pop %v9174
  %v9183 = vtanh.pop %v9175
  %v9184 = vtanh.pop %v9176
  %v9185 = vtanh.pop %v9177
  %v9186 = vtanh.pop %v9178
  %v9187 = vtanh.pop %v9179
  %v9188 = vmul.f32 %v9116, %v9180
  %v9189 = vmul.f32 %v9117, %v9181
  %v9190 = vmul.f32 %v9118, %v9182
  %v9191 = vmul.f32 %v9119, %v9183
  %v9192 = vmul.f32 %v9120, %v9184
  %v9193 = vmul.f32 %v9121, %v9185
  %v9194 = vmul.f32 %v9122, %v9186
  %v9195 = vmul.f32 %v9123, %v9187
  %9196 = vst [vmem:[%s6 + $0x8] sm:$0x40] %v9188
  %9197 = vst [vmem:[%s6 + $0x18] sm:$0x40] %v9189
  %9198 = vst [vmem:[%s6 + $0x28] sm:$0x40] %v9190
  %9199 = vst [vmem:[%s6 + $0x38] sm:$0x40] %v9191
  %9200 = vst [vmem:[%s6 + $0x48] sm:$0x40] %v9192
  %9201 = vst [vmem:[%s6 + $0x58] sm:$0x40] %v9193
  %9202 = vst [vmem:[%s6 + $0x68] sm:$0x40] %v9194
  %9203 = vst [vmem:[%s6 + $0x78] sm:$0x40] %v9195
  %v9204 = vpack.c.bf16 %v9188, %v9188
  %v9205 = vpack.c.bf16 %v9189, %v9189
  %v9206 = vpack.c.bf16 %v9190, %v9190
  %v9207 = vpack.c.bf16 %v9191, %v9191
  %v9208 = vpack.c.bf16 %v9192, %v9192
  %v9209 = vpack.c.bf16 %v9193, %v9193
  %v9210 = vpack.c.bf16 %v9194, %v9194
  %v9211 = vpack.c.bf16 %v9195, %v9195
  %v9212 = vld [vmem:[%s2] sm:$0xff]
  %v9213 = vld [vmem:[%s2 + $0x8] sm:$0xff]
  %v9214 = vld [vmem:[%s2 + $0x10] sm:$0xff]
  %v9215 = vld [vmem:[%s2 + $0x18] sm:$0xff]
  %v9216 = vld [vmem:[%s2 + $0x20] sm:$0xff]
  %v9217 = vld [vmem:[%s2 + $0x28] sm:$0xff]
  %v9218 = vld [vmem:[%s2 + $0x30] sm:$0xff]
  %v9219 = vld [vmem:[%s2 + $0x38] sm:$0xff]
  %v9220 = vld [vmem:[%s2 + $0x40] sm:$0xff]
  %v9221 = vld [vmem:[%s2 + $0x48] sm:$0xff]
  %v9222 = vld [vmem:[%s2 + $0x50] sm:$0xff]
  %v9223 = vld [vmem:[%s2 + $0x58] sm:$0xff]
  %v9224 = vld [vmem:[%s2 + $0x60] sm:$0xff]
  %v9225 = vld [vmem:[%s2 + $0x68] sm:$0xff]
  %v9226 = vld [vmem:[%s2 + $0x70] sm:$0xff]
  %v9227 = vld [vmem:[%s2 + $0x78] sm:$0xff]
  %v9228 = vld [vmem:[%s2 + $0x80] sm:$0xff]
  %v9229 = vld [vmem:[%s2 + $0x88] sm:$0xff]
  %v9230 = vld [vmem:[%s2 + $0x90] sm:$0xff]
  %v9231 = vld [vmem:[%s2 + $0x98] sm:$0xff]
  %v9232 = vld [vmem:[%s2 + $0xa0] sm:$0xff]
  %v9233 = vld [vmem:[%s2 + $0xa8] sm:$0xff]
  %v9234 = vld [vmem:[%s2 + $0xb0] sm:$0xff]
  %v9235 = vld [vmem:[%s2 + $0xb8] sm:$0xff]
  %v9236 = vld [vmem:[%s2 + $0xc0] sm:$0xff]
  %v9237 = vld [vmem:[%s2 + $0xc8] sm:$0xff]
  %v9238 = vld [vmem:[%s2 + $0xd0] sm:$0xff]
  %v9239 = vld [vmem:[%s2 + $0xd8] sm:$0xff]
  %v9240 = vld [vmem:[%s2 + $0xe0] sm:$0xff]
  %v9241 = vld [vmem:[%s2 + $0xe8] sm:$0xff]
  %v9242 = vld [vmem:[%s2 + $0xf0] sm:$0xff]
  %v9243 = vld [vmem:[%s2 + $0xf8] sm:$0xff]
  %v9252 = vunpack.c.l.b16 %v9204
  %v9253 = vunpack.c.l.b16 %v9205
  %v9254 = vunpack.c.l.b16 %v9206
  %v9255 = vunpack.c.l.b16 %v9207
  %v9256 = vunpack.c.l.b16 %v9208
  %v9257 = vunpack.c.l.b16 %v9209
  %v9258 = vunpack.c.l.b16 %v9210
  %v9259 = vunpack.c.l.b16 %v9211
  %v9260 = vrot.slane %v9252, 6
  %v9261 = vrot.slane %v9253, 5
  %v9262 = vsel %vm1050, %v9261, %v9260
  %v9263 = vrot.slane %v9254, 4
  %v9264 = vsel %vm1053, %v9263, %v9262
  %v9265 = vrot.slane %v9255, 3
  %v9266 = vsel %vm1056, %v9265, %v9264
  %v9267 = vrot.slane %v9256, 2
  %v9268 = vsel %vm1059, %v9267, %v9266
  %v9269 = vrot.slane %v9257, 1
  %v9270 = vsel %vm1062, %v9269, %v9268
  %v9271 = vsel %vm1065, %v9258, %v9270
  %v9272 = vrot.slane %v9259, 7
  %v9273 = vsel %vm1068, %v9272, %v9271
  %v9274 = vpack.c.b16 %v9273, %v9273
  %v9308 = vunpack.c.l.b16 %v9212
  %v9309 = vunpack.c.h.b16 %v9212
  %v9310 = vunpack.c.l.b16 %v9213
  %v9311 = vunpack.c.h.b16 %v9213
  %v9312 = vunpack.c.l.b16 %v9214
  %v9313 = vunpack.c.h.b16 %v9214
  %v9314 = vunpack.c.l.b16 %v9215
  %v9315 = vunpack.c.h.b16 %v9215
  %v9316 = vunpack.c.l.b16 %v9216
  %v9317 = vunpack.c.h.b16 %v9216
  %v9318 = vunpack.c.l.b16 %v9217
  %v9319 = vunpack.c.h.b16 %v9217
  %v9320 = vunpack.c.l.b16 %v9218
  %v9321 = vunpack.c.h.b16 %v9218
  %v9322 = vunpack.c.l.b16 %v9219
  %v9323 = vunpack.c.h.b16 %v9219
  %v9324 = vunpack.c.l.b16 %v9220
  %v9325 = vunpack.c.h.b16 %v9220
  %v9326 = vunpack.c.l.b16 %v9221
  %v9327 = vunpack.c.h.b16 %v9221
  %v9328 = vunpack.c.l.b16 %v9222
  %v9329 = vunpack.c.h.b16 %v9222
  %v9330 = vunpack.c.l.b16 %v9223
  %v9331 = vunpack.c.h.b16 %v9223
  %v9332 = vunpack.c.l.b16 %v9224
  %v9333 = vunpack.c.h.b16 %v9224
  %v9334 = vunpack.c.l.b16 %v9225
  %v9335 = vunpack.c.h.b16 %v9225
  %v9336 = vunpack.c.l.b16 %v9226
  %v9337 = vunpack.c.h.b16 %v9226
  %v9338 = vunpack.c.l.b16 %v9227
  %v9339 = vunpack.c.h.b16 %v9227
  %v9340 = vunpack.c.l.b16 %v9228
  %v9341 = vunpack.c.h.b16 %v9228
  %v9342 = vunpack.c.l.b16 %v9229
  %v9343 = vunpack.c.h.b16 %v9229
  %v9344 = vunpack.c.l.b16 %v9230
  %v9345 = vunpack.c.h.b16 %v9230
  %v9346 = vunpack.c.l.b16 %v9231
  %v9347 = vunpack.c.h.b16 %v9231
  %v9348 = vunpack.c.l.b16 %v9232
  %v9349 = vunpack.c.h.b16 %v9232
  %v9350 = vunpack.c.l.b16 %v9233
  %v9351 = vunpack.c.h.b16 %v9233
  %v9352 = vunpack.c.l.b16 %v9234
  %v9353 = vunpack.c.h.b16 %v9234
  %v9354 = vunpack.c.l.b16 %v9235
  %v9355 = vunpack.c.h.b16 %v9235
  %v9356 = vunpack.c.l.b16 %v9236
  %v9357 = vunpack.c.h.b16 %v9236
  %v9358 = vunpack.c.l.b16 %v9237
  %v9359 = vunpack.c.h.b16 %v9237
  %v9360 = vunpack.c.l.b16 %v9238
  %v9361 = vunpack.c.h.b16 %v9238
  %v9362 = vunpack.c.l.b16 %v9239
  %v9363 = vunpack.c.h.b16 %v9239
  %v9364 = vunpack.c.l.b16 %v9240
  %v9365 = vunpack.c.h.b16 %v9240
  %v9366 = vunpack.c.l.b16 %v9241
  %v9367 = vunpack.c.h.b16 %v9241
  %v9368 = vunpack.c.l.b16 %v9242
  %v9369 = vunpack.c.h.b16 %v9242
  %v9370 = vunpack.c.l.b16 %v9243
  %v9371 = vunpack.c.h.b16 %v9243
  %v9372 = vpack.c.b16 %v9312, %v9308
  %v9373 = vpack.c.b16 %v9313, %v9309
  %v9374 = vpack.c.b16 %v9314, %v9310
  %v9375 = vpack.c.b16 %v9315, %v9311
  %v9376 = vpack.c.b16 %v9320, %v9316
  %v9377 = vpack.c.b16 %v9321, %v9317
  %v9378 = vpack.c.b16 %v9322, %v9318
  %v9379 = vpack.c.b16 %v9323, %v9319
  %v9380 = vpack.c.b16 %v9328, %v9324
  %v9381 = vpack.c.b16 %v9329, %v9325
  %v9382 = vpack.c.b16 %v9330, %v9326
  %v9383 = vpack.c.b16 %v9331, %v9327
  %v9384 = vpack.c.b16 %v9336, %v9332
  %v9385 = vpack.c.b16 %v9337, %v9333
  %v9386 = vpack.c.b16 %v9338, %v9334
  %v9387 = vpack.c.b16 %v9339, %v9335
  %v9388 = vpack.c.b16 %v9344, %v9340
  %v9389 = vpack.c.b16 %v9345, %v9341
  %v9390 = vpack.c.b16 %v9346, %v9342
  %v9391 = vpack.c.b16 %v9347, %v9343
  %v9392 = vpack.c.b16 %v9352, %v9348
  %v9393 = vpack.c.b16 %v9353, %v9349
  %v9394 = vpack.c.b16 %v9354, %v9350
  %v9395 = vpack.c.b16 %v9355, %v9351
  %v9396 = vpack.c.b16 %v9360, %v9356
  %v9397 = vpack.c.b16 %v9361, %v9357
  %v9398 = vpack.c.b16 %v9362, %v9358
  %v9399 = vpack.c.b16 %v9363, %v9359
  %v9400 = vpack.c.b16 %v9368, %v9364
  %v9401 = vpack.c.b16 %v9369, %v9365
  %v9402 = vpack.c.b16 %v9370, %v9366
  %v9403 = vpack.c.b16 %v9371, %v9367
  %9436 = vmatprep.subr.bf16.mxu0 %v9401
  %9437 = vmatpush1.bf16.msra.mxu0 %v9400
  %9438 = vmatprep.subr.bf16.mxu0 %v9397
  %9439 = vmatpush1.bf16.msra.mxu0 %v9396
  %9440 = vmatprep.subr.bf16.mxu0 %v9393
  %9441 = vmatpush1.bf16.msra.mxu0 %v9392
  %9442 = vmatprep.subr.bf16.mxu0 %v9389
  %9443 = vmatpush1.bf16.msra.mxu0 %v9388
  %9444 = vmatprep.subr.bf16.mxu0 %v9385
  %9445 = vmatpush1.bf16.msra.mxu0 %v9384
  %9446 = vmatprep.subr.bf16.mxu0 %v9381
  %9447 = vmatpush1.bf16.msra.mxu0 %v9380
  %9448 = vmatprep.subr.bf16.mxu0 %v9377
  %9449 = vmatpush1.bf16.msra.mxu0 %v9376
  %9450 = vmatprep.subr.bf16.mxu0 %v9373
  %9451 = vmatpush1.bf16.msra.mxu0 %v9372
  %9452 = vmatprep.subr.bf16.mxu0 0
  %9453 = vmatpush2.bf16.msra.mxu0 0
  %9454 = vmatprep.subr.bf16.mxu0 0
  %9455 = vmatpush2.bf16.msra.mxu0 0
  %9456 = vmatprep.subr.bf16.mxu0 0
  %9457 = vmatpush2.bf16.msra.mxu0 0
  %9458 = vmatprep.subr.bf16.mxu0 0
  %9459 = vmatpush2.bf16.msra.mxu0 0
  %9460 = vmatprep.subr.bf16.mxu0 0
  %9461 = vmatpush2.bf16.msra.mxu0 0
  %9462 = vmatprep.subr.bf16.mxu0 0
  %9463 = vmatpush2.bf16.msra.mxu0 0
  %9464 = vmatprep.subr.bf16.mxu0 0
  %9465 = vmatpush2.bf16.msra.mxu0 0
  %9466 = vmatprep.subr.bf16.mxu0 0
  %9467 = vmatpush2.bf16.msra.mxu0 0
  %9468 = vmatprep.mubr.bf16.mxu0 0
  %9469 = vmatmul.mubr.bf16.gmra.mxu0 %v9274
  %v9470 = vpop.f32.mrf.mxu0
  %v9471 = vadd.f32 0.0, %v9470
  %v9472 = vpop.f32.mrf.mxu0
  %v9473 = vadd.f32 0.0, %v9472
  %v9474 = vpop.f32.mrf.mxu0
  %v9475 = vpop.f32.mrf.mxu0
  %9476 = vdwg.mxu0
  %9477 = vmatprep.subr.bf16.mxu0 %v9403
  %9478 = vmatpush1.bf16.msra.mxu0 %v9402
  %9479 = vmatprep.subr.bf16.mxu0 %v9399
  %9480 = vmatpush1.bf16.msra.mxu0 %v9398
  %9481 = vmatprep.subr.bf16.mxu0 %v9395
  %9482 = vmatpush1.bf16.msra.mxu0 %v9394
  %9483 = vmatprep.subr.bf16.mxu0 %v9391
  %9484 = vmatpush1.bf16.msra.mxu0 %v9390
  %9485 = vmatprep.subr.bf16.mxu0 %v9387
  %9486 = vmatpush1.bf16.msra.mxu0 %v9386
  %9487 = vmatprep.subr.bf16.mxu0 %v9383
  %9488 = vmatpush1.bf16.msra.mxu0 %v9382
  %9489 = vmatprep.subr.bf16.mxu0 %v9379
  %9490 = vmatpush1.bf16.msra.mxu0 %v9378
  %9491 = vmatprep.subr.bf16.mxu0 %v9375
  %9492 = vmatpush1.bf16.msra.mxu0 %v9374
  %9493 = vmatprep.subr.bf16.mxu0 0
  %9494 = vmatpush2.bf16.msra.mxu0 0
  %9495 = vmatprep.subr.bf16.mxu0 0
  %9496 = vmatpush2.bf16.msra.mxu0 0
  %9497 = vmatprep.subr.bf16.mxu0 0
  %9498 = vmatpush2.bf16.msra.mxu0 0
  %9499 = vmatprep.subr.bf16.mxu0 0
  %9500 = vmatpush2.bf16.msra.mxu0 0
  %9501 = vmatprep.subr.bf16.mxu0 0
  %9502 = vmatpush2.bf16.msra.mxu0 0
  %9503 = vmatprep.subr.bf16.mxu0 0
  %9504 = vmatpush2.bf16.msra.mxu0 0
  %9505 = vmatprep.subr.bf16.mxu0 0
  %9506 = vmatpush2.bf16.msra.mxu0 0
  %9507 = vmatprep.subr.bf16.mxu0 0
  %9508 = vmatpush2.bf16.msra.mxu0 0
  %9509 = vmatprep.mubr.bf16.mxu0 0
  %9510 = vmatmul.mubr.bf16.gmra.mxu0 %v9274
  %v9511 = vpop.f32.mrf.mxu0
  %v9512 = vadd.f32 0.0, %v9511
  %v9513 = vpop.f32.mrf.mxu0
  %v9514 = vadd.f32 0.0, %v9513
  %v9515 = vpop.f32.mrf.mxu0
  %v9516 = vpop.f32.mrf.mxu0
  %9517 = vdwg.mxu0
  %v9522 = vrot.slane %v9471, 1
  %v9523 = vrot.slane %v9473, 1
  %v9524 = vrot.slane %v9512, 1
  %v9525 = vrot.slane %v9514, 1
  %v9526 = vrot.slane %v9471, 2
  %v9527 = vrot.slane %v9473, 2
  %v9528 = vrot.slane %v9512, 2
  %v9529 = vrot.slane %v9514, 2
  %v9530 = vrot.slane %v9471, 3
  %v9531 = vrot.slane %v9473, 3
  %v9532 = vrot.slane %v9512, 3
  %v9533 = vrot.slane %v9514, 3
  %v9534 = vrot.slane %v9471, 4
  %v9535 = vrot.slane %v9473, 4
  %v9536 = vrot.slane %v9512, 4
  %v9537 = vrot.slane %v9514, 4
  %v9538 = vrot.slane %v9471, 5
  %v9539 = vrot.slane %v9473, 5
  %v9540 = vrot.slane %v9512, 5
  %v9541 = vrot.slane %v9514, 5
  %v9542 = vrot.slane %v9471, 6
  %v9543 = vrot.slane %v9473, 6
  %v9544 = vrot.slane %v9512, 6
  %v9545 = vrot.slane %v9514, 6
  %v9546 = vrot.slane %v9471, 7
  %v9547 = vrot.slane %v9473, 7
  %v9548 = vrot.slane %v9512, 7
  %v9549 = vrot.slane %v9514, 7
  %v9582 = vadd.f32 %v392, %v9522
  %v9583 = vadd.f32 %v393, %v9523
  %v9584 = vadd.f32 %v394, %v9524
  %v9585 = vadd.f32 %v395, %v9525
  %v9586 = vadd.f32 %v400, %v9526
  %v9587 = vadd.f32 %v401, %v9527
  %v9588 = vadd.f32 %v402, %v9528
  %v9589 = vadd.f32 %v403, %v9529
  %v9590 = vadd.f32 %v408, %v9530
  %v9591 = vadd.f32 %v409, %v9531
  %v9592 = vadd.f32 %v410, %v9532
  %v9593 = vadd.f32 %v411, %v9533
  %v9594 = vadd.f32 %v416, %v9534
  %v9595 = vadd.f32 %v417, %v9535
  %v9596 = vadd.f32 %v418, %v9536
  %v9597 = vadd.f32 %v419, %v9537
  %v9598 = vadd.f32 %v424, %v9538
  %v9599 = vadd.f32 %v425, %v9539
  %v9600 = vadd.f32 %v426, %v9540
  %v9601 = vadd.f32 %v427, %v9541
  %v9602 = vadd.f32 %v432, %v9542
  %v9603 = vadd.f32 %v433, %v9543
  %v9604 = vadd.f32 %v434, %v9544
  %v9605 = vadd.f32 %v435, %v9545
  %v9606 = vadd.f32 %v440, %v9546
  %v9607 = vadd.f32 %v441, %v9547
  %v9608 = vadd.f32 %v442, %v9548
  %v9609 = vadd.f32 %v443, %v9549
  %v9610 = vadd.f32 %v448, %v9471
  %v9611 = vadd.f32 %v449, %v9473
  %v9612 = vadd.f32 %v450, %v9512
  %v9613 = vadd.f32 %v451, %v9514
  %v9614 = vmul.f32 %v9582, 0.5
  %v9615 = vmul.f32 %v9586, 0.5
  %v9616 = vmul.f32 %v9590, 0.5
  %v9617 = vmul.f32 %v9594, 0.5
  %v9618 = vmul.f32 %v9598, 0.5
  %v9619 = vmul.f32 %v9602, 0.5
  %v9620 = vmul.f32 %v9606, 0.5
  %v9621 = vmul.f32 %v9610, 0.5
  %v9622 = vtanh.pop %v9614
  %v9623 = vtanh.pop %v9615
  %v9624 = vtanh.pop %v9616
  %v9625 = vtanh.pop %v9617
  %v9626 = vtanh.pop %v9618
  %v9627 = vtanh.pop %v9619
  %v9628 = vtanh.pop %v9620
  %v9629 = vtanh.pop %v9621
  %v9630 = vmul.f32 %v9622, 0.5
  %v9631 = vmul.f32 %v9623, 0.5
  %v9632 = vmul.f32 %v9624, 0.5
  %v9633 = vmul.f32 %v9625, 0.5
  %v9634 = vmul.f32 %v9626, 0.5
  %v9635 = vmul.f32 %v9627, 0.5
  %v9636 = vmul.f32 %v9628, 0.5
  %v9637 = vmul.f32 %v9629, 0.5
  %v9638 = vadd.f32 %v9630, 0.5
  %v9639 = vadd.f32 %v9631, 0.5
  %v9640 = vadd.f32 %v9632, 0.5
  %v9641 = vadd.f32 %v9633, 0.5
  %v9642 = vadd.f32 %v9634, 0.5
  %v9643 = vadd.f32 %v9635, 0.5
  %v9644 = vadd.f32 %v9636, 0.5
  %v9645 = vadd.f32 %v9637, 0.5
  %v9646 = vmul.f32 %v9583, 0.5
  %v9647 = vmul.f32 %v9587, 0.5
  %v9648 = vmul.f32 %v9591, 0.5
  %v9649 = vmul.f32 %v9595, 0.5
  %v9650 = vmul.f32 %v9599, 0.5
  %v9651 = vmul.f32 %v9603, 0.5
  %v9652 = vmul.f32 %v9607, 0.5
  %v9653 = vmul.f32 %v9611, 0.5
  %v9654 = vtanh.pop %v9646
  %v9655 = vtanh.pop %v9647
  %v9656 = vtanh.pop %v9648
  %v9657 = vtanh.pop %v9649
  %v9658 = vtanh.pop %v9650
  %v9659 = vtanh.pop %v9651
  %v9660 = vtanh.pop %v9652
  %v9661 = vtanh.pop %v9653
  %v9662 = vmul.f32 %v9654, 0.5
  %v9663 = vmul.f32 %v9655, 0.5
  %v9664 = vmul.f32 %v9656, 0.5
  %v9665 = vmul.f32 %v9657, 0.5
  %v9666 = vmul.f32 %v9658, 0.5
  %v9667 = vmul.f32 %v9659, 0.5
  %v9668 = vmul.f32 %v9660, 0.5
  %v9669 = vmul.f32 %v9661, 0.5
  %v9670 = vadd.f32 %v9662, 0.5
  %v9671 = vadd.f32 %v9663, 0.5
  %v9672 = vadd.f32 %v9664, 0.5
  %v9673 = vadd.f32 %v9665, 0.5
  %v9674 = vadd.f32 %v9666, 0.5
  %v9675 = vadd.f32 %v9667, 0.5
  %v9676 = vadd.f32 %v9668, 0.5
  %v9677 = vadd.f32 %v9669, 0.5
  %v9678 = vmul.f32 %v9584, 0.5
  %v9679 = vmul.f32 %v9588, 0.5
  %v9680 = vmul.f32 %v9592, 0.5
  %v9681 = vmul.f32 %v9596, 0.5
  %v9682 = vmul.f32 %v9600, 0.5
  %v9683 = vmul.f32 %v9604, 0.5
  %v9684 = vmul.f32 %v9608, 0.5
  %v9685 = vmul.f32 %v9612, 0.5
  %v9686 = vtanh.pop %v9678
  %v9687 = vtanh.pop %v9679
  %v9688 = vtanh.pop %v9680
  %v9689 = vtanh.pop %v9681
  %v9690 = vtanh.pop %v9682
  %v9691 = vtanh.pop %v9683
  %v9692 = vtanh.pop %v9684
  %v9693 = vtanh.pop %v9685
  %v9694 = vmul.f32 %v9686, 0.5
  %v9695 = vmul.f32 %v9687, 0.5
  %v9696 = vmul.f32 %v9688, 0.5
  %v9697 = vmul.f32 %v9689, 0.5
  %v9698 = vmul.f32 %v9690, 0.5
  %v9699 = vmul.f32 %v9691, 0.5
  %v9700 = vmul.f32 %v9692, 0.5
  %v9701 = vmul.f32 %v9693, 0.5
  %v9702 = vadd.f32 %v9694, 0.5
  %v9703 = vadd.f32 %v9695, 0.5
  %v9704 = vadd.f32 %v9696, 0.5
  %v9705 = vadd.f32 %v9697, 0.5
  %v9706 = vadd.f32 %v9698, 0.5
  %v9707 = vadd.f32 %v9699, 0.5
  %v9708 = vadd.f32 %v9700, 0.5
  %v9709 = vadd.f32 %v9701, 0.5
  %v9710 = vtanh.pop %v9585
  %v9711 = vtanh.pop %v9589
  %v9712 = vtanh.pop %v9593
  %v9713 = vtanh.pop %v9597
  %v9714 = vtanh.pop %v9601
  %v9715 = vtanh.pop %v9605
  %v9716 = vtanh.pop %v9609
  %v9717 = vtanh.pop %v9613
  %v9726 = vrot.slane %v9172, 7
  %v9727 = vrot.slane %v9173, 7
  %v9728 = vrot.slane %v9174, 7
  %v9729 = vrot.slane %v9175, 7
  %v9730 = vrot.slane %v9176, 7
  %v9731 = vrot.slane %v9177, 7
  %v9732 = vrot.slane %v9178, 7
  %v9733 = vrot.slane %v9179, 7
  %v9742 = vmul.f32 %v9670, %v9726
  %v9743 = vmul.f32 %v9671, %v9727
  %v9744 = vmul.f32 %v9672, %v9728
  %v9745 = vmul.f32 %v9673, %v9729
  %v9746 = vmul.f32 %v9674, %v9730
  %v9747 = vmul.f32 %v9675, %v9731
  %v9748 = vmul.f32 %v9676, %v9732
  %v9749 = vmul.f32 %v9677, %v9733
  %v9750 = vmul.f32 %v9638, %v9710
  %v9751 = vmul.f32 %v9639, %v9711
  %v9752 = vmul.f32 %v9640, %v9712
  %v9753 = vmul.f32 %v9641, %v9713
  %v9754 = vmul.f32 %v9642, %v9714
  %v9755 = vmul.f32 %v9643, %v9715
  %v9756 = vmul.f32 %v9644, %v9716
  %v9757 = vmul.f32 %v9645, %v9717
  %v9758 = vadd.f32 %v9742, %v9750
  %v9759 = vadd.f32 %v9743, %v9751
  %v9760 = vadd.f32 %v9744, %v9752
  %v9761 = vadd.f32 %v9745, %v9753
  %v9762 = vadd.f32 %v9746, %v9754
  %v9763 = vadd.f32 %v9747, %v9755
  %v9764 = vadd.f32 %v9748, %v9756
  %v9765 = vadd.f32 %v9749, %v9757
  %v9766 = vtanh.pop %v9758
  %v9767 = vtanh.pop %v9759
  %v9768 = vtanh.pop %v9760
  %v9769 = vtanh.pop %v9761
  %v9770 = vtanh.pop %v9762
  %v9771 = vtanh.pop %v9763
  %v9772 = vtanh.pop %v9764
  %v9773 = vtanh.pop %v9765
  %v9774 = vmul.f32 %v9702, %v9766
  %v9775 = vmul.f32 %v9703, %v9767
  %v9776 = vmul.f32 %v9704, %v9768
  %v9777 = vmul.f32 %v9705, %v9769
  %v9778 = vmul.f32 %v9706, %v9770
  %v9779 = vmul.f32 %v9707, %v9771
  %v9780 = vmul.f32 %v9708, %v9772
  %v9781 = vmul.f32 %v9709, %v9773
  %9782 = vst [vmem:[%s6 + $0x8] sm:$0x80] %v9774
  %9783 = vst [vmem:[%s6 + $0x18] sm:$0x80] %v9775
  %9784 = vst [vmem:[%s6 + $0x28] sm:$0x80] %v9776
  %9785 = vst [vmem:[%s6 + $0x38] sm:$0x80] %v9777
  %9786 = vst [vmem:[%s6 + $0x48] sm:$0x80] %v9778
  %9787 = vst [vmem:[%s6 + $0x58] sm:$0x80] %v9779
  %9788 = vst [vmem:[%s6 + $0x68] sm:$0x80] %v9780
  %9789 = vst [vmem:[%s6 + $0x78] sm:$0x80] %v9781
  %v9798 = vrot.slane %v9775, 7
  %v9799 = vrot.slane %v9776, 6
  %v9800 = vsel %vm1050, %v9799, %v9798
  %v9801 = vrot.slane %v9777, 5
  %v9802 = vsel %vm1053, %v9801, %v9800
  %v9803 = vrot.slane %v9778, 4
  %v9804 = vsel %vm1056, %v9803, %v9802
  %v9805 = vrot.slane %v9779, 3
  %v9806 = vsel %vm1059, %v9805, %v9804
  %v9807 = vrot.slane %v9780, 2
  %v9808 = vsel %vm1062, %v9807, %v9806
  %v9809 = vrot.slane %v9781, 1
  %v9810 = vsel %vm1065, %v9809, %v9808
  %9813 = vst [vmem:[#allocation2 - $0x7] sm:$0x80] %v9774
  %9814 = vst [vmem:[#allocation2 + $0x1] sm:$0x7f] %v9810
  %v9823 = vrot.slane %v9759, 7
  %v9824 = vrot.slane %v9760, 6
  %v9825 = vsel %vm1050, %v9824, %v9823
  %v9826 = vrot.slane %v9761, 5
  %v9827 = vsel %vm1053, %v9826, %v9825
  %v9828 = vrot.slane %v9762, 4
  %v9829 = vsel %vm1056, %v9828, %v9827
  %v9830 = vrot.slane %v9763, 3
  %v9831 = vsel %vm1059, %v9830, %v9829
  %v9832 = vrot.slane %v9764, 2
  %v9833 = vsel %vm1062, %v9832, %v9831
  %v9834 = vrot.slane %v9765, 1
  %v9835 = vsel %vm1065, %v9834, %v9833
  %9838 = vst [vmem:[#allocation3 - $0x7] sm:$0x80] %v9758
  %9839 = vst [vmem:[#allocation3 + $0x1] sm:$0x7f] %v9835
  // Predicated region
  $region30: #{peephole_lstm_forward.1} parent=0 // pred_check
    %p9840 = pneg %p27
  $region31: #{peephole_lstm_forward.1} parent=0 // pred_check_branch
    %9842 = sbr.rel (%p9840) target = $region33
  $region32: #{peephole_lstm_forward.1} parent=0 // pred_region
    %9843 = vst [vmem:[%s7 - $0x7] sm:$0x80] %v9774
    %9844 = vst [vmem:[%s7 + $0x1] sm:$0x7f] %v9810
    %9845 = vst [vmem:[%s8 - $0x7] sm:$0x80] %v9758
    %9846 = vst [vmem:[%s8 + $0x1] sm:$0x7f] %v9835
  $region33: #{peephole_lstm_forward.1} parent=0 // pred_fallthru
    _
  // Predicated region
  $region34: #{peephole_lstm_forward.1} parent=0 // pred_check
    _
  $region35: #{peephole_lstm_forward.1} parent=0 // pred_check_branch
    %9848 = sbr.rel (0) target = $region37
  $region36: #{peephole_lstm_forward.1} parent=0 // pred_region
    _
  $region37: #{peephole_lstm_forward.1} parent=0 // pred_fallthru
    _
  // Predicated region
  $region38: #{peephole_lstm_forward.1} parent=0 // pred_check
    _
  $region39: #{peephole_lstm_forward.1} parent=0 // pred_check_branch
    %9850 = sbr.rel (0) target = $region41
  $region40: #{peephole_lstm_forward.1} parent=0 // pred_region
    _
  $region41: #{peephole_lstm_forward.1} parent=0 // pred_fallthru
    _
  // Predicated region
  $region42: #{peephole_lstm_forward.1} parent=0 // pred_check
    _
  $region43: #{peephole_lstm_forward.1} parent=0 // pred_check_branch
    %9852 = sbr.rel (0) target = $region45
  $region44: #{peephole_lstm_forward.1} parent=0 // pred_region
    _
  $region45: #{peephole_lstm_forward.1} parent=0 // pred_fallthru
    _
  // Predicated region
  $region46: #{peephole_lstm_forward.1} parent=0 // pred_check
    _
  $region47: #{peephole_lstm_forward.1} parent=0 // pred_check_branch
    %9854 = sbr.rel (0) target = $region49
  $region48: #{peephole_lstm_forward.1} parent=0 // pred_region
    _
  $region49: #{peephole_lstm_forward.1} parent=0 // pred_fallthru
    _
  // Predicated region
  $region50: #{peephole_lstm_forward.1} parent=0 // pred_check
    _
  $region51: #{peephole_lstm_forward.1} parent=0 // pred_check_branch
    %9856 = sbr.rel (0) target = $region53
  $region52: #{peephole_lstm_forward.1} parent=0 // pred_region
    _
  $region53: #{peephole_lstm_forward.1} parent=0 // pred_fallthru
    _
  // Predicated region
  $region54: #{peephole_lstm_forward.1} parent=0 // pred_check
    _
  $region55: #{peephole_lstm_forward.1} parent=0 // pred_check_branch
    %9858 = sbr.rel (0) target = $region57
  $region56: #{peephole_lstm_forward.1} parent=0 // pred_region
    _
  $region57: #{peephole_lstm_forward.1} parent=0 // pred_fallthru
    _

</llo_original>
